<compile_context>
chip_gen: v6e
topology: v6e:2x2x1
jax: 0.10.0
libtpu: 0.0.40
codegen_flags: <defaults>
</compile_context>

<pallas_src>
import jax
import jax.numpy as jnp
from jax.experimental import pallas as pl
from jax.experimental.pallas import tpu as pltpu

BN_EPS = 1e-5      # nn.BatchNorm1d default eps
NORM_EPS = 1e-12   # F.normalize default eps


# ---------------------------------------------------------------------------
# Fused kernel: encoder -> adapter (3 layers, BN, ReLU) -> cosine loss
# Grid: (HIDDEN // TN,) over the hidden columns of layer 2 (= K rows of layer 3).
# ---------------------------------------------------------------------------
def fused_cos_adapter_kernel(
        x_ref, we_ref, benc_ref,                       # encoder
        w1_ref, b1_ref, g1_ref, be1_ref,               # adapter layer 1 + BN1
        w2_ref, b2_ref, g2_ref, be2_ref,               # adapter layer 2 tile + BN2 tile
        w3_ref, b3_ref,                                # adapter layer 3 tile + bias
        loss_ref,                                      # (1,1) scalar loss in SMEM
        enc_s, h1_s, acc_s):                           # VMEM scratch
    n = pl.program_id(0)

    @pl.when(n == 0)
    def _init():
        # --- synthetic encoder: flattened image @ W + b (shared by both branches) ---
        enc = (jnp.dot(x_ref[...], we_ref[...], preferred_element_type=jnp.float32)
               + benc_ref[...])
        enc_s[...] = enc
        # --- adapter layer 1: Linear -> BatchNorm1d(batch stats) -> ReLU (full width) ---
        h = (jnp.dot(enc.astype(jnp.bfloat16), w1_ref[...],
                     preferred_element_type=jnp.float32) + b1_ref[...])
        mu = jnp.mean(h, axis=0, keepdims=True)
        var = jnp.mean((h - mu) ** 2, axis=0, keepdims=True)
        h = g1_ref[...] * (h - mu) * jax.lax.rsqrt(var + BN_EPS) + be1_ref[...]
        h1_s[...] = jnp.maximum(h, 0.0).astype(jnp.bfloat16)
        acc_s[...] = jnp.zeros_like(acc_s)

    # --- adapter layer 2 (this hidden-column tile): Linear -> BN -> ReLU ---
    # BatchNorm1d normalizes each feature independently over the batch, so tiling the
    # feature (column) axis is exact.
    h2 = (jnp.dot(h1_s[...], w2_ref[...], preferred_element_type=jnp.float32)
          + b2_ref[...])
    mu2 = jnp.mean(h2, axis=0, keepdims=True)
    var2 = jnp.mean((h2 - mu2) ** 2, axis=0, keepdims=True)
    h2 = g2_ref[...] * (h2 - mu2) * jax.lax.rsqrt(var2 + BN_EPS) + be2_ref[...]
    h2 = jnp.maximum(h2, 0.0)

    # --- adapter layer 3: accumulate this K-slice of the final Linear ---
    acc_s[...] += jnp.dot(h2.astype(jnp.bfloat16), w3_ref[...],
                          preferred_element_type=jnp.float32)

    @pl.when(n == pl.num_programs(0) - 1)
    def _finish():
        x1 = acc_s[...] + b3_ref[...]      # adapter(encoder(x))  (online branch)
        x2 = enc_s[...]                    # encoder(x)           (target branch)
        # cos(x1, x2) with F.normalize eps semantics: max(||x||, eps) == sqrt(max(s, eps^2))
        s1 = jnp.maximum(jnp.sum(x1 * x1, axis=-1, keepdims=True), NORM_EPS * NORM_EPS)
        s2 = jnp.maximum(jnp.sum(x2 * x2, axis=-1, keepdims=True), NORM_EPS * NORM_EPS)
        dot = jnp.sum(x1 * x2, axis=-1, keepdims=True)
        cos = dot * jax.lax.rsqrt(s1) * jax.lax.rsqrt(s2)
        loss_ref[0, 0] = jnp.mean(2.0 - 2.0 * cos)


# ---------------------------------------------------------------------------
# Wrapper (glue only: flattening, bf16 weight cast, BlockSpec plumbing)
# ---------------------------------------------------------------------------
def cos_adapter_forward(x_nchw, params, *, tn=1024):
    """Default-mode COS_ADAPTER.forward(x): returns scalar loss."""
    B = x_nchw.shape[0]
    x_flat = x_nchw.reshape(B, -1).astype(jnp.float32)   # NCHW flattened row-major
    IN = x_flat.shape[1]
    FEAT = params["w_enc"].shape[1]
    H = params["w1"].shape[1]
    assert H % tn == 0
    n_tiles = H // tn

    # bf16 weight storage (halves HBM bytes of the dominant w2 load); f32 accumulation.
    w1 = params["w1"].astype(jnp.bfloat16)
    w2 = params["w2"].astype(jnp.bfloat16)
    w3 = params["w3"].astype(jnp.bfloat16)

    grid_spec = pltpu.PrefetchScalarGridSpec(
        num_scalar_prefetch=0,
        grid=(n_tiles,),
        in_specs=[
            pl.BlockSpec((B, IN), lambda n: (0, 0)),        # x_flat
            pl.BlockSpec((IN, FEAT), lambda n: (0, 0)),     # w_enc
            pl.BlockSpec((1, FEAT), lambda n: (0, 0)),      # b_enc
            pl.BlockSpec((FEAT, H), lambda n: (0, 0)),      # w1
            pl.BlockSpec((1, H), lambda n: (0, 0)),         # b1
            pl.BlockSpec((1, H), lambda n: (0, 0)),         # gamma1
            pl.BlockSpec((1, H), lambda n: (0, 0)),         # beta1
            pl.BlockSpec((H, tn), lambda n: (0, n)),        # w2 column tile (pipelined)
            pl.BlockSpec((1, tn), lambda n: (0, n)),        # b2 tile
            pl.BlockSpec((1, tn), lambda n: (0, n)),        # gamma2 tile
            pl.BlockSpec((1, tn), lambda n: (0, n)),        # beta2 tile
            pl.BlockSpec((tn, FEAT), lambda n: (n, 0)),     # w3 row tile (pipelined)
            pl.BlockSpec((1, FEAT), lambda n: (0, 0)),      # b3
        ],
        out_specs=pl.BlockSpec(memory_space=pltpu.MemorySpace.SMEM),
        scratch_shapes=[
            pltpu.VMEM((B, FEAT), jnp.float32),             # encoder output (x2)
            pltpu.VMEM((B, H), jnp.bfloat16),               # post-BN1-ReLU activations
            pltpu.VMEM((B, FEAT), jnp.float32),             # layer-3 accumulator
        ],
    )

    loss = pl.pallas_call(
        fused_cos_adapter_kernel,
        out_shape=jax.ShapeDtypeStruct((1, 1), jnp.float32),
        grid_spec=grid_spec,
        compiler_params=pltpu.CompilerParams(
            # Reduction over the hidden-tile axis (accumulator revisited) => arbitrary.
            dimension_semantics=("arbitrary",),
            vmem_limit_bytes=32 * 1024 * 1024,
        ),
    )(x_flat, params["w_enc"], params["b_enc"],
      w1, params["b1"], params["g1"], params["be1"],
      w2, params["b2"], params["g2"], params["be2"],
      w3, params["b3"])
    return loss[0, 0]


# ---------------------------------------------------------------------------
# Deterministic parameter init + reference check
# ---------------------------------------------------------------------------
def make_params(key, in_feat, feat_dim, hidden):
    ks = jax.random.split(key, 12)
    n = jax.random.normal
    return {
        "w_enc": 0.02 * n(ks[0], (in_feat, feat_dim), jnp.float32),
        "b_enc": 0.01 * n(ks[1], (1, feat_dim), jnp.float32),
        "w1": 0.02 * n(ks[2], (feat_dim, hidden), jnp.float32),
        "b1": 0.01 * n(ks[3], (1, hidden), jnp.float32),
        "g1": 1.0 + 0.1 * n(ks[4], (1, hidden), jnp.float32),
        "be1": 0.05 * n(ks[5], (1, hidden), jnp.float32),
        "w2": 0.02 * n(ks[6], (hidden, hidden), jnp.float32),
        "b2": 0.01 * n(ks[7], (1, hidden), jnp.float32),
        "g2": 1.0 + 0.1 * n(ks[8], (1, hidden), jnp.float32),
        "be2": 0.05 * n(ks[9], (1, hidden), jnp.float32),
        "w3": 0.02 * n(ks[10], (hidden, feat_dim), jnp.float32),
        "b3": 0.01 * n(ks[11], (1, feat_dim), jnp.float32),
    }


def reference_forward(x_nchw, p):
    """Plain-JAX reference of the module math (f32 activations), using the same
    bf16-rounded adapter weights the kernel consumes."""
    xf = x_nchw.reshape(x_nchw.shape[0], -1).astype(jnp.float32)
    enc = xf @ p["w_enc"] + p["b_enc"]
    w1 = p["w1"].astype(jnp.bfloat16).astype(jnp.float32)
    w2 = p["w2"].astype(jnp.bfloat16).astype(jnp.float32)
    w3 = p["w3"].astype(jnp.bfloat16).astype(jnp.float32)

    def bn(h, g, be):
        mu = h.mean(0, keepdims=True)
        var = ((h - mu) ** 2).mean(0, keepdims=True)
        return g * (h - mu) / jnp.sqrt(var + BN_EPS) + be

    h = jnp.maximum(bn(enc @ w1 + p["b1"], p["g1"], p["be1"]), 0.0)
    h = jnp.maximum(bn(h @ w2 + p["b2"], p["g2"], p["be2"]), 0.0)
    x1 = h @ w3 + p["b3"]
    x2 = enc
    n1 = jnp.maximum(jnp.linalg.norm(x1, axis=-1, keepdims=True), NORM_EPS)
    n2 = jnp.maximum(jnp.linalg.norm(x2, axis=-1, keepdims=True), NORM_EPS)
    return jnp.mean(2.0 - 2.0 * jnp.sum((x1 / n1) * (x2 / n2), axis=-1))


if __name__ == "__main__":
    B, C, IMG = 8, 3, 16          # small image batch (NCHW like the PyTorch module)
    FEAT = 128                    # synthetic encoder feature dim (lane-dense: multiple of 128)
    HIDDEN = 2048                 # adapter hidden width (as in the module)

    key = jax.random.PRNGKey(0)
    kx, kp = jax.random.split(key)
    x = jax.random.normal(kx, (B, C, IMG, IMG), jnp.float32)
    params = make_params(kp, C * IMG * IMG, FEAT, HIDDEN)

    loss = jax.block_until_ready(cos_adapter_forward(x, params))
    loss_ref = jax.block_until_ready(reference_forward(x, params))

    assert jnp.isfinite(loss), "non-finite loss"
    assert abs(float(loss) - float(loss_ref)) < 1e-2 * max(1.0, abs(float(loss_ref))), (
        float(loss), float(loss_ref))

    print("KERNEL_OK")
</pallas_src>

<mosaic_0001>
module attributes {stable_mosaic.version = 11 : i64} {
  func.func @fused_cos_adapter_kernel(%arg0: i32, %arg1: memref<8x768xf32, #tpu.memory_space<vmem>>, %arg2: memref<768x128xf32, #tpu.memory_space<vmem>>, %arg3: memref<1x128xf32, #tpu.memory_space<vmem>>, %arg4: memref<128x2048xbf16, #tpu.memory_space<vmem>>, %arg5: memref<1x2048xf32, #tpu.memory_space<vmem>>, %arg6: memref<1x2048xf32, #tpu.memory_space<vmem>>, %arg7: memref<1x2048xf32, #tpu.memory_space<vmem>>, %arg8: memref<2048x1024xbf16, #tpu.memory_space<vmem>>, %arg9: memref<1x1024xf32, #tpu.memory_space<vmem>>, %arg10: memref<1x1024xf32, #tpu.memory_space<vmem>>, %arg11: memref<1x1024xf32, #tpu.memory_space<vmem>>, %arg12: memref<1024x128xbf16, #tpu.memory_space<vmem>>, %arg13: memref<1x128xf32, #tpu.memory_space<vmem>>, %arg14: memref<1x1xf32, #tpu.memory_space<smem>>, %arg15: memref<8x128xf32, #tpu.memory_space<vmem>>, %arg16: memref<8x2048xbf16, #tpu.memory_space<vmem>>, %arg17: memref<8x128xf32, #tpu.memory_space<vmem>>) attributes {dimension_semantics = [#tpu.dimension_semantics<arbitrary>], iteration_bounds = array<i64: 2>, scalar_prefetch = 0 : i64, scratch_operands = 3 : i64, tpu.core_type = #tpu.core_type<tc>, window_params = [{pipeline_mode = #tpu.pipeline_mode<synchronous>, transform_indices = @transform_0, window_bounds = array<i64: 8, 768>}, {pipeline_mode = #tpu.pipeline_mode<synchronous>, transform_indices = @transform_1, window_bounds = array<i64: 768, 128>}, {pipeline_mode = #tpu.pipeline_mode<synchronous>, transform_indices = @transform_2, window_bounds = array<i64: 1, 128>}, {pipeline_mode = #tpu.pipeline_mode<synchronous>, transform_indices = @transform_3, window_bounds = array<i64: 128, 2048>}, {pipeline_mode = #tpu.pipeline_mode<synchronous>, transform_indices = @transform_4, window_bounds = array<i64: 1, 2048>}, {pipeline_mode = #tpu.pipeline_mode<synchronous>, transform_indices = @transform_5, window_bounds = array<i64: 1, 2048>}, {pipeline_mode = #tpu.pipeline_mode<synchronous>, transform_indices = @transform_6, window_bounds = array<i64: 1, 2048>}, {transform_indices = @transform_7, window_bounds = array<i64: 2048, 1024>}, {transform_indices = @transform_8, window_bounds = array<i64: 1, 1024>}, {transform_indices = @transform_9, window_bounds = array<i64: 1, 1024>}, {transform_indices = @transform_10, window_bounds = array<i64: 1, 1024>}, {transform_indices = @transform_11, window_bounds = array<i64: 1024, 128>}, {pipeline_mode = #tpu.pipeline_mode<synchronous>, transform_indices = @transform_12, window_bounds = array<i64: 1, 128>}, {transform_indices = @transform_13, window_bounds = array<i64: 1, 1>}]} {
    %c0_i32 = arith.constant 0 : i32
    %0 = arith.cmpi eq, %arg0, %c0_i32 : i32
    %1 = arith.extui %0 : i1 to i32
    %c0_i32_0 = arith.constant 0 : i32
    %2 = arith.cmpi ne, %1, %c0_i32_0 : i32
    scf.if %2 {
      %c0_24 = arith.constant 0 : index
      %c0_25 = arith.constant 0 : index
      %44 = vector.load %arg1[%c0_24, %c0_25] : memref<8x768xf32, #tpu.memory_space<vmem>>, vector<8x768xf32>
      %c0_26 = arith.constant 0 : index
      %c0_27 = arith.constant 0 : index
      %45 = vector.load %arg2[%c0_26, %c0_27] : memref<768x128xf32, #tpu.memory_space<vmem>>, vector<768x128xf32>
      %cst_28 = arith.constant dense<0.000000e+00> : vector<8x128xf32>
      %46 = tpu.matmul %44, %45, %cst_28 {dimension_numbers = #tpu.dot_dimension_numbers<[1], [0], [0], [1], [0, 0, 1, 1], [], []>} : vector<8x768xf32>, vector<768x128xf32>, vector<8x128xf32> -> vector<8x128xf32>
      %c0_29 = arith.constant 0 : index
      %c0_30 = arith.constant 0 : index
      %47 = vector.load %arg3[%c0_29, %c0_30] : memref<1x128xf32, #tpu.memory_space<vmem>>, vector<1x128xf32>
      %48 = vector.broadcast %47 : vector<1x128xf32> to vector<8x128xf32>
      %49 = arith.addf %46, %48 : vector<8x128xf32>
      %c0_31 = arith.constant 0 : index
      %c0_32 = arith.constant 0 : index
      %50 = vector.load %arg15[%c0_31, %c0_32] : memref<8x128xf32, #tpu.memory_space<vmem>>, vector<8x128xf32>
      tpu.vector_store %arg15[%c0_31, %c0_32], %49 {strides = array<i32>} : memref<8x128xf32, #tpu.memory_space<vmem>>, vector<8x128xf32>,
      %51 = arith.truncf %49 : vector<8x128xf32> to vector<8x128xbf16>
      %c0_33 = arith.constant 0 : index
      %c0_34 = arith.constant 0 : index
      %52 = vector.load %arg4[%c0_33, %c0_34] : memref<128x2048xbf16, #tpu.memory_space<vmem>>, vector<128x2048xbf16>
      %cst_35 = arith.constant dense<0.000000e+00> : vector<8x2048xf32>
      %53 = tpu.matmul %51, %52, %cst_35 {dimension_numbers = #tpu.dot_dimension_numbers<[1], [0], [0], [1], [0, 0, 1, 1], [], []>} : vector<8x128xbf16>, vector<128x2048xbf16>, vector<8x2048xf32> -> vector<8x2048xf32>
      %c0_36 = arith.constant 0 : index
      %c0_37 = arith.constant 0 : index
      %54 = vector.load %arg5[%c0_36, %c0_37] : memref<1x2048xf32, #tpu.memory_space<vmem>>, vector<1x2048xf32>
      %55 = vector.broadcast %54 : vector<1x2048xf32> to vector<8x2048xf32>
      %56 = arith.addf %53, %55 : vector<8x2048xf32>
      %cst_38 = arith.constant dense<0.000000e+00> : vector<2048xf32>
      %57 = vector.multi_reduction <add>, %56, %cst_38 [0] : vector<8x2048xf32> to vector<2048xf32>
      %58 = vector.shape_cast %57 : vector<2048xf32> to vector<1x2048xf32>
      %cst_39 = arith.constant 8.000000e+00 : f32
      %59 = vector.broadcast %cst_39 : f32 to vector<1x2048xf32>
      %60 = arith.divf %58, %59 : vector<1x2048xf32>
      %61 = vector.broadcast %60 : vector<1x2048xf32> to vector<8x2048xf32>
      %62 = arith.subf %56, %61 : vector<8x2048xf32>
      %63 = arith.mulf %62, %62 : vector<8x2048xf32>
      %cst_40 = arith.constant dense<0.000000e+00> : vector<2048xf32>
      %64 = vector.multi_reduction <add>, %63, %cst_40 [0] : vector<8x2048xf32> to vector<2048xf32>
      %65 = vector.shape_cast %64 : vector<2048xf32> to vector<1x2048xf32>
      %cst_41 = arith.constant 8.000000e+00 : f32
      %66 = vector.broadcast %cst_41 : f32 to vector<1x2048xf32>
      %67 = arith.divf %65, %66 : vector<1x2048xf32>
      %c0_42 = arith.constant 0 : index
      %c0_43 = arith.constant 0 : index
      %68 = vector.load %arg6[%c0_42, %c0_43] : memref<1x2048xf32, #tpu.memory_space<vmem>>, vector<1x2048xf32>
      %69 = vector.broadcast %60 : vector<1x2048xf32> to vector<8x2048xf32>
      %70 = arith.subf %56, %69 : vector<8x2048xf32>
      %71 = vector.broadcast %68 : vector<1x2048xf32> to vector<8x2048xf32>
      %72 = arith.mulf %71, %70 : vector<8x2048xf32>
      %cst_44 = arith.constant 9.99999974E-6 : f32
      %73 = vector.broadcast %cst_44 : f32 to vector<1x2048xf32>
      %74 = arith.addf %67, %73 : vector<1x2048xf32>
      %75 = math.rsqrt %74 : vector<1x2048xf32>
      %76 = vector.broadcast %75 : vector<1x2048xf32> to vector<8x2048xf32>
      %77 = arith.mulf %72, %76 : vector<8x2048xf32>
      %c0_45 = arith.constant 0 : index
      %c0_46 = arith.constant 0 : index
      %78 = vector.load %arg7[%c0_45, %c0_46] : memref<1x2048xf32, #tpu.memory_space<vmem>>, vector<1x2048xf32>
      %79 = vector.broadcast %78 : vector<1x2048xf32> to vector<8x2048xf32>
      %80 = arith.addf %77, %79 : vector<8x2048xf32>
      %cst_47 = arith.constant 0.000000e+00 : f32
      %81 = vector.broadcast %cst_47 : f32 to vector<8x2048xf32>
      %82 = arith.maximumf %80, %81 : vector<8x2048xf32>
      %83 = arith.truncf %82 : vector<8x2048xf32> to vector<8x2048xbf16>
      %c0_48 = arith.constant 0 : index
      %c0_49 = arith.constant 0 : index
      %84 = vector.load %arg16[%c0_48, %c0_49] : memref<8x2048xbf16, #tpu.memory_space<vmem>>, vector<8x2048xbf16>
      tpu.vector_store %arg16[%c0_48, %c0_49], %83 {strides = array<i32>} : memref<8x2048xbf16, #tpu.memory_space<vmem>>, vector<8x2048xbf16>,
      %cst_50 = arith.constant 0.000000e+00 : f32
      %85 = vector.broadcast %cst_50 : f32 to vector<8x128xf32>
      %c0_51 = arith.constant 0 : index
      %c0_52 = arith.constant 0 : index
      %86 = vector.load %arg17[%c0_51, %c0_52] : memref<8x128xf32, #tpu.memory_space<vmem>>, vector<8x128xf32>
      tpu.vector_store %arg17[%c0_51, %c0_52], %85 {strides = array<i32>} : memref<8x128xf32, #tpu.memory_space<vmem>>, vector<8x128xf32>,
    } else {
    }
    %c0 = arith.constant 0 : index
    %c0_1 = arith.constant 0 : index
    %3 = vector.load %arg16[%c0, %c0_1] : memref<8x2048xbf16, #tpu.memory_space<vmem>>, vector<8x2048xbf16>
    %c0_2 = arith.constant 0 : index
    %c0_3 = arith.constant 0 : index
    %4 = vector.load %arg8[%c0_2, %c0_3] : memref<2048x1024xbf16, #tpu.memory_space<vmem>>, vector<2048x1024xbf16>
    %cst = arith.constant dense<0.000000e+00> : vector<8x1024xf32>
    %5 = tpu.matmul %3, %4, %cst {dimension_numbers = #tpu.dot_dimension_numbers<[1], [0], [0], [1], [0, 0, 1, 1], [], []>} : vector<8x2048xbf16>, vector<2048x1024xbf16>, vector<8x1024xf32> -> vector<8x1024xf32>
    %c0_4 = arith.constant 0 : index
    %c0_5 = arith.constant 0 : index
    %6 = vector.load %arg9[%c0_4, %c0_5] : memref<1x1024xf32, #tpu.memory_space<vmem>>, vector<1x1024xf32>
    %7 = vector.broadcast %6 : vector<1x1024xf32> to vector<8x1024xf32>
    %8 = arith.addf %5, %7 : vector<8x1024xf32>
    %cst_6 = arith.constant dense<0.000000e+00> : vector<1024xf32>
    %9 = vector.multi_reduction <add>, %8, %cst_6 [0] : vector<8x1024xf32> to vector<1024xf32>
    %10 = vector.shape_cast %9 : vector<1024xf32> to vector<1x1024xf32>
    %cst_7 = arith.constant 8.000000e+00 : f32
    %11 = vector.broadcast %cst_7 : f32 to vector<1x1024xf32>
    %12 = arith.divf %10, %11 : vector<1x1024xf32>
    %13 = vector.broadcast %12 : vector<1x1024xf32> to vector<8x1024xf32>
    %14 = arith.subf %8, %13 : vector<8x1024xf32>
    %15 = arith.mulf %14, %14 : vector<8x1024xf32>
    %cst_8 = arith.constant dense<0.000000e+00> : vector<1024xf32>
    %16 = vector.multi_reduction <add>, %15, %cst_8 [0] : vector<8x1024xf32> to vector<1024xf32>
    %17 = vector.shape_cast %16 : vector<1024xf32> to vector<1x1024xf32>
    %cst_9 = arith.constant 8.000000e+00 : f32
    %18 = vector.broadcast %cst_9 : f32 to vector<1x1024xf32>
    %19 = arith.divf %17, %18 : vector<1x1024xf32>
    %c0_10 = arith.constant 0 : index
    %c0_11 = arith.constant 0 : index
    %20 = vector.load %arg10[%c0_10, %c0_11] : memref<1x1024xf32, #tpu.memory_space<vmem>>, vector<1x1024xf32>
    %21 = vector.broadcast %12 : vector<1x1024xf32> to vector<8x1024xf32>
    %22 = arith.subf %8, %21 : vector<8x1024xf32>
    %23 = vector.broadcast %20 : vector<1x1024xf32> to vector<8x1024xf32>
    %24 = arith.mulf %23, %22 : vector<8x1024xf32>
    %cst_12 = arith.constant 9.99999974E-6 : f32
    %25 = vector.broadcast %cst_12 : f32 to vector<1x1024xf32>
    %26 = arith.addf %19, %25 : vector<1x1024xf32>
    %27 = math.rsqrt %26 : vector<1x1024xf32>
    %28 = vector.broadcast %27 : vector<1x1024xf32> to vector<8x1024xf32>
    %29 = arith.mulf %24, %28 : vector<8x1024xf32>
    %c0_13 = arith.constant 0 : index
    %c0_14 = arith.constant 0 : index
    %30 = vector.load %arg11[%c0_13, %c0_14] : memref<1x1024xf32, #tpu.memory_space<vmem>>, vector<1x1024xf32>
    %31 = vector.broadcast %30 : vector<1x1024xf32> to vector<8x1024xf32>
    %32 = arith.addf %29, %31 : vector<8x1024xf32>
    %cst_15 = arith.constant 0.000000e+00 : f32
    %33 = vector.broadcast %cst_15 : f32 to vector<8x1024xf32>
    %34 = arith.maximumf %32, %33 : vector<8x1024xf32>
    %c0_16 = arith.constant 0 : index
    %c0_17 = arith.constant 0 : index
    %35 = vector.load %arg17[%c0_16, %c0_17] : memref<8x128xf32, #tpu.memory_space<vmem>>, vector<8x128xf32>
    %36 = arith.truncf %34 : vector<8x1024xf32> to vector<8x1024xbf16>
    %c0_18 = arith.constant 0 : index
    %c0_19 = arith.constant 0 : index
    %37 = vector.load %arg12[%c0_18, %c0_19] : memref<1024x128xbf16, #tpu.memory_space<vmem>>, vector<1024x128xbf16>
    %cst_20 = arith.constant dense<0.000000e+00> : vector<8x128xf32>
    %38 = tpu.matmul %36, %37, %cst_20 {dimension_numbers = #tpu.dot_dimension_numbers<[1], [0], [0], [1], [0, 0, 1, 1], [], []>} : vector<8x1024xbf16>, vector<1024x128xbf16>, vector<8x128xf32> -> vector<8x128xf32>
    %39 = arith.addf %35, %38 : vector<8x128xf32>
    %c0_21 = arith.constant 0 : index
    %c0_22 = arith.constant 0 : index
    %40 = vector.load %arg17[%c0_21, %c0_22] : memref<8x128xf32, #tpu.memory_space<vmem>>, vector<8x128xf32>
    tpu.vector_store %arg17[%c0_21, %c0_22], %39 {strides = array<i32>} : memref<8x128xf32, #tpu.memory_space<vmem>>, vector<8x128xf32>,
    %c1_i32 = arith.constant 1 : i32
    %41 = arith.cmpi eq, %arg0, %c1_i32 : i32
    %42 = arith.extui %41 : i1 to i32
    %c0_i32_23 = arith.constant 0 : i32
    %43 = arith.cmpi ne, %42, %c0_i32_23 : i32
    scf.if %43 {
      %c0_24 = arith.constant 0 : index
      %c0_25 = arith.constant 0 : index
      %44 = vector.load %arg17[%c0_24, %c0_25] : memref<8x128xf32, #tpu.memory_space<vmem>>, vector<8x128xf32>
      %c0_26 = arith.constant 0 : index
      %c0_27 = arith.constant 0 : index
      %45 = vector.load %arg13[%c0_26, %c0_27] : memref<1x128xf32, #tpu.memory_space<vmem>>, vector<1x128xf32>
      %46 = vector.broadcast %45 : vector<1x128xf32> to vector<8x128xf32>
      %47 = arith.addf %44, %46 : vector<8x128xf32>
      %c0_28 = arith.constant 0 : index
      %c0_29 = arith.constant 0 : index
      %48 = vector.load %arg15[%c0_28, %c0_29] : memref<8x128xf32, #tpu.memory_space<vmem>>, vector<8x128xf32>
      %49 = arith.mulf %47, %47 : vector<8x128xf32>
      %cst_30 = arith.constant dense<0.000000e+00> : vector<8xf32>
      %50 = vector.multi_reduction <add>, %49, %cst_30 [1] : vector<8x128xf32> to vector<8xf32>
      %51 = vector.shape_cast %50 : vector<8xf32> to vector<8x1xf32>
      %cst_31 = arith.constant 1.000000e-24 : f32
      %52 = vector.broadcast %cst_31 : f32 to vector<8x1xf32>
      %53 = arith.maximumf %51, %52 : vector<8x1xf32>
      %54 = arith.mulf %48, %48 : vector<8x128xf32>
      %cst_32 = arith.constant dense<0.000000e+00> : vector<8xf32>
      %55 = vector.multi_reduction <add>, %54, %cst_32 [1] : vector<8x128xf32> to vector<8xf32>
      %56 = vector.shape_cast %55 : vector<8xf32> to vector<8x1xf32>
      %cst_33 = arith.constant 1.000000e-24 : f32
      %57 = vector.broadcast %cst_33 : f32 to vector<8x1xf32>
      %58 = arith.maximumf %56, %57 : vector<8x1xf32>
      %59 = arith.mulf %47, %48 : vector<8x128xf32>
      %cst_34 = arith.constant dense<0.000000e+00> : vector<8xf32>
      %60 = vector.multi_reduction <add>, %59, %cst_34 [1] : vector<8x128xf32> to vector<8xf32>
      %61 = vector.shape_cast %60 : vector<8xf32> to vector<8x1xf32>
      %62 = math.rsqrt %53 : vector<8x1xf32>
      %63 = arith.mulf %61, %62 : vector<8x1xf32>
      %64 = math.rsqrt %58 : vector<8x1xf32>
      %65 = arith.mulf %63, %64 : vector<8x1xf32>
      %cst_35 = arith.constant 2.000000e+00 : f32
      %66 = vector.broadcast %cst_35 : f32 to vector<8x1xf32>
      %67 = arith.mulf %66, %65 : vector<8x1xf32>
      %cst_36 = arith.constant 2.000000e+00 : f32
      %68 = vector.broadcast %cst_36 : f32 to vector<8x1xf32>
      %69 = arith.subf %68, %67 : vector<8x1xf32>
      %70 = vector.shape_cast %69 : vector<8x1xf32> to vector<1x8x1xf32>
      %cst_37 = arith.constant dense<0.000000e+00> : vector<1xf32>
      %71 = vector.multi_reduction <add>, %70, %cst_37 [1, 2] : vector<1x8x1xf32> to vector<1xf32>
      %72 = vector.shape_cast %71 : vector<1xf32> to vector<1x1x1xf32>
      %73 = vector.extract %72[0, 0, 0] : f32 from vector<1x1x1xf32>
      %cst_38 = arith.constant 8.000000e+00 : f32
      %74 = arith.divf %73, %cst_38 : f32
      %c0_39 = arith.constant 0 : index
      %c0_40 = arith.constant 0 : index
      %75 = memref.load %arg14[%c0_39, %c0_40] : memref<1x1xf32, #tpu.memory_space<smem>>
      memref.store %74, %arg14[%c0_39, %c0_40] : memref<1x1xf32, #tpu.memory_space<smem>>
    } else {
    }
    return
  }
  func.func @transform_0(%arg0: i32) -> (i32, i32) {
    %c0_i32 = arith.constant 0 : i32
    %c0_i32_0 = arith.constant 0 : i32
    %c0_i32_1 = arith.constant 0 : i32
    return %c0_i32, %c0_i32_0 : i32, i32
  }
  func.func @transform_1(%arg0: i32) -> (i32, i32) {
    %c0_i32 = arith.constant 0 : i32
    %c0_i32_0 = arith.constant 0 : i32
    %c0_i32_1 = arith.constant 0 : i32
    return %c0_i32, %c0_i32_0 : i32, i32
  }
  func.func @transform_2(%arg0: i32) -> (i32, i32) {
    %c0_i32 = arith.constant 0 : i32
    %c0_i32_0 = arith.constant 0 : i32
    %c0_i32_1 = arith.constant 0 : i32
    return %c0_i32, %c0_i32_0 : i32, i32
  }
  func.func @transform_3(%arg0: i32) -> (i32, i32) {
    %c0_i32 = arith.constant 0 : i32
    %c0_i32_0 = arith.constant 0 : i32
    %c0_i32_1 = arith.constant 0 : i32
    return %c0_i32, %c0_i32_0 : i32, i32
  }
  func.func @transform_4(%arg0: i32) -> (i32, i32) {
    %c0_i32 = arith.constant 0 : i32
    %c0_i32_0 = arith.constant 0 : i32
    %c0_i32_1 = arith.constant 0 : i32
    return %c0_i32, %c0_i32_0 : i32, i32
  }
  func.func @transform_5(%arg0: i32) -> (i32, i32) {
    %c0_i32 = arith.constant 0 : i32
    %c0_i32_0 = arith.constant 0 : i32
    %c0_i32_1 = arith.constant 0 : i32
    return %c0_i32, %c0_i32_0 : i32, i32
  }
  func.func @transform_6(%arg0: i32) -> (i32, i32) {
    %c0_i32 = arith.constant 0 : i32
    %c0_i32_0 = arith.constant 0 : i32
    %c0_i32_1 = arith.constant 0 : i32
    return %c0_i32, %c0_i32_0 : i32, i32
  }
  func.func @transform_7(%arg0: i32) -> (i32, i32) {
    %c0_i32 = arith.constant 0 : i32
    %c0_i32_0 = arith.constant 0 : i32
    return %c0_i32, %arg0 : i32, i32
  }
  func.func @transform_8(%arg0: i32) -> (i32, i32) {
    %c0_i32 = arith.constant 0 : i32
    %c0_i32_0 = arith.constant 0 : i32
    return %c0_i32, %arg0 : i32, i32
  }
  func.func @transform_9(%arg0: i32) -> (i32, i32) {
    %c0_i32 = arith.constant 0 : i32
    %c0_i32_0 = arith.constant 0 : i32
    return %c0_i32, %arg0 : i32, i32
  }
  func.func @transform_10(%arg0: i32) -> (i32, i32) {
    %c0_i32 = arith.constant 0 : i32
    %c0_i32_0 = arith.constant 0 : i32
    return %c0_i32, %arg0 : i32, i32
  }
  func.func @transform_11(%arg0: i32) -> (i32, i32) {
    %c0_i32 = arith.constant 0 : i32
    %c0_i32_0 = arith.constant 0 : i32
    return %arg0, %c0_i32 : i32, i32
  }
  func.func @transform_12(%arg0: i32) -> (i32, i32) {
    %c0_i32 = arith.constant 0 : i32
    %c0_i32_0 = arith.constant 0 : i32
    %c0_i32_1 = arith.constant 0 : i32
    return %c0_i32, %c0_i32_0 : i32, i32
  }
  func.func @transform_13(%arg0: i32) -> (i32, i32) {
    %c0_i32 = arith.constant 0 : i32
    %c0_i32_0 = arith.constant 0 : i32
    %c0_i32_1 = arith.constant 0 : i32
    return %c0_i32, %c0_i32_0 : i32, i32
  }
}

</mosaic_0001>

<llo_original>
// kernel: tpu_custom_call.1
$region0: #{tpu_custom_call.1}
  #allocation0 [shape = 'u32[]', space=smem, size = 0x4, offset = 0x4, fixed_abs, tag = 'smem constant byte address 0x4 - core index']
  #allocation1 [shape = 'u32[144,128]{1,0:T(1,128)}', space=vmem, size = 0x12000, scoped, tag = 'internal scratch']
  #allocation2 [shape = 'f32[8,128]{1,0:T(8,128)}', space=vmem, size = 0x1000, scoped, tag = 'scratch operand']
  #allocation3 [shape = 'bf16[8,2048]{1,0:T(8,128)(2,1)}', space=vmem, size = 0x8000, scoped, tag = 'scratch operand']
  #allocation4 [shape = 'f32[8,128]{1,0:T(8,128)}', space=vmem, size = 0x1000, scoped, tag = 'scratch operand']
  %s0 = inlined_call_operand.hbm [shape: f32[8,768], index: 0, kind: input, shape index: {}]
  %s1 = inlined_call_operand.hbm [shape: f32[768,128], index: 1, kind: input, shape index: {}]
  %s2 = inlined_call_operand.hbm [shape: f32[1,128], index: 2, kind: input, shape index: {}]
  %s3 = inlined_call_operand.hbm [shape: bf16[128,2048], index: 3, kind: input, shape index: {}]
  %s4 = inlined_call_operand.hbm [shape: f32[1,2048], index: 4, kind: input, shape index: {}]
  %s5 = inlined_call_operand.hbm [shape: f32[1,2048], index: 5, kind: input, shape index: {}]
  %s6 = inlined_call_operand.hbm [shape: f32[1,2048], index: 6, kind: input, shape index: {}]
  %s7 = inlined_call_operand.hbm [shape: bf16[2048,2048], index: 7, kind: input, shape index: {}]
  %s8 = inlined_call_operand.hbm [shape: f32[1,2048], index: 8, kind: input, shape index: {}]
  %s9 = inlined_call_operand.hbm [shape: f32[1,2048], index: 9, kind: input, shape index: {}]
  %s10 = inlined_call_operand.hbm [shape: f32[1,2048], index: 10, kind: input, shape index: {}]
  %s11 = inlined_call_operand.hbm [shape: bf16[2048,128], index: 11, kind: input, shape index: {}]
  %s12 = inlined_call_operand.hbm [shape: f32[1,128], index: 12, kind: input, shape index: {}]
  %s13 = inlined_call_operand.hbm [shape: f32[1,1], index: 13, kind: output, shape index: {}]
  %s14 = sld [smem:[#allocation0]]
  $region145: #{tpu_custom_call.1} parent=0
    _
  %s16 = ssub.s32 1, %s14
  %s17 = scalar_select 0, %s16, %s14
  $region1: #{tpu_custom_call.1} parent=0
    #allocation5 [shape = 'u8[24576]{0}', space=vmem, size = 0x6000, scoped, tag = 'input window, operand 0, single buffered']
    #allocation6 [shape = 's32[2]{0}', space=sflag, size = 0x8, scoped, tag = 'scoped memory for tpu_custom_call.1']
    #allocation7 [shape = 's32[2]{0}', space=sflag, size = 0x8, scoped, tag = 'scoped memory for tpu_custom_call.1']
    #allocation8 [shape = 'u8[393216]{0}', space=vmem, size = 0x60000, scoped, tag = 'input window, operand 1, single buffered']
    #allocation9 [shape = 's32[1]{0}', space=sflag, size = 0x4, scoped, tag = 'scoped memory for tpu_custom_call.1']
    #allocation10 [shape = 'u8[512]{0}', space=vmem, size = 0x400, scoped, tag = 'input window, operand 2, single buffered']
    #allocation11 [shape = 'u8[524288]{0}', space=vmem, size = 0x80000, scoped, tag = 'input window, operand 3, single buffered']
    #allocation12 [shape = 's32[1]{0}', space=sflag, size = 0x4, scoped, tag = 'scoped memory for tpu_custom_call.1']
    #allocation13 [shape = 'u8[8192]{0}', space=vmem, size = 0x2000, scoped, tag = 'input window, operand 4, single buffered']
    #allocation14 [shape = 'u8[8192]{0}', space=vmem, size = 0x2000, scoped, tag = 'input window, operand 5, single buffered']
    #allocation15 [shape = 's32[1]{0}', space=sflag, size = 0x4, scoped, tag = 'scoped memory for tpu_custom_call.1']
    #allocation16 [shape = 'u8[8192]{0}', space=vmem, size = 0x2000, scoped, tag = 'input window, operand 6, single buffered']
    #allocation17 [shape = 'u8[8388608]{0}', space=vmem, size = 0x800000, scoped, tag = 'input window, operand 7']
    #allocation18 [shape = 's32[2]{0}', space=sflag, size = 0x8, scoped, tag = 'scoped memory for tpu_custom_call.1']
    #allocation19 [shape = 'u8[8192]{0}', space=vmem, size = 0x2000, scoped, tag = 'input window, operand 8']
    #allocation20 [shape = 'u8[8192]{0}', space=vmem, size = 0x2000, scoped, tag = 'input window, operand 9']
    #allocation21 [shape = 's32[2]{0}', space=sflag, size = 0x8, scoped, tag = 'scoped memory for tpu_custom_call.1']
    #allocation22 [shape = 'u8[8192]{0}', space=vmem, size = 0x2000, scoped, tag = 'input window, operand 10']
    #allocation23 [shape = 'u8[524288]{0}', space=vmem, size = 0x80000, scoped, tag = 'input window, operand 11']
    #allocation24 [shape = 's32[2]{0}', space=sflag, size = 0x8, scoped, tag = 'scoped memory for tpu_custom_call.1']
    #allocation25 [shape = 'u8[512]{0}', space=vmem, size = 0x400, scoped, tag = 'input window, operand 12, single buffered']
    #allocation26 [shape = 'u8[512]{0}', space=smem, size = 0x200, scoped, tag = 'output window, operand 0, single buffered']
    %18 = vsyncpa [#allocation6], 0
    %19 = vsyncpa [#allocation9], 0
    %20 = vsyncpa [#allocation12], 0
    %21 = vsyncpa [#allocation15], 0
    %22 = vsyncpa [#allocation18], 0
    %s23 = scalar_lea.sflag [#allocation18], 1
    %24 = vsyncpa %s23, 0
    %25 = vsyncpa [#allocation21], 0
    %s26 = scalar_lea.sflag [#allocation21], 1
    %27 = vsyncpa %s26, 0
    %28 = vsyncpa [#allocation24], 0
    %s29 = scalar_lea.sflag [#allocation24], 1
    %30 = vsyncpa %s29, 0
    %31 = vsyncpa [#allocation7], 0
    loop: start=0, step=1, limit=4
    $region2: #{tpu_custom_call.1} parent=1 // loop_pre_header
      _
    $region3: #{tpu_custom_call.1} parent=1 // loop_header
      %s33 = sphi 0, %s37
      %p34 = scmp.ge.s32.totalorder %s33, 4
      %s41 = sphi 0, %s41
      %s43 = sphi 0, %s41
      %s44 = sphi 0, %s43
      %s58 = sphi 0, %s44
      %s62 = sphi 0, %s62
      %s64 = sphi 0, %s62
      %s65 = sphi 0, %s64
      %s79 = sphi 0, %s65
      %s83 = sphi 0, %s83
      %s85 = sphi 0, %s83
      %s86 = sphi 0, %s85
      %s100 = sphi 0, %s86
      %s104 = sphi 0, %s104
      %s106 = sphi 0, %s104
      %s107 = sphi 0, %s106
      %s121 = sphi 0, %s107
      %s125 = sphi 0, %s125
      %s127 = sphi 0, %s125
      %s128 = sphi 0, %s127
      %s142 = sphi 0, %s128
      %s146 = sphi 0, %s146
      %s148 = sphi 0, %s146
      %s149 = sphi 0, %s148
      %s163 = sphi 0, %s149
      %s167 = sphi 0, %s167
      %s169 = sphi 0, %s167
      %s170 = sphi 0, %s169
      %s184 = sphi 0, %s170
      %s190 = sphi 0, %s192
      %s193 = sphi 0, %s190
      %s194 = sphi 0, %s193
      %s210 = sphi 0, %s194
      %s216 = sphi 0, %s218
      %s219 = sphi 0, %s216
      %s220 = sphi 0, %s219
      %s236 = sphi 0, %s220
      %s242 = sphi 0, %s244
      %s245 = sphi 0, %s242
      %s246 = sphi 0, %s245
      %s262 = sphi 0, %s246
      %s268 = sphi 0, %s270
      %s271 = sphi 0, %s268
      %s272 = sphi 0, %s271
      %s288 = sphi 0, %s272
      %s294 = sphi 0, %s296
      %s297 = sphi 0, %s294
      %s298 = sphi 0, %s297
      %s314 = sphi 0, %s298
      %s318 = sphi 0, %s318
      %s320 = sphi 0, %s318
      %s321 = sphi 0, %s320
      %s335 = sphi 0, %s321
      %s339 = sphi 0, %s339
      %s341 = sphi 0, %s339
      %s342 = sphi 0, %s341
      %s356 = sphi 0, %s342
    $region4: #{tpu_custom_call.1} parent=1 // loop_header_branch
      %36 = sbr.rel (%p34) target = $region8
    $region5: #{tpu_custom_call.1} parent=1 // loop_body
      %s38 = ssub.s32 %s33, 1
      %s39 = ssub.s32 %s33, 2
      %s40 = sadd.s32 %s33, 1
      %s42 = sadd.s32 %s41, 1
      %p45 = scmp.eq.s32.totalorder %s33, 1
      %p46 = scmp.ne.s32.totalorder %s41, %s43
      %p47 = scmp.eq.s32.totalorder %s33, 0
      %p48 = por %p46, %p47
      %p49 = scmp.ne.s32.totalorder %s41, %s43
      %p50 = scmp.eq.s32.totalorder %s38, 1
      %p51 = por %p49, %p50
      %p52 = scmp.ne.s32.totalorder %s43, %s44
      %p53 = scmp.eq.s32.totalorder %s38, 0
      %p54 = por %p52, %p53
      %p55 = scmp.ne.s32.totalorder %s43, %s44
      %p56 = scmp.eq.s32.totalorder %s39, 1
      %p57 = por %p55, %p56
      %p59 = scmp.ne.s32.totalorder %s44, %s58
      %p60 = scmp.eq.s32.totalorder %s39, 0
      %p61 = por %p59, %p60
      %s63 = sadd.s32 %s62, 1
      %p66 = scmp.eq.s32.totalorder %s33, 1
      %p67 = scmp.ne.s32.totalorder %s62, %s64
      %p68 = scmp.eq.s32.totalorder %s33, 0
      %p69 = por %p67, %p68
      %p70 = scmp.ne.s32.totalorder %s62, %s64
      %p71 = scmp.eq.s32.totalorder %s38, 1
      %p72 = por %p70, %p71
      %p73 = scmp.ne.s32.totalorder %s64, %s65
      %p74 = scmp.eq.s32.totalorder %s38, 0
      %p75 = por %p73, %p74
      %p76 = scmp.ne.s32.totalorder %s64, %s65
      %p77 = scmp.eq.s32.totalorder %s39, 1
      %p78 = por %p76, %p77
      %p80 = scmp.ne.s32.totalorder %s65, %s79
      %p81 = scmp.eq.s32.totalorder %s39, 0
      %p82 = por %p80, %p81
      %s84 = sadd.s32 %s83, 1
      %p87 = scmp.eq.s32.totalorder %s33, 1
      %p88 = scmp.ne.s32.totalorder %s83, %s85
      %p89 = scmp.eq.s32.totalorder %s33, 0
      %p90 = por %p88, %p89
      %p91 = scmp.ne.s32.totalorder %s83, %s85
      %p92 = scmp.eq.s32.totalorder %s38, 1
      %p93 = por %p91, %p92
      %p94 = scmp.ne.s32.totalorder %s85, %s86
      %p95 = scmp.eq.s32.totalorder %s38, 0
      %p96 = por %p94, %p95
      %p97 = scmp.ne.s32.totalorder %s85, %s86
      %p98 = scmp.eq.s32.totalorder %s39, 1
      %p99 = por %p97, %p98
      %p101 = scmp.ne.s32.totalorder %s86, %s100
      %p102 = scmp.eq.s32.totalorder %s39, 0
      %p103 = por %p101, %p102
      %s105 = sadd.s32 %s104, 1
      %p108 = scmp.eq.s32.totalorder %s33, 1
      %p109 = scmp.ne.s32.totalorder %s104, %s106
      %p110 = scmp.eq.s32.totalorder %s33, 0
      %p111 = por %p109, %p110
      %p112 = scmp.ne.s32.totalorder %s104, %s106
      %p113 = scmp.eq.s32.totalorder %s38, 1
      %p114 = por %p112, %p113
      %p115 = scmp.ne.s32.totalorder %s106, %s107
      %p116 = scmp.eq.s32.totalorder %s38, 0
      %p117 = por %p115, %p116
      %p118 = scmp.ne.s32.totalorder %s106, %s107
      %p119 = scmp.eq.s32.totalorder %s39, 1
      %p120 = por %p118, %p119
      %p122 = scmp.ne.s32.totalorder %s107, %s121
      %p123 = scmp.eq.s32.totalorder %s39, 0
      %p124 = por %p122, %p123
      %s126 = sadd.s32 %s125, 1
      %p129 = scmp.eq.s32.totalorder %s33, 1
      %p130 = scmp.ne.s32.totalorder %s125, %s127
      %p131 = scmp.eq.s32.totalorder %s33, 0
      %p132 = por %p130, %p131
      %p133 = scmp.ne.s32.totalorder %s125, %s127
      %p134 = scmp.eq.s32.totalorder %s38, 1
      %p135 = por %p133, %p134
      %p136 = scmp.ne.s32.totalorder %s127, %s128
      %p137 = scmp.eq.s32.totalorder %s38, 0
      %p138 = por %p136, %p137
      %p139 = scmp.ne.s32.totalorder %s127, %s128
      %p140 = scmp.eq.s32.totalorder %s39, 1
      %p141 = por %p139, %p140
      %p143 = scmp.ne.s32.totalorder %s128, %s142
      %p144 = scmp.eq.s32.totalorder %s39, 0
      %p145 = por %p143, %p144
      %s147 = sadd.s32 %s146, 1
      %p150 = scmp.eq.s32.totalorder %s33, 1
      %p151 = scmp.ne.s32.totalorder %s146, %s148
      %p152 = scmp.eq.s32.totalorder %s33, 0
      %p153 = por %p151, %p152
      %p154 = scmp.ne.s32.totalorder %s146, %s148
      %p155 = scmp.eq.s32.totalorder %s38, 1
      %p156 = por %p154, %p155
      %p157 = scmp.ne.s32.totalorder %s148, %s149
      %p158 = scmp.eq.s32.totalorder %s38, 0
      %p159 = por %p157, %p158
      %p160 = scmp.ne.s32.totalorder %s148, %s149
      %p161 = scmp.eq.s32.totalorder %s39, 1
      %p162 = por %p160, %p161
      %p164 = scmp.ne.s32.totalorder %s149, %s163
      %p165 = scmp.eq.s32.totalorder %s39, 0
      %p166 = por %p164, %p165
      %s168 = sadd.s32 %s167, 1
      %p171 = scmp.eq.s32.totalorder %s33, 1
      %p172 = scmp.ne.s32.totalorder %s167, %s169
      %p173 = scmp.eq.s32.totalorder %s33, 0
      %p174 = por %p172, %p173
      %p175 = scmp.ne.s32.totalorder %s167, %s169
      %p176 = scmp.eq.s32.totalorder %s38, 1
      %p177 = por %p175, %p176
      %p178 = scmp.ne.s32.totalorder %s169, %s170
      %p179 = scmp.eq.s32.totalorder %s38, 0
      %p180 = por %p178, %p179
      %p181 = scmp.ne.s32.totalorder %s169, %s170
      %p182 = scmp.eq.s32.totalorder %s39, 1
      %p183 = por %p181, %p182
      %p185 = scmp.ne.s32.totalorder %s170, %s184
      %p186 = scmp.eq.s32.totalorder %s39, 0
      %p187 = por %p185, %p186
      %s188 = ssub.s32 %s33, %s40
      %p189 = scmp.eq.s32.totalorder %s188, 0
      %s191 = sadd.s32 %s190, 1
      %s192 = scalar_select %p189, %s190, %s191
      %p195 = pneg %p189
      %p196 = scmp.eq.s32.totalorder %s33, 1
      %p197 = por %p195, %p196
      %p198 = scmp.ne.s32.totalorder %s190, %s193
      %p199 = scmp.eq.s32.totalorder %s33, 0
      %p200 = por %p198, %p199
      %p201 = scmp.ne.s32.totalorder %s190, %s193
      %p202 = scmp.eq.s32.totalorder %s38, 1
      %p203 = por %p201, %p202
      %p204 = scmp.ne.s32.totalorder %s193, %s194
      %p205 = scmp.eq.s32.totalorder %s38, 0
      %p206 = por %p204, %p205
      %p207 = scmp.ne.s32.totalorder %s193, %s194
      %p208 = scmp.eq.s32.totalorder %s39, 1
      %p209 = por %p207, %p208
      %p211 = scmp.ne.s32.totalorder %s194, %s210
      %p212 = scmp.eq.s32.totalorder %s39, 0
      %p213 = por %p211, %p212
      %s214 = ssub.s32 %s33, %s40
      %p215 = scmp.eq.s32.totalorder %s214, 0
      %s217 = sadd.s32 %s216, 1
      %s218 = scalar_select %p215, %s216, %s217
      %p221 = pneg %p215
      %p222 = scmp.eq.s32.totalorder %s33, 1
      %p223 = por %p221, %p222
      %p224 = scmp.ne.s32.totalorder %s216, %s219
      %p225 = scmp.eq.s32.totalorder %s33, 0
      %p226 = por %p224, %p225
      %p227 = scmp.ne.s32.totalorder %s216, %s219
      %p228 = scmp.eq.s32.totalorder %s38, 1
      %p229 = por %p227, %p228
      %p230 = scmp.ne.s32.totalorder %s219, %s220
      %p231 = scmp.eq.s32.totalorder %s38, 0
      %p232 = por %p230, %p231
      %p233 = scmp.ne.s32.totalorder %s219, %s220
      %p234 = scmp.eq.s32.totalorder %s39, 1
      %p235 = por %p233, %p234
      %p237 = scmp.ne.s32.totalorder %s220, %s236
      %p238 = scmp.eq.s32.totalorder %s39, 0
      %p239 = por %p237, %p238
      %s240 = ssub.s32 %s33, %s40
      %p241 = scmp.eq.s32.totalorder %s240, 0
      %s243 = sadd.s32 %s242, 1
      %s244 = scalar_select %p241, %s242, %s243
      %p247 = pneg %p241
      %p248 = scmp.eq.s32.totalorder %s33, 1
      %p249 = por %p247, %p248
      %p250 = scmp.ne.s32.totalorder %s242, %s245
      %p251 = scmp.eq.s32.totalorder %s33, 0
      %p252 = por %p250, %p251
      %p253 = scmp.ne.s32.totalorder %s242, %s245
      %p254 = scmp.eq.s32.totalorder %s38, 1
      %p255 = por %p253, %p254
      %p256 = scmp.ne.s32.totalorder %s245, %s246
      %p257 = scmp.eq.s32.totalorder %s38, 0
      %p258 = por %p256, %p257
      %p259 = scmp.ne.s32.totalorder %s245, %s246
      %p260 = scmp.eq.s32.totalorder %s39, 1
      %p261 = por %p259, %p260
      %p263 = scmp.ne.s32.totalorder %s246, %s262
      %p264 = scmp.eq.s32.totalorder %s39, 0
      %p265 = por %p263, %p264
      %s266 = ssub.s32 %s33, %s40
      %p267 = scmp.eq.s32.totalorder %s266, 0
      %s269 = sadd.s32 %s268, 1
      %s270 = scalar_select %p267, %s268, %s269
      %p273 = pneg %p267
      %p274 = scmp.eq.s32.totalorder %s33, 1
      %p275 = por %p273, %p274
      %p276 = scmp.ne.s32.totalorder %s268, %s271
      %p277 = scmp.eq.s32.totalorder %s33, 0
      %p278 = por %p276, %p277
      %p279 = scmp.ne.s32.totalorder %s268, %s271
      %p280 = scmp.eq.s32.totalorder %s38, 1
      %p281 = por %p279, %p280
      %p282 = scmp.ne.s32.totalorder %s271, %s272
      %p283 = scmp.eq.s32.totalorder %s38, 0
      %p284 = por %p282, %p283
      %p285 = scmp.ne.s32.totalorder %s271, %s272
      %p286 = scmp.eq.s32.totalorder %s39, 1
      %p287 = por %p285, %p286
      %p289 = scmp.ne.s32.totalorder %s272, %s288
      %p290 = scmp.eq.s32.totalorder %s39, 0
      %p291 = por %p289, %p290
      %s292 = ssub.s32 %s33, %s40
      %p293 = scmp.eq.s32.totalorder %s292, 0
      %s295 = sadd.s32 %s294, 1
      %s296 = scalar_select %p293, %s294, %s295
      %p299 = pneg %p293
      %p300 = scmp.eq.s32.totalorder %s33, 1
      %p301 = por %p299, %p300
      %p302 = scmp.ne.s32.totalorder %s294, %s297
      %p303 = scmp.eq.s32.totalorder %s33, 0
      %p304 = por %p302, %p303
      %p305 = scmp.ne.s32.totalorder %s294, %s297
      %p306 = scmp.eq.s32.totalorder %s38, 1
      %p307 = por %p305, %p306
      %p308 = scmp.ne.s32.totalorder %s297, %s298
      %p309 = scmp.eq.s32.totalorder %s38, 0
      %p310 = por %p308, %p309
      %p311 = scmp.ne.s32.totalorder %s297, %s298
      %p312 = scmp.eq.s32.totalorder %s39, 1
      %p313 = por %p311, %p312
      %p315 = scmp.ne.s32.totalorder %s298, %s314
      %p316 = scmp.eq.s32.totalorder %s39, 0
      %p317 = por %p315, %p316
      %s319 = sadd.s32 %s318, 1
      %p322 = scmp.eq.s32.totalorder %s33, 1
      %p323 = scmp.ne.s32.totalorder %s318, %s320
      %p324 = scmp.eq.s32.totalorder %s33, 0
      %p325 = por %p323, %p324
      %p326 = scmp.ne.s32.totalorder %s318, %s320
      %p327 = scmp.eq.s32.totalorder %s38, 1
      %p328 = por %p326, %p327
      %p329 = scmp.ne.s32.totalorder %s320, %s321
      %p330 = scmp.eq.s32.totalorder %s38, 0
      %p331 = por %p329, %p330
      %p332 = scmp.ne.s32.totalorder %s320, %s321
      %p333 = scmp.eq.s32.totalorder %s39, 1
      %p334 = por %p332, %p333
      %p336 = scmp.ne.s32.totalorder %s321, %s335
      %p337 = scmp.eq.s32.totalorder %s39, 0
      %p338 = por %p336, %p337
      %s340 = sadd.s32 %s339, 1
      %p343 = scmp.eq.s32.totalorder %s33, 1
      %p344 = scmp.ne.s32.totalorder %s339, %s341
      %p345 = scmp.eq.s32.totalorder %s33, 0
      %p346 = por %p344, %p345
      %p347 = scmp.ne.s32.totalorder %s339, %s341
      %p348 = scmp.eq.s32.totalorder %s38, 1
      %p349 = por %p347, %p348
      %p350 = scmp.ne.s32.totalorder %s341, %s342
      %p351 = scmp.eq.s32.totalorder %s38, 0
      %p352 = por %p350, %p351
      %p353 = scmp.ne.s32.totalorder %s341, %s342
      %p354 = scmp.eq.s32.totalorder %s39, 1
      %p355 = por %p353, %p354
      %p357 = scmp.ne.s32.totalorder %s342, %s356
      %p358 = scmp.eq.s32.totalorder %s39, 0
      %p359 = por %p357, %p358
      %p360 = scmp.le.s32.totalorder 1, %s33
      %p361 = scmp.lt.s32.totalorder %s33, 3
      %p362 = pnand %p360, %p361
      %p363 = pneg %p362
      // Predicated region
      $region9: #{tpu_custom_call.1} parent=5 // pred_check
        _
      $region10: #{tpu_custom_call.1} parent=5 // pred_check_branch
        %365 = sbr.rel (%p362) target = $region12
      $region11: #{tpu_custom_call.1} parent=5 // pred_region
        %s366 = ssub.s32 %s33, 1
        // Predicated region
        $region13: #{tpu_custom_call.1} parent=11 // pred_check
          %p367 = pneg %p54
        $region14: #{tpu_custom_call.1} parent=11 // pred_check_branch
          %369 = sbr.rel (%p367) target = $region16
        $region15: #{tpu_custom_call.1} parent=11 // pred_region
          %s371 = ssub.s32 768, 768
          %372 = vsyncadd [#allocation6], %s371
          %s374 = sshll.u32 [#allocation5], 4
          %s375 = int_to_ptr.vmem [resolvable:$true] %s374
          %377 = dma.hbm_to_vmem [thread:$0]  %s0, 768, %s375, [#allocation6]
        $region16: #{tpu_custom_call.1} parent=11 // pred_fallthru
          _
        // Predicated region
        $region17: #{tpu_custom_call.1} parent=11 // pred_check
          %p378 = pneg %p75
        $region18: #{tpu_custom_call.1} parent=11 // pred_check_branch
          %380 = sbr.rel (%p378) target = $region20
        $region19: #{tpu_custom_call.1} parent=11 // pred_region
          %s382 = ssub.s32 12288, 12288
          %383 = vsyncadd [#allocation9], %s382
          %s384 = sshll.u32 [#allocation8], 4
          %s385 = int_to_ptr.vmem [resolvable:$true] %s384
          %390 = dma.hbm_to_vmem [thread:$0]  %s1, 12288, %s385, [#allocation9], 128, 128, 8
        $region20: #{tpu_custom_call.1} parent=11 // pred_fallthru
          _
        // Predicated region
        $region21: #{tpu_custom_call.1} parent=11 // pred_check
          %p391 = pneg %p96
        $region22: #{tpu_custom_call.1} parent=11 // pred_check_branch
          %393 = sbr.rel (%p391) target = $region24
        $region23: #{tpu_custom_call.1} parent=11 // pred_region
          %s395 = ssub.s32 16, 16
          %396 = vsyncadd [#allocation9], %s395
          %s398 = sshll.u32 [#allocation10], 4
          %s399 = int_to_ptr.vmem [resolvable:$true] %s398
          %401 = dma.hbm_to_vmem [thread:$0]  %s2, 16, %s399, [#allocation9]
        $region24: #{tpu_custom_call.1} parent=11 // pred_fallthru
          _
        // Predicated region
        $region25: #{tpu_custom_call.1} parent=11 // pred_check
          %p402 = pneg %p117
        $region26: #{tpu_custom_call.1} parent=11 // pred_check_branch
          %404 = sbr.rel (%p402) target = $region28
        $region27: #{tpu_custom_call.1} parent=11 // pred_region
          %s406 = ssub.s32 16384, 16384
          %407 = vsyncadd [#allocation12], %s406
          %s408 = sshll.u32 [#allocation11], 4
          %s409 = int_to_ptr.vmem [resolvable:$true] %s408
          %414 = dma.hbm_to_vmem [thread:$0]  %s3, 16384, %s409, [#allocation12], 1024, 1024, 64
        $region28: #{tpu_custom_call.1} parent=11 // pred_fallthru
          _
        // Predicated region
        $region29: #{tpu_custom_call.1} parent=11 // pred_check
          %p415 = pneg %p138
        $region30: #{tpu_custom_call.1} parent=11 // pred_check_branch
          %417 = sbr.rel (%p415) target = $region32
        $region31: #{tpu_custom_call.1} parent=11 // pred_region
          %s419 = ssub.s32 256, 256
          %420 = vsyncadd [#allocation12], %s419
          %s422 = sshll.u32 [#allocation13], 4
          %s423 = int_to_ptr.vmem [resolvable:$true] %s422
          %425 = dma.hbm_to_vmem [thread:$0]  %s4, 256, %s423, [#allocation12]
        $region32: #{tpu_custom_call.1} parent=11 // pred_fallthru
          _
        // Predicated region
        $region33: #{tpu_custom_call.1} parent=11 // pred_check
          %p426 = pneg %p159
        $region34: #{tpu_custom_call.1} parent=11 // pred_check_branch
          %428 = sbr.rel (%p426) target = $region36
        $region35: #{tpu_custom_call.1} parent=11 // pred_region
          %s430 = ssub.s32 256, 256
          %431 = vsyncadd [#allocation15], %s430
          %s433 = sshll.u32 [#allocation14], 4
          %s434 = int_to_ptr.vmem [resolvable:$true] %s433
          %436 = dma.hbm_to_vmem [thread:$0]  %s5, 256, %s434, [#allocation15]
        $region36: #{tpu_custom_call.1} parent=11 // pred_fallthru
          _
        // Predicated region
        $region37: #{tpu_custom_call.1} parent=11 // pred_check
          %p437 = pneg %p180
        $region38: #{tpu_custom_call.1} parent=11 // pred_check_branch
          %439 = sbr.rel (%p437) target = $region40
        $region39: #{tpu_custom_call.1} parent=11 // pred_region
          %s441 = ssub.s32 256, 256
          %442 = vsyncadd [#allocation15], %s441
          %s444 = sshll.u32 [#allocation16], 4
          %s445 = int_to_ptr.vmem [resolvable:$true] %s444
          %447 = dma.hbm_to_vmem [thread:$0]  %s6, 256, %s445, [#allocation15]
        $region40: #{tpu_custom_call.1} parent=11 // pred_fallthru
          _
        // Predicated region
        $region41: #{tpu_custom_call.1} parent=11 // pred_check
          %p448 = pneg %p331
        $region42: #{tpu_custom_call.1} parent=11 // pred_check_branch
          %450 = sbr.rel (%p448) target = $region44
        $region43: #{tpu_custom_call.1} parent=11 // pred_region
          %s452 = ssub.s32 16, 16
          %453 = vsyncadd [#allocation24], %s452
          %s455 = sshll.u32 [#allocation25], 4
          %s456 = int_to_ptr.vmem [resolvable:$true] %s455
          %458 = dma.hbm_to_vmem [thread:$0]  %s12, 16, %s456, [#allocation24]
        $region44: #{tpu_custom_call.1} parent=11 // pred_fallthru
          _
      $region12: #{tpu_custom_call.1} parent=5 // pred_fallthru
        _
      %p459 = scmp.lt.s32.totalorder %s33, 2
      // Predicated region
      $region45: #{tpu_custom_call.1} parent=5 // pred_check
        %p460 = pneg %p459
      $region46: #{tpu_custom_call.1} parent=5 // pred_check_branch
        %462 = sbr.rel (%p460) target = $region48
      $region47: #{tpu_custom_call.1} parent=5 // pred_region
        // Predicated region
        $region49: #{tpu_custom_call.1} parent=47 // pred_check
          %p463 = pneg %p200
        $region50: #{tpu_custom_call.1} parent=47 // pred_check_branch
          %465 = sbr.rel (%p463) target = $region52
        $region51: #{tpu_custom_call.1} parent=47 // pred_region
          %s466 = sand.u32 %s33, 1
          %s467 = scalar_lea.sflag [#allocation18], %s466
          %s468 = sand.u32 %s190, 1
          %s469 = smul.addr %s468, 8192
          %s470 = scalar_lea.vmem [#allocation17], %s469
          %s471 = smul.u32 8, %s33
          %s473 = ssub.s32 131072, 131072
          %474 = vsyncadd %s467, %s473
          %s475 = smul.addr %s471, 64
          %s476 = scalar_lea.hbm %s7, %s475
          %s477 = sshll.u32 %s470, 4
          %s478 = int_to_ptr.vmem [resolvable:$true] %s477
          %483 = dma.hbm_to_vmem [thread:$0]  %s476, 131072, %s478, %s467, 1024, 512, 32
        $region52: #{tpu_custom_call.1} parent=47 // pred_fallthru
          _
        // Predicated region
        $region53: #{tpu_custom_call.1} parent=47 // pred_check
          %p484 = pneg %p226
        $region54: #{tpu_custom_call.1} parent=47 // pred_check_branch
          %486 = sbr.rel (%p484) target = $region56
        $region55: #{tpu_custom_call.1} parent=47 // pred_region
          %s487 = sand.u32 %s33, 1
          %s488 = scalar_lea.sflag [#allocation18], %s487
          %s489 = sand.u32 %s216, 1
          %s490 = smul.addr %s489, 8
          %s491 = scalar_lea.vmem [#allocation19], %s490
          %s492 = smul.u32 8, %s33
          %s494 = ssub.s32 128, 128
          %495 = vsyncadd %s488, %s494
          %s496 = smul.addr %s492, 16
          %s497 = scalar_lea.hbm %s8, %s496
          %s499 = sshll.u32 %s491, 4
          %s500 = int_to_ptr.vmem [resolvable:$true] %s499
          %502 = dma.hbm_to_vmem [thread:$0]  %s497, 128, %s500, %s488
        $region56: #{tpu_custom_call.1} parent=47 // pred_fallthru
          _
        // Predicated region
        $region57: #{tpu_custom_call.1} parent=47 // pred_check
          %p503 = pneg %p252
        $region58: #{tpu_custom_call.1} parent=47 // pred_check_branch
          %505 = sbr.rel (%p503) target = $region60
        $region59: #{tpu_custom_call.1} parent=47 // pred_region
          %s506 = sand.u32 %s33, 1
          %s507 = scalar_lea.sflag [#allocation21], %s506
          %s508 = sand.u32 %s242, 1
          %s509 = smul.addr %s508, 8
          %s510 = scalar_lea.vmem [#allocation20], %s509
          %s511 = smul.u32 8, %s33
          %s513 = ssub.s32 128, 128
          %514 = vsyncadd %s507, %s513
          %s515 = smul.addr %s511, 16
          %s516 = scalar_lea.hbm %s9, %s515
          %s518 = sshll.u32 %s510, 4
          %s519 = int_to_ptr.vmem [resolvable:$true] %s518
          %521 = dma.hbm_to_vmem [thread:$0]  %s516, 128, %s519, %s507
        $region60: #{tpu_custom_call.1} parent=47 // pred_fallthru
          _
        // Predicated region
        $region61: #{tpu_custom_call.1} parent=47 // pred_check
          %p522 = pneg %p278
        $region62: #{tpu_custom_call.1} parent=47 // pred_check_branch
          %524 = sbr.rel (%p522) target = $region64
        $region63: #{tpu_custom_call.1} parent=47 // pred_region
          %s525 = sand.u32 %s33, 1
          %s526 = scalar_lea.sflag [#allocation21], %s525
          %s527 = sand.u32 %s268, 1
          %s528 = smul.addr %s527, 8
          %s529 = scalar_lea.vmem [#allocation22], %s528
          %s530 = smul.u32 8, %s33
          %s532 = ssub.s32 128, 128
          %533 = vsyncadd %s526, %s532
          %s534 = smul.addr %s530, 16
          %s535 = scalar_lea.hbm %s10, %s534
          %s537 = sshll.u32 %s529, 4
          %s538 = int_to_ptr.vmem [resolvable:$true] %s537
          %540 = dma.hbm_to_vmem [thread:$0]  %s535, 128, %s538, %s526
        $region64: #{tpu_custom_call.1} parent=47 // pred_fallthru
          _
        // Predicated region
        $region65: #{tpu_custom_call.1} parent=47 // pred_check
          %p541 = pneg %p304
        $region66: #{tpu_custom_call.1} parent=47 // pred_check_branch
          %543 = sbr.rel (%p541) target = $region68
        $region67: #{tpu_custom_call.1} parent=47 // pred_region
          %s544 = sand.u32 %s33, 1
          %s545 = scalar_lea.sflag [#allocation24], %s544
          %s546 = sand.u32 %s294, 1
          %s547 = smul.addr %s546, 512
          %s548 = scalar_lea.vmem [#allocation23], %s547
          %s549 = smul.u32 128, %s33
          %s551 = ssub.s32 8192, 8192
          %552 = vsyncadd %s545, %s551
          %s553 = smul.addr %s549, 64
          %s554 = scalar_lea.hbm %s11, %s553
          %s555 = sshll.u32 %s548, 4
          %s556 = int_to_ptr.vmem [resolvable:$true] %s555
          %561 = dma.hbm_to_vmem [thread:$0]  %s554, 8192, %s556, %s545, 64, 64, 4
        $region68: #{tpu_custom_call.1} parent=47 // pred_fallthru
          _
      $region48: #{tpu_custom_call.1} parent=5 // pred_fallthru
        _
      %p562 = scmp.le.s32.totalorder 1, %s33
      %p563 = scmp.lt.s32.totalorder %s33, 3
      %p564 = pnand %p562, %p563
      %p565 = pneg %p564
      // Predicated region
      $region69: #{tpu_custom_call.1} parent=5 // pred_check
        _
      $region70: #{tpu_custom_call.1} parent=5 // pred_check_branch
        %567 = sbr.rel (%p564) target = $region72
      $region71: #{tpu_custom_call.1} parent=5 // pred_region
        %s568 = ssub.s32 %s33, 1
        // Predicated region
        $region73: #{tpu_custom_call.1} parent=71 // pred_check
          %p569 = pneg %p54
        $region74: #{tpu_custom_call.1} parent=71 // pred_check_branch
          %571 = sbr.rel (%p569) target = $region76
        $region75: #{tpu_custom_call.1} parent=71 // pred_region
          %572 = dma.done [#allocation6], 768
        $region76: #{tpu_custom_call.1} parent=71 // pred_fallthru
          _
        // Predicated region
        $region77: #{tpu_custom_call.1} parent=71 // pred_check
          %p573 = pneg %p75
        $region78: #{tpu_custom_call.1} parent=71 // pred_check_branch
          %575 = sbr.rel (%p573) target = $region80
        $region79: #{tpu_custom_call.1} parent=71 // pred_region
          %576 = dma.done [#allocation9], 12288
        $region80: #{tpu_custom_call.1} parent=71 // pred_fallthru
          _
        // Predicated region
        $region81: #{tpu_custom_call.1} parent=71 // pred_check
          %p577 = pneg %p96
        $region82: #{tpu_custom_call.1} parent=71 // pred_check_branch
          %579 = sbr.rel (%p577) target = $region84
        $region83: #{tpu_custom_call.1} parent=71 // pred_region
          %580 = dma.done [#allocation9], 16
        $region84: #{tpu_custom_call.1} parent=71 // pred_fallthru
          _
        // Predicated region
        $region85: #{tpu_custom_call.1} parent=71 // pred_check
          %p581 = pneg %p117
        $region86: #{tpu_custom_call.1} parent=71 // pred_check_branch
          %583 = sbr.rel (%p581) target = $region88
        $region87: #{tpu_custom_call.1} parent=71 // pred_region
          %584 = dma.done [#allocation12], 16384
        $region88: #{tpu_custom_call.1} parent=71 // pred_fallthru
          _
        // Predicated region
        $region89: #{tpu_custom_call.1} parent=71 // pred_check
          %p585 = pneg %p138
        $region90: #{tpu_custom_call.1} parent=71 // pred_check_branch
          %587 = sbr.rel (%p585) target = $region92
        $region91: #{tpu_custom_call.1} parent=71 // pred_region
          %588 = dma.done [#allocation12], 256
        $region92: #{tpu_custom_call.1} parent=71 // pred_fallthru
          _
        // Predicated region
        $region93: #{tpu_custom_call.1} parent=71 // pred_check
          %p589 = pneg %p159
        $region94: #{tpu_custom_call.1} parent=71 // pred_check_branch
          %591 = sbr.rel (%p589) target = $region96
        $region95: #{tpu_custom_call.1} parent=71 // pred_region
          %592 = dma.done [#allocation15], 256
        $region96: #{tpu_custom_call.1} parent=71 // pred_fallthru
          _
        // Predicated region
        $region97: #{tpu_custom_call.1} parent=71 // pred_check
          %p593 = pneg %p180
        $region98: #{tpu_custom_call.1} parent=71 // pred_check_branch
          %595 = sbr.rel (%p593) target = $region100
        $region99: #{tpu_custom_call.1} parent=71 // pred_region
          %596 = dma.done [#allocation15], 256
        $region100: #{tpu_custom_call.1} parent=71 // pred_fallthru
          _
        %s597 = sand.u32 %s38, 1
        %s598 = scalar_lea.sflag [#allocation18], %s597
        %s599 = sand.u32 %s193, 1
        %s600 = smul.addr %s599, 8192
        %s601 = scalar_lea.vmem [#allocation17], %s600
        // Predicated region
        $region101: #{tpu_custom_call.1} parent=71 // pred_check
          %p602 = pneg %p206
        $region102: #{tpu_custom_call.1} parent=71 // pred_check_branch
          %604 = sbr.rel (%p602) target = $region104
        $region103: #{tpu_custom_call.1} parent=71 // pred_region
          %605 = dma.done %s598, 131072
        $region104: #{tpu_custom_call.1} parent=71 // pred_fallthru
          _
        %s606 = sand.u32 %s38, 1
        %s607 = scalar_lea.sflag [#allocation18], %s606
        %s608 = sand.u32 %s219, 1
        %s609 = smul.addr %s608, 8
        %s610 = scalar_lea.vmem [#allocation19], %s609
        // Predicated region
        $region105: #{tpu_custom_call.1} parent=71 // pred_check
          %p611 = pneg %p232
        $region106: #{tpu_custom_call.1} parent=71 // pred_check_branch
          %613 = sbr.rel (%p611) target = $region108
        $region107: #{tpu_custom_call.1} parent=71 // pred_region
          %614 = dma.done %s607, 128
        $region108: #{tpu_custom_call.1} parent=71 // pred_fallthru
          _
        %s615 = sand.u32 %s38, 1
        %s616 = scalar_lea.sflag [#allocation21], %s615
        %s617 = sand.u32 %s245, 1
        %s618 = smul.addr %s617, 8
        %s619 = scalar_lea.vmem [#allocation20], %s618
        // Predicated region
        $region109: #{tpu_custom_call.1} parent=71 // pred_check
          %p620 = pneg %p258
        $region110: #{tpu_custom_call.1} parent=71 // pred_check_branch
          %622 = sbr.rel (%p620) target = $region112
        $region111: #{tpu_custom_call.1} parent=71 // pred_region
          %623 = dma.done %s616, 128
        $region112: #{tpu_custom_call.1} parent=71 // pred_fallthru
          _
        %s624 = sand.u32 %s38, 1
        %s625 = scalar_lea.sflag [#allocation21], %s624
        %s626 = sand.u32 %s271, 1
        %s627 = smul.addr %s626, 8
        %s628 = scalar_lea.vmem [#allocation22], %s627
        // Predicated region
        $region113: #{tpu_custom_call.1} parent=71 // pred_check
          %p629 = pneg %p284
        $region114: #{tpu_custom_call.1} parent=71 // pred_check_branch
          %631 = sbr.rel (%p629) target = $region116
        $region115: #{tpu_custom_call.1} parent=71 // pred_region
          %632 = dma.done %s625, 128
        $region116: #{tpu_custom_call.1} parent=71 // pred_fallthru
          _
        %s633 = sand.u32 %s38, 1
        %s634 = scalar_lea.sflag [#allocation24], %s633
        %s635 = sand.u32 %s297, 1
        %s636 = smul.addr %s635, 512
        %s637 = scalar_lea.vmem [#allocation23], %s636
        // Predicated region
        $region117: #{tpu_custom_call.1} parent=71 // pred_check
          %p638 = pneg %p310
        $region118: #{tpu_custom_call.1} parent=71 // pred_check_branch
          %640 = sbr.rel (%p638) target = $region120
        $region119: #{tpu_custom_call.1} parent=71 // pred_region
          %641 = dma.done %s634, 8192
        $region120: #{tpu_custom_call.1} parent=71 // pred_fallthru
          _
        // Predicated region
        $region121: #{tpu_custom_call.1} parent=71 // pred_check
          %p642 = pneg %p331
        $region122: #{tpu_custom_call.1} parent=71 // pred_check_branch
          %644 = sbr.rel (%p642) target = $region124
        $region123: #{tpu_custom_call.1} parent=71 // pred_region
          %645 = dma.done [#allocation24], 16
        $region124: #{tpu_custom_call.1} parent=71 // pred_fallthru
          _
        %p646 = pneg %p54
        %p647 = pneg %p51
        %p648 = pneg %p75
        %p649 = pneg %p72
        %p650 = pneg %p96
        %p651 = pneg %p93
        %p652 = pneg %p117
        %p653 = pneg %p114
        %p654 = pneg %p138
        %p655 = pneg %p135
        %p656 = pneg %p159
        %p657 = pneg %p156
        %p658 = pneg %p180
        %p659 = pneg %p177
        %s660 = sand.u32 %s38, 1
        %s661 = scalar_lea.sflag [#allocation18], %s660
        %s662 = sand.u32 %s193, 1
        %s663 = smul.addr %s662, 8192
        %s664 = scalar_lea.vmem [#allocation17], %s663
        %p665 = pneg %p206
        %p666 = pneg %p203
        %s667 = sand.u32 %s38, 1
        %s668 = scalar_lea.sflag [#allocation18], %s667
        %s669 = sand.u32 %s219, 1
        %s670 = smul.addr %s669, 8
        %s671 = scalar_lea.vmem [#allocation19], %s670
        %p672 = pneg %p232
        %p673 = pneg %p229
        %s674 = sand.u32 %s38, 1
        %s675 = scalar_lea.sflag [#allocation21], %s674
        %s676 = sand.u32 %s245, 1
        %s677 = smul.addr %s676, 8
        %s678 = scalar_lea.vmem [#allocation20], %s677
        %p679 = pneg %p258
        %p680 = pneg %p255
        %s681 = sand.u32 %s38, 1
        %s682 = scalar_lea.sflag [#allocation21], %s681
        %s683 = sand.u32 %s271, 1
        %s684 = smul.addr %s683, 8
        %s685 = scalar_lea.vmem [#allocation22], %s684
        %p686 = pneg %p284
        %p687 = pneg %p281
        %s688 = sand.u32 %s38, 1
        %s689 = scalar_lea.sflag [#allocation24], %s688
        %s690 = sand.u32 %s297, 1
        %s691 = smul.addr %s690, 512
        %s692 = scalar_lea.vmem [#allocation23], %s691
        %p693 = pneg %p310
        %p694 = pneg %p307
        %p695 = pneg %p331
        %p696 = pneg %p328
        %p697 = pneg %p352
        %p698 = pneg %p349
        %s699 = smul.u32 8, %s38
        %s700 = smul.u32 8, %s38
        %s701 = smul.u32 8, %s38
        %s702 = smul.u32 8, %s38
        %s703 = smul.u32 128, %s38
        %p705 = scmp.eq.s32.totalorder %s38, 0
        // Predicated region
        $region125: #{tpu_custom_call.1} parent=71 // pred_check
          %p706 = pneg %p705
        $region126: #{tpu_custom_call.1} parent=71 // pred_check_branch
          %708 = sbr.rel (%p706) target = $region128
        $region127: #{tpu_custom_call.1} parent=71 // pred_region
          %v709 = vld [vmem:[#allocation5] sm:$0xff]
          %v710 = vld [vmem:[#allocation5 + $0x8] sm:$0xff]
          %v711 = vld [vmem:[#allocation5 + $0x10] sm:$0xff]
          %v712 = vld [vmem:[#allocation5 + $0x18] sm:$0xff]
          %v713 = vld [vmem:[#allocation5 + $0x20] sm:$0xff]
          %v714 = vld [vmem:[#allocation5 + $0x28] sm:$0xff]
          %v715 = vld [vmem:[#allocation8] sm:$0xff]
          %v716 = vld [vmem:[#allocation8 + $0x8] sm:$0xff]
          %v717 = vld [vmem:[#allocation8 + $0x10] sm:$0xff]
          %v718 = vld [vmem:[#allocation8 + $0x18] sm:$0xff]
          %v719 = vld [vmem:[#allocation8 + $0x20] sm:$0xff]
          %v720 = vld [vmem:[#allocation8 + $0x28] sm:$0xff]
          %v721 = vld [vmem:[#allocation8 + $0x30] sm:$0xff]
          %v722 = vld [vmem:[#allocation8 + $0x38] sm:$0xff]
          %v723 = vld [vmem:[#allocation8 + $0x40] sm:$0xff]
          %v724 = vld [vmem:[#allocation8 + $0x48] sm:$0xff]
          %v725 = vld [vmem:[#allocation8 + $0x50] sm:$0xff]
          %v726 = vld [vmem:[#allocation8 + $0x58] sm:$0xff]
          %v727 = vld [vmem:[#allocation8 + $0x60] sm:$0xff]
          %v728 = vld [vmem:[#allocation8 + $0x68] sm:$0xff]
          %v729 = vld [vmem:[#allocation8 + $0x70] sm:$0xff]
          %v730 = vld [vmem:[#allocation8 + $0x78] sm:$0xff]
          %v731 = vld [vmem:[#allocation8 + $0x80] sm:$0xff]
          %v732 = vld [vmem:[#allocation8 + $0x88] sm:$0xff]
          %v733 = vld [vmem:[#allocation8 + $0x90] sm:$0xff]
          %v734 = vld [vmem:[#allocation8 + $0x98] sm:$0xff]
          %v735 = vld [vmem:[#allocation8 + $0xa0] sm:$0xff]
          %v736 = vld [vmem:[#allocation8 + $0xa8] sm:$0xff]
          %v737 = vld [vmem:[#allocation8 + $0xb0] sm:$0xff]
          %v738 = vld [vmem:[#allocation8 + $0xb8] sm:$0xff]
          %v739 = vld [vmem:[#allocation8 + $0xc0] sm:$0xff]
          %v740 = vld [vmem:[#allocation8 + $0xc8] sm:$0xff]
          %v741 = vld [vmem:[#allocation8 + $0xd0] sm:$0xff]
          %v742 = vld [vmem:[#allocation8 + $0xd8] sm:$0xff]
          %v743 = vld [vmem:[#allocation8 + $0xe0] sm:$0xff]
          %v744 = vld [vmem:[#allocation8 + $0xe8] sm:$0xff]
          %v745 = vld [vmem:[#allocation8 + $0xf0] sm:$0xff]
          %v746 = vld [vmem:[#allocation8 + $0xf8] sm:$0xff]
          %v747 = vld [vmem:[#allocation8 + $0x100] sm:$0xff]
          %v748 = vld [vmem:[#allocation8 + $0x108] sm:$0xff]
          %v749 = vld [vmem:[#allocation8 + $0x110] sm:$0xff]
          %v750 = vld [vmem:[#allocation8 + $0x118] sm:$0xff]
          %v751 = vld [vmem:[#allocation8 + $0x120] sm:$0xff]
          %v752 = vld [vmem:[#allocation8 + $0x128] sm:$0xff]
          %v753 = vld [vmem:[#allocation8 + $0x130] sm:$0xff]
          %v754 = vld [vmem:[#allocation8 + $0x138] sm:$0xff]
          %v755 = vld [vmem:[#allocation8 + $0x140] sm:$0xff]
          %v756 = vld [vmem:[#allocation8 + $0x148] sm:$0xff]
          %v757 = vld [vmem:[#allocation8 + $0x150] sm:$0xff]
          %v758 = vld [vmem:[#allocation8 + $0x158] sm:$0xff]
          %v759 = vld [vmem:[#allocation8 + $0x160] sm:$0xff]
          %v760 = vld [vmem:[#allocation8 + $0x168] sm:$0xff]
          %v761 = vld [vmem:[#allocation8 + $0x170] sm:$0xff]
          %v762 = vld [vmem:[#allocation8 + $0x178] sm:$0xff]
          %v763 = vld [vmem:[#allocation8 + $0x180] sm:$0xff]
          %v764 = vld [vmem:[#allocation8 + $0x188] sm:$0xff]
          %v765 = vld [vmem:[#allocation8 + $0x190] sm:$0xff]
          %v766 = vld [vmem:[#allocation8 + $0x198] sm:$0xff]
          %v767 = vld [vmem:[#allocation8 + $0x1a0] sm:$0xff]
          %v768 = vld [vmem:[#allocation8 + $0x1a8] sm:$0xff]
          %v769 = vld [vmem:[#allocation8 + $0x1b0] sm:$0xff]
          %v770 = vld [vmem:[#allocation8 + $0x1b8] sm:$0xff]
          %v771 = vld [vmem:[#allocation8 + $0x1c0] sm:$0xff]
          %v772 = vld [vmem:[#allocation8 + $0x1c8] sm:$0xff]
          %v773 = vld [vmem:[#allocation8 + $0x1d0] sm:$0xff]
          %v774 = vld [vmem:[#allocation8 + $0x1d8] sm:$0xff]
          %v775 = vld [vmem:[#allocation8 + $0x1e0] sm:$0xff]
          %v776 = vld [vmem:[#allocation8 + $0x1e8] sm:$0xff]
          %v777 = vld [vmem:[#allocation8 + $0x1f0] sm:$0xff]
          %v778 = vld [vmem:[#allocation8 + $0x1f8] sm:$0xff]
          %v779 = vld [vmem:[#allocation8 + $0x200] sm:$0xff]
          %v780 = vld [vmem:[#allocation8 + $0x208] sm:$0xff]
          %v781 = vld [vmem:[#allocation8 + $0x210] sm:$0xff]
          %v782 = vld [vmem:[#allocation8 + $0x218] sm:$0xff]
          %v783 = vld [vmem:[#allocation8 + $0x220] sm:$0xff]
          %v784 = vld [vmem:[#allocation8 + $0x228] sm:$0xff]
          %v785 = vld [vmem:[#allocation8 + $0x230] sm:$0xff]
          %v786 = vld [vmem:[#allocation8 + $0x238] sm:$0xff]
          %v787 = vld [vmem:[#allocation8 + $0x240] sm:$0xff]
          %v788 = vld [vmem:[#allocation8 + $0x248] sm:$0xff]
          %v789 = vld [vmem:[#allocation8 + $0x250] sm:$0xff]
          %v790 = vld [vmem:[#allocation8 + $0x258] sm:$0xff]
          %v791 = vld [vmem:[#allocation8 + $0x260] sm:$0xff]
          %v792 = vld [vmem:[#allocation8 + $0x268] sm:$0xff]
          %v793 = vld [vmem:[#allocation8 + $0x270] sm:$0xff]
          %v794 = vld [vmem:[#allocation8 + $0x278] sm:$0xff]
          %v795 = vld [vmem:[#allocation8 + $0x280] sm:$0xff]
          %v796 = vld [vmem:[#allocation8 + $0x288] sm:$0xff]
          %v797 = vld [vmem:[#allocation8 + $0x290] sm:$0xff]
          %v798 = vld [vmem:[#allocation8 + $0x298] sm:$0xff]
          %v799 = vld [vmem:[#allocation8 + $0x2a0] sm:$0xff]
          %v800 = vld [vmem:[#allocation8 + $0x2a8] sm:$0xff]
          %v801 = vld [vmem:[#allocation8 + $0x2b0] sm:$0xff]
          %v802 = vld [vmem:[#allocation8 + $0x2b8] sm:$0xff]
          %v803 = vld [vmem:[#allocation8 + $0x2c0] sm:$0xff]
          %v804 = vld [vmem:[#allocation8 + $0x2c8] sm:$0xff]
          %v805 = vld [vmem:[#allocation8 + $0x2d0] sm:$0xff]
          %v806 = vld [vmem:[#allocation8 + $0x2d8] sm:$0xff]
          %v807 = vld [vmem:[#allocation8 + $0x2e0] sm:$0xff]
          %v808 = vld [vmem:[#allocation8 + $0x2e8] sm:$0xff]
          %v809 = vld [vmem:[#allocation8 + $0x2f0] sm:$0xff]
          %v810 = vld [vmem:[#allocation8 + $0x2f8] sm:$0xff]
          %v811 = vld [vmem:[#allocation10] sm:$0x1]
          %v813 = vlaneseq
          %v814 = vshrl.u32 %v813, 7
          %v815 = vsub.s32 0, %v814
          %v816 = vrot.slane %v811, %v815
          %818 = vmatprep.subr.mxu0 0.0
          %819 = vmatpush1.msra.mxu0 %v730
          %820 = vmatprep.subr.mxu0 0.0
          %821 = vmatpush1.msra.mxu0 %v729
          %822 = vmatprep.subr.mxu0 0.0
          %823 = vmatpush1.msra.mxu0 %v728
          %824 = vmatprep.subr.mxu0 0.0
          %825 = vmatpush1.msra.mxu0 %v727
          %826 = vmatprep.subr.mxu0 0.0
          %827 = vmatpush1.msra.mxu0 %v726
          %828 = vmatprep.subr.mxu0 0.0
          %829 = vmatpush1.msra.mxu0 %v725
          %830 = vmatprep.subr.mxu0 0.0
          %831 = vmatpush1.msra.mxu0 %v724
          %832 = vmatprep.subr.mxu0 0.0
          %833 = vmatpush1.msra.mxu0 %v723
          %834 = vmatprep.subr.mxu0 0.0
          %835 = vmatpush1.msra.mxu0 %v722
          %836 = vmatprep.subr.mxu0 0.0
          %837 = vmatpush1.msra.mxu0 %v721
          %838 = vmatprep.subr.mxu0 0.0
          %839 = vmatpush1.msra.mxu0 %v720
          %840 = vmatprep.subr.mxu0 0.0
          %841 = vmatpush1.msra.mxu0 %v719
          %842 = vmatprep.subr.mxu0 0.0
          %843 = vmatpush1.msra.mxu0 %v718
          %844 = vmatprep.subr.mxu0 0.0
          %845 = vmatpush1.msra.mxu0 %v717
          %846 = vmatprep.subr.mxu0 0.0
          %847 = vmatpush1.msra.mxu0 %v716
          %848 = vmatprep.subr.mxu0 0.0
          %849 = vmatpush1.msra.mxu0 %v715
          %850 = vmatprep.subr.mxu0 0.0
          %851 = vmatpush2.msra.mxu0 %v746
          %852 = vmatprep.subr.mxu0 0.0
          %853 = vmatpush2.msra.mxu0 %v745
          %854 = vmatprep.subr.mxu0 0.0
          %855 = vmatpush2.msra.mxu0 %v744
          %856 = vmatprep.subr.mxu0 0.0
          %857 = vmatpush2.msra.mxu0 %v743
          %858 = vmatprep.subr.mxu0 0.0
          %859 = vmatpush2.msra.mxu0 %v742
          %860 = vmatprep.subr.mxu0 0.0
          %861 = vmatpush2.msra.mxu0 %v741
          %862 = vmatprep.subr.mxu0 0.0
          %863 = vmatpush2.msra.mxu0 %v740
          %864 = vmatprep.subr.mxu0 0.0
          %865 = vmatpush2.msra.mxu0 %v739
          %866 = vmatprep.subr.mxu0 0.0
          %867 = vmatpush2.msra.mxu0 %v738
          %868 = vmatprep.subr.mxu0 0.0
          %869 = vmatpush2.msra.mxu0 %v737
          %870 = vmatprep.subr.mxu0 0.0
          %871 = vmatpush2.msra.mxu0 %v736
          %872 = vmatprep.subr.mxu0 0.0
          %873 = vmatpush2.msra.mxu0 %v735
          %874 = vmatprep.subr.mxu0 0.0
          %875 = vmatpush2.msra.mxu0 %v734
          %876 = vmatprep.subr.mxu0 0.0
          %877 = vmatpush2.msra.mxu0 %v733
          %878 = vmatprep.subr.mxu0 0.0
          %879 = vmatpush2.msra.mxu0 %v732
          %880 = vmatprep.subr.mxu0 0.0
          %881 = vmatpush2.msra.mxu0 %v731
          %882 = vmatprep.mubr.f32.mxu0 %v710
          %883 = vmatmul.mubr.f32.gmra.mxu0 %v709
          %v884 = vpop.f32.mrf.mxu0
          %v885 = vadd.f32 %v816, %v884
          %v886 = vpop.f32.mrf.mxu0
          %887 = vdwg.mxu0
          %888 = vmatprep.subr.mxu0 0.0
          %889 = vmatpush1.msra.mxu0 %v762
          %890 = vmatprep.subr.mxu0 0.0
          %891 = vmatpush1.msra.mxu0 %v761
          %892 = vmatprep.subr.mxu0 0.0
          %893 = vmatpush1.msra.mxu0 %v760
          %894 = vmatprep.subr.mxu0 0.0
          %895 = vmatpush1.msra.mxu0 %v759
          %896 = vmatprep.subr.mxu0 0.0
          %897 = vmatpush1.msra.mxu0 %v758
          %898 = vmatprep.subr.mxu0 0.0
          %899 = vmatpush1.msra.mxu0 %v757
          %900 = vmatprep.subr.mxu0 0.0
          %901 = vmatpush1.msra.mxu0 %v756
          %902 = vmatprep.subr.mxu0 0.0
          %903 = vmatpush1.msra.mxu0 %v755
          %904 = vmatprep.subr.mxu0 0.0
          %905 = vmatpush1.msra.mxu0 %v754
          %906 = vmatprep.subr.mxu0 0.0
          %907 = vmatpush1.msra.mxu0 %v753
          %908 = vmatprep.subr.mxu0 0.0
          %909 = vmatpush1.msra.mxu0 %v752
          %910 = vmatprep.subr.mxu0 0.0
          %911 = vmatpush1.msra.mxu0 %v751
          %912 = vmatprep.subr.mxu0 0.0
          %913 = vmatpush1.msra.mxu0 %v750
          %914 = vmatprep.subr.mxu0 0.0
          %915 = vmatpush1.msra.mxu0 %v749
          %916 = vmatprep.subr.mxu0 0.0
          %917 = vmatpush1.msra.mxu0 %v748
          %918 = vmatprep.subr.mxu0 0.0
          %919 = vmatpush1.msra.mxu0 %v747
          %920 = vmatprep.subr.mxu0 0.0
          %921 = vmatpush2.msra.mxu0 %v778
          %922 = vmatprep.subr.mxu0 0.0
          %923 = vmatpush2.msra.mxu0 %v777
          %924 = vmatprep.subr.mxu0 0.0
          %925 = vmatpush2.msra.mxu0 %v776
          %926 = vmatprep.subr.mxu0 0.0
          %927 = vmatpush2.msra.mxu0 %v775
          %928 = vmatprep.subr.mxu0 0.0
          %929 = vmatpush2.msra.mxu0 %v774
          %930 = vmatprep.subr.mxu0 0.0
          %931 = vmatpush2.msra.mxu0 %v773
          %932 = vmatprep.subr.mxu0 0.0
          %933 = vmatpush2.msra.mxu0 %v772
          %934 = vmatprep.subr.mxu0 0.0
          %935 = vmatpush2.msra.mxu0 %v771
          %936 = vmatprep.subr.mxu0 0.0
          %937 = vmatpush2.msra.mxu0 %v770
          %938 = vmatprep.subr.mxu0 0.0
          %939 = vmatpush2.msra.mxu0 %v769
          %940 = vmatprep.subr.mxu0 0.0
          %941 = vmatpush2.msra.mxu0 %v768
          %942 = vmatprep.subr.mxu0 0.0
          %943 = vmatpush2.msra.mxu0 %v767
          %944 = vmatprep.subr.mxu0 0.0
          %945 = vmatpush2.msra.mxu0 %v766
          %946 = vmatprep.subr.mxu0 0.0
          %947 = vmatpush2.msra.mxu0 %v765
          %948 = vmatprep.subr.mxu0 0.0
          %949 = vmatpush2.msra.mxu0 %v764
          %950 = vmatprep.subr.mxu0 0.0
          %951 = vmatpush2.msra.mxu0 %v763
          %952 = vmatprep.mubr.f32.mxu0 %v712
          %953 = vmatmul.mubr.f32.gmra.mxu0 %v711
          %v954 = vpop.f32.mrf.mxu0
          %v955 = vadd.f32 %v885, %v954
          %v956 = vpop.f32.mrf.mxu0
          %957 = vdwg.mxu0
          %958 = vmatprep.subr.mxu0 0.0
          %959 = vmatpush1.msra.mxu0 %v794
          %960 = vmatprep.subr.mxu0 0.0
          %961 = vmatpush1.msra.mxu0 %v793
          %962 = vmatprep.subr.mxu0 0.0
          %963 = vmatpush1.msra.mxu0 %v792
          %964 = vmatprep.subr.mxu0 0.0
          %965 = vmatpush1.msra.mxu0 %v791
          %966 = vmatprep.subr.mxu0 0.0
          %967 = vmatpush1.msra.mxu0 %v790
          %968 = vmatprep.subr.mxu0 0.0
          %969 = vmatpush1.msra.mxu0 %v789
          %970 = vmatprep.subr.mxu0 0.0
          %971 = vmatpush1.msra.mxu0 %v788
          %972 = vmatprep.subr.mxu0 0.0
          %973 = vmatpush1.msra.mxu0 %v787
          %974 = vmatprep.subr.mxu0 0.0
          %975 = vmatpush1.msra.mxu0 %v786
          %976 = vmatprep.subr.mxu0 0.0
          %977 = vmatpush1.msra.mxu0 %v785
          %978 = vmatprep.subr.mxu0 0.0
          %979 = vmatpush1.msra.mxu0 %v784
          %980 = vmatprep.subr.mxu0 0.0
          %981 = vmatpush1.msra.mxu0 %v783
          %982 = vmatprep.subr.mxu0 0.0
          %983 = vmatpush1.msra.mxu0 %v782
          %984 = vmatprep.subr.mxu0 0.0
          %985 = vmatpush1.msra.mxu0 %v781
          %986 = vmatprep.subr.mxu0 0.0
          %987 = vmatpush1.msra.mxu0 %v780
          %988 = vmatprep.subr.mxu0 0.0
          %989 = vmatpush1.msra.mxu0 %v779
          %990 = vmatprep.subr.mxu0 0.0
          %991 = vmatpush2.msra.mxu0 %v810
          %992 = vmatprep.subr.mxu0 0.0
          %993 = vmatpush2.msra.mxu0 %v809
          %994 = vmatprep.subr.mxu0 0.0
          %995 = vmatpush2.msra.mxu0 %v808
          %996 = vmatprep.subr.mxu0 0.0
          %997 = vmatpush2.msra.mxu0 %v807
          %998 = vmatprep.subr.mxu0 0.0
          %999 = vmatpush2.msra.mxu0 %v806
          %1000 = vmatprep.subr.mxu0 0.0
          %1001 = vmatpush2.msra.mxu0 %v805
          %1002 = vmatprep.subr.mxu0 0.0
          %1003 = vmatpush2.msra.mxu0 %v804
          %1004 = vmatprep.subr.mxu0 0.0
          %1005 = vmatpush2.msra.mxu0 %v803
          %1006 = vmatprep.subr.mxu0 0.0
          %1007 = vmatpush2.msra.mxu0 %v802
          %1008 = vmatprep.subr.mxu0 0.0
          %1009 = vmatpush2.msra.mxu0 %v801
          %1010 = vmatprep.subr.mxu0 0.0
          %1011 = vmatpush2.msra.mxu0 %v800
          %1012 = vmatprep.subr.mxu0 0.0
          %1013 = vmatpush2.msra.mxu0 %v799
          %1014 = vmatprep.subr.mxu0 0.0
          %1015 = vmatpush2.msra.mxu0 %v798
          %1016 = vmatprep.subr.mxu0 0.0
          %1017 = vmatpush2.msra.mxu0 %v797
          %1018 = vmatprep.subr.mxu0 0.0
          %1019 = vmatpush2.msra.mxu0 %v796
          %1020 = vmatprep.subr.mxu0 0.0
          %1021 = vmatpush2.msra.mxu0 %v795
          %1022 = vmatprep.mubr.f32.mxu0 %v714
          %1023 = vmatmul.mubr.f32.gmra.mxu0 %v713
          %v1024 = vpop.f32.mrf.mxu0
          %v1025 = vadd.f32 %v955, %v1024
          %v1026 = vpop.f32.mrf.mxu0
          %1027 = vdwg.mxu0
          %1028 = vst [vmem:[#allocation2] sm:$0xff] %v1025
          %v1029 = vpack.c.bf16 %v1025, %v1025
          %v1030 = vld [vmem:[#allocation11] sm:$0xff]
          %v1031 = vld [vmem:[#allocation11 + $0x8] sm:$0xff]
          %v1032 = vld [vmem:[#allocation11 + $0x10] sm:$0xff]
          %v1033 = vld [vmem:[#allocation11 + $0x18] sm:$0xff]
          %v1034 = vld [vmem:[#allocation11 + $0x20] sm:$0xff]
          %v1035 = vld [vmem:[#allocation11 + $0x28] sm:$0xff]
          %v1036 = vld [vmem:[#allocation11 + $0x30] sm:$0xff]
          %v1037 = vld [vmem:[#allocation11 + $0x38] sm:$0xff]
          %v1038 = vld [vmem:[#allocation11 + $0x40] sm:$0xff]
          %v1039 = vld [vmem:[#allocation11 + $0x48] sm:$0xff]
          %v1040 = vld [vmem:[#allocation11 + $0x50] sm:$0xff]
          %v1041 = vld [vmem:[#allocation11 + $0x58] sm:$0xff]
          %v1042 = vld [vmem:[#allocation11 + $0x60] sm:$0xff]
          %v1043 = vld [vmem:[#allocation11 + $0x68] sm:$0xff]
          %v1044 = vld [vmem:[#allocation11 + $0x70] sm:$0xff]
          %v1045 = vld [vmem:[#allocation11 + $0x78] sm:$0xff]
          %v1046 = vld [vmem:[#allocation11 + $0x80] sm:$0xff]
          %v1047 = vld [vmem:[#allocation11 + $0x88] sm:$0xff]
          %v1048 = vld [vmem:[#allocation11 + $0x90] sm:$0xff]
          %v1049 = vld [vmem:[#allocation11 + $0x98] sm:$0xff]
          %v1050 = vld [vmem:[#allocation11 + $0xa0] sm:$0xff]
          %v1051 = vld [vmem:[#allocation11 + $0xa8] sm:$0xff]
          %v1052 = vld [vmem:[#allocation11 + $0xb0] sm:$0xff]
          %v1053 = vld [vmem:[#allocation11 + $0xb8] sm:$0xff]
          %v1054 = vld [vmem:[#allocation11 + $0xc0] sm:$0xff]
          %v1055 = vld [vmem:[#allocation11 + $0xc8] sm:$0xff]
          %v1056 = vld [vmem:[#allocation11 + $0xd0] sm:$0xff]
          %v1057 = vld [vmem:[#allocation11 + $0xd8] sm:$0xff]
          %v1058 = vld [vmem:[#allocation11 + $0xe0] sm:$0xff]
          %v1059 = vld [vmem:[#allocation11 + $0xe8] sm:$0xff]
          %v1060 = vld [vmem:[#allocation11 + $0xf0] sm:$0xff]
          %v1061 = vld [vmem:[#allocation11 + $0xf8] sm:$0xff]
          %v1062 = vld [vmem:[#allocation11 + $0x100] sm:$0xff]
          %v1063 = vld [vmem:[#allocation11 + $0x108] sm:$0xff]
          %v1064 = vld [vmem:[#allocation11 + $0x110] sm:$0xff]
          %v1065 = vld [vmem:[#allocation11 + $0x118] sm:$0xff]
          %v1066 = vld [vmem:[#allocation11 + $0x120] sm:$0xff]
          %v1067 = vld [vmem:[#allocation11 + $0x128] sm:$0xff]
          %v1068 = vld [vmem:[#allocation11 + $0x130] sm:$0xff]
          %v1069 = vld [vmem:[#allocation11 + $0x138] sm:$0xff]
          %v1070 = vld [vmem:[#allocation11 + $0x140] sm:$0xff]
          %v1071 = vld [vmem:[#allocation11 + $0x148] sm:$0xff]
          %v1072 = vld [vmem:[#allocation11 + $0x150] sm:$0xff]
          %v1073 = vld [vmem:[#allocation11 + $0x158] sm:$0xff]
          %v1074 = vld [vmem:[#allocation11 + $0x160] sm:$0xff]
          %v1075 = vld [vmem:[#allocation11 + $0x168] sm:$0xff]
          %v1076 = vld [vmem:[#allocation11 + $0x170] sm:$0xff]
          %v1077 = vld [vmem:[#allocation11 + $0x178] sm:$0xff]
          %v1078 = vld [vmem:[#allocation11 + $0x180] sm:$0xff]
          %v1079 = vld [vmem:[#allocation11 + $0x188] sm:$0xff]
          %v1080 = vld [vmem:[#allocation11 + $0x190] sm:$0xff]
          %v1081 = vld [vmem:[#allocation11 + $0x198] sm:$0xff]
          %v1082 = vld [vmem:[#allocation11 + $0x1a0] sm:$0xff]
          %v1083 = vld [vmem:[#allocation11 + $0x1a8] sm:$0xff]
          %v1084 = vld [vmem:[#allocation11 + $0x1b0] sm:$0xff]
          %v1085 = vld [vmem:[#allocation11 + $0x1b8] sm:$0xff]
          %v1086 = vld [vmem:[#allocation11 + $0x1c0] sm:$0xff]
          %v1087 = vld [vmem:[#allocation11 + $0x1c8] sm:$0xff]
          %v1088 = vld [vmem:[#allocation11 + $0x1d0] sm:$0xff]
          %v1089 = vld [vmem:[#allocation11 + $0x1d8] sm:$0xff]
          %v1090 = vld [vmem:[#allocation11 + $0x1e0] sm:$0xff]
          %v1091 = vld [vmem:[#allocation11 + $0x1e8] sm:$0xff]
          %v1092 = vld [vmem:[#allocation11 + $0x1f0] sm:$0xff]
          %v1093 = vld [vmem:[#allocation11 + $0x1f8] sm:$0xff]
          %v1094 = vld [vmem:[#allocation11 + $0x200] sm:$0xff]
          %v1095 = vld [vmem:[#allocation11 + $0x208] sm:$0xff]
          %v1096 = vld [vmem:[#allocation11 + $0x210] sm:$0xff]
          %v1097 = vld [vmem:[#allocation11 + $0x218] sm:$0xff]
          %v1098 = vld [vmem:[#allocation11 + $0x220] sm:$0xff]
          %v1099 = vld [vmem:[#allocation11 + $0x228] sm:$0xff]
          %v1100 = vld [vmem:[#allocation11 + $0x230] sm:$0xff]
          %v1101 = vld [vmem:[#allocation11 + $0x238] sm:$0xff]
          %v1102 = vld [vmem:[#allocation11 + $0x240] sm:$0xff]
          %v1103 = vld [vmem:[#allocation11 + $0x248] sm:$0xff]
          %v1104 = vld [vmem:[#allocation11 + $0x250] sm:$0xff]
          %v1105 = vld [vmem:[#allocation11 + $0x258] sm:$0xff]
          %v1106 = vld [vmem:[#allocation11 + $0x260] sm:$0xff]
          %v1107 = vld [vmem:[#allocation11 + $0x268] sm:$0xff]
          %v1108 = vld [vmem:[#allocation11 + $0x270] sm:$0xff]
          %v1109 = vld [vmem:[#allocation11 + $0x278] sm:$0xff]
          %v1110 = vld [vmem:[#allocation11 + $0x280] sm:$0xff]
          %v1111 = vld [vmem:[#allocation11 + $0x288] sm:$0xff]
          %v1112 = vld [vmem:[#allocation11 + $0x290] sm:$0xff]
          %v1113 = vld [vmem:[#allocation11 + $0x298] sm:$0xff]
          %v1114 = vld [vmem:[#allocation11 + $0x2a0] sm:$0xff]
          %v1115 = vld [vmem:[#allocation11 + $0x2a8] sm:$0xff]
          %v1116 = vld [vmem:[#allocation11 + $0x2b0] sm:$0xff]
          %v1117 = vld [vmem:[#allocation11 + $0x2b8] sm:$0xff]
          %v1118 = vld [vmem:[#allocation11 + $0x2c0] sm:$0xff]
          %v1119 = vld [vmem:[#allocation11 + $0x2c8] sm:$0xff]
          %v1120 = vld [vmem:[#allocation11 + $0x2d0] sm:$0xff]
          %v1121 = vld [vmem:[#allocation11 + $0x2d8] sm:$0xff]
          %v1122 = vld [vmem:[#allocation11 + $0x2e0] sm:$0xff]
          %v1123 = vld [vmem:[#allocation11 + $0x2e8] sm:$0xff]
          %v1124 = vld [vmem:[#allocation11 + $0x2f0] sm:$0xff]
          %v1125 = vld [vmem:[#allocation11 + $0x2f8] sm:$0xff]
          %v1126 = vld [vmem:[#allocation11 + $0x300] sm:$0xff]
          %v1127 = vld [vmem:[#allocation11 + $0x308] sm:$0xff]
          %v1128 = vld [vmem:[#allocation11 + $0x310] sm:$0xff]
          %v1129 = vld [vmem:[#allocation11 + $0x318] sm:$0xff]
          %v1130 = vld [vmem:[#allocation11 + $0x320] sm:$0xff]
          %v1131 = vld [vmem:[#allocation11 + $0x328] sm:$0xff]
          %v1132 = vld [vmem:[#allocation11 + $0x330] sm:$0xff]
          %v1133 = vld [vmem:[#allocation11 + $0x338] sm:$0xff]
          %v1134 = vld [vmem:[#allocation11 + $0x340] sm:$0xff]
          %v1135 = vld [vmem:[#allocation11 + $0x348] sm:$0xff]
          %v1136 = vld [vmem:[#allocation11 + $0x350] sm:$0xff]
          %v1137 = vld [vmem:[#allocation11 + $0x358] sm:$0xff]
          %v1138 = vld [vmem:[#allocation11 + $0x360] sm:$0xff]
          %v1139 = vld [vmem:[#allocation11 + $0x368] sm:$0xff]
          %v1140 = vld [vmem:[#allocation11 + $0x370] sm:$0xff]
          %v1141 = vld [vmem:[#allocation11 + $0x378] sm:$0xff]
          %v1142 = vld [vmem:[#allocation11 + $0x380] sm:$0xff]
          %v1143 = vld [vmem:[#allocation11 + $0x388] sm:$0xff]
          %v1144 = vld [vmem:[#allocation11 + $0x390] sm:$0xff]
          %v1145 = vld [vmem:[#allocation11 + $0x398] sm:$0xff]
          %v1146 = vld [vmem:[#allocation11 + $0x3a0] sm:$0xff]
          %v1147 = vld [vmem:[#allocation11 + $0x3a8] sm:$0xff]
          %v1148 = vld [vmem:[#allocation11 + $0x3b0] sm:$0xff]
          %v1149 = vld [vmem:[#allocation11 + $0x3b8] sm:$0xff]
          %v1150 = vld [vmem:[#allocation11 + $0x3c0] sm:$0xff]
          %v1151 = vld [vmem:[#allocation11 + $0x3c8] sm:$0xff]
          %v1152 = vld [vmem:[#allocation11 + $0x3d0] sm:$0xff]
          %v1153 = vld [vmem:[#allocation11 + $0x3d8] sm:$0xff]
          %v1154 = vld [vmem:[#allocation11 + $0x3e0] sm:$0xff]
          %v1155 = vld [vmem:[#allocation11 + $0x3e8] sm:$0xff]
          %v1156 = vld [vmem:[#allocation11 + $0x3f0] sm:$0xff]
          %v1157 = vld [vmem:[#allocation11 + $0x3f8] sm:$0xff]
          %v1158 = vld [vmem:[#allocation13] sm:$0xff]
          %v1159 = vld [vmem:[#allocation13 + $0x8] sm:$0xff]
          %v1162 = vlaneseq
          %v1163 = vshrl.u32 %v1162, 7
          %v1164 = vsub.s32 0, %v1163
          %v1165 = vrot.slane %v1158, %v1164
          %v1166 = vlaneseq
          %v1167 = vshrl.u32 %v1166, 7
          %v1168 = vsub.s32 1, %v1167
          %v1169 = vrot.slane %v1158, %v1168
          %v1170 = vlaneseq
          %v1171 = vshrl.u32 %v1170, 7
          %v1172 = vsub.s32 2, %v1171
          %v1173 = vrot.slane %v1158, %v1172
          %v1174 = vlaneseq
          %v1175 = vshrl.u32 %v1174, 7
          %v1176 = vsub.s32 3, %v1175
          %v1177 = vrot.slane %v1158, %v1176
          %v1178 = vlaneseq
          %v1179 = vshrl.u32 %v1178, 7
          %v1180 = vsub.s32 4, %v1179
          %v1181 = vrot.slane %v1158, %v1180
          %v1182 = vlaneseq
          %v1183 = vshrl.u32 %v1182, 7
          %v1184 = vsub.s32 5, %v1183
          %v1185 = vrot.slane %v1158, %v1184
          %v1186 = vlaneseq
          %v1187 = vshrl.u32 %v1186, 7
          %v1188 = vsub.s32 6, %v1187
          %v1189 = vrot.slane %v1158, %v1188
          %v1190 = vlaneseq
          %v1191 = vshrl.u32 %v1190, 7
          %v1192 = vsub.s32 7, %v1191
          %v1193 = vrot.slane %v1158, %v1192
          %v1194 = vlaneseq
          %v1195 = vshrl.u32 %v1194, 7
          %v1196 = vsub.s32 0, %v1195
          %v1197 = vrot.slane %v1159, %v1196
          %v1198 = vlaneseq
          %v1199 = vshrl.u32 %v1198, 7
          %v1200 = vsub.s32 1, %v1199
          %v1201 = vrot.slane %v1159, %v1200
          %v1202 = vlaneseq
          %v1203 = vshrl.u32 %v1202, 7
          %v1204 = vsub.s32 2, %v1203
          %v1205 = vrot.slane %v1159, %v1204
          %v1206 = vlaneseq
          %v1207 = vshrl.u32 %v1206, 7
          %v1208 = vsub.s32 3, %v1207
          %v1209 = vrot.slane %v1159, %v1208
          %v1210 = vlaneseq
          %v1211 = vshrl.u32 %v1210, 7
          %v1212 = vsub.s32 4, %v1211
          %v1213 = vrot.slane %v1159, %v1212
          %v1214 = vlaneseq
          %v1215 = vshrl.u32 %v1214, 7
          %v1216 = vsub.s32 5, %v1215
          %v1217 = vrot.slane %v1159, %v1216
          %v1218 = vlaneseq
          %v1219 = vshrl.u32 %v1218, 7
          %v1220 = vsub.s32 6, %v1219
          %v1221 = vrot.slane %v1159, %v1220
          %v1222 = vlaneseq
          %v1223 = vshrl.u32 %v1222, 7
          %v1224 = vsub.s32 7, %v1223
          %v1225 = vrot.slane %v1159, %v1224
          %v1370 = vunpack.c.l.b16 %v1030
          %v1371 = vunpack.c.h.b16 %v1030
          %v1372 = vunpack.c.l.b16 %v1031
          %v1373 = vunpack.c.h.b16 %v1031
          %v1374 = vunpack.c.l.b16 %v1032
          %v1375 = vunpack.c.h.b16 %v1032
          %v1376 = vunpack.c.l.b16 %v1033
          %v1377 = vunpack.c.h.b16 %v1033
          %v1378 = vunpack.c.l.b16 %v1034
          %v1379 = vunpack.c.h.b16 %v1034
          %v1380 = vunpack.c.l.b16 %v1035
          %v1381 = vunpack.c.h.b16 %v1035
          %v1382 = vunpack.c.l.b16 %v1036
          %v1383 = vunpack.c.h.b16 %v1036
          %v1384 = vunpack.c.l.b16 %v1037
          %v1385 = vunpack.c.h.b16 %v1037
          %v1386 = vunpack.c.l.b16 %v1038
          %v1387 = vunpack.c.h.b16 %v1038
          %v1388 = vunpack.c.l.b16 %v1039
          %v1389 = vunpack.c.h.b16 %v1039
          %v1390 = vunpack.c.l.b16 %v1040
          %v1391 = vunpack.c.h.b16 %v1040
          %v1392 = vunpack.c.l.b16 %v1041
          %v1393 = vunpack.c.h.b16 %v1041
          %v1394 = vunpack.c.l.b16 %v1042
          %v1395 = vunpack.c.h.b16 %v1042
          %v1396 = vunpack.c.l.b16 %v1043
          %v1397 = vunpack.c.h.b16 %v1043
          %v1398 = vunpack.c.l.b16 %v1044
          %v1399 = vunpack.c.h.b16 %v1044
          %v1400 = vunpack.c.l.b16 %v1045
          %v1401 = vunpack.c.h.b16 %v1045
          %v1402 = vunpack.c.l.b16 %v1046
          %v1403 = vunpack.c.h.b16 %v1046
          %v1404 = vunpack.c.l.b16 %v1047
          %v1405 = vunpack.c.h.b16 %v1047
          %v1406 = vunpack.c.l.b16 %v1048
          %v1407 = vunpack.c.h.b16 %v1048
          %v1408 = vunpack.c.l.b16 %v1049
          %v1409 = vunpack.c.h.b16 %v1049
          %v1410 = vunpack.c.l.b16 %v1050
          %v1411 = vunpack.c.h.b16 %v1050
          %v1412 = vunpack.c.l.b16 %v1051
          %v1413 = vunpack.c.h.b16 %v1051
          %v1414 = vunpack.c.l.b16 %v1052
          %v1415 = vunpack.c.h.b16 %v1052
          %v1416 = vunpack.c.l.b16 %v1053
          %v1417 = vunpack.c.h.b16 %v1053
          %v1418 = vunpack.c.l.b16 %v1054
          %v1419 = vunpack.c.h.b16 %v1054
          %v1420 = vunpack.c.l.b16 %v1055
          %v1421 = vunpack.c.h.b16 %v1055
          %v1422 = vunpack.c.l.b16 %v1056
          %v1423 = vunpack.c.h.b16 %v1056
          %v1424 = vunpack.c.l.b16 %v1057
          %v1425 = vunpack.c.h.b16 %v1057
          %v1426 = vunpack.c.l.b16 %v1058
          %v1427 = vunpack.c.h.b16 %v1058
          %v1428 = vunpack.c.l.b16 %v1059
          %v1429 = vunpack.c.h.b16 %v1059
          %v1430 = vunpack.c.l.b16 %v1060
          %v1431 = vunpack.c.h.b16 %v1060
          %v1432 = vunpack.c.l.b16 %v1061
          %v1433 = vunpack.c.h.b16 %v1061
          %v1434 = vunpack.c.l.b16 %v1062
          %v1435 = vunpack.c.h.b16 %v1062
          %v1436 = vunpack.c.l.b16 %v1063
          %v1437 = vunpack.c.h.b16 %v1063
          %v1438 = vunpack.c.l.b16 %v1064
          %v1439 = vunpack.c.h.b16 %v1064
          %v1440 = vunpack.c.l.b16 %v1065
          %v1441 = vunpack.c.h.b16 %v1065
          %v1442 = vunpack.c.l.b16 %v1066
          %v1443 = vunpack.c.h.b16 %v1066
          %v1444 = vunpack.c.l.b16 %v1067
          %v1445 = vunpack.c.h.b16 %v1067
          %v1446 = vunpack.c.l.b16 %v1068
          %v1447 = vunpack.c.h.b16 %v1068
          %v1448 = vunpack.c.l.b16 %v1069
          %v1449 = vunpack.c.h.b16 %v1069
          %v1450 = vunpack.c.l.b16 %v1070
          %v1451 = vunpack.c.h.b16 %v1070
          %v1452 = vunpack.c.l.b16 %v1071
          %v1453 = vunpack.c.h.b16 %v1071
          %v1454 = vunpack.c.l.b16 %v1072
          %v1455 = vunpack.c.h.b16 %v1072
          %v1456 = vunpack.c.l.b16 %v1073
          %v1457 = vunpack.c.h.b16 %v1073
          %v1458 = vunpack.c.l.b16 %v1074
          %v1459 = vunpack.c.h.b16 %v1074
          %v1460 = vunpack.c.l.b16 %v1075
          %v1461 = vunpack.c.h.b16 %v1075
          %v1462 = vunpack.c.l.b16 %v1076
          %v1463 = vunpack.c.h.b16 %v1076
          %v1464 = vunpack.c.l.b16 %v1077
          %v1465 = vunpack.c.h.b16 %v1077
          %v1466 = vunpack.c.l.b16 %v1078
          %v1467 = vunpack.c.h.b16 %v1078
          %v1468 = vunpack.c.l.b16 %v1079
          %v1469 = vunpack.c.h.b16 %v1079
          %v1470 = vunpack.c.l.b16 %v1080
          %v1471 = vunpack.c.h.b16 %v1080
          %v1472 = vunpack.c.l.b16 %v1081
          %v1473 = vunpack.c.h.b16 %v1081
          %v1474 = vunpack.c.l.b16 %v1082
          %v1475 = vunpack.c.h.b16 %v1082
          %v1476 = vunpack.c.l.b16 %v1083
          %v1477 = vunpack.c.h.b16 %v1083
          %v1478 = vunpack.c.l.b16 %v1084
          %v1479 = vunpack.c.h.b16 %v1084
          %v1480 = vunpack.c.l.b16 %v1085
          %v1481 = vunpack.c.h.b16 %v1085
          %v1482 = vunpack.c.l.b16 %v1086
          %v1483 = vunpack.c.h.b16 %v1086
          %v1484 = vunpack.c.l.b16 %v1087
          %v1485 = vunpack.c.h.b16 %v1087
          %v1486 = vunpack.c.l.b16 %v1088
          %v1487 = vunpack.c.h.b16 %v1088
          %v1488 = vunpack.c.l.b16 %v1089
          %v1489 = vunpack.c.h.b16 %v1089
          %v1490 = vunpack.c.l.b16 %v1090
          %v1491 = vunpack.c.h.b16 %v1090
          %v1492 = vunpack.c.l.b16 %v1091
          %v1493 = vunpack.c.h.b16 %v1091
          %v1494 = vunpack.c.l.b16 %v1092
          %v1495 = vunpack.c.h.b16 %v1092
          %v1496 = vunpack.c.l.b16 %v1093
          %v1497 = vunpack.c.h.b16 %v1093
          %v1498 = vunpack.c.l.b16 %v1094
          %v1499 = vunpack.c.h.b16 %v1094
          %v1500 = vunpack.c.l.b16 %v1095
          %v1501 = vunpack.c.h.b16 %v1095
          %v1502 = vunpack.c.l.b16 %v1096
          %v1503 = vunpack.c.h.b16 %v1096
          %v1504 = vunpack.c.l.b16 %v1097
          %v1505 = vunpack.c.h.b16 %v1097
          %v1506 = vunpack.c.l.b16 %v1098
          %v1507 = vunpack.c.h.b16 %v1098
          %v1508 = vunpack.c.l.b16 %v1099
          %v1509 = vunpack.c.h.b16 %v1099
          %v1510 = vunpack.c.l.b16 %v1100
          %v1511 = vunpack.c.h.b16 %v1100
          %v1512 = vunpack.c.l.b16 %v1101
          %v1513 = vunpack.c.h.b16 %v1101
          %v1514 = vunpack.c.l.b16 %v1102
          %v1515 = vunpack.c.h.b16 %v1102
          %v1516 = vunpack.c.l.b16 %v1103
          %v1517 = vunpack.c.h.b16 %v1103
          %v1518 = vunpack.c.l.b16 %v1104
          %v1519 = vunpack.c.h.b16 %v1104
          %v1520 = vunpack.c.l.b16 %v1105
          %v1521 = vunpack.c.h.b16 %v1105
          %v1522 = vunpack.c.l.b16 %v1106
          %v1523 = vunpack.c.h.b16 %v1106
          %v1524 = vunpack.c.l.b16 %v1107
          %v1525 = vunpack.c.h.b16 %v1107
          %v1526 = vunpack.c.l.b16 %v1108
          %v1527 = vunpack.c.h.b16 %v1108
          %v1528 = vunpack.c.l.b16 %v1109
          %v1529 = vunpack.c.h.b16 %v1109
          %v1530 = vunpack.c.l.b16 %v1110
          %v1531 = vunpack.c.h.b16 %v1110
          %v1532 = vunpack.c.l.b16 %v1111
          %v1533 = vunpack.c.h.b16 %v1111
          %v1534 = vunpack.c.l.b16 %v1112
          %v1535 = vunpack.c.h.b16 %v1112
          %v1536 = vunpack.c.l.b16 %v1113
          %v1537 = vunpack.c.h.b16 %v1113
          %v1538 = vunpack.c.l.b16 %v1114
          %v1539 = vunpack.c.h.b16 %v1114
          %v1540 = vunpack.c.l.b16 %v1115
          %v1541 = vunpack.c.h.b16 %v1115
          %v1542 = vunpack.c.l.b16 %v1116
          %v1543 = vunpack.c.h.b16 %v1116
          %v1544 = vunpack.c.l.b16 %v1117
          %v1545 = vunpack.c.h.b16 %v1117
          %v1546 = vunpack.c.l.b16 %v1118
          %v1547 = vunpack.c.h.b16 %v1118
          %v1548 = vunpack.c.l.b16 %v1119
          %v1549 = vunpack.c.h.b16 %v1119
          %v1550 = vunpack.c.l.b16 %v1120
          %v1551 = vunpack.c.h.b16 %v1120
          %v1552 = vunpack.c.l.b16 %v1121
          %v1553 = vunpack.c.h.b16 %v1121
          %v1554 = vunpack.c.l.b16 %v1122
          %v1555 = vunpack.c.h.b16 %v1122
          %v1556 = vunpack.c.l.b16 %v1123
          %v1557 = vunpack.c.h.b16 %v1123
          %v1558 = vunpack.c.l.b16 %v1124
          %v1559 = vunpack.c.h.b16 %v1124
          %v1560 = vunpack.c.l.b16 %v1125
          %v1561 = vunpack.c.h.b16 %v1125
          %v1562 = vunpack.c.l.b16 %v1126
          %v1563 = vunpack.c.h.b16 %v1126
          %v1564 = vunpack.c.l.b16 %v1127
          %v1565 = vunpack.c.h.b16 %v1127
          %v1566 = vunpack.c.l.b16 %v1128
          %v1567 = vunpack.c.h.b16 %v1128
          %v1568 = vunpack.c.l.b16 %v1129
          %v1569 = vunpack.c.h.b16 %v1129
          %v1570 = vunpack.c.l.b16 %v1130
          %v1571 = vunpack.c.h.b16 %v1130
          %v1572 = vunpack.c.l.b16 %v1131
          %v1573 = vunpack.c.h.b16 %v1131
          %v1574 = vunpack.c.l.b16 %v1132
          %v1575 = vunpack.c.h.b16 %v1132
          %v1576 = vunpack.c.l.b16 %v1133
          %v1577 = vunpack.c.h.b16 %v1133
          %v1578 = vunpack.c.l.b16 %v1134
          %v1579 = vunpack.c.h.b16 %v1134
          %v1580 = vunpack.c.l.b16 %v1135
          %v1581 = vunpack.c.h.b16 %v1135
          %v1582 = vunpack.c.l.b16 %v1136
          %v1583 = vunpack.c.h.b16 %v1136
          %v1584 = vunpack.c.l.b16 %v1137
          %v1585 = vunpack.c.h.b16 %v1137
          %v1586 = vunpack.c.l.b16 %v1138
          %v1587 = vunpack.c.h.b16 %v1138
          %v1588 = vunpack.c.l.b16 %v1139
          %v1589 = vunpack.c.h.b16 %v1139
          %v1590 = vunpack.c.l.b16 %v1140
          %v1591 = vunpack.c.h.b16 %v1140
          %v1592 = vunpack.c.l.b16 %v1141
          %v1593 = vunpack.c.h.b16 %v1141
          %v1594 = vunpack.c.l.b16 %v1142
          %v1595 = vunpack.c.h.b16 %v1142
          %v1596 = vunpack.c.l.b16 %v1143
          %v1597 = vunpack.c.h.b16 %v1143
          %v1598 = vunpack.c.l.b16 %v1144
          %v1599 = vunpack.c.h.b16 %v1144
          %v1600 = vunpack.c.l.b16 %v1145
          %v1601 = vunpack.c.h.b16 %v1145
          %v1602 = vunpack.c.l.b16 %v1146
          %v1603 = vunpack.c.h.b16 %v1146
          %v1604 = vunpack.c.l.b16 %v1147
          %v1605 = vunpack.c.h.b16 %v1147
          %v1606 = vunpack.c.l.b16 %v1148
          %v1607 = vunpack.c.h.b16 %v1148
          %v1608 = vunpack.c.l.b16 %v1149
          %v1609 = vunpack.c.h.b16 %v1149
          %v1610 = vunpack.c.l.b16 %v1150
          %v1611 = vunpack.c.h.b16 %v1150
          %v1612 = vunpack.c.l.b16 %v1151
          %v1613 = vunpack.c.h.b16 %v1151
          %v1614 = vunpack.c.l.b16 %v1152
          %v1615 = vunpack.c.h.b16 %v1152
          %v1616 = vunpack.c.l.b16 %v1153
          %v1617 = vunpack.c.h.b16 %v1153
          %v1618 = vunpack.c.l.b16 %v1154
          %v1619 = vunpack.c.h.b16 %v1154
          %v1620 = vunpack.c.l.b16 %v1155
          %v1621 = vunpack.c.h.b16 %v1155
          %v1622 = vunpack.c.l.b16 %v1156
          %v1623 = vunpack.c.h.b16 %v1156
          %v1624 = vunpack.c.l.b16 %v1157
          %v1625 = vunpack.c.h.b16 %v1157
          %v1626 = vpack.c.b16 %v1386, %v1370
          %v1627 = vpack.c.b16 %v1387, %v1371
          %v1628 = vpack.c.b16 %v1388, %v1372
          %v1629 = vpack.c.b16 %v1389, %v1373
          %v1630 = vpack.c.b16 %v1390, %v1374
          %v1631 = vpack.c.b16 %v1391, %v1375
          %v1632 = vpack.c.b16 %v1392, %v1376
          %v1633 = vpack.c.b16 %v1393, %v1377
          %v1634 = vpack.c.b16 %v1394, %v1378
          %v1635 = vpack.c.b16 %v1395, %v1379
          %v1636 = vpack.c.b16 %v1396, %v1380
          %v1637 = vpack.c.b16 %v1397, %v1381
          %v1638 = vpack.c.b16 %v1398, %v1382
          %v1639 = vpack.c.b16 %v1399, %v1383
          %v1640 = vpack.c.b16 %v1400, %v1384
          %v1641 = vpack.c.b16 %v1401, %v1385
          %v1642 = vpack.c.b16 %v1418, %v1402
          %v1643 = vpack.c.b16 %v1419, %v1403
          %v1644 = vpack.c.b16 %v1420, %v1404
          %v1645 = vpack.c.b16 %v1421, %v1405
          %v1646 = vpack.c.b16 %v1422, %v1406
          %v1647 = vpack.c.b16 %v1423, %v1407
          %v1648 = vpack.c.b16 %v1424, %v1408
          %v1649 = vpack.c.b16 %v1425, %v1409
          %v1650 = vpack.c.b16 %v1426, %v1410
          %v1651 = vpack.c.b16 %v1427, %v1411
          %v1652 = vpack.c.b16 %v1428, %v1412
          %v1653 = vpack.c.b16 %v1429, %v1413
          %v1654 = vpack.c.b16 %v1430, %v1414
          %v1655 = vpack.c.b16 %v1431, %v1415
          %v1656 = vpack.c.b16 %v1432, %v1416
          %v1657 = vpack.c.b16 %v1433, %v1417
          %v1658 = vpack.c.b16 %v1450, %v1434
          %v1659 = vpack.c.b16 %v1451, %v1435
          %v1660 = vpack.c.b16 %v1452, %v1436
          %v1661 = vpack.c.b16 %v1453, %v1437
          %v1662 = vpack.c.b16 %v1454, %v1438
          %v1663 = vpack.c.b16 %v1455, %v1439
          %v1664 = vpack.c.b16 %v1456, %v1440
          %v1665 = vpack.c.b16 %v1457, %v1441
          %v1666 = vpack.c.b16 %v1458, %v1442
          %v1667 = vpack.c.b16 %v1459, %v1443
          %v1668 = vpack.c.b16 %v1460, %v1444
          %v1669 = vpack.c.b16 %v1461, %v1445
          %v1670 = vpack.c.b16 %v1462, %v1446
          %v1671 = vpack.c.b16 %v1463, %v1447
          %v1672 = vpack.c.b16 %v1464, %v1448
          %v1673 = vpack.c.b16 %v1465, %v1449
          %v1674 = vpack.c.b16 %v1482, %v1466
          %v1675 = vpack.c.b16 %v1483, %v1467
          %v1676 = vpack.c.b16 %v1484, %v1468
          %v1677 = vpack.c.b16 %v1485, %v1469
          %v1678 = vpack.c.b16 %v1486, %v1470
          %v1679 = vpack.c.b16 %v1487, %v1471
          %v1680 = vpack.c.b16 %v1488, %v1472
          %v1681 = vpack.c.b16 %v1489, %v1473
          %v1682 = vpack.c.b16 %v1490, %v1474
          %v1683 = vpack.c.b16 %v1491, %v1475
          %v1684 = vpack.c.b16 %v1492, %v1476
          %v1685 = vpack.c.b16 %v1493, %v1477
          %v1686 = vpack.c.b16 %v1494, %v1478
          %v1687 = vpack.c.b16 %v1495, %v1479
          %v1688 = vpack.c.b16 %v1496, %v1480
          %v1689 = vpack.c.b16 %v1497, %v1481
          %v1690 = vpack.c.b16 %v1514, %v1498
          %v1691 = vpack.c.b16 %v1515, %v1499
          %v1692 = vpack.c.b16 %v1516, %v1500
          %v1693 = vpack.c.b16 %v1517, %v1501
          %v1694 = vpack.c.b16 %v1518, %v1502
          %v1695 = vpack.c.b16 %v1519, %v1503
          %v1696 = vpack.c.b16 %v1520, %v1504
          %v1697 = vpack.c.b16 %v1521, %v1505
          %v1698 = vpack.c.b16 %v1522, %v1506
          %v1699 = vpack.c.b16 %v1523, %v1507
          %v1700 = vpack.c.b16 %v1524, %v1508
          %v1701 = vpack.c.b16 %v1525, %v1509
          %v1702 = vpack.c.b16 %v1526, %v1510
          %v1703 = vpack.c.b16 %v1527, %v1511
          %v1704 = vpack.c.b16 %v1528, %v1512
          %v1705 = vpack.c.b16 %v1529, %v1513
          %v1706 = vpack.c.b16 %v1546, %v1530
          %v1707 = vpack.c.b16 %v1547, %v1531
          %v1708 = vpack.c.b16 %v1548, %v1532
          %v1709 = vpack.c.b16 %v1549, %v1533
          %v1710 = vpack.c.b16 %v1550, %v1534
          %v1711 = vpack.c.b16 %v1551, %v1535
          %v1712 = vpack.c.b16 %v1552, %v1536
          %v1713 = vpack.c.b16 %v1553, %v1537
          %v1714 = vpack.c.b16 %v1554, %v1538
          %v1715 = vpack.c.b16 %v1555, %v1539
          %v1716 = vpack.c.b16 %v1556, %v1540
          %v1717 = vpack.c.b16 %v1557, %v1541
          %v1718 = vpack.c.b16 %v1558, %v1542
          %v1719 = vpack.c.b16 %v1559, %v1543
          %v1720 = vpack.c.b16 %v1560, %v1544
          %v1721 = vpack.c.b16 %v1561, %v1545
          %v1722 = vpack.c.b16 %v1578, %v1562
          %v1723 = vpack.c.b16 %v1579, %v1563
          %v1724 = vpack.c.b16 %v1580, %v1564
          %v1725 = vpack.c.b16 %v1581, %v1565
          %v1726 = vpack.c.b16 %v1582, %v1566
          %v1727 = vpack.c.b16 %v1583, %v1567
          %v1728 = vpack.c.b16 %v1584, %v1568
          %v1729 = vpack.c.b16 %v1585, %v1569
          %v1730 = vpack.c.b16 %v1586, %v1570
          %v1731 = vpack.c.b16 %v1587, %v1571
          %v1732 = vpack.c.b16 %v1588, %v1572
          %v1733 = vpack.c.b16 %v1589, %v1573
          %v1734 = vpack.c.b16 %v1590, %v1574
          %v1735 = vpack.c.b16 %v1591, %v1575
          %v1736 = vpack.c.b16 %v1592, %v1576
          %v1737 = vpack.c.b16 %v1593, %v1577
          %v1738 = vpack.c.b16 %v1610, %v1594
          %v1739 = vpack.c.b16 %v1611, %v1595
          %v1740 = vpack.c.b16 %v1612, %v1596
          %v1741 = vpack.c.b16 %v1613, %v1597
          %v1742 = vpack.c.b16 %v1614, %v1598
          %v1743 = vpack.c.b16 %v1615, %v1599
          %v1744 = vpack.c.b16 %v1616, %v1600
          %v1745 = vpack.c.b16 %v1617, %v1601
          %v1746 = vpack.c.b16 %v1618, %v1602
          %v1747 = vpack.c.b16 %v1619, %v1603
          %v1748 = vpack.c.b16 %v1620, %v1604
          %v1749 = vpack.c.b16 %v1621, %v1605
          %v1750 = vpack.c.b16 %v1622, %v1606
          %v1751 = vpack.c.b16 %v1623, %v1607
          %v1752 = vpack.c.b16 %v1624, %v1608
          %v1753 = vpack.c.b16 %v1625, %v1609
          %1882 = vmatprep.subr.bf16.mxu0 %v1739
          %1883 = vmatpush1.bf16.msra.mxu0 %v1738
          %1884 = vmatprep.subr.bf16.mxu0 %v1723
          %1885 = vmatpush1.bf16.msra.mxu0 %v1722
          %1886 = vmatprep.subr.bf16.mxu0 %v1707
          %1887 = vmatpush1.bf16.msra.mxu0 %v1706
          %1888 = vmatprep.subr.bf16.mxu0 %v1691
          %1889 = vmatpush1.bf16.msra.mxu0 %v1690
          %1890 = vmatprep.subr.bf16.mxu0 %v1675
          %1891 = vmatpush1.bf16.msra.mxu0 %v1674
          %1892 = vmatprep.subr.bf16.mxu0 %v1659
          %1893 = vmatpush1.bf16.msra.mxu0 %v1658
          %1894 = vmatprep.subr.bf16.mxu0 %v1643
          %1895 = vmatpush1.bf16.msra.mxu0 %v1642
          %1896 = vmatprep.subr.bf16.mxu0 %v1627
          %1897 = vmatpush1.bf16.msra.mxu0 %v1626
          %1898 = vmatprep.subr.bf16.mxu0 0
          %1899 = vmatpush2.bf16.msra.mxu0 0
          %1900 = vmatprep.subr.bf16.mxu0 0
          %1901 = vmatpush2.bf16.msra.mxu0 0
          %1902 = vmatprep.subr.bf16.mxu0 0
          %1903 = vmatpush2.bf16.msra.mxu0 0
          %1904 = vmatprep.subr.bf16.mxu0 0
          %1905 = vmatpush2.bf16.msra.mxu0 0
          %1906 = vmatprep.subr.bf16.mxu0 0
          %1907 = vmatpush2.bf16.msra.mxu0 0
          %1908 = vmatprep.subr.bf16.mxu0 0
          %1909 = vmatpush2.bf16.msra.mxu0 0
          %1910 = vmatprep.subr.bf16.mxu0 0
          %1911 = vmatpush2.bf16.msra.mxu0 0
          %1912 = vmatprep.subr.bf16.mxu0 0
          %1913 = vmatpush2.bf16.msra.mxu0 0
          %1914 = vmatprep.mubr.bf16.mxu0 0
          %1915 = vmatmul.mubr.bf16.gmra.mxu0 %v1029
          %v1916 = vpop.f32.mrf.mxu0
          %v1917 = vadd.f32 %v1165, %v1916
          %v1918 = vpop.f32.mrf.mxu0
          %v1919 = vadd.f32 %v1169, %v1918
          %v1920 = vpop.f32.mrf.mxu0
          %v1921 = vpop.f32.mrf.mxu0
          %1922 = vdwg.mxu0
          %1923 = vmatprep.subr.bf16.mxu0 %v1741
          %1924 = vmatpush1.bf16.msra.mxu0 %v1740
          %1925 = vmatprep.subr.bf16.mxu0 %v1725
          %1926 = vmatpush1.bf16.msra.mxu0 %v1724
          %1927 = vmatprep.subr.bf16.mxu0 %v1709
          %1928 = vmatpush1.bf16.msra.mxu0 %v1708
          %1929 = vmatprep.subr.bf16.mxu0 %v1693
          %1930 = vmatpush1.bf16.msra.mxu0 %v1692
          %1931 = vmatprep.subr.bf16.mxu0 %v1677
          %1932 = vmatpush1.bf16.msra.mxu0 %v1676
          %1933 = vmatprep.subr.bf16.mxu0 %v1661
          %1934 = vmatpush1.bf16.msra.mxu0 %v1660
          %1935 = vmatprep.subr.bf16.mxu0 %v1645
          %1936 = vmatpush1.bf16.msra.mxu0 %v1644
          %1937 = vmatprep.subr.bf16.mxu0 %v1629
          %1938 = vmatpush1.bf16.msra.mxu0 %v1628
          %1939 = vmatprep.subr.bf16.mxu0 0
          %1940 = vmatpush2.bf16.msra.mxu0 0
          %1941 = vmatprep.subr.bf16.mxu0 0
          %1942 = vmatpush2.bf16.msra.mxu0 0
          %1943 = vmatprep.subr.bf16.mxu0 0
          %1944 = vmatpush2.bf16.msra.mxu0 0
          %1945 = vmatprep.subr.bf16.mxu0 0
          %1946 = vmatpush2.bf16.msra.mxu0 0
          %1947 = vmatprep.subr.bf16.mxu0 0
          %1948 = vmatpush2.bf16.msra.mxu0 0
          %1949 = vmatprep.subr.bf16.mxu0 0
          %1950 = vmatpush2.bf16.msra.mxu0 0
          %1951 = vmatprep.subr.bf16.mxu0 0
          %1952 = vmatpush2.bf16.msra.mxu0 0
          %1953 = vmatprep.subr.bf16.mxu0 0
          %1954 = vmatpush2.bf16.msra.mxu0 0
          %1955 = vmatprep.mubr.bf16.mxu0 0
          %1956 = vmatmul.mubr.bf16.gmra.mxu0 %v1029
          %v1957 = vpop.f32.mrf.mxu0
          %v1958 = vadd.f32 %v1173, %v1957
          %v1959 = vpop.f32.mrf.mxu0
          %v1960 = vadd.f32 %v1177, %v1959
          %v1961 = vpop.f32.mrf.mxu0
          %v1962 = vpop.f32.mrf.mxu0
          %1963 = vdwg.mxu0
          %1964 = vmatprep.subr.bf16.mxu0 %v1743
          %1965 = vmatpush1.bf16.msra.mxu0 %v1742
          %1966 = vmatprep.subr.bf16.mxu0 %v1727
          %1967 = vmatpush1.bf16.msra.mxu0 %v1726
          %1968 = vmatprep.subr.bf16.mxu0 %v1711
          %1969 = vmatpush1.bf16.msra.mxu0 %v1710
          %1970 = vmatprep.subr.bf16.mxu0 %v1695
          %1971 = vmatpush1.bf16.msra.mxu0 %v1694
          %1972 = vmatprep.subr.bf16.mxu0 %v1679
          %1973 = vmatpush1.bf16.msra.mxu0 %v1678
          %1974 = vmatprep.subr.bf16.mxu0 %v1663
          %1975 = vmatpush1.bf16.msra.mxu0 %v1662
          %1976 = vmatprep.subr.bf16.mxu0 %v1647
          %1977 = vmatpush1.bf16.msra.mxu0 %v1646
          %1978 = vmatprep.subr.bf16.mxu0 %v1631
          %1979 = vmatpush1.bf16.msra.mxu0 %v1630
          %1980 = vmatprep.subr.bf16.mxu0 0
          %1981 = vmatpush2.bf16.msra.mxu0 0
          %1982 = vmatprep.subr.bf16.mxu0 0
          %1983 = vmatpush2.bf16.msra.mxu0 0
          %1984 = vmatprep.subr.bf16.mxu0 0
          %1985 = vmatpush2.bf16.msra.mxu0 0
          %1986 = vmatprep.subr.bf16.mxu0 0
          %1987 = vmatpush2.bf16.msra.mxu0 0
          %1988 = vmatprep.subr.bf16.mxu0 0
          %1989 = vmatpush2.bf16.msra.mxu0 0
          %1990 = vmatprep.subr.bf16.mxu0 0
          %1991 = vmatpush2.bf16.msra.mxu0 0
          %1992 = vmatprep.subr.bf16.mxu0 0
          %1993 = vmatpush2.bf16.msra.mxu0 0
          %1994 = vmatprep.subr.bf16.mxu0 0
          %1995 = vmatpush2.bf16.msra.mxu0 0
          %1996 = vmatprep.mubr.bf16.mxu0 0
          %1997 = vmatmul.mubr.bf16.gmra.mxu0 %v1029
          %v1998 = vpop.f32.mrf.mxu0
          %v1999 = vadd.f32 %v1181, %v1998
          %v2000 = vpop.f32.mrf.mxu0
          %v2001 = vadd.f32 %v1185, %v2000
          %v2002 = vpop.f32.mrf.mxu0
          %v2003 = vpop.f32.mrf.mxu0
          %2004 = vdwg.mxu0
          %2005 = vmatprep.subr.bf16.mxu0 %v1745
          %2006 = vmatpush1.bf16.msra.mxu0 %v1744
          %2007 = vmatprep.subr.bf16.mxu0 %v1729
          %2008 = vmatpush1.bf16.msra.mxu0 %v1728
          %2009 = vmatprep.subr.bf16.mxu0 %v1713
          %2010 = vmatpush1.bf16.msra.mxu0 %v1712
          %2011 = vmatprep.subr.bf16.mxu0 %v1697
          %2012 = vmatpush1.bf16.msra.mxu0 %v1696
          %2013 = vmatprep.subr.bf16.mxu0 %v1681
          %2014 = vmatpush1.bf16.msra.mxu0 %v1680
          %2015 = vmatprep.subr.bf16.mxu0 %v1665
          %2016 = vmatpush1.bf16.msra.mxu0 %v1664
          %2017 = vmatprep.subr.bf16.mxu0 %v1649
          %2018 = vmatpush1.bf16.msra.mxu0 %v1648
          %2019 = vmatprep.subr.bf16.mxu0 %v1633
          %2020 = vmatpush1.bf16.msra.mxu0 %v1632
          %2021 = vmatprep.subr.bf16.mxu0 0
          %2022 = vmatpush2.bf16.msra.mxu0 0
          %2023 = vmatprep.subr.bf16.mxu0 0
          %2024 = vmatpush2.bf16.msra.mxu0 0
          %2025 = vmatprep.subr.bf16.mxu0 0
          %2026 = vmatpush2.bf16.msra.mxu0 0
          %2027 = vmatprep.subr.bf16.mxu0 0
          %2028 = vmatpush2.bf16.msra.mxu0 0
          %2029 = vmatprep.subr.bf16.mxu0 0
          %2030 = vmatpush2.bf16.msra.mxu0 0
          %2031 = vmatprep.subr.bf16.mxu0 0
          %2032 = vmatpush2.bf16.msra.mxu0 0
          %2033 = vmatprep.subr.bf16.mxu0 0
          %2034 = vmatpush2.bf16.msra.mxu0 0
          %2035 = vmatprep.subr.bf16.mxu0 0
          %2036 = vmatpush2.bf16.msra.mxu0 0
          %2037 = vmatprep.mubr.bf16.mxu0 0
          %2038 = vmatmul.mubr.bf16.gmra.mxu0 %v1029
          %v2039 = vpop.f32.mrf.mxu0
          %v2040 = vadd.f32 %v1189, %v2039
          %v2041 = vpop.f32.mrf.mxu0
          %v2042 = vadd.f32 %v1193, %v2041
          %v2043 = vpop.f32.mrf.mxu0
          %v2044 = vpop.f32.mrf.mxu0
          %2045 = vdwg.mxu0
          %2046 = vmatprep.subr.bf16.mxu0 %v1747
          %2047 = vmatpush1.bf16.msra.mxu0 %v1746
          %2048 = vmatprep.subr.bf16.mxu0 %v1731
          %2049 = vmatpush1.bf16.msra.mxu0 %v1730
          %2050 = vmatprep.subr.bf16.mxu0 %v1715
          %2051 = vmatpush1.bf16.msra.mxu0 %v1714
          %2052 = vmatprep.subr.bf16.mxu0 %v1699
          %2053 = vmatpush1.bf16.msra.mxu0 %v1698
          %2054 = vmatprep.subr.bf16.mxu0 %v1683
          %2055 = vmatpush1.bf16.msra.mxu0 %v1682
          %2056 = vmatprep.subr.bf16.mxu0 %v1667
          %2057 = vmatpush1.bf16.msra.mxu0 %v1666
          %2058 = vmatprep.subr.bf16.mxu0 %v1651
          %2059 = vmatpush1.bf16.msra.mxu0 %v1650
          %2060 = vmatprep.subr.bf16.mxu0 %v1635
          %2061 = vmatpush1.bf16.msra.mxu0 %v1634
          %2062 = vmatprep.subr.bf16.mxu0 0
          %2063 = vmatpush2.bf16.msra.mxu0 0
          %2064 = vmatprep.subr.bf16.mxu0 0
          %2065 = vmatpush2.bf16.msra.mxu0 0
          %2066 = vmatprep.subr.bf16.mxu0 0
          %2067 = vmatpush2.bf16.msra.mxu0 0
          %2068 = vmatprep.subr.bf16.mxu0 0
          %2069 = vmatpush2.bf16.msra.mxu0 0
          %2070 = vmatprep.subr.bf16.mxu0 0
          %2071 = vmatpush2.bf16.msra.mxu0 0
          %2072 = vmatprep.subr.bf16.mxu0 0
          %2073 = vmatpush2.bf16.msra.mxu0 0
          %2074 = vmatprep.subr.bf16.mxu0 0
          %2075 = vmatpush2.bf16.msra.mxu0 0
          %2076 = vmatprep.subr.bf16.mxu0 0
          %2077 = vmatpush2.bf16.msra.mxu0 0
          %2078 = vmatprep.mubr.bf16.mxu0 0
          %2079 = vmatmul.mubr.bf16.gmra.mxu0 %v1029
          %v2080 = vpop.f32.mrf.mxu0
          %v2081 = vadd.f32 %v1197, %v2080
          %v2082 = vpop.f32.mrf.mxu0
          %v2083 = vadd.f32 %v1201, %v2082
          %v2084 = vpop.f32.mrf.mxu0
          %v2085 = vpop.f32.mrf.mxu0
          %2086 = vdwg.mxu0
          %2087 = vmatprep.subr.bf16.mxu0 %v1749
          %2088 = vmatpush1.bf16.msra.mxu0 %v1748
          %2089 = vmatprep.subr.bf16.mxu0 %v1733
          %2090 = vmatpush1.bf16.msra.mxu0 %v1732
          %2091 = vmatprep.subr.bf16.mxu0 %v1717
          %2092 = vmatpush1.bf16.msra.mxu0 %v1716
          %2093 = vmatprep.subr.bf16.mxu0 %v1701
          %2094 = vmatpush1.bf16.msra.mxu0 %v1700
          %2095 = vmatprep.subr.bf16.mxu0 %v1685
          %2096 = vmatpush1.bf16.msra.mxu0 %v1684
          %2097 = vmatprep.subr.bf16.mxu0 %v1669
          %2098 = vmatpush1.bf16.msra.mxu0 %v1668
          %2099 = vmatprep.subr.bf16.mxu0 %v1653
          %2100 = vmatpush1.bf16.msra.mxu0 %v1652
          %2101 = vmatprep.subr.bf16.mxu0 %v1637
          %2102 = vmatpush1.bf16.msra.mxu0 %v1636
          %2103 = vmatprep.subr.bf16.mxu0 0
          %2104 = vmatpush2.bf16.msra.mxu0 0
          %2105 = vmatprep.subr.bf16.mxu0 0
          %2106 = vmatpush2.bf16.msra.mxu0 0
          %2107 = vmatprep.subr.bf16.mxu0 0
          %2108 = vmatpush2.bf16.msra.mxu0 0
          %2109 = vmatprep.subr.bf16.mxu0 0
          %2110 = vmatpush2.bf16.msra.mxu0 0
          %2111 = vmatprep.subr.bf16.mxu0 0
          %2112 = vmatpush2.bf16.msra.mxu0 0
          %2113 = vmatprep.subr.bf16.mxu0 0
          %2114 = vmatpush2.bf16.msra.mxu0 0
          %2115 = vmatprep.subr.bf16.mxu0 0
          %2116 = vmatpush2.bf16.msra.mxu0 0
          %2117 = vmatprep.subr.bf16.mxu0 0
          %2118 = vmatpush2.bf16.msra.mxu0 0
          %2119 = vmatprep.mubr.bf16.mxu0 0
          %2120 = vmatmul.mubr.bf16.gmra.mxu0 %v1029
          %v2121 = vpop.f32.mrf.mxu0
          %v2122 = vadd.f32 %v1205, %v2121
          %v2123 = vpop.f32.mrf.mxu0
          %v2124 = vadd.f32 %v1209, %v2123
          %v2125 = vpop.f32.mrf.mxu0
          %v2126 = vpop.f32.mrf.mxu0
          %2127 = vdwg.mxu0
          %2128 = vmatprep.subr.bf16.mxu0 %v1751
          %2129 = vmatpush1.bf16.msra.mxu0 %v1750
          %2130 = vmatprep.subr.bf16.mxu0 %v1735
          %2131 = vmatpush1.bf16.msra.mxu0 %v1734
          %2132 = vmatprep.subr.bf16.mxu0 %v1719
          %2133 = vmatpush1.bf16.msra.mxu0 %v1718
          %2134 = vmatprep.subr.bf16.mxu0 %v1703
          %2135 = vmatpush1.bf16.msra.mxu0 %v1702
          %2136 = vmatprep.subr.bf16.mxu0 %v1687
          %2137 = vmatpush1.bf16.msra.mxu0 %v1686
          %2138 = vmatprep.subr.bf16.mxu0 %v1671
          %2139 = vmatpush1.bf16.msra.mxu0 %v1670
          %2140 = vmatprep.subr.bf16.mxu0 %v1655
          %2141 = vmatpush1.bf16.msra.mxu0 %v1654
          %2142 = vmatprep.subr.bf16.mxu0 %v1639
          %2143 = vmatpush1.bf16.msra.mxu0 %v1638
          %2144 = vmatprep.subr.bf16.mxu0 0
          %2145 = vmatpush2.bf16.msra.mxu0 0
          %2146 = vmatprep.subr.bf16.mxu0 0
          %2147 = vmatpush2.bf16.msra.mxu0 0
          %2148 = vmatprep.subr.bf16.mxu0 0
          %2149 = vmatpush2.bf16.msra.mxu0 0
          %2150 = vmatprep.subr.bf16.mxu0 0
          %2151 = vmatpush2.bf16.msra.mxu0 0
          %2152 = vmatprep.subr.bf16.mxu0 0
          %2153 = vmatpush2.bf16.msra.mxu0 0
          %2154 = vmatprep.subr.bf16.mxu0 0
          %2155 = vmatpush2.bf16.msra.mxu0 0
          %2156 = vmatprep.subr.bf16.mxu0 0
          %2157 = vmatpush2.bf16.msra.mxu0 0
          %2158 = vmatprep.subr.bf16.mxu0 0
          %2159 = vmatpush2.bf16.msra.mxu0 0
          %2160 = vmatprep.mubr.bf16.mxu0 0
          %2161 = vmatmul.mubr.bf16.gmra.mxu0 %v1029
          %v2162 = vpop.f32.mrf.mxu0
          %v2163 = vadd.f32 %v1213, %v2162
          %v2164 = vpop.f32.mrf.mxu0
          %v2165 = vadd.f32 %v1217, %v2164
          %v2166 = vpop.f32.mrf.mxu0
          %v2167 = vpop.f32.mrf.mxu0
          %2168 = vdwg.mxu0
          %2169 = vmatprep.subr.bf16.mxu0 %v1753
          %2170 = vmatpush1.bf16.msra.mxu0 %v1752
          %2171 = vmatprep.subr.bf16.mxu0 %v1737
          %2172 = vmatpush1.bf16.msra.mxu0 %v1736
          %2173 = vmatprep.subr.bf16.mxu0 %v1721
          %2174 = vmatpush1.bf16.msra.mxu0 %v1720
          %2175 = vmatprep.subr.bf16.mxu0 %v1705
          %2176 = vmatpush1.bf16.msra.mxu0 %v1704
          %2177 = vmatprep.subr.bf16.mxu0 %v1689
          %2178 = vmatpush1.bf16.msra.mxu0 %v1688
          %2179 = vmatprep.subr.bf16.mxu0 %v1673
          %2180 = vmatpush1.bf16.msra.mxu0 %v1672
          %2181 = vmatprep.subr.bf16.mxu0 %v1657
          %2182 = vmatpush1.bf16.msra.mxu0 %v1656
          %2183 = vmatprep.subr.bf16.mxu0 %v1641
          %2184 = vmatpush1.bf16.msra.mxu0 %v1640
          %2185 = vmatprep.subr.bf16.mxu0 0
          %2186 = vmatpush2.bf16.msra.mxu0 0
          %2187 = vmatprep.subr.bf16.mxu0 0
          %2188 = vmatpush2.bf16.msra.mxu0 0
          %2189 = vmatprep.subr.bf16.mxu0 0
          %2190 = vmatpush2.bf16.msra.mxu0 0
          %2191 = vmatprep.subr.bf16.mxu0 0
          %2192 = vmatpush2.bf16.msra.mxu0 0
          %2193 = vmatprep.subr.bf16.mxu0 0
          %2194 = vmatpush2.bf16.msra.mxu0 0
          %2195 = vmatprep.subr.bf16.mxu0 0
          %2196 = vmatpush2.bf16.msra.mxu0 0
          %2197 = vmatprep.subr.bf16.mxu0 0
          %2198 = vmatpush2.bf16.msra.mxu0 0
          %2199 = vmatprep.subr.bf16.mxu0 0
          %2200 = vmatpush2.bf16.msra.mxu0 0
          %2201 = vmatprep.mubr.bf16.mxu0 0
          %2202 = vmatmul.mubr.bf16.gmra.mxu0 %v1029
          %v2203 = vpop.f32.mrf.mxu0
          %v2204 = vadd.f32 %v1221, %v2203
          %v2205 = vpop.f32.mrf.mxu0
          %v2206 = vadd.f32 %v1225, %v2205
          %v2207 = vpop.f32.mrf.mxu0
          %v2208 = vpop.f32.mrf.mxu0
          %2209 = vdwg.mxu0
          %v2210 = vrot.slane %v1917, 4
          %v2211 = vadd.f32 %v1917, %v2210
          %v2212 = vrot.slane %v2211, 2
          %v2213 = vadd.f32 %v2211, %v2212
          %v2214 = vrot.slane %v2213, 1
          %v2215 = vadd.f32 %v2213, %v2214
          %v2216 = vrot.slane %v1919, 4
          %v2217 = vadd.f32 %v1919, %v2216
          %v2218 = vrot.slane %v2217, 2
          %v2219 = vadd.f32 %v2217, %v2218
          %v2220 = vrot.slane %v2219, 1
          %v2221 = vadd.f32 %v2219, %v2220
          %v2222 = vrot.slane %v1958, 4
          %v2223 = vadd.f32 %v1958, %v2222
          %v2224 = vrot.slane %v2223, 2
          %v2225 = vadd.f32 %v2223, %v2224
          %v2226 = vrot.slane %v2225, 1
          %v2227 = vadd.f32 %v2225, %v2226
          %v2228 = vrot.slane %v1960, 4
          %v2229 = vadd.f32 %v1960, %v2228
          %v2230 = vrot.slane %v2229, 2
          %v2231 = vadd.f32 %v2229, %v2230
          %v2232 = vrot.slane %v2231, 1
          %v2233 = vadd.f32 %v2231, %v2232
          %v2234 = vrot.slane %v1999, 4
          %v2235 = vadd.f32 %v1999, %v2234
          %v2236 = vrot.slane %v2235, 2
          %v2237 = vadd.f32 %v2235, %v2236
          %v2238 = vrot.slane %v2237, 1
          %v2239 = vadd.f32 %v2237, %v2238
          %v2240 = vrot.slane %v2001, 4
          %v2241 = vadd.f32 %v2001, %v2240
          %v2242 = vrot.slane %v2241, 2
          %v2243 = vadd.f32 %v2241, %v2242
          %v2244 = vrot.slane %v2243, 1
          %v2245 = vadd.f32 %v2243, %v2244
          %v2246 = vrot.slane %v2040, 4
          %v2247 = vadd.f32 %v2040, %v2246
          %v2248 = vrot.slane %v2247, 2
          %v2249 = vadd.f32 %v2247, %v2248
          %v2250 = vrot.slane %v2249, 1
          %v2251 = vadd.f32 %v2249, %v2250
          %v2252 = vrot.slane %v2042, 4
          %v2253 = vadd.f32 %v2042, %v2252
          %v2254 = vrot.slane %v2253, 2
          %v2255 = vadd.f32 %v2253, %v2254
          %v2256 = vrot.slane %v2255, 1
          %v2257 = vadd.f32 %v2255, %v2256
          %v2258 = vrot.slane %v2081, 4
          %v2259 = vadd.f32 %v2081, %v2258
          %v2260 = vrot.slane %v2259, 2
          %v2261 = vadd.f32 %v2259, %v2260
          %v2262 = vrot.slane %v2261, 1
          %v2263 = vadd.f32 %v2261, %v2262
          %v2264 = vrot.slane %v2083, 4
          %v2265 = vadd.f32 %v2083, %v2264
          %v2266 = vrot.slane %v2265, 2
          %v2267 = vadd.f32 %v2265, %v2266
          %v2268 = vrot.slane %v2267, 1
          %v2269 = vadd.f32 %v2267, %v2268
          %v2270 = vrot.slane %v2122, 4
          %v2271 = vadd.f32 %v2122, %v2270
          %v2272 = vrot.slane %v2271, 2
          %v2273 = vadd.f32 %v2271, %v2272
          %v2274 = vrot.slane %v2273, 1
          %v2275 = vadd.f32 %v2273, %v2274
          %v2276 = vrot.slane %v2124, 4
          %v2277 = vadd.f32 %v2124, %v2276
          %v2278 = vrot.slane %v2277, 2
          %v2279 = vadd.f32 %v2277, %v2278
          %v2280 = vrot.slane %v2279, 1
          %v2281 = vadd.f32 %v2279, %v2280
          %v2282 = vrot.slane %v2163, 4
          %v2283 = vadd.f32 %v2163, %v2282
          %v2284 = vrot.slane %v2283, 2
          %v2285 = vadd.f32 %v2283, %v2284
          %v2286 = vrot.slane %v2285, 1
          %v2287 = vadd.f32 %v2285, %v2286
          %v2288 = vrot.slane %v2165, 4
          %v2289 = vadd.f32 %v2165, %v2288
          %v2290 = vrot.slane %v2289, 2
          %v2291 = vadd.f32 %v2289, %v2290
          %v2292 = vrot.slane %v2291, 1
          %v2293 = vadd.f32 %v2291, %v2292
          %v2294 = vrot.slane %v2204, 4
          %v2295 = vadd.f32 %v2204, %v2294
          %v2296 = vrot.slane %v2295, 2
          %v2297 = vadd.f32 %v2295, %v2296
          %v2298 = vrot.slane %v2297, 1
          %v2299 = vadd.f32 %v2297, %v2298
          %v2300 = vrot.slane %v2206, 4
          %v2301 = vadd.f32 %v2206, %v2300
          %v2302 = vrot.slane %v2301, 2
          %v2303 = vadd.f32 %v2301, %v2302
          %v2304 = vrot.slane %v2303, 1
          %v2305 = vadd.f32 %v2303, %v2304
          %v2306 = vrcp.pop 8.0
          %v2307 = vmul.f32 %v2215, %v2306
          %v2308 = vmul.f32 %v2221, %v2306
          %v2309 = vmul.f32 %v2227, %v2306
          %v2310 = vmul.f32 %v2233, %v2306
          %v2311 = vmul.f32 %v2239, %v2306
          %v2312 = vmul.f32 %v2245, %v2306
          %v2313 = vmul.f32 %v2251, %v2306
          %v2314 = vmul.f32 %v2257, %v2306
          %v2315 = vmul.f32 %v2263, %v2306
          %v2316 = vmul.f32 %v2269, %v2306
          %v2317 = vmul.f32 %v2275, %v2306
          %v2318 = vmul.f32 %v2281, %v2306
          %v2319 = vmul.f32 %v2287, %v2306
          %v2320 = vmul.f32 %v2293, %v2306
          %v2321 = vmul.f32 %v2299, %v2306
          %v2322 = vmul.f32 %v2305, %v2306
          %v2323 = vsub.f32 %v1917, %v2307
          %v2324 = vsub.f32 %v1919, %v2308
          %v2325 = vsub.f32 %v1958, %v2309
          %v2326 = vsub.f32 %v1960, %v2310
          %v2327 = vsub.f32 %v1999, %v2311
          %v2328 = vsub.f32 %v2001, %v2312
          %v2329 = vsub.f32 %v2040, %v2313
          %v2330 = vsub.f32 %v2042, %v2314
          %v2331 = vsub.f32 %v2081, %v2315
          %v2332 = vsub.f32 %v2083, %v2316
          %v2333 = vsub.f32 %v2122, %v2317
          %v2334 = vsub.f32 %v2124, %v2318
          %v2335 = vsub.f32 %v2163, %v2319
          %v2336 = vsub.f32 %v2165, %v2320
          %v2337 = vsub.f32 %v2204, %v2321
          %v2338 = vsub.f32 %v2206, %v2322
          %v2339 = vmul.f32 %v2323, %v2323
          %v2340 = vmul.f32 %v2324, %v2324
          %v2341 = vmul.f32 %v2325, %v2325
          %v2342 = vmul.f32 %v2326, %v2326
          %v2343 = vmul.f32 %v2327, %v2327
          %v2344 = vmul.f32 %v2328, %v2328
          %v2345 = vmul.f32 %v2329, %v2329
          %v2346 = vmul.f32 %v2330, %v2330
          %v2347 = vmul.f32 %v2331, %v2331
          %v2348 = vmul.f32 %v2332, %v2332
          %v2349 = vmul.f32 %v2333, %v2333
          %v2350 = vmul.f32 %v2334, %v2334
          %v2351 = vmul.f32 %v2335, %v2335
          %v2352 = vmul.f32 %v2336, %v2336
          %v2353 = vmul.f32 %v2337, %v2337
          %v2354 = vmul.f32 %v2338, %v2338
          %v2355 = vrot.slane %v2339, 4
          %v2356 = vadd.f32 %v2339, %v2355
          %v2357 = vrot.slane %v2356, 2
          %v2358 = vadd.f32 %v2356, %v2357
          %v2359 = vrot.slane %v2358, 1
          %v2360 = vadd.f32 %v2358, %v2359
          %v2361 = vrot.slane %v2340, 4
          %v2362 = vadd.f32 %v2340, %v2361
          %v2363 = vrot.slane %v2362, 2
          %v2364 = vadd.f32 %v2362, %v2363
          %v2365 = vrot.slane %v2364, 1
          %v2366 = vadd.f32 %v2364, %v2365
          %v2367 = vrot.slane %v2341, 4
          %v2368 = vadd.f32 %v2341, %v2367
          %v2369 = vrot.slane %v2368, 2
          %v2370 = vadd.f32 %v2368, %v2369
          %v2371 = vrot.slane %v2370, 1
          %v2372 = vadd.f32 %v2370, %v2371
          %v2373 = vrot.slane %v2342, 4
          %v2374 = vadd.f32 %v2342, %v2373
          %v2375 = vrot.slane %v2374, 2
          %v2376 = vadd.f32 %v2374, %v2375
          %v2377 = vrot.slane %v2376, 1
          %v2378 = vadd.f32 %v2376, %v2377
          %v2379 = vrot.slane %v2343, 4
          %v2380 = vadd.f32 %v2343, %v2379
          %v2381 = vrot.slane %v2380, 2
          %v2382 = vadd.f32 %v2380, %v2381
          %v2383 = vrot.slane %v2382, 1
          %v2384 = vadd.f32 %v2382, %v2383
          %v2385 = vrot.slane %v2344, 4
          %v2386 = vadd.f32 %v2344, %v2385
          %v2387 = vrot.slane %v2386, 2
          %v2388 = vadd.f32 %v2386, %v2387
          %v2389 = vrot.slane %v2388, 1
          %v2390 = vadd.f32 %v2388, %v2389
          %v2391 = vrot.slane %v2345, 4
          %v2392 = vadd.f32 %v2345, %v2391
          %v2393 = vrot.slane %v2392, 2
          %v2394 = vadd.f32 %v2392, %v2393
          %v2395 = vrot.slane %v2394, 1
          %v2396 = vadd.f32 %v2394, %v2395
          %v2397 = vrot.slane %v2346, 4
          %v2398 = vadd.f32 %v2346, %v2397
          %v2399 = vrot.slane %v2398, 2
          %v2400 = vadd.f32 %v2398, %v2399
          %v2401 = vrot.slane %v2400, 1
          %v2402 = vadd.f32 %v2400, %v2401
          %v2403 = vrot.slane %v2347, 4
          %v2404 = vadd.f32 %v2347, %v2403
          %v2405 = vrot.slane %v2404, 2
          %v2406 = vadd.f32 %v2404, %v2405
          %v2407 = vrot.slane %v2406, 1
          %v2408 = vadd.f32 %v2406, %v2407
          %v2409 = vrot.slane %v2348, 4
          %v2410 = vadd.f32 %v2348, %v2409
          %v2411 = vrot.slane %v2410, 2
          %v2412 = vadd.f32 %v2410, %v2411
          %v2413 = vrot.slane %v2412, 1
          %v2414 = vadd.f32 %v2412, %v2413
          %v2415 = vrot.slane %v2349, 4
          %v2416 = vadd.f32 %v2349, %v2415
          %v2417 = vrot.slane %v2416, 2
          %v2418 = vadd.f32 %v2416, %v2417
          %v2419 = vrot.slane %v2418, 1
          %v2420 = vadd.f32 %v2418, %v2419
          %v2421 = vrot.slane %v2350, 4
          %v2422 = vadd.f32 %v2350, %v2421
          %v2423 = vrot.slane %v2422, 2
          %v2424 = vadd.f32 %v2422, %v2423
          %v2425 = vrot.slane %v2424, 1
          %v2426 = vadd.f32 %v2424, %v2425
          %v2427 = vrot.slane %v2351, 4
          %v2428 = vadd.f32 %v2351, %v2427
          %v2429 = vrot.slane %v2428, 2
          %v2430 = vadd.f32 %v2428, %v2429
          %v2431 = vrot.slane %v2430, 1
          %v2432 = vadd.f32 %v2430, %v2431
          %v2433 = vrot.slane %v2352, 4
          %v2434 = vadd.f32 %v2352, %v2433
          %v2435 = vrot.slane %v2434, 2
          %v2436 = vadd.f32 %v2434, %v2435
          %v2437 = vrot.slane %v2436, 1
          %v2438 = vadd.f32 %v2436, %v2437
          %v2439 = vrot.slane %v2353, 4
          %v2440 = vadd.f32 %v2353, %v2439
          %v2441 = vrot.slane %v2440, 2
          %v2442 = vadd.f32 %v2440, %v2441
          %v2443 = vrot.slane %v2442, 1
          %v2444 = vadd.f32 %v2442, %v2443
          %v2445 = vrot.slane %v2354, 4
          %v2446 = vadd.f32 %v2354, %v2445
          %v2447 = vrot.slane %v2446, 2
          %v2448 = vadd.f32 %v2446, %v2447
          %v2449 = vrot.slane %v2448, 1
          %v2450 = vadd.f32 %v2448, %v2449
          %v2451 = vmul.f32 %v2360, %v2306
          %v2452 = vmul.f32 %v2366, %v2306
          %v2453 = vmul.f32 %v2372, %v2306
          %v2454 = vmul.f32 %v2378, %v2306
          %v2455 = vmul.f32 %v2384, %v2306
          %v2456 = vmul.f32 %v2390, %v2306
          %v2457 = vmul.f32 %v2396, %v2306
          %v2458 = vmul.f32 %v2402, %v2306
          %v2459 = vmul.f32 %v2408, %v2306
          %v2460 = vmul.f32 %v2414, %v2306
          %v2461 = vmul.f32 %v2420, %v2306
          %v2462 = vmul.f32 %v2426, %v2306
          %v2463 = vmul.f32 %v2432, %v2306
          %v2464 = vmul.f32 %v2438, %v2306
          %v2465 = vmul.f32 %v2444, %v2306
          %v2466 = vmul.f32 %v2450, %v2306
          %v2467 = vld [vmem:[#allocation14] sm:$0xff]
          %v2468 = vld [vmem:[#allocation14 + $0x8] sm:$0xff]
          %v2471 = vlaneseq
          %v2472 = vshrl.u32 %v2471, 7
          %v2473 = vsub.s32 0, %v2472
          %v2474 = vrot.slane %v2467, %v2473
          %v2475 = vlaneseq
          %v2476 = vshrl.u32 %v2475, 7
          %v2477 = vsub.s32 1, %v2476
          %v2478 = vrot.slane %v2467, %v2477
          %v2479 = vlaneseq
          %v2480 = vshrl.u32 %v2479, 7
          %v2481 = vsub.s32 2, %v2480
          %v2482 = vrot.slane %v2467, %v2481
          %v2483 = vlaneseq
          %v2484 = vshrl.u32 %v2483, 7
          %v2485 = vsub.s32 3, %v2484
          %v2486 = vrot.slane %v2467, %v2485
          %v2487 = vlaneseq
          %v2488 = vshrl.u32 %v2487, 7
          %v2489 = vsub.s32 4, %v2488
          %v2490 = vrot.slane %v2467, %v2489
          %v2491 = vlaneseq
          %v2492 = vshrl.u32 %v2491, 7
          %v2493 = vsub.s32 5, %v2492
          %v2494 = vrot.slane %v2467, %v2493
          %v2495 = vlaneseq
          %v2496 = vshrl.u32 %v2495, 7
          %v2497 = vsub.s32 6, %v2496
          %v2498 = vrot.slane %v2467, %v2497
          %v2499 = vlaneseq
          %v2500 = vshrl.u32 %v2499, 7
          %v2501 = vsub.s32 7, %v2500
          %v2502 = vrot.slane %v2467, %v2501
          %v2503 = vlaneseq
          %v2504 = vshrl.u32 %v2503, 7
          %v2505 = vsub.s32 0, %v2504
          %v2506 = vrot.slane %v2468, %v2505
          %v2507 = vlaneseq
          %v2508 = vshrl.u32 %v2507, 7
          %v2509 = vsub.s32 1, %v2508
          %v2510 = vrot.slane %v2468, %v2509
          %v2511 = vlaneseq
          %v2512 = vshrl.u32 %v2511, 7
          %v2513 = vsub.s32 2, %v2512
          %v2514 = vrot.slane %v2468, %v2513
          %v2515 = vlaneseq
          %v2516 = vshrl.u32 %v2515, 7
          %v2517 = vsub.s32 3, %v2516
          %v2518 = vrot.slane %v2468, %v2517
          %v2519 = vlaneseq
          %v2520 = vshrl.u32 %v2519, 7
          %v2521 = vsub.s32 4, %v2520
          %v2522 = vrot.slane %v2468, %v2521
          %v2523 = vlaneseq
          %v2524 = vshrl.u32 %v2523, 7
          %v2525 = vsub.s32 5, %v2524
          %v2526 = vrot.slane %v2468, %v2525
          %v2527 = vlaneseq
          %v2528 = vshrl.u32 %v2527, 7
          %v2529 = vsub.s32 6, %v2528
          %v2530 = vrot.slane %v2468, %v2529
          %v2531 = vlaneseq
          %v2532 = vshrl.u32 %v2531, 7
          %v2533 = vsub.s32 7, %v2532
          %v2534 = vrot.slane %v2468, %v2533
          %v2551 = vmul.f32 %v2474, %v2323
          %v2552 = vmul.f32 %v2478, %v2324
          %v2553 = vmul.f32 %v2482, %v2325
          %v2554 = vmul.f32 %v2486, %v2326
          %v2555 = vmul.f32 %v2490, %v2327
          %v2556 = vmul.f32 %v2494, %v2328
          %v2557 = vmul.f32 %v2498, %v2329
          %v2558 = vmul.f32 %v2502, %v2330
          %v2559 = vmul.f32 %v2506, %v2331
          %v2560 = vmul.f32 %v2510, %v2332
          %v2561 = vmul.f32 %v2514, %v2333
          %v2562 = vmul.f32 %v2518, %v2334
          %v2563 = vmul.f32 %v2522, %v2335
          %v2564 = vmul.f32 %v2526, %v2336
          %v2565 = vmul.f32 %v2530, %v2337
          %v2566 = vmul.f32 %v2534, %v2338
          %v2567 = vadd.f32 %v2451, 1e-05
          %v2568 = vadd.f32 %v2452, 1e-05
          %v2569 = vadd.f32 %v2453, 1e-05
          %v2570 = vadd.f32 %v2454, 1e-05
          %v2571 = vadd.f32 %v2455, 1e-05
          %v2572 = vadd.f32 %v2456, 1e-05
          %v2573 = vadd.f32 %v2457, 1e-05
          %v2574 = vadd.f32 %v2458, 1e-05
          %v2575 = vadd.f32 %v2459, 1e-05
          %v2576 = vadd.f32 %v2460, 1e-05
          %v2577 = vadd.f32 %v2461, 1e-05
          %v2578 = vadd.f32 %v2462, 1e-05
          %v2579 = vadd.f32 %v2463, 1e-05
          %v2580 = vadd.f32 %v2464, 1e-05
          %v2581 = vadd.f32 %v2465, 1e-05
          %v2582 = vadd.f32 %v2466, 1e-05
          %v2583 = vrsqrt.pop %v2567
          %v2584 = vrsqrt.pop %v2568
          %v2585 = vrsqrt.pop %v2569
          %v2586 = vrsqrt.pop %v2570
          %v2587 = vrsqrt.pop %v2571
          %v2588 = vrsqrt.pop %v2572
          %v2589 = vrsqrt.pop %v2573
          %v2590 = vrsqrt.pop %v2574
          %v2591 = vrsqrt.pop %v2575
          %v2592 = vrsqrt.pop %v2576
          %v2593 = vrsqrt.pop %v2577
          %v2594 = vrsqrt.pop %v2578
          %v2595 = vrsqrt.pop %v2579
          %v2596 = vrsqrt.pop %v2580
          %v2597 = vrsqrt.pop %v2581
          %v2598 = vrsqrt.pop %v2582
          %v2599 = vmul.f32 %v2551, %v2583
          %v2600 = vmul.f32 %v2552, %v2584
          %v2601 = vmul.f32 %v2553, %v2585
          %v2602 = vmul.f32 %v2554, %v2586
          %v2603 = vmul.f32 %v2555, %v2587
          %v2604 = vmul.f32 %v2556, %v2588
          %v2605 = vmul.f32 %v2557, %v2589
          %v2606 = vmul.f32 %v2558, %v2590
          %v2607 = vmul.f32 %v2559, %v2591
          %v2608 = vmul.f32 %v2560, %v2592
          %v2609 = vmul.f32 %v2561, %v2593
          %v2610 = vmul.f32 %v2562, %v2594
          %v2611 = vmul.f32 %v2563, %v2595
          %v2612 = vmul.f32 %v2564, %v2596
          %v2613 = vmul.f32 %v2565, %v2597
          %v2614 = vmul.f32 %v2566, %v2598
          %v2615 = vld [vmem:[#allocation16] sm:$0xff]
          %v2616 = vld [vmem:[#allocation16 + $0x8] sm:$0xff]
          %v2619 = vlaneseq
          %v2620 = vshrl.u32 %v2619, 7
          %v2621 = vsub.s32 0, %v2620
          %v2622 = vrot.slane %v2615, %v2621
          %v2623 = vlaneseq
          %v2624 = vshrl.u32 %v2623, 7
          %v2625 = vsub.s32 1, %v2624
          %v2626 = vrot.slane %v2615, %v2625
          %v2627 = vlaneseq
          %v2628 = vshrl.u32 %v2627, 7
          %v2629 = vsub.s32 2, %v2628
          %v2630 = vrot.slane %v2615, %v2629
          %v2631 = vlaneseq
          %v2632 = vshrl.u32 %v2631, 7
          %v2633 = vsub.s32 3, %v2632
          %v2634 = vrot.slane %v2615, %v2633
          %v2635 = vlaneseq
          %v2636 = vshrl.u32 %v2635, 7
          %v2637 = vsub.s32 4, %v2636
          %v2638 = vrot.slane %v2615, %v2637
          %v2639 = vlaneseq
          %v2640 = vshrl.u32 %v2639, 7
          %v2641 = vsub.s32 5, %v2640
          %v2642 = vrot.slane %v2615, %v2641
          %v2643 = vlaneseq
          %v2644 = vshrl.u32 %v2643, 7
          %v2645 = vsub.s32 6, %v2644
          %v2646 = vrot.slane %v2615, %v2645
          %v2647 = vlaneseq
          %v2648 = vshrl.u32 %v2647, 7
          %v2649 = vsub.s32 7, %v2648
          %v2650 = vrot.slane %v2615, %v2649
          %v2651 = vlaneseq
          %v2652 = vshrl.u32 %v2651, 7
          %v2653 = vsub.s32 0, %v2652
          %v2654 = vrot.slane %v2616, %v2653
          %v2655 = vlaneseq
          %v2656 = vshrl.u32 %v2655, 7
          %v2657 = vsub.s32 1, %v2656
          %v2658 = vrot.slane %v2616, %v2657
          %v2659 = vlaneseq
          %v2660 = vshrl.u32 %v2659, 7
          %v2661 = vsub.s32 2, %v2660
          %v2662 = vrot.slane %v2616, %v2661
          %v2663 = vlaneseq
          %v2664 = vshrl.u32 %v2663, 7
          %v2665 = vsub.s32 3, %v2664
          %v2666 = vrot.slane %v2616, %v2665
          %v2667 = vlaneseq
          %v2668 = vshrl.u32 %v2667, 7
          %v2669 = vsub.s32 4, %v2668
          %v2670 = vrot.slane %v2616, %v2669
          %v2671 = vlaneseq
          %v2672 = vshrl.u32 %v2671, 7
          %v2673 = vsub.s32 5, %v2672
          %v2674 = vrot.slane %v2616, %v2673
          %v2675 = vlaneseq
          %v2676 = vshrl.u32 %v2675, 7
          %v2677 = vsub.s32 6, %v2676
          %v2678 = vrot.slane %v2616, %v2677
          %v2679 = vlaneseq
          %v2680 = vshrl.u32 %v2679, 7
          %v2681 = vsub.s32 7, %v2680
          %v2682 = vrot.slane %v2616, %v2681
          %v2699 = vadd.f32 %v2599, %v2622
          %v2700 = vadd.f32 %v2600, %v2626
          %v2701 = vadd.f32 %v2601, %v2630
          %v2702 = vadd.f32 %v2602, %v2634
          %v2703 = vadd.f32 %v2603, %v2638
          %v2704 = vadd.f32 %v2604, %v2642
          %v2705 = vadd.f32 %v2605, %v2646
          %v2706 = vadd.f32 %v2606, %v2650
          %v2707 = vadd.f32 %v2607, %v2654
          %v2708 = vadd.f32 %v2608, %v2658
          %v2709 = vadd.f32 %v2609, %v2662
          %v2710 = vadd.f32 %v2610, %v2666
          %v2711 = vadd.f32 %v2611, %v2670
          %v2712 = vadd.f32 %v2612, %v2674
          %v2713 = vadd.f32 %v2613, %v2678
          %v2714 = vadd.f32 %v2614, %v2682
          %v2715 = vmax.f32 %v2699, 0.0
          %v2716 = vmax.f32 %v2700, 0.0
          %v2717 = vmax.f32 %v2701, 0.0
          %v2718 = vmax.f32 %v2702, 0.0
          %v2719 = vmax.f32 %v2703, 0.0
          %v2720 = vmax.f32 %v2704, 0.0
          %v2721 = vmax.f32 %v2705, 0.0
          %v2722 = vmax.f32 %v2706, 0.0
          %v2723 = vmax.f32 %v2707, 0.0
          %v2724 = vmax.f32 %v2708, 0.0
          %v2725 = vmax.f32 %v2709, 0.0
          %v2726 = vmax.f32 %v2710, 0.0
          %v2727 = vmax.f32 %v2711, 0.0
          %v2728 = vmax.f32 %v2712, 0.0
          %v2729 = vmax.f32 %v2713, 0.0
          %v2730 = vmax.f32 %v2714, 0.0
          %v2731 = vpack.c.bf16 %v2715, %v2715
          %v2732 = vpack.c.bf16 %v2716, %v2716
          %v2733 = vpack.c.bf16 %v2717, %v2717
          %v2734 = vpack.c.bf16 %v2718, %v2718
          %v2735 = vpack.c.bf16 %v2719, %v2719
          %v2736 = vpack.c.bf16 %v2720, %v2720
          %v2737 = vpack.c.bf16 %v2721, %v2721
          %v2738 = vpack.c.bf16 %v2722, %v2722
          %v2739 = vpack.c.bf16 %v2723, %v2723
          %v2740 = vpack.c.bf16 %v2724, %v2724
          %v2741 = vpack.c.bf16 %v2725, %v2725
          %v2742 = vpack.c.bf16 %v2726, %v2726
          %v2743 = vpack.c.bf16 %v2727, %v2727
          %v2744 = vpack.c.bf16 %v2728, %v2728
          %v2745 = vpack.c.bf16 %v2729, %v2729
          %v2746 = vpack.c.bf16 %v2730, %v2730
          %v2763 = vunpack.c.l.b16 %v2731
          %v2764 = vunpack.c.l.b16 %v2732
          %v2765 = vunpack.c.l.b16 %v2733
          %v2766 = vunpack.c.l.b16 %v2734
          %v2767 = vunpack.c.l.b16 %v2735
          %v2768 = vunpack.c.l.b16 %v2736
          %v2769 = vunpack.c.l.b16 %v2737
          %v2770 = vunpack.c.l.b16 %v2738
          %v2771 = vunpack.c.l.b16 %v2739
          %v2772 = vunpack.c.l.b16 %v2740
          %v2773 = vunpack.c.l.b16 %v2741
          %v2774 = vunpack.c.l.b16 %v2742
          %v2775 = vunpack.c.l.b16 %v2743
          %v2776 = vunpack.c.l.b16 %v2744
          %v2777 = vunpack.c.l.b16 %v2745
          %v2778 = vunpack.c.l.b16 %v2746
          %v2779 = vpack.c.b16 %v2764, %v2763
          %v2780 = vpack.c.b16 %v2766, %v2765
          %v2781 = vpack.c.b16 %v2768, %v2767
          %v2782 = vpack.c.b16 %v2770, %v2769
          %v2783 = vpack.c.b16 %v2772, %v2771
          %v2784 = vpack.c.b16 %v2774, %v2773
          %v2785 = vpack.c.b16 %v2776, %v2775
          %v2786 = vpack.c.b16 %v2778, %v2777
          %2795 = vst [vmem:[#allocation3] sm:$0xff] %v2779
          %2796 = vst [vmem:[#allocation3 + $0x8] sm:$0xff] %v2780
          %2797 = vst [vmem:[#allocation3 + $0x10] sm:$0xff] %v2781
          %2798 = vst [vmem:[#allocation3 + $0x18] sm:$0xff] %v2782
          %2799 = vst [vmem:[#allocation3 + $0x20] sm:$0xff] %v2783
          %2800 = vst [vmem:[#allocation3 + $0x28] sm:$0xff] %v2784
          %2801 = vst [vmem:[#allocation3 + $0x30] sm:$0xff] %v2785
          %2802 = vst [vmem:[#allocation3 + $0x38] sm:$0xff] %v2786
          %2803 = vst [vmem:[#allocation4] sm:$0xff] 0.0
        $region128: #{tpu_custom_call.1} parent=71 // pred_fallthru
          _
        %v2804 = vld [vmem:[#allocation3] sm:$0xff]
        %v2805 = vld [vmem:[#allocation3 + $0x8] sm:$0xff]
        %v2806 = vld [vmem:[#allocation3 + $0x10] sm:$0xff]
        %v2807 = vld [vmem:[#allocation3 + $0x18] sm:$0xff]
        %v2808 = vld [vmem:[#allocation3 + $0x20] sm:$0xff]
        %v2809 = vld [vmem:[#allocation3 + $0x28] sm:$0xff]
        %v2810 = vld [vmem:[#allocation3 + $0x30] sm:$0xff]
        %v2811 = vld [vmem:[#allocation3 + $0x38] sm:$0xff]
        %v2812 = vld [vmem:[%s601] sm:$0xff]
        %v2813 = vld [vmem:[%s601 + $0x8] sm:$0xff]
        %v2814 = vld [vmem:[%s601 + $0x10] sm:$0xff]
        %v2815 = vld [vmem:[%s601 + $0x18] sm:$0xff]
        %v2816 = vld [vmem:[%s601 + $0x20] sm:$0xff]
        %v2817 = vld [vmem:[%s601 + $0x28] sm:$0xff]
        %v2818 = vld [vmem:[%s601 + $0x30] sm:$0xff]
        %v2819 = vld [vmem:[%s601 + $0x38] sm:$0xff]
        %v2820 = vld [vmem:[%s601 + $0x40] sm:$0xff]
        %v2821 = vld [vmem:[%s601 + $0x48] sm:$0xff]
        %v2822 = vld [vmem:[%s601 + $0x50] sm:$0xff]
        %v2823 = vld [vmem:[%s601 + $0x58] sm:$0xff]
        %v2824 = vld [vmem:[%s601 + $0x60] sm:$0xff]
        %v2825 = vld [vmem:[%s601 + $0x68] sm:$0xff]
        %v2826 = vld [vmem:[%s601 + $0x70] sm:$0xff]
        %v2827 = vld [vmem:[%s601 + $0x78] sm:$0xff]
        %v2828 = vld [vmem:[%s601 + $0x80] sm:$0xff]
        %v2829 = vld [vmem:[%s601 + $0x88] sm:$0xff]
        %v2830 = vld [vmem:[%s601 + $0x90] sm:$0xff]
        %v2831 = vld [vmem:[%s601 + $0x98] sm:$0xff]
        %v2832 = vld [vmem:[%s601 + $0xa0] sm:$0xff]
        %v2833 = vld [vmem:[%s601 + $0xa8] sm:$0xff]
        %v2834 = vld [vmem:[%s601 + $0xb0] sm:$0xff]
        %v2835 = vld [vmem:[%s601 + $0xb8] sm:$0xff]
        %v2836 = vld [vmem:[%s601 + $0xc0] sm:$0xff]
        %v2837 = vld [vmem:[%s601 + $0xc8] sm:$0xff]
        %v2838 = vld [vmem:[%s601 + $0xd0] sm:$0xff]
        %v2839 = vld [vmem:[%s601 + $0xd8] sm:$0xff]
        %v2840 = vld [vmem:[%s601 + $0xe0] sm:$0xff]
        %v2841 = vld [vmem:[%s601 + $0xe8] sm:$0xff]
        %v2842 = vld [vmem:[%s601 + $0xf0] sm:$0xff]
        %v2843 = vld [vmem:[%s601 + $0xf8] sm:$0xff]
        %v2844 = vld [vmem:[%s601 + $0x100] sm:$0xff]
        %v2845 = vld [vmem:[%s601 + $0x108] sm:$0xff]
        %v2846 = vld [vmem:[%s601 + $0x110] sm:$0xff]
        %v2847 = vld [vmem:[%s601 + $0x118] sm:$0xff]
        %v2848 = vld [vmem:[%s601 + $0x120] sm:$0xff]
        %v2849 = vld [vmem:[%s601 + $0x128] sm:$0xff]
        %v2850 = vld [vmem:[%s601 + $0x130] sm:$0xff]
        %v2851 = vld [vmem:[%s601 + $0x138] sm:$0xff]
        %v2852 = vld [vmem:[%s601 + $0x140] sm:$0xff]
        %v2853 = vld [vmem:[%s601 + $0x148] sm:$0xff]
        %v2854 = vld [vmem:[%s601 + $0x150] sm:$0xff]
        %v2855 = vld [vmem:[%s601 + $0x158] sm:$0xff]
        %v2856 = vld [vmem:[%s601 + $0x160] sm:$0xff]
        %v2857 = vld [vmem:[%s601 + $0x168] sm:$0xff]
        %v2858 = vld [vmem:[%s601 + $0x170] sm:$0xff]
        %v2859 = vld [vmem:[%s601 + $0x178] sm:$0xff]
        %v2860 = vld [vmem:[%s601 + $0x180] sm:$0xff]
        %v2861 = vld [vmem:[%s601 + $0x188] sm:$0xff]
        %v2862 = vld [vmem:[%s601 + $0x190] sm:$0xff]
        %v2863 = vld [vmem:[%s601 + $0x198] sm:$0xff]
        %v2864 = vld [vmem:[%s601 + $0x1a0] sm:$0xff]
        %v2865 = vld [vmem:[%s601 + $0x1a8] sm:$0xff]
        %v2866 = vld [vmem:[%s601 + $0x1b0] sm:$0xff]
        %v2867 = vld [vmem:[%s601 + $0x1b8] sm:$0xff]
        %v2868 = vld [vmem:[%s601 + $0x1c0] sm:$0xff]
        %v2869 = vld [vmem:[%s601 + $0x1c8] sm:$0xff]
        %v2870 = vld [vmem:[%s601 + $0x1d0] sm:$0xff]
        %v2871 = vld [vmem:[%s601 + $0x1d8] sm:$0xff]
        %v2872 = vld [vmem:[%s601 + $0x1e0] sm:$0xff]
        %v2873 = vld [vmem:[%s601 + $0x1e8] sm:$0xff]
        %v2874 = vld [vmem:[%s601 + $0x1f0] sm:$0xff]
        %v2875 = vld [vmem:[%s601 + $0x1f8] sm:$0xff]
        %v2876 = vld [vmem:[%s601 + $0x200] sm:$0xff]
        %v2877 = vld [vmem:[%s601 + $0x208] sm:$0xff]
        %v2878 = vld [vmem:[%s601 + $0x210] sm:$0xff]
        %v2879 = vld [vmem:[%s601 + $0x218] sm:$0xff]
        %v2880 = vld [vmem:[%s601 + $0x220] sm:$0xff]
        %v2881 = vld [vmem:[%s601 + $0x228] sm:$0xff]
        %v2882 = vld [vmem:[%s601 + $0x230] sm:$0xff]
        %v2883 = vld [vmem:[%s601 + $0x238] sm:$0xff]
        %v2884 = vld [vmem:[%s601 + $0x240] sm:$0xff]
        %v2885 = vld [vmem:[%s601 + $0x248] sm:$0xff]
        %v2886 = vld [vmem:[%s601 + $0x250] sm:$0xff]
        %v2887 = vld [vmem:[%s601 + $0x258] sm:$0xff]
        %v2888 = vld [vmem:[%s601 + $0x260] sm:$0xff]
        %v2889 = vld [vmem:[%s601 + $0x268] sm:$0xff]
        %v2890 = vld [vmem:[%s601 + $0x270] sm:$0xff]
        %v2891 = vld [vmem:[%s601 + $0x278] sm:$0xff]
        %v2892 = vld [vmem:[%s601 + $0x280] sm:$0xff]
        %v2893 = vld [vmem:[%s601 + $0x288] sm:$0xff]
        %v2894 = vld [vmem:[%s601 + $0x290] sm:$0xff]
        %v2895 = vld [vmem:[%s601 + $0x298] sm:$0xff]
        %v2896 = vld [vmem:[%s601 + $0x2a0] sm:$0xff]
        %v2897 = vld [vmem:[%s601 + $0x2a8] sm:$0xff]
        %v2898 = vld [vmem:[%s601 + $0x2b0] sm:$0xff]
        %v2899 = vld [vmem:[%s601 + $0x2b8] sm:$0xff]
        %v2900 = vld [vmem:[%s601 + $0x2c0] sm:$0xff]
        %v2901 = vld [vmem:[%s601 + $0x2c8] sm:$0xff]
        %v2902 = vld [vmem:[%s601 + $0x2d0] sm:$0xff]
        %v2903 = vld [vmem:[%s601 + $0x2d8] sm:$0xff]
        %v2904 = vld [vmem:[%s601 + $0x2e0] sm:$0xff]
        %v2905 = vld [vmem:[%s601 + $0x2e8] sm:$0xff]
        %v2906 = vld [vmem:[%s601 + $0x2f0] sm:$0xff]
        %v2907 = vld [vmem:[%s601 + $0x2f8] sm:$0xff]
        %v2908 = vld [vmem:[%s601 + $0x300] sm:$0xff]
        %v2909 = vld [vmem:[%s601 + $0x308] sm:$0xff]
        %v2910 = vld [vmem:[%s601 + $0x310] sm:$0xff]
        %v2911 = vld [vmem:[%s601 + $0x318] sm:$0xff]
        %v2912 = vld [vmem:[%s601 + $0x320] sm:$0xff]
        %v2913 = vld [vmem:[%s601 + $0x328] sm:$0xff]
        %v2914 = vld [vmem:[%s601 + $0x330] sm:$0xff]
        %v2915 = vld [vmem:[%s601 + $0x338] sm:$0xff]
        %v2916 = vld [vmem:[%s601 + $0x340] sm:$0xff]
        %v2917 = vld [vmem:[%s601 + $0x348] sm:$0xff]
        %v2918 = vld [vmem:[%s601 + $0x350] sm:$0xff]
        %v2919 = vld [vmem:[%s601 + $0x358] sm:$0xff]
        %v2920 = vld [vmem:[%s601 + $0x360] sm:$0xff]
        %v2921 = vld [vmem:[%s601 + $0x368] sm:$0xff]
        %v2922 = vld [vmem:[%s601 + $0x370] sm:$0xff]
        %v2923 = vld [vmem:[%s601 + $0x378] sm:$0xff]
        %v2924 = vld [vmem:[%s601 + $0x380] sm:$0xff]
        %v2925 = vld [vmem:[%s601 + $0x388] sm:$0xff]
        %v2926 = vld [vmem:[%s601 + $0x390] sm:$0xff]
        %v2927 = vld [vmem:[%s601 + $0x398] sm:$0xff]
        %v2928 = vld [vmem:[%s601 + $0x3a0] sm:$0xff]
        %v2929 = vld [vmem:[%s601 + $0x3a8] sm:$0xff]
        %v2930 = vld [vmem:[%s601 + $0x3b0] sm:$0xff]
        %v2931 = vld [vmem:[%s601 + $0x3b8] sm:$0xff]
        %v2932 = vld [vmem:[%s601 + $0x3c0] sm:$0xff]
        %v2933 = vld [vmem:[%s601 + $0x3c8] sm:$0xff]
        %v2934 = vld [vmem:[%s601 + $0x3d0] sm:$0xff]
        %v2935 = vld [vmem:[%s601 + $0x3d8] sm:$0xff]
        %v2936 = vld [vmem:[%s601 + $0x3e0] sm:$0xff]
        %v2937 = vld [vmem:[%s601 + $0x3e8] sm:$0xff]
        %v2938 = vld [vmem:[%s601 + $0x3f0] sm:$0xff]
        %v2939 = vld [vmem:[%s601 + $0x3f8] sm:$0xff]
        %v2940 = vld [vmem:[%s601 + $0x400] sm:$0xff]
        %v2941 = vld [vmem:[%s601 + $0x408] sm:$0xff]
        %v2942 = vld [vmem:[%s601 + $0x410] sm:$0xff]
        %v2943 = vld [vmem:[%s601 + $0x418] sm:$0xff]
        %v2944 = vld [vmem:[%s601 + $0x420] sm:$0xff]
        %v2945 = vld [vmem:[%s601 + $0x428] sm:$0xff]
        %v2946 = vld [vmem:[%s601 + $0x430] sm:$0xff]
        %v2947 = vld [vmem:[%s601 + $0x438] sm:$0xff]
        %v2948 = vld [vmem:[%s601 + $0x440] sm:$0xff]
        %v2949 = vld [vmem:[%s601 + $0x448] sm:$0xff]
        %v2950 = vld [vmem:[%s601 + $0x450] sm:$0xff]
        %v2951 = vld [vmem:[%s601 + $0x458] sm:$0xff]
        %v2952 = vld [vmem:[%s601 + $0x460] sm:$0xff]
        %v2953 = vld [vmem:[%s601 + $0x468] sm:$0xff]
        %v2954 = vld [vmem:[%s601 + $0x470] sm:$0xff]
        %v2955 = vld [vmem:[%s601 + $0x478] sm:$0xff]
        %v2956 = vld [vmem:[%s601 + $0x480] sm:$0xff]
        %v2957 = vld [vmem:[%s601 + $0x488] sm:$0xff]
        %v2958 = vld [vmem:[%s601 + $0x490] sm:$0xff]
        %v2959 = vld [vmem:[%s601 + $0x498] sm:$0xff]
        %v2960 = vld [vmem:[%s601 + $0x4a0] sm:$0xff]
        %v2961 = vld [vmem:[%s601 + $0x4a8] sm:$0xff]
        %v2962 = vld [vmem:[%s601 + $0x4b0] sm:$0xff]
        %v2963 = vld [vmem:[%s601 + $0x4b8] sm:$0xff]
        %v2964 = vld [vmem:[%s601 + $0x4c0] sm:$0xff]
        %v2965 = vld [vmem:[%s601 + $0x4c8] sm:$0xff]
        %v2966 = vld [vmem:[%s601 + $0x4d0] sm:$0xff]
        %v2967 = vld [vmem:[%s601 + $0x4d8] sm:$0xff]
        %v2968 = vld [vmem:[%s601 + $0x4e0] sm:$0xff]
        %v2969 = vld [vmem:[%s601 + $0x4e8] sm:$0xff]
        %v2970 = vld [vmem:[%s601 + $0x4f0] sm:$0xff]
        %v2971 = vld [vmem:[%s601 + $0x4f8] sm:$0xff]
        %v2972 = vld [vmem:[%s601 + $0x500] sm:$0xff]
        %v2973 = vld [vmem:[%s601 + $0x508] sm:$0xff]
        %v2974 = vld [vmem:[%s601 + $0x510] sm:$0xff]
        %v2975 = vld [vmem:[%s601 + $0x518] sm:$0xff]
        %v2976 = vld [vmem:[%s601 + $0x520] sm:$0xff]
        %v2977 = vld [vmem:[%s601 + $0x528] sm:$0xff]
        %v2978 = vld [vmem:[%s601 + $0x530] sm:$0xff]
        %v2979 = vld [vmem:[%s601 + $0x538] sm:$0xff]
        %v2980 = vld [vmem:[%s601 + $0x540] sm:$0xff]
        %v2981 = vld [vmem:[%s601 + $0x548] sm:$0xff]
        %v2982 = vld [vmem:[%s601 + $0x550] sm:$0xff]
        %v2983 = vld [vmem:[%s601 + $0x558] sm:$0xff]
        %v2984 = vld [vmem:[%s601 + $0x560] sm:$0xff]
        %v2985 = vld [vmem:[%s601 + $0x568] sm:$0xff]
        %v2986 = vld [vmem:[%s601 + $0x570] sm:$0xff]
        %v2987 = vld [vmem:[%s601 + $0x578] sm:$0xff]
        %v2988 = vld [vmem:[%s601 + $0x580] sm:$0xff]
        %v2989 = vld [vmem:[%s601 + $0x588] sm:$0xff]
        %v2990 = vld [vmem:[%s601 + $0x590] sm:$0xff]
        %v2991 = vld [vmem:[%s601 + $0x598] sm:$0xff]
        %v2992 = vld [vmem:[%s601 + $0x5a0] sm:$0xff]
        %v2993 = vld [vmem:[%s601 + $0x5a8] sm:$0xff]
        %v2994 = vld [vmem:[%s601 + $0x5b0] sm:$0xff]
        %v2995 = vld [vmem:[%s601 + $0x5b8] sm:$0xff]
        %v2996 = vld [vmem:[%s601 + $0x5c0] sm:$0xff]
        %v2997 = vld [vmem:[%s601 + $0x5c8] sm:$0xff]
        %v2998 = vld [vmem:[%s601 + $0x5d0] sm:$0xff]
        %v2999 = vld [vmem:[%s601 + $0x5d8] sm:$0xff]
        %v3000 = vld [vmem:[%s601 + $0x5e0] sm:$0xff]
        %v3001 = vld [vmem:[%s601 + $0x5e8] sm:$0xff]
        %v3002 = vld [vmem:[%s601 + $0x5f0] sm:$0xff]
        %v3003 = vld [vmem:[%s601 + $0x5f8] sm:$0xff]
        %v3004 = vld [vmem:[%s601 + $0x600] sm:$0xff]
        %v3005 = vld [vmem:[%s601 + $0x608] sm:$0xff]
        %v3006 = vld [vmem:[%s601 + $0x610] sm:$0xff]
        %v3007 = vld [vmem:[%s601 + $0x618] sm:$0xff]
        %v3008 = vld [vmem:[%s601 + $0x620] sm:$0xff]
        %v3009 = vld [vmem:[%s601 + $0x628] sm:$0xff]
        %v3010 = vld [vmem:[%s601 + $0x630] sm:$0xff]
        %v3011 = vld [vmem:[%s601 + $0x638] sm:$0xff]
        %v3012 = vld [vmem:[%s601 + $0x640] sm:$0xff]
        %v3013 = vld [vmem:[%s601 + $0x648] sm:$0xff]
        %v3014 = vld [vmem:[%s601 + $0x650] sm:$0xff]
        %v3015 = vld [vmem:[%s601 + $0x658] sm:$0xff]
        %v3016 = vld [vmem:[%s601 + $0x660] sm:$0xff]
        %v3017 = vld [vmem:[%s601 + $0x668] sm:$0xff]
        %v3018 = vld [vmem:[%s601 + $0x670] sm:$0xff]
        %v3019 = vld [vmem:[%s601 + $0x678] sm:$0xff]
        %v3020 = vld [vmem:[%s601 + $0x680] sm:$0xff]
        %v3021 = vld [vmem:[%s601 + $0x688] sm:$0xff]
        %v3022 = vld [vmem:[%s601 + $0x690] sm:$0xff]
        %v3023 = vld [vmem:[%s601 + $0x698] sm:$0xff]
        %v3024 = vld [vmem:[%s601 + $0x6a0] sm:$0xff]
        %v3025 = vld [vmem:[%s601 + $0x6a8] sm:$0xff]
        %v3026 = vld [vmem:[%s601 + $0x6b0] sm:$0xff]
        %v3027 = vld [vmem:[%s601 + $0x6b8] sm:$0xff]
        %v3028 = vld [vmem:[%s601 + $0x6c0] sm:$0xff]
        %v3029 = vld [vmem:[%s601 + $0x6c8] sm:$0xff]
        %v3030 = vld [vmem:[%s601 + $0x6d0] sm:$0xff]
        %v3031 = vld [vmem:[%s601 + $0x6d8] sm:$0xff]
        %v3032 = vld [vmem:[%s601 + $0x6e0] sm:$0xff]
        %v3033 = vld [vmem:[%s601 + $0x6e8] sm:$0xff]
        %v3034 = vld [vmem:[%s601 + $0x6f0] sm:$0xff]
        %v3035 = vld [vmem:[%s601 + $0x6f8] sm:$0xff]
        %v3036 = vld [vmem:[%s601 + $0x700] sm:$0xff]
        %v3037 = vld [vmem:[%s601 + $0x708] sm:$0xff]
        %v3038 = vld [vmem:[%s601 + $0x710] sm:$0xff]
        %v3039 = vld [vmem:[%s601 + $0x718] sm:$0xff]
        %v3040 = vld [vmem:[%s601 + $0x720] sm:$0xff]
        %v3041 = vld [vmem:[%s601 + $0x728] sm:$0xff]
        %v3042 = vld [vmem:[%s601 + $0x730] sm:$0xff]
        %v3043 = vld [vmem:[%s601 + $0x738] sm:$0xff]
        %v3044 = vld [vmem:[%s601 + $0x740] sm:$0xff]
        %v3045 = vld [vmem:[%s601 + $0x748] sm:$0xff]
        %v3046 = vld [vmem:[%s601 + $0x750] sm:$0xff]
        %v3047 = vld [vmem:[%s601 + $0x758] sm:$0xff]
        %v3048 = vld [vmem:[%s601 + $0x760] sm:$0xff]
        %v3049 = vld [vmem:[%s601 + $0x768] sm:$0xff]
        %v3050 = vld [vmem:[%s601 + $0x770] sm:$0xff]
        %v3051 = vld [vmem:[%s601 + $0x778] sm:$0xff]
        %v3052 = vld [vmem:[%s601 + $0x780] sm:$0xff]
        %v3053 = vld [vmem:[%s601 + $0x788] sm:$0xff]
        %v3054 = vld [vmem:[%s601 + $0x790] sm:$0xff]
        %v3055 = vld [vmem:[%s601 + $0x798] sm:$0xff]
        %v3056 = vld [vmem:[%s601 + $0x7a0] sm:$0xff]
        %v3057 = vld [vmem:[%s601 + $0x7a8] sm:$0xff]
        %v3058 = vld [vmem:[%s601 + $0x7b0] sm:$0xff]
        %v3059 = vld [vmem:[%s601 + $0x7b8] sm:$0xff]
        %v3060 = vld [vmem:[%s601 + $0x7c0] sm:$0xff]
        %v3061 = vld [vmem:[%s601 + $0x7c8] sm:$0xff]
        %v3062 = vld [vmem:[%s601 + $0x7d0] sm:$0xff]
        %v3063 = vld [vmem:[%s601 + $0x7d8] sm:$0xff]
        %v3064 = vld [vmem:[%s601 + $0x7e0] sm:$0xff]
        %v3065 = vld [vmem:[%s601 + $0x7e8] sm:$0xff]
        %v3066 = vld [vmem:[%s601 + $0x7f0] sm:$0xff]
        %v3067 = vld [vmem:[%s601 + $0x7f8] sm:$0xff]
        %v3068 = vld [vmem:[%s601 + $0x800] sm:$0xff]
        %v3069 = vld [vmem:[%s601 + $0x808] sm:$0xff]
        %v3070 = vld [vmem:[%s601 + $0x810] sm:$0xff]
        %v3071 = vld [vmem:[%s601 + $0x818] sm:$0xff]
        %v3072 = vld [vmem:[%s601 + $0x820] sm:$0xff]
        %v3073 = vld [vmem:[%s601 + $0x828] sm:$0xff]
        %v3074 = vld [vmem:[%s601 + $0x830] sm:$0xff]
        %v3075 = vld [vmem:[%s601 + $0x838] sm:$0xff]
        %v3076 = vld [vmem:[%s601 + $0x840] sm:$0xff]
        %v3077 = vld [vmem:[%s601 + $0x848] sm:$0xff]
        %v3078 = vld [vmem:[%s601 + $0x850] sm:$0xff]
        %v3079 = vld [vmem:[%s601 + $0x858] sm:$0xff]
        %v3080 = vld [vmem:[%s601 + $0x860] sm:$0xff]
        %v3081 = vld [vmem:[%s601 + $0x868] sm:$0xff]
        %v3082 = vld [vmem:[%s601 + $0x870] sm:$0xff]
        %v3083 = vld [vmem:[%s601 + $0x878] sm:$0xff]
        %v3084 = vld [vmem:[%s601 + $0x880] sm:$0xff]
        %v3085 = vld [vmem:[%s601 + $0x888] sm:$0xff]
        %v3086 = vld [vmem:[%s601 + $0x890] sm:$0xff]
        %v3087 = vld [vmem:[%s601 + $0x898] sm:$0xff]
        %v3088 = vld [vmem:[%s601 + $0x8a0] sm:$0xff]
        %v3089 = vld [vmem:[%s601 + $0x8a8] sm:$0xff]
        %v3090 = vld [vmem:[%s601 + $0x8b0] sm:$0xff]
        %v3091 = vld [vmem:[%s601 + $0x8b8] sm:$0xff]
        %v3092 = vld [vmem:[%s601 + $0x8c0] sm:$0xff]
        %v3093 = vld [vmem:[%s601 + $0x8c8] sm:$0xff]
        %v3094 = vld [vmem:[%s601 + $0x8d0] sm:$0xff]
        %v3095 = vld [vmem:[%s601 + $0x8d8] sm:$0xff]
        %v3096 = vld [vmem:[%s601 + $0x8e0] sm:$0xff]
        %v3097 = vld [vmem:[%s601 + $0x8e8] sm:$0xff]
        %v3098 = vld [vmem:[%s601 + $0x8f0] sm:$0xff]
        %v3099 = vld [vmem:[%s601 + $0x8f8] sm:$0xff]
        %v3100 = vld [vmem:[%s601 + $0x900] sm:$0xff]
        %v3101 = vld [vmem:[%s601 + $0x908] sm:$0xff]
        %v3102 = vld [vmem:[%s601 + $0x910] sm:$0xff]
        %v3103 = vld [vmem:[%s601 + $0x918] sm:$0xff]
        %v3104 = vld [vmem:[%s601 + $0x920] sm:$0xff]
        %v3105 = vld [vmem:[%s601 + $0x928] sm:$0xff]
        %v3106 = vld [vmem:[%s601 + $0x930] sm:$0xff]
        %v3107 = vld [vmem:[%s601 + $0x938] sm:$0xff]
        %v3108 = vld [vmem:[%s601 + $0x940] sm:$0xff]
        %v3109 = vld [vmem:[%s601 + $0x948] sm:$0xff]
        %v3110 = vld [vmem:[%s601 + $0x950] sm:$0xff]
        %v3111 = vld [vmem:[%s601 + $0x958] sm:$0xff]
        %v3112 = vld [vmem:[%s601 + $0x960] sm:$0xff]
        %v3113 = vld [vmem:[%s601 + $0x968] sm:$0xff]
        %v3114 = vld [vmem:[%s601 + $0x970] sm:$0xff]
        %v3115 = vld [vmem:[%s601 + $0x978] sm:$0xff]
        %v3116 = vld [vmem:[%s601 + $0x980] sm:$0xff]
        %v3117 = vld [vmem:[%s601 + $0x988] sm:$0xff]
        %v3118 = vld [vmem:[%s601 + $0x990] sm:$0xff]
        %v3119 = vld [vmem:[%s601 + $0x998] sm:$0xff]
        %v3120 = vld [vmem:[%s601 + $0x9a0] sm:$0xff]
        %v3121 = vld [vmem:[%s601 + $0x9a8] sm:$0xff]
        %v3122 = vld [vmem:[%s601 + $0x9b0] sm:$0xff]
        %v3123 = vld [vmem:[%s601 + $0x9b8] sm:$0xff]
        %v3124 = vld [vmem:[%s601 + $0x9c0] sm:$0xff]
        %v3125 = vld [vmem:[%s601 + $0x9c8] sm:$0xff]
        %v3126 = vld [vmem:[%s601 + $0x9d0] sm:$0xff]
        %v3127 = vld [vmem:[%s601 + $0x9d8] sm:$0xff]
        %v3128 = vld [vmem:[%s601 + $0x9e0] sm:$0xff]
        %v3129 = vld [vmem:[%s601 + $0x9e8] sm:$0xff]
        %v3130 = vld [vmem:[%s601 + $0x9f0] sm:$0xff]
        %v3131 = vld [vmem:[%s601 + $0x9f8] sm:$0xff]
        %v3132 = vld [vmem:[%s601 + $0xa00] sm:$0xff]
        %v3133 = vld [vmem:[%s601 + $0xa08] sm:$0xff]
        %v3134 = vld [vmem:[%s601 + $0xa10] sm:$0xff]
        %v3135 = vld [vmem:[%s601 + $0xa18] sm:$0xff]
        %v3136 = vld [vmem:[%s601 + $0xa20] sm:$0xff]
        %v3137 = vld [vmem:[%s601 + $0xa28] sm:$0xff]
        %v3138 = vld [vmem:[%s601 + $0xa30] sm:$0xff]
        %v3139 = vld [vmem:[%s601 + $0xa38] sm:$0xff]
        %v3140 = vld [vmem:[%s601 + $0xa40] sm:$0xff]
        %v3141 = vld [vmem:[%s601 + $0xa48] sm:$0xff]
        %v3142 = vld [vmem:[%s601 + $0xa50] sm:$0xff]
        %v3143 = vld [vmem:[%s601 + $0xa58] sm:$0xff]
        %v3144 = vld [vmem:[%s601 + $0xa60] sm:$0xff]
        %v3145 = vld [vmem:[%s601 + $0xa68] sm:$0xff]
        %v3146 = vld [vmem:[%s601 + $0xa70] sm:$0xff]
        %v3147 = vld [vmem:[%s601 + $0xa78] sm:$0xff]
        %v3148 = vld [vmem:[%s601 + $0xa80] sm:$0xff]
        %v3149 = vld [vmem:[%s601 + $0xa88] sm:$0xff]
        %v3150 = vld [vmem:[%s601 + $0xa90] sm:$0xff]
        %v3151 = vld [vmem:[%s601 + $0xa98] sm:$0xff]
        %v3152 = vld [vmem:[%s601 + $0xaa0] sm:$0xff]
        %v3153 = vld [vmem:[%s601 + $0xaa8] sm:$0xff]
        %v3154 = vld [vmem:[%s601 + $0xab0] sm:$0xff]
        %v3155 = vld [vmem:[%s601 + $0xab8] sm:$0xff]
        %v3156 = vld [vmem:[%s601 + $0xac0] sm:$0xff]
        %v3157 = vld [vmem:[%s601 + $0xac8] sm:$0xff]
        %v3158 = vld [vmem:[%s601 + $0xad0] sm:$0xff]
        %v3159 = vld [vmem:[%s601 + $0xad8] sm:$0xff]
        %v3160 = vld [vmem:[%s601 + $0xae0] sm:$0xff]
        %v3161 = vld [vmem:[%s601 + $0xae8] sm:$0xff]
        %v3162 = vld [vmem:[%s601 + $0xaf0] sm:$0xff]
        %v3163 = vld [vmem:[%s601 + $0xaf8] sm:$0xff]
        %v3164 = vld [vmem:[%s601 + $0xb00] sm:$0xff]
        %v3165 = vld [vmem:[%s601 + $0xb08] sm:$0xff]
        %v3166 = vld [vmem:[%s601 + $0xb10] sm:$0xff]
        %v3167 = vld [vmem:[%s601 + $0xb18] sm:$0xff]
        %v3168 = vld [vmem:[%s601 + $0xb20] sm:$0xff]
        %v3169 = vld [vmem:[%s601 + $0xb28] sm:$0xff]
        %v3170 = vld [vmem:[%s601 + $0xb30] sm:$0xff]
        %v3171 = vld [vmem:[%s601 + $0xb38] sm:$0xff]
        %v3172 = vld [vmem:[%s601 + $0xb40] sm:$0xff]
        %v3173 = vld [vmem:[%s601 + $0xb48] sm:$0xff]
        %v3174 = vld [vmem:[%s601 + $0xb50] sm:$0xff]
        %v3175 = vld [vmem:[%s601 + $0xb58] sm:$0xff]
        %v3176 = vld [vmem:[%s601 + $0xb60] sm:$0xff]
        %v3177 = vld [vmem:[%s601 + $0xb68] sm:$0xff]
        %v3178 = vld [vmem:[%s601 + $0xb70] sm:$0xff]
        %v3179 = vld [vmem:[%s601 + $0xb78] sm:$0xff]
        %v3180 = vld [vmem:[%s601 + $0xb80] sm:$0xff]
        %v3181 = vld [vmem:[%s601 + $0xb88] sm:$0xff]
        %v3182 = vld [vmem:[%s601 + $0xb90] sm:$0xff]
        %v3183 = vld [vmem:[%s601 + $0xb98] sm:$0xff]
        %v3184 = vld [vmem:[%s601 + $0xba0] sm:$0xff]
        %v3185 = vld [vmem:[%s601 + $0xba8] sm:$0xff]
        %v3186 = vld [vmem:[%s601 + $0xbb0] sm:$0xff]
        %v3187 = vld [vmem:[%s601 + $0xbb8] sm:$0xff]
        %v3188 = vld [vmem:[%s601 + $0xbc0] sm:$0xff]
        %v3189 = vld [vmem:[%s601 + $0xbc8] sm:$0xff]
        %v3190 = vld [vmem:[%s601 + $0xbd0] sm:$0xff]
        %v3191 = vld [vmem:[%s601 + $0xbd8] sm:$0xff]
        %v3192 = vld [vmem:[%s601 + $0xbe0] sm:$0xff]
        %v3193 = vld [vmem:[%s601 + $0xbe8] sm:$0xff]
        %v3194 = vld [vmem:[%s601 + $0xbf0] sm:$0xff]
        %v3195 = vld [vmem:[%s601 + $0xbf8] sm:$0xff]
        %v3196 = vld [vmem:[%s601 + $0xc00] sm:$0xff]
        %v3197 = vld [vmem:[%s601 + $0xc08] sm:$0xff]
        %v3198 = vld [vmem:[%s601 + $0xc10] sm:$0xff]
        %v3199 = vld [vmem:[%s601 + $0xc18] sm:$0xff]
        %v3200 = vld [vmem:[%s601 + $0xc20] sm:$0xff]
        %v3201 = vld [vmem:[%s601 + $0xc28] sm:$0xff]
        %v3202 = vld [vmem:[%s601 + $0xc30] sm:$0xff]
        %v3203 = vld [vmem:[%s601 + $0xc38] sm:$0xff]
        %v3204 = vld [vmem:[%s601 + $0xc40] sm:$0xff]
        %v3205 = vld [vmem:[%s601 + $0xc48] sm:$0xff]
        %v3206 = vld [vmem:[%s601 + $0xc50] sm:$0xff]
        %v3207 = vld [vmem:[%s601 + $0xc58] sm:$0xff]
        %v3208 = vld [vmem:[%s601 + $0xc60] sm:$0xff]
        %v3209 = vld [vmem:[%s601 + $0xc68] sm:$0xff]
        %v3210 = vld [vmem:[%s601 + $0xc70] sm:$0xff]
        %v3211 = vld [vmem:[%s601 + $0xc78] sm:$0xff]
        %v3212 = vld [vmem:[%s601 + $0xc80] sm:$0xff]
        %v3213 = vld [vmem:[%s601 + $0xc88] sm:$0xff]
        %v3214 = vld [vmem:[%s601 + $0xc90] sm:$0xff]
        %v3215 = vld [vmem:[%s601 + $0xc98] sm:$0xff]
        %v3216 = vld [vmem:[%s601 + $0xca0] sm:$0xff]
        %v3217 = vld [vmem:[%s601 + $0xca8] sm:$0xff]
        %v3218 = vld [vmem:[%s601 + $0xcb0] sm:$0xff]
        %v3219 = vld [vmem:[%s601 + $0xcb8] sm:$0xff]
        %v3220 = vld [vmem:[%s601 + $0xcc0] sm:$0xff]
        %v3221 = vld [vmem:[%s601 + $0xcc8] sm:$0xff]
        %v3222 = vld [vmem:[%s601 + $0xcd0] sm:$0xff]
        %v3223 = vld [vmem:[%s601 + $0xcd8] sm:$0xff]
        %v3224 = vld [vmem:[%s601 + $0xce0] sm:$0xff]
        %v3225 = vld [vmem:[%s601 + $0xce8] sm:$0xff]
        %v3226 = vld [vmem:[%s601 + $0xcf0] sm:$0xff]
        %v3227 = vld [vmem:[%s601 + $0xcf8] sm:$0xff]
        %v3228 = vld [vmem:[%s601 + $0xd00] sm:$0xff]
        %v3229 = vld [vmem:[%s601 + $0xd08] sm:$0xff]
        %v3230 = vld [vmem:[%s601 + $0xd10] sm:$0xff]
        %v3231 = vld [vmem:[%s601 + $0xd18] sm:$0xff]
        %v3232 = vld [vmem:[%s601 + $0xd20] sm:$0xff]
        %v3233 = vld [vmem:[%s601 + $0xd28] sm:$0xff]
        %v3234 = vld [vmem:[%s601 + $0xd30] sm:$0xff]
        %v3235 = vld [vmem:[%s601 + $0xd38] sm:$0xff]
        %v3236 = vld [vmem:[%s601 + $0xd40] sm:$0xff]
        %v3237 = vld [vmem:[%s601 + $0xd48] sm:$0xff]
        %v3238 = vld [vmem:[%s601 + $0xd50] sm:$0xff]
        %v3239 = vld [vmem:[%s601 + $0xd58] sm:$0xff]
        %v3240 = vld [vmem:[%s601 + $0xd60] sm:$0xff]
        %v3241 = vld [vmem:[%s601 + $0xd68] sm:$0xff]
        %v3242 = vld [vmem:[%s601 + $0xd70] sm:$0xff]
        %v3243 = vld [vmem:[%s601 + $0xd78] sm:$0xff]
        %v3244 = vld [vmem:[%s601 + $0xd80] sm:$0xff]
        %v3245 = vld [vmem:[%s601 + $0xd88] sm:$0xff]
        %v3246 = vld [vmem:[%s601 + $0xd90] sm:$0xff]
        %v3247 = vld [vmem:[%s601 + $0xd98] sm:$0xff]
        %v3248 = vld [vmem:[%s601 + $0xda0] sm:$0xff]
        %v3249 = vld [vmem:[%s601 + $0xda8] sm:$0xff]
        %v3250 = vld [vmem:[%s601 + $0xdb0] sm:$0xff]
        %v3251 = vld [vmem:[%s601 + $0xdb8] sm:$0xff]
        %v3252 = vld [vmem:[%s601 + $0xdc0] sm:$0xff]
        %v3253 = vld [vmem:[%s601 + $0xdc8] sm:$0xff]
        %v3254 = vld [vmem:[%s601 + $0xdd0] sm:$0xff]
        %v3255 = vld [vmem:[%s601 + $0xdd8] sm:$0xff]
        %v3256 = vld [vmem:[%s601 + $0xde0] sm:$0xff]
        %v3257 = vld [vmem:[%s601 + $0xde8] sm:$0xff]
        %v3258 = vld [vmem:[%s601 + $0xdf0] sm:$0xff]
        %v3259 = vld [vmem:[%s601 + $0xdf8] sm:$0xff]
        %v3260 = vld [vmem:[%s601 + $0xe00] sm:$0xff]
        %v3261 = vld [vmem:[%s601 + $0xe08] sm:$0xff]
        %v3262 = vld [vmem:[%s601 + $0xe10] sm:$0xff]
        %v3263 = vld [vmem:[%s601 + $0xe18] sm:$0xff]
        %v3264 = vld [vmem:[%s601 + $0xe20] sm:$0xff]
        %v3265 = vld [vmem:[%s601 + $0xe28] sm:$0xff]
        %v3266 = vld [vmem:[%s601 + $0xe30] sm:$0xff]
        %v3267 = vld [vmem:[%s601 + $0xe38] sm:$0xff]
        %v3268 = vld [vmem:[%s601 + $0xe40] sm:$0xff]
        %v3269 = vld [vmem:[%s601 + $0xe48] sm:$0xff]
        %v3270 = vld [vmem:[%s601 + $0xe50] sm:$0xff]
        %v3271 = vld [vmem:[%s601 + $0xe58] sm:$0xff]
        %v3272 = vld [vmem:[%s601 + $0xe60] sm:$0xff]
        %v3273 = vld [vmem:[%s601 + $0xe68] sm:$0xff]
        %v3274 = vld [vmem:[%s601 + $0xe70] sm:$0xff]
        %v3275 = vld [vmem:[%s601 + $0xe78] sm:$0xff]
        %v3276 = vld [vmem:[%s601 + $0xe80] sm:$0xff]
        %v3277 = vld [vmem:[%s601 + $0xe88] sm:$0xff]
        %v3278 = vld [vmem:[%s601 + $0xe90] sm:$0xff]
        %v3279 = vld [vmem:[%s601 + $0xe98] sm:$0xff]
        %v3280 = vld [vmem:[%s601 + $0xea0] sm:$0xff]
        %v3281 = vld [vmem:[%s601 + $0xea8] sm:$0xff]
        %v3282 = vld [vmem:[%s601 + $0xeb0] sm:$0xff]
        %v3283 = vld [vmem:[%s601 + $0xeb8] sm:$0xff]
        %v3284 = vld [vmem:[%s601 + $0xec0] sm:$0xff]
        %v3285 = vld [vmem:[%s601 + $0xec8] sm:$0xff]
        %v3286 = vld [vmem:[%s601 + $0xed0] sm:$0xff]
        %v3287 = vld [vmem:[%s601 + $0xed8] sm:$0xff]
        %v3288 = vld [vmem:[%s601 + $0xee0] sm:$0xff]
        %v3289 = vld [vmem:[%s601 + $0xee8] sm:$0xff]
        %v3290 = vld [vmem:[%s601 + $0xef0] sm:$0xff]
        %v3291 = vld [vmem:[%s601 + $0xef8] sm:$0xff]
        %v3292 = vld [vmem:[%s601 + $0xf00] sm:$0xff]
        %v3293 = vld [vmem:[%s601 + $0xf08] sm:$0xff]
        %v3294 = vld [vmem:[%s601 + $0xf10] sm:$0xff]
        %v3295 = vld [vmem:[%s601 + $0xf18] sm:$0xff]
        %v3296 = vld [vmem:[%s601 + $0xf20] sm:$0xff]
        %v3297 = vld [vmem:[%s601 + $0xf28] sm:$0xff]
        %v3298 = vld [vmem:[%s601 + $0xf30] sm:$0xff]
        %v3299 = vld [vmem:[%s601 + $0xf38] sm:$0xff]
        %v3300 = vld [vmem:[%s601 + $0xf40] sm:$0xff]
        %v3301 = vld [vmem:[%s601 + $0xf48] sm:$0xff]
        %v3302 = vld [vmem:[%s601 + $0xf50] sm:$0xff]
        %v3303 = vld [vmem:[%s601 + $0xf58] sm:$0xff]
        %v3304 = vld [vmem:[%s601 + $0xf60] sm:$0xff]
        %v3305 = vld [vmem:[%s601 + $0xf68] sm:$0xff]
        %v3306 = vld [vmem:[%s601 + $0xf70] sm:$0xff]
        %v3307 = vld [vmem:[%s601 + $0xf78] sm:$0xff]
        %v3308 = vld [vmem:[%s601 + $0xf80] sm:$0xff]
        %v3309 = vld [vmem:[%s601 + $0xf88] sm:$0xff]
        %v3310 = vld [vmem:[%s601 + $0xf90] sm:$0xff]
        %v3311 = vld [vmem:[%s601 + $0xf98] sm:$0xff]
        %v3312 = vld [vmem:[%s601 + $0xfa0] sm:$0xff]
        %v3313 = vld [vmem:[%s601 + $0xfa8] sm:$0xff]
        %v3314 = vld [vmem:[%s601 + $0xfb0] sm:$0xff]
        %v3315 = vld [vmem:[%s601 + $0xfb8] sm:$0xff]
        %v3316 = vld [vmem:[%s601 + $0xfc0] sm:$0xff]
        %v3317 = vld [vmem:[%s601 + $0xfc8] sm:$0xff]
        %v3318 = vld [vmem:[%s601 + $0xfd0] sm:$0xff]
        %v3319 = vld [vmem:[%s601 + $0xfd8] sm:$0xff]
        %v3320 = vld [vmem:[%s601 + $0xfe0] sm:$0xff]
        %v3321 = vld [vmem:[%s601 + $0xfe8] sm:$0xff]
        %v3322 = vld [vmem:[%s601 + $0xff0] sm:$0xff]
        %v3323 = vld [vmem:[%s601 + $0xff8] sm:$0xff]
        %v3324 = vld [vmem:[%s601 + $0x1000] sm:$0xff]
        %v3325 = vld [vmem:[%s601 + $0x1008] sm:$0xff]
        %v3326 = vld [vmem:[%s601 + $0x1010] sm:$0xff]
        %v3327 = vld [vmem:[%s601 + $0x1018] sm:$0xff]
        %v3328 = vld [vmem:[%s601 + $0x1020] sm:$0xff]
        %v3329 = vld [vmem:[%s601 + $0x1028] sm:$0xff]
        %v3330 = vld [vmem:[%s601 + $0x1030] sm:$0xff]
        %v3331 = vld [vmem:[%s601 + $0x1038] sm:$0xff]
        %v3332 = vld [vmem:[%s601 + $0x1040] sm:$0xff]
        %v3333 = vld [vmem:[%s601 + $0x1048] sm:$0xff]
        %v3334 = vld [vmem:[%s601 + $0x1050] sm:$0xff]
        %v3335 = vld [vmem:[%s601 + $0x1058] sm:$0xff]
        %v3336 = vld [vmem:[%s601 + $0x1060] sm:$0xff]
        %v3337 = vld [vmem:[%s601 + $0x1068] sm:$0xff]
        %v3338 = vld [vmem:[%s601 + $0x1070] sm:$0xff]
        %v3339 = vld [vmem:[%s601 + $0x1078] sm:$0xff]
        %v3340 = vld [vmem:[%s601 + $0x1080] sm:$0xff]
        %v3341 = vld [vmem:[%s601 + $0x1088] sm:$0xff]
        %v3342 = vld [vmem:[%s601 + $0x1090] sm:$0xff]
        %v3343 = vld [vmem:[%s601 + $0x1098] sm:$0xff]
        %v3344 = vld [vmem:[%s601 + $0x10a0] sm:$0xff]
        %v3345 = vld [vmem:[%s601 + $0x10a8] sm:$0xff]
        %v3346 = vld [vmem:[%s601 + $0x10b0] sm:$0xff]
        %v3347 = vld [vmem:[%s601 + $0x10b8] sm:$0xff]
        %v3348 = vld [vmem:[%s601 + $0x10c0] sm:$0xff]
        %v3349 = vld [vmem:[%s601 + $0x10c8] sm:$0xff]
        %v3350 = vld [vmem:[%s601 + $0x10d0] sm:$0xff]
        %v3351 = vld [vmem:[%s601 + $0x10d8] sm:$0xff]
        %v3352 = vld [vmem:[%s601 + $0x10e0] sm:$0xff]
        %v3353 = vld [vmem:[%s601 + $0x10e8] sm:$0xff]
        %v3354 = vld [vmem:[%s601 + $0x10f0] sm:$0xff]
        %v3355 = vld [vmem:[%s601 + $0x10f8] sm:$0xff]
        %v3356 = vld [vmem:[%s601 + $0x1100] sm:$0xff]
        %v3357 = vld [vmem:[%s601 + $0x1108] sm:$0xff]
        %v3358 = vld [vmem:[%s601 + $0x1110] sm:$0xff]
        %v3359 = vld [vmem:[%s601 + $0x1118] sm:$0xff]
        %v3360 = vld [vmem:[%s601 + $0x1120] sm:$0xff]
        %v3361 = vld [vmem:[%s601 + $0x1128] sm:$0xff]
        %v3362 = vld [vmem:[%s601 + $0x1130] sm:$0xff]
        %v3363 = vld [vmem:[%s601 + $0x1138] sm:$0xff]
        %v3364 = vld [vmem:[%s601 + $0x1140] sm:$0xff]
        %v3365 = vld [vmem:[%s601 + $0x1148] sm:$0xff]
        %v3366 = vld [vmem:[%s601 + $0x1150] sm:$0xff]
        %v3367 = vld [vmem:[%s601 + $0x1158] sm:$0xff]
        %v3368 = vld [vmem:[%s601 + $0x1160] sm:$0xff]
        %v3369 = vld [vmem:[%s601 + $0x1168] sm:$0xff]
        %v3370 = vld [vmem:[%s601 + $0x1170] sm:$0xff]
        %v3371 = vld [vmem:[%s601 + $0x1178] sm:$0xff]
        %v3372 = vld [vmem:[%s601 + $0x1180] sm:$0xff]
        %v3373 = vld [vmem:[%s601 + $0x1188] sm:$0xff]
        %v3374 = vld [vmem:[%s601 + $0x1190] sm:$0xff]
        %v3375 = vld [vmem:[%s601 + $0x1198] sm:$0xff]
        %v3376 = vld [vmem:[%s601 + $0x11a0] sm:$0xff]
        %v3377 = vld [vmem:[%s601 + $0x11a8] sm:$0xff]
        %v3378 = vld [vmem:[%s601 + $0x11b0] sm:$0xff]
        %v3379 = vld [vmem:[%s601 + $0x11b8] sm:$0xff]
        %v3380 = vld [vmem:[%s601 + $0x11c0] sm:$0xff]
        %v3381 = vld [vmem:[%s601 + $0x11c8] sm:$0xff]
        %v3382 = vld [vmem:[%s601 + $0x11d0] sm:$0xff]
        %v3383 = vld [vmem:[%s601 + $0x11d8] sm:$0xff]
        %v3384 = vld [vmem:[%s601 + $0x11e0] sm:$0xff]
        %v3385 = vld [vmem:[%s601 + $0x11e8] sm:$0xff]
        %v3386 = vld [vmem:[%s601 + $0x11f0] sm:$0xff]
        %v3387 = vld [vmem:[%s601 + $0x11f8] sm:$0xff]
        %v3388 = vld [vmem:[%s601 + $0x1200] sm:$0xff]
        %v3389 = vld [vmem:[%s601 + $0x1208] sm:$0xff]
        %v3390 = vld [vmem:[%s601 + $0x1210] sm:$0xff]
        %v3391 = vld [vmem:[%s601 + $0x1218] sm:$0xff]
        %v3392 = vld [vmem:[%s601 + $0x1220] sm:$0xff]
        %v3393 = vld [vmem:[%s601 + $0x1228] sm:$0xff]
        %v3394 = vld [vmem:[%s601 + $0x1230] sm:$0xff]
        %v3395 = vld [vmem:[%s601 + $0x1238] sm:$0xff]
        %v3396 = vld [vmem:[%s601 + $0x1240] sm:$0xff]
        %v3397 = vld [vmem:[%s601 + $0x1248] sm:$0xff]
        %v3398 = vld [vmem:[%s601 + $0x1250] sm:$0xff]
        %v3399 = vld [vmem:[%s601 + $0x1258] sm:$0xff]
        %v3400 = vld [vmem:[%s601 + $0x1260] sm:$0xff]
        %v3401 = vld [vmem:[%s601 + $0x1268] sm:$0xff]
        %v3402 = vld [vmem:[%s601 + $0x1270] sm:$0xff]
        %v3403 = vld [vmem:[%s601 + $0x1278] sm:$0xff]
        %v3404 = vld [vmem:[%s601 + $0x1280] sm:$0xff]
        %v3405 = vld [vmem:[%s601 + $0x1288] sm:$0xff]
        %v3406 = vld [vmem:[%s601 + $0x1290] sm:$0xff]
        %v3407 = vld [vmem:[%s601 + $0x1298] sm:$0xff]
        %v3408 = vld [vmem:[%s601 + $0x12a0] sm:$0xff]
        %v3409 = vld [vmem:[%s601 + $0x12a8] sm:$0xff]
        %v3410 = vld [vmem:[%s601 + $0x12b0] sm:$0xff]
        %v3411 = vld [vmem:[%s601 + $0x12b8] sm:$0xff]
        %v3412 = vld [vmem:[%s601 + $0x12c0] sm:$0xff]
        %v3413 = vld [vmem:[%s601 + $0x12c8] sm:$0xff]
        %v3414 = vld [vmem:[%s601 + $0x12d0] sm:$0xff]
        %v3415 = vld [vmem:[%s601 + $0x12d8] sm:$0xff]
        %v3416 = vld [vmem:[%s601 + $0x12e0] sm:$0xff]
        %v3417 = vld [vmem:[%s601 + $0x12e8] sm:$0xff]
        %v3418 = vld [vmem:[%s601 + $0x12f0] sm:$0xff]
        %v3419 = vld [vmem:[%s601 + $0x12f8] sm:$0xff]
        %v3420 = vld [vmem:[%s601 + $0x1300] sm:$0xff]
        %v3421 = vld [vmem:[%s601 + $0x1308] sm:$0xff]
        %v3422 = vld [vmem:[%s601 + $0x1310] sm:$0xff]
        %v3423 = vld [vmem:[%s601 + $0x1318] sm:$0xff]
        %v3424 = vld [vmem:[%s601 + $0x1320] sm:$0xff]
        %v3425 = vld [vmem:[%s601 + $0x1328] sm:$0xff]
        %v3426 = vld [vmem:[%s601 + $0x1330] sm:$0xff]
        %v3427 = vld [vmem:[%s601 + $0x1338] sm:$0xff]
        %v3428 = vld [vmem:[%s601 + $0x1340] sm:$0xff]
        %v3429 = vld [vmem:[%s601 + $0x1348] sm:$0xff]
        %v3430 = vld [vmem:[%s601 + $0x1350] sm:$0xff]
        %v3431 = vld [vmem:[%s601 + $0x1358] sm:$0xff]
        %v3432 = vld [vmem:[%s601 + $0x1360] sm:$0xff]
        %v3433 = vld [vmem:[%s601 + $0x1368] sm:$0xff]
        %v3434 = vld [vmem:[%s601 + $0x1370] sm:$0xff]
        %v3435 = vld [vmem:[%s601 + $0x1378] sm:$0xff]
        %v3436 = vld [vmem:[%s601 + $0x1380] sm:$0xff]
        %v3437 = vld [vmem:[%s601 + $0x1388] sm:$0xff]
        %v3438 = vld [vmem:[%s601 + $0x1390] sm:$0xff]
        %v3439 = vld [vmem:[%s601 + $0x1398] sm:$0xff]
        %v3440 = vld [vmem:[%s601 + $0x13a0] sm:$0xff]
        %v3441 = vld [vmem:[%s601 + $0x13a8] sm:$0xff]
        %v3442 = vld [vmem:[%s601 + $0x13b0] sm:$0xff]
        %v3443 = vld [vmem:[%s601 + $0x13b8] sm:$0xff]
        %v3444 = vld [vmem:[%s601 + $0x13c0] sm:$0xff]
        %v3445 = vld [vmem:[%s601 + $0x13c8] sm:$0xff]
        %v3446 = vld [vmem:[%s601 + $0x13d0] sm:$0xff]
        %v3447 = vld [vmem:[%s601 + $0x13d8] sm:$0xff]
        %v3448 = vld [vmem:[%s601 + $0x13e0] sm:$0xff]
        %v3449 = vld [vmem:[%s601 + $0x13e8] sm:$0xff]
        %v3450 = vld [vmem:[%s601 + $0x13f0] sm:$0xff]
        %v3451 = vld [vmem:[%s601 + $0x13f8] sm:$0xff]
        %v3452 = vld [vmem:[%s601 + $0x1400] sm:$0xff]
        %v3453 = vld [vmem:[%s601 + $0x1408] sm:$0xff]
        %v3454 = vld [vmem:[%s601 + $0x1410] sm:$0xff]
        %v3455 = vld [vmem:[%s601 + $0x1418] sm:$0xff]
        %v3456 = vld [vmem:[%s601 + $0x1420] sm:$0xff]
        %v3457 = vld [vmem:[%s601 + $0x1428] sm:$0xff]
        %v3458 = vld [vmem:[%s601 + $0x1430] sm:$0xff]
        %v3459 = vld [vmem:[%s601 + $0x1438] sm:$0xff]
        %v3460 = vld [vmem:[%s601 + $0x1440] sm:$0xff]
        %v3461 = vld [vmem:[%s601 + $0x1448] sm:$0xff]
        %v3462 = vld [vmem:[%s601 + $0x1450] sm:$0xff]
        %v3463 = vld [vmem:[%s601 + $0x1458] sm:$0xff]
        %v3464 = vld [vmem:[%s601 + $0x1460] sm:$0xff]
        %v3465 = vld [vmem:[%s601 + $0x1468] sm:$0xff]
        %v3466 = vld [vmem:[%s601 + $0x1470] sm:$0xff]
        %v3467 = vld [vmem:[%s601 + $0x1478] sm:$0xff]
        %v3468 = vld [vmem:[%s601 + $0x1480] sm:$0xff]
        %v3469 = vld [vmem:[%s601 + $0x1488] sm:$0xff]
        %v3470 = vld [vmem:[%s601 + $0x1490] sm:$0xff]
        %v3471 = vld [vmem:[%s601 + $0x1498] sm:$0xff]
        %v3472 = vld [vmem:[%s601 + $0x14a0] sm:$0xff]
        %v3473 = vld [vmem:[%s601 + $0x14a8] sm:$0xff]
        %v3474 = vld [vmem:[%s601 + $0x14b0] sm:$0xff]
        %v3475 = vld [vmem:[%s601 + $0x14b8] sm:$0xff]
        %v3476 = vld [vmem:[%s601 + $0x14c0] sm:$0xff]
        %v3477 = vld [vmem:[%s601 + $0x14c8] sm:$0xff]
        %v3478 = vld [vmem:[%s601 + $0x14d0] sm:$0xff]
        %v3479 = vld [vmem:[%s601 + $0x14d8] sm:$0xff]
        %v3480 = vld [vmem:[%s601 + $0x14e0] sm:$0xff]
        %v3481 = vld [vmem:[%s601 + $0x14e8] sm:$0xff]
        %v3482 = vld [vmem:[%s601 + $0x14f0] sm:$0xff]
        %v3483 = vld [vmem:[%s601 + $0x14f8] sm:$0xff]
        %v3484 = vld [vmem:[%s601 + $0x1500] sm:$0xff]
        %v3485 = vld [vmem:[%s601 + $0x1508] sm:$0xff]
        %v3486 = vld [vmem:[%s601 + $0x1510] sm:$0xff]
        %v3487 = vld [vmem:[%s601 + $0x1518] sm:$0xff]
        %v3488 = vld [vmem:[%s601 + $0x1520] sm:$0xff]
        %v3489 = vld [vmem:[%s601 + $0x1528] sm:$0xff]
        %v3490 = vld [vmem:[%s601 + $0x1530] sm:$0xff]
        %v3491 = vld [vmem:[%s601 + $0x1538] sm:$0xff]
        %v3492 = vld [vmem:[%s601 + $0x1540] sm:$0xff]
        %v3493 = vld [vmem:[%s601 + $0x1548] sm:$0xff]
        %v3494 = vld [vmem:[%s601 + $0x1550] sm:$0xff]
        %v3495 = vld [vmem:[%s601 + $0x1558] sm:$0xff]
        %v3496 = vld [vmem:[%s601 + $0x1560] sm:$0xff]
        %v3497 = vld [vmem:[%s601 + $0x1568] sm:$0xff]
        %v3498 = vld [vmem:[%s601 + $0x1570] sm:$0xff]
        %v3499 = vld [vmem:[%s601 + $0x1578] sm:$0xff]
        %v3500 = vld [vmem:[%s601 + $0x1580] sm:$0xff]
        %v3501 = vld [vmem:[%s601 + $0x1588] sm:$0xff]
        %v3502 = vld [vmem:[%s601 + $0x1590] sm:$0xff]
        %v3503 = vld [vmem:[%s601 + $0x1598] sm:$0xff]
        %v3504 = vld [vmem:[%s601 + $0x15a0] sm:$0xff]
        %v3505 = vld [vmem:[%s601 + $0x15a8] sm:$0xff]
        %v3506 = vld [vmem:[%s601 + $0x15b0] sm:$0xff]
        %v3507 = vld [vmem:[%s601 + $0x15b8] sm:$0xff]
        %v3508 = vld [vmem:[%s601 + $0x15c0] sm:$0xff]
        %v3509 = vld [vmem:[%s601 + $0x15c8] sm:$0xff]
        %v3510 = vld [vmem:[%s601 + $0x15d0] sm:$0xff]
        %v3511 = vld [vmem:[%s601 + $0x15d8] sm:$0xff]
        %v3512 = vld [vmem:[%s601 + $0x15e0] sm:$0xff]
        %v3513 = vld [vmem:[%s601 + $0x15e8] sm:$0xff]
        %v3514 = vld [vmem:[%s601 + $0x15f0] sm:$0xff]
        %v3515 = vld [vmem:[%s601 + $0x15f8] sm:$0xff]
        %v3516 = vld [vmem:[%s601 + $0x1600] sm:$0xff]
        %v3517 = vld [vmem:[%s601 + $0x1608] sm:$0xff]
        %v3518 = vld [vmem:[%s601 + $0x1610] sm:$0xff]
        %v3519 = vld [vmem:[%s601 + $0x1618] sm:$0xff]
        %v3520 = vld [vmem:[%s601 + $0x1620] sm:$0xff]
        %v3521 = vld [vmem:[%s601 + $0x1628] sm:$0xff]
        %v3522 = vld [vmem:[%s601 + $0x1630] sm:$0xff]
        %v3523 = vld [vmem:[%s601 + $0x1638] sm:$0xff]
        %v3524 = vld [vmem:[%s601 + $0x1640] sm:$0xff]
        %v3525 = vld [vmem:[%s601 + $0x1648] sm:$0xff]
        %v3526 = vld [vmem:[%s601 + $0x1650] sm:$0xff]
        %v3527 = vld [vmem:[%s601 + $0x1658] sm:$0xff]
        %v3528 = vld [vmem:[%s601 + $0x1660] sm:$0xff]
        %v3529 = vld [vmem:[%s601 + $0x1668] sm:$0xff]
        %v3530 = vld [vmem:[%s601 + $0x1670] sm:$0xff]
        %v3531 = vld [vmem:[%s601 + $0x1678] sm:$0xff]
        %v3532 = vld [vmem:[%s601 + $0x1680] sm:$0xff]
        %v3533 = vld [vmem:[%s601 + $0x1688] sm:$0xff]
        %v3534 = vld [vmem:[%s601 + $0x1690] sm:$0xff]
        %v3535 = vld [vmem:[%s601 + $0x1698] sm:$0xff]
        %v3536 = vld [vmem:[%s601 + $0x16a0] sm:$0xff]
        %v3537 = vld [vmem:[%s601 + $0x16a8] sm:$0xff]
        %v3538 = vld [vmem:[%s601 + $0x16b0] sm:$0xff]
        %v3539 = vld [vmem:[%s601 + $0x16b8] sm:$0xff]
        %v3540 = vld [vmem:[%s601 + $0x16c0] sm:$0xff]
        %v3541 = vld [vmem:[%s601 + $0x16c8] sm:$0xff]
        %v3542 = vld [vmem:[%s601 + $0x16d0] sm:$0xff]
        %v3543 = vld [vmem:[%s601 + $0x16d8] sm:$0xff]
        %v3544 = vld [vmem:[%s601 + $0x16e0] sm:$0xff]
        %v3545 = vld [vmem:[%s601 + $0x16e8] sm:$0xff]
        %v3546 = vld [vmem:[%s601 + $0x16f0] sm:$0xff]
        %v3547 = vld [vmem:[%s601 + $0x16f8] sm:$0xff]
        %v3548 = vld [vmem:[%s601 + $0x1700] sm:$0xff]
        %v3549 = vld [vmem:[%s601 + $0x1708] sm:$0xff]
        %v3550 = vld [vmem:[%s601 + $0x1710] sm:$0xff]
        %v3551 = vld [vmem:[%s601 + $0x1718] sm:$0xff]
        %v3552 = vld [vmem:[%s601 + $0x1720] sm:$0xff]
        %v3553 = vld [vmem:[%s601 + $0x1728] sm:$0xff]
        %v3554 = vld [vmem:[%s601 + $0x1730] sm:$0xff]
        %v3555 = vld [vmem:[%s601 + $0x1738] sm:$0xff]
        %v3556 = vld [vmem:[%s601 + $0x1740] sm:$0xff]
        %v3557 = vld [vmem:[%s601 + $0x1748] sm:$0xff]
        %v3558 = vld [vmem:[%s601 + $0x1750] sm:$0xff]
        %v3559 = vld [vmem:[%s601 + $0x1758] sm:$0xff]
        %v3560 = vld [vmem:[%s601 + $0x1760] sm:$0xff]
        %v3561 = vld [vmem:[%s601 + $0x1768] sm:$0xff]
        %v3562 = vld [vmem:[%s601 + $0x1770] sm:$0xff]
        %v3563 = vld [vmem:[%s601 + $0x1778] sm:$0xff]
        %v3564 = vld [vmem:[%s601 + $0x1780] sm:$0xff]
        %v3565 = vld [vmem:[%s601 + $0x1788] sm:$0xff]
        %v3566 = vld [vmem:[%s601 + $0x1790] sm:$0xff]
        %v3567 = vld [vmem:[%s601 + $0x1798] sm:$0xff]
        %v3568 = vld [vmem:[%s601 + $0x17a0] sm:$0xff]
        %v3569 = vld [vmem:[%s601 + $0x17a8] sm:$0xff]
        %v3570 = vld [vmem:[%s601 + $0x17b0] sm:$0xff]
        %v3571 = vld [vmem:[%s601 + $0x17b8] sm:$0xff]
        %v3572 = vld [vmem:[%s601 + $0x17c0] sm:$0xff]
        %v3573 = vld [vmem:[%s601 + $0x17c8] sm:$0xff]
        %v3574 = vld [vmem:[%s601 + $0x17d0] sm:$0xff]
        %v3575 = vld [vmem:[%s601 + $0x17d8] sm:$0xff]
        %v3576 = vld [vmem:[%s601 + $0x17e0] sm:$0xff]
        %v3577 = vld [vmem:[%s601 + $0x17e8] sm:$0xff]
        %v3578 = vld [vmem:[%s601 + $0x17f0] sm:$0xff]
        %v3579 = vld [vmem:[%s601 + $0x17f8] sm:$0xff]
        %v3580 = vld [vmem:[%s601 + $0x1800] sm:$0xff]
        %v3581 = vld [vmem:[%s601 + $0x1808] sm:$0xff]
        %v3582 = vld [vmem:[%s601 + $0x1810] sm:$0xff]
        %v3583 = vld [vmem:[%s601 + $0x1818] sm:$0xff]
        %v3584 = vld [vmem:[%s601 + $0x1820] sm:$0xff]
        %v3585 = vld [vmem:[%s601 + $0x1828] sm:$0xff]
        %v3586 = vld [vmem:[%s601 + $0x1830] sm:$0xff]
        %v3587 = vld [vmem:[%s601 + $0x1838] sm:$0xff]
        %v3588 = vld [vmem:[%s601 + $0x1840] sm:$0xff]
        %v3589 = vld [vmem:[%s601 + $0x1848] sm:$0xff]
        %v3590 = vld [vmem:[%s601 + $0x1850] sm:$0xff]
        %v3591 = vld [vmem:[%s601 + $0x1858] sm:$0xff]
        %v3592 = vld [vmem:[%s601 + $0x1860] sm:$0xff]
        %v3593 = vld [vmem:[%s601 + $0x1868] sm:$0xff]
        %v3594 = vld [vmem:[%s601 + $0x1870] sm:$0xff]
        %v3595 = vld [vmem:[%s601 + $0x1878] sm:$0xff]
        %v3596 = vld [vmem:[%s601 + $0x1880] sm:$0xff]
        %v3597 = vld [vmem:[%s601 + $0x1888] sm:$0xff]
        %v3598 = vld [vmem:[%s601 + $0x1890] sm:$0xff]
        %v3599 = vld [vmem:[%s601 + $0x1898] sm:$0xff]
        %v3600 = vld [vmem:[%s601 + $0x18a0] sm:$0xff]
        %v3601 = vld [vmem:[%s601 + $0x18a8] sm:$0xff]
        %v3602 = vld [vmem:[%s601 + $0x18b0] sm:$0xff]
        %v3603 = vld [vmem:[%s601 + $0x18b8] sm:$0xff]
        %v3604 = vld [vmem:[%s601 + $0x18c0] sm:$0xff]
        %v3605 = vld [vmem:[%s601 + $0x18c8] sm:$0xff]
        %v3606 = vld [vmem:[%s601 + $0x18d0] sm:$0xff]
        %v3607 = vld [vmem:[%s601 + $0x18d8] sm:$0xff]
        %v3608 = vld [vmem:[%s601 + $0x18e0] sm:$0xff]
        %v3609 = vld [vmem:[%s601 + $0x18e8] sm:$0xff]
        %v3610 = vld [vmem:[%s601 + $0x18f0] sm:$0xff]
        %v3611 = vld [vmem:[%s601 + $0x18f8] sm:$0xff]
        %v3612 = vld [vmem:[%s601 + $0x1900] sm:$0xff]
        %v3613 = vld [vmem:[%s601 + $0x1908] sm:$0xff]
        %v3614 = vld [vmem:[%s601 + $0x1910] sm:$0xff]
        %v3615 = vld [vmem:[%s601 + $0x1918] sm:$0xff]
        %v3616 = vld [vmem:[%s601 + $0x1920] sm:$0xff]
        %v3617 = vld [vmem:[%s601 + $0x1928] sm:$0xff]
        %v3618 = vld [vmem:[%s601 + $0x1930] sm:$0xff]
        %v3619 = vld [vmem:[%s601 + $0x1938] sm:$0xff]
        %v3620 = vld [vmem:[%s601 + $0x1940] sm:$0xff]
        %v3621 = vld [vmem:[%s601 + $0x1948] sm:$0xff]
        %v3622 = vld [vmem:[%s601 + $0x1950] sm:$0xff]
        %v3623 = vld [vmem:[%s601 + $0x1958] sm:$0xff]
        %v3624 = vld [vmem:[%s601 + $0x1960] sm:$0xff]
        %v3625 = vld [vmem:[%s601 + $0x1968] sm:$0xff]
        %v3626 = vld [vmem:[%s601 + $0x1970] sm:$0xff]
        %v3627 = vld [vmem:[%s601 + $0x1978] sm:$0xff]
        %v3628 = vld [vmem:[%s601 + $0x1980] sm:$0xff]
        %v3629 = vld [vmem:[%s601 + $0x1988] sm:$0xff]
        %v3630 = vld [vmem:[%s601 + $0x1990] sm:$0xff]
        %v3631 = vld [vmem:[%s601 + $0x1998] sm:$0xff]
        %v3632 = vld [vmem:[%s601 + $0x19a0] sm:$0xff]
        %v3633 = vld [vmem:[%s601 + $0x19a8] sm:$0xff]
        %v3634 = vld [vmem:[%s601 + $0x19b0] sm:$0xff]
        %v3635 = vld [vmem:[%s601 + $0x19b8] sm:$0xff]
        %v3636 = vld [vmem:[%s601 + $0x19c0] sm:$0xff]
        %v3637 = vld [vmem:[%s601 + $0x19c8] sm:$0xff]
        %v3638 = vld [vmem:[%s601 + $0x19d0] sm:$0xff]
        %v3639 = vld [vmem:[%s601 + $0x19d8] sm:$0xff]
        %v3640 = vld [vmem:[%s601 + $0x19e0] sm:$0xff]
        %v3641 = vld [vmem:[%s601 + $0x19e8] sm:$0xff]
        %v3642 = vld [vmem:[%s601 + $0x19f0] sm:$0xff]
        %v3643 = vld [vmem:[%s601 + $0x19f8] sm:$0xff]
        %v3644 = vld [vmem:[%s601 + $0x1a00] sm:$0xff]
        %v3645 = vld [vmem:[%s601 + $0x1a08] sm:$0xff]
        %v3646 = vld [vmem:[%s601 + $0x1a10] sm:$0xff]
        %v3647 = vld [vmem:[%s601 + $0x1a18] sm:$0xff]
        %v3648 = vld [vmem:[%s601 + $0x1a20] sm:$0xff]
        %v3649 = vld [vmem:[%s601 + $0x1a28] sm:$0xff]
        %v3650 = vld [vmem:[%s601 + $0x1a30] sm:$0xff]
        %v3651 = vld [vmem:[%s601 + $0x1a38] sm:$0xff]
        %v3652 = vld [vmem:[%s601 + $0x1a40] sm:$0xff]
        %v3653 = vld [vmem:[%s601 + $0x1a48] sm:$0xff]
        %v3654 = vld [vmem:[%s601 + $0x1a50] sm:$0xff]
        %v3655 = vld [vmem:[%s601 + $0x1a58] sm:$0xff]
        %v3656 = vld [vmem:[%s601 + $0x1a60] sm:$0xff]
        %v3657 = vld [vmem:[%s601 + $0x1a68] sm:$0xff]
        %v3658 = vld [vmem:[%s601 + $0x1a70] sm:$0xff]
        %v3659 = vld [vmem:[%s601 + $0x1a78] sm:$0xff]
        %v3660 = vld [vmem:[%s601 + $0x1a80] sm:$0xff]
        %v3661 = vld [vmem:[%s601 + $0x1a88] sm:$0xff]
        %v3662 = vld [vmem:[%s601 + $0x1a90] sm:$0xff]
        %v3663 = vld [vmem:[%s601 + $0x1a98] sm:$0xff]
        %v3664 = vld [vmem:[%s601 + $0x1aa0] sm:$0xff]
        %v3665 = vld [vmem:[%s601 + $0x1aa8] sm:$0xff]
        %v3666 = vld [vmem:[%s601 + $0x1ab0] sm:$0xff]
        %v3667 = vld [vmem:[%s601 + $0x1ab8] sm:$0xff]
        %v3668 = vld [vmem:[%s601 + $0x1ac0] sm:$0xff]
        %v3669 = vld [vmem:[%s601 + $0x1ac8] sm:$0xff]
        %v3670 = vld [vmem:[%s601 + $0x1ad0] sm:$0xff]
        %v3671 = vld [vmem:[%s601 + $0x1ad8] sm:$0xff]
        %v3672 = vld [vmem:[%s601 + $0x1ae0] sm:$0xff]
        %v3673 = vld [vmem:[%s601 + $0x1ae8] sm:$0xff]
        %v3674 = vld [vmem:[%s601 + $0x1af0] sm:$0xff]
        %v3675 = vld [vmem:[%s601 + $0x1af8] sm:$0xff]
        %v3676 = vld [vmem:[%s601 + $0x1b00] sm:$0xff]
        %v3677 = vld [vmem:[%s601 + $0x1b08] sm:$0xff]
        %v3678 = vld [vmem:[%s601 + $0x1b10] sm:$0xff]
        %v3679 = vld [vmem:[%s601 + $0x1b18] sm:$0xff]
        %v3680 = vld [vmem:[%s601 + $0x1b20] sm:$0xff]
        %v3681 = vld [vmem:[%s601 + $0x1b28] sm:$0xff]
        %v3682 = vld [vmem:[%s601 + $0x1b30] sm:$0xff]
        %v3683 = vld [vmem:[%s601 + $0x1b38] sm:$0xff]
        %v3684 = vld [vmem:[%s601 + $0x1b40] sm:$0xff]
        %v3685 = vld [vmem:[%s601 + $0x1b48] sm:$0xff]
        %v3686 = vld [vmem:[%s601 + $0x1b50] sm:$0xff]
        %v3687 = vld [vmem:[%s601 + $0x1b58] sm:$0xff]
        %v3688 = vld [vmem:[%s601 + $0x1b60] sm:$0xff]
        %v3689 = vld [vmem:[%s601 + $0x1b68] sm:$0xff]
        %v3690 = vld [vmem:[%s601 + $0x1b70] sm:$0xff]
        %v3691 = vld [vmem:[%s601 + $0x1b78] sm:$0xff]
        %v3692 = vld [vmem:[%s601 + $0x1b80] sm:$0xff]
        %v3693 = vld [vmem:[%s601 + $0x1b88] sm:$0xff]
        %v3694 = vld [vmem:[%s601 + $0x1b90] sm:$0xff]
        %v3695 = vld [vmem:[%s601 + $0x1b98] sm:$0xff]
        %v3696 = vld [vmem:[%s601 + $0x1ba0] sm:$0xff]
        %v3697 = vld [vmem:[%s601 + $0x1ba8] sm:$0xff]
        %v3698 = vld [vmem:[%s601 + $0x1bb0] sm:$0xff]
        %v3699 = vld [vmem:[%s601 + $0x1bb8] sm:$0xff]
        %v3700 = vld [vmem:[%s601 + $0x1bc0] sm:$0xff]
        %v3701 = vld [vmem:[%s601 + $0x1bc8] sm:$0xff]
        %v3702 = vld [vmem:[%s601 + $0x1bd0] sm:$0xff]
        %v3703 = vld [vmem:[%s601 + $0x1bd8] sm:$0xff]
        %v3704 = vld [vmem:[%s601 + $0x1be0] sm:$0xff]
        %v3705 = vld [vmem:[%s601 + $0x1be8] sm:$0xff]
        %v3706 = vld [vmem:[%s601 + $0x1bf0] sm:$0xff]
        %v3707 = vld [vmem:[%s601 + $0x1bf8] sm:$0xff]
        %v3708 = vld [vmem:[%s601 + $0x1c00] sm:$0xff]
        %v3709 = vld [vmem:[%s601 + $0x1c08] sm:$0xff]
        %v3710 = vld [vmem:[%s601 + $0x1c10] sm:$0xff]
        %v3711 = vld [vmem:[%s601 + $0x1c18] sm:$0xff]
        %v3712 = vld [vmem:[%s601 + $0x1c20] sm:$0xff]
        %v3713 = vld [vmem:[%s601 + $0x1c28] sm:$0xff]
        %v3714 = vld [vmem:[%s601 + $0x1c30] sm:$0xff]
        %v3715 = vld [vmem:[%s601 + $0x1c38] sm:$0xff]
        %v3716 = vld [vmem:[%s601 + $0x1c40] sm:$0xff]
        %v3717 = vld [vmem:[%s601 + $0x1c48] sm:$0xff]
        %v3718 = vld [vmem:[%s601 + $0x1c50] sm:$0xff]
        %v3719 = vld [vmem:[%s601 + $0x1c58] sm:$0xff]
        %v3720 = vld [vmem:[%s601 + $0x1c60] sm:$0xff]
        %v3721 = vld [vmem:[%s601 + $0x1c68] sm:$0xff]
        %v3722 = vld [vmem:[%s601 + $0x1c70] sm:$0xff]
        %v3723 = vld [vmem:[%s601 + $0x1c78] sm:$0xff]
        %v3724 = vld [vmem:[%s601 + $0x1c80] sm:$0xff]
        %v3725 = vld [vmem:[%s601 + $0x1c88] sm:$0xff]
        %v3726 = vld [vmem:[%s601 + $0x1c90] sm:$0xff]
        %v3727 = vld [vmem:[%s601 + $0x1c98] sm:$0xff]
        %v3728 = vld [vmem:[%s601 + $0x1ca0] sm:$0xff]
        %v3729 = vld [vmem:[%s601 + $0x1ca8] sm:$0xff]
        %v3730 = vld [vmem:[%s601 + $0x1cb0] sm:$0xff]
        %v3731 = vld [vmem:[%s601 + $0x1cb8] sm:$0xff]
        %v3732 = vld [vmem:[%s601 + $0x1cc0] sm:$0xff]
        %v3733 = vld [vmem:[%s601 + $0x1cc8] sm:$0xff]
        %v3734 = vld [vmem:[%s601 + $0x1cd0] sm:$0xff]
        %v3735 = vld [vmem:[%s601 + $0x1cd8] sm:$0xff]
        %v3736 = vld [vmem:[%s601 + $0x1ce0] sm:$0xff]
        %v3737 = vld [vmem:[%s601 + $0x1ce8] sm:$0xff]
        %v3738 = vld [vmem:[%s601 + $0x1cf0] sm:$0xff]
        %v3739 = vld [vmem:[%s601 + $0x1cf8] sm:$0xff]
        %v3740 = vld [vmem:[%s601 + $0x1d00] sm:$0xff]
        %v3741 = vld [vmem:[%s601 + $0x1d08] sm:$0xff]
        %v3742 = vld [vmem:[%s601 + $0x1d10] sm:$0xff]
        %v3743 = vld [vmem:[%s601 + $0x1d18] sm:$0xff]
        %v3744 = vld [vmem:[%s601 + $0x1d20] sm:$0xff]
        %v3745 = vld [vmem:[%s601 + $0x1d28] sm:$0xff]
        %v3746 = vld [vmem:[%s601 + $0x1d30] sm:$0xff]
        %v3747 = vld [vmem:[%s601 + $0x1d38] sm:$0xff]
        %v3748 = vld [vmem:[%s601 + $0x1d40] sm:$0xff]
        %v3749 = vld [vmem:[%s601 + $0x1d48] sm:$0xff]
        %v3750 = vld [vmem:[%s601 + $0x1d50] sm:$0xff]
        %v3751 = vld [vmem:[%s601 + $0x1d58] sm:$0xff]
        %v3752 = vld [vmem:[%s601 + $0x1d60] sm:$0xff]
        %v3753 = vld [vmem:[%s601 + $0x1d68] sm:$0xff]
        %v3754 = vld [vmem:[%s601 + $0x1d70] sm:$0xff]
        %v3755 = vld [vmem:[%s601 + $0x1d78] sm:$0xff]
        %v3756 = vld [vmem:[%s601 + $0x1d80] sm:$0xff]
        %v3757 = vld [vmem:[%s601 + $0x1d88] sm:$0xff]
        %v3758 = vld [vmem:[%s601 + $0x1d90] sm:$0xff]
        %v3759 = vld [vmem:[%s601 + $0x1d98] sm:$0xff]
        %v3760 = vld [vmem:[%s601 + $0x1da0] sm:$0xff]
        %v3761 = vld [vmem:[%s601 + $0x1da8] sm:$0xff]
        %v3762 = vld [vmem:[%s601 + $0x1db0] sm:$0xff]
        %v3763 = vld [vmem:[%s601 + $0x1db8] sm:$0xff]
        %v3764 = vld [vmem:[%s601 + $0x1dc0] sm:$0xff]
        %v3765 = vld [vmem:[%s601 + $0x1dc8] sm:$0xff]
        %v3766 = vld [vmem:[%s601 + $0x1dd0] sm:$0xff]
        %v3767 = vld [vmem:[%s601 + $0x1dd8] sm:$0xff]
        %v3768 = vld [vmem:[%s601 + $0x1de0] sm:$0xff]
        %v3769 = vld [vmem:[%s601 + $0x1de8] sm:$0xff]
        %v3770 = vld [vmem:[%s601 + $0x1df0] sm:$0xff]
        %v3771 = vld [vmem:[%s601 + $0x1df8] sm:$0xff]
        %v3772 = vld [vmem:[%s601 + $0x1e00] sm:$0xff]
        %v3773 = vld [vmem:[%s601 + $0x1e08] sm:$0xff]
        %v3774 = vld [vmem:[%s601 + $0x1e10] sm:$0xff]
        %v3775 = vld [vmem:[%s601 + $0x1e18] sm:$0xff]
        %v3776 = vld [vmem:[%s601 + $0x1e20] sm:$0xff]
        %v3777 = vld [vmem:[%s601 + $0x1e28] sm:$0xff]
        %v3778 = vld [vmem:[%s601 + $0x1e30] sm:$0xff]
        %v3779 = vld [vmem:[%s601 + $0x1e38] sm:$0xff]
        %v3780 = vld [vmem:[%s601 + $0x1e40] sm:$0xff]
        %v3781 = vld [vmem:[%s601 + $0x1e48] sm:$0xff]
        %v3782 = vld [vmem:[%s601 + $0x1e50] sm:$0xff]
        %v3783 = vld [vmem:[%s601 + $0x1e58] sm:$0xff]
        %v3784 = vld [vmem:[%s601 + $0x1e60] sm:$0xff]
        %v3785 = vld [vmem:[%s601 + $0x1e68] sm:$0xff]
        %v3786 = vld [vmem:[%s601 + $0x1e70] sm:$0xff]
        %v3787 = vld [vmem:[%s601 + $0x1e78] sm:$0xff]
        %v3788 = vld [vmem:[%s601 + $0x1e80] sm:$0xff]
        %v3789 = vld [vmem:[%s601 + $0x1e88] sm:$0xff]
        %v3790 = vld [vmem:[%s601 + $0x1e90] sm:$0xff]
        %v3791 = vld [vmem:[%s601 + $0x1e98] sm:$0xff]
        %v3792 = vld [vmem:[%s601 + $0x1ea0] sm:$0xff]
        %v3793 = vld [vmem:[%s601 + $0x1ea8] sm:$0xff]
        %v3794 = vld [vmem:[%s601 + $0x1eb0] sm:$0xff]
        %v3795 = vld [vmem:[%s601 + $0x1eb8] sm:$0xff]
        %v3796 = vld [vmem:[%s601 + $0x1ec0] sm:$0xff]
        %v3797 = vld [vmem:[%s601 + $0x1ec8] sm:$0xff]
        %v3798 = vld [vmem:[%s601 + $0x1ed0] sm:$0xff]
        %v3799 = vld [vmem:[%s601 + $0x1ed8] sm:$0xff]
        %v3800 = vld [vmem:[%s601 + $0x1ee0] sm:$0xff]
        %v3801 = vld [vmem:[%s601 + $0x1ee8] sm:$0xff]
        %v3802 = vld [vmem:[%s601 + $0x1ef0] sm:$0xff]
        %v3803 = vld [vmem:[%s601 + $0x1ef8] sm:$0xff]
        %v3804 = vld [vmem:[%s601 + $0x1f00] sm:$0xff]
        %v3805 = vld [vmem:[%s601 + $0x1f08] sm:$0xff]
        %v3806 = vld [vmem:[%s601 + $0x1f10] sm:$0xff]
        %v3807 = vld [vmem:[%s601 + $0x1f18] sm:$0xff]
        %v3808 = vld [vmem:[%s601 + $0x1f20] sm:$0xff]
        %v3809 = vld [vmem:[%s601 + $0x1f28] sm:$0xff]
        %v3810 = vld [vmem:[%s601 + $0x1f30] sm:$0xff]
        %v3811 = vld [vmem:[%s601 + $0x1f38] sm:$0xff]
        %v3812 = vld [vmem:[%s601 + $0x1f40] sm:$0xff]
        %v3813 = vld [vmem:[%s601 + $0x1f48] sm:$0xff]
        %v3814 = vld [vmem:[%s601 + $0x1f50] sm:$0xff]
        %v3815 = vld [vmem:[%s601 + $0x1f58] sm:$0xff]
        %v3816 = vld [vmem:[%s601 + $0x1f60] sm:$0xff]
        %v3817 = vld [vmem:[%s601 + $0x1f68] sm:$0xff]
        %v3818 = vld [vmem:[%s601 + $0x1f70] sm:$0xff]
        %v3819 = vld [vmem:[%s601 + $0x1f78] sm:$0xff]
        %v3820 = vld [vmem:[%s601 + $0x1f80] sm:$0xff]
        %v3821 = vld [vmem:[%s601 + $0x1f88] sm:$0xff]
        %v3822 = vld [vmem:[%s601 + $0x1f90] sm:$0xff]
        %v3823 = vld [vmem:[%s601 + $0x1f98] sm:$0xff]
        %v3824 = vld [vmem:[%s601 + $0x1fa0] sm:$0xff]
        %v3825 = vld [vmem:[%s601 + $0x1fa8] sm:$0xff]
        %v3826 = vld [vmem:[%s601 + $0x1fb0] sm:$0xff]
        %v3827 = vld [vmem:[%s601 + $0x1fb8] sm:$0xff]
        %v3828 = vld [vmem:[%s601 + $0x1fc0] sm:$0xff]
        %v3829 = vld [vmem:[%s601 + $0x1fc8] sm:$0xff]
        %v3830 = vld [vmem:[%s601 + $0x1fd0] sm:$0xff]
        %v3831 = vld [vmem:[%s601 + $0x1fd8] sm:$0xff]
        %v3832 = vld [vmem:[%s601 + $0x1fe0] sm:$0xff]
        %v3833 = vld [vmem:[%s601 + $0x1fe8] sm:$0xff]
        %v3834 = vld [vmem:[%s601 + $0x1ff0] sm:$0xff]
        %v3835 = vld [vmem:[%s601 + $0x1ff8] sm:$0xff]
        %v3836 = vld [vmem:[%s610] sm:$0xff]
        %v3838 = vlaneseq
        %v3839 = vshrl.u32 %v3838, 7
        %v3840 = vsub.s32 0, %v3839
        %v3841 = vrot.slane %v3836, %v3840
        %v3842 = vlaneseq
        %v3843 = vshrl.u32 %v3842, 7
        %v3844 = vsub.s32 1, %v3843
        %v3845 = vrot.slane %v3836, %v3844
        %v3846 = vlaneseq
        %v3847 = vshrl.u32 %v3846, 7
        %v3848 = vsub.s32 2, %v3847
        %v3849 = vrot.slane %v3836, %v3848
        %v3850 = vlaneseq
        %v3851 = vshrl.u32 %v3850, 7
        %v3852 = vsub.s32 3, %v3851
        %v3853 = vrot.slane %v3836, %v3852
        %v3854 = vlaneseq
        %v3855 = vshrl.u32 %v3854, 7
        %v3856 = vsub.s32 4, %v3855
        %v3857 = vrot.slane %v3836, %v3856
        %v3858 = vlaneseq
        %v3859 = vshrl.u32 %v3858, 7
        %v3860 = vsub.s32 5, %v3859
        %v3861 = vrot.slane %v3836, %v3860
        %v3862 = vlaneseq
        %v3863 = vshrl.u32 %v3862, 7
        %v3864 = vsub.s32 6, %v3863
        %v3865 = vrot.slane %v3836, %v3864
        %v3866 = vlaneseq
        %v3867 = vshrl.u32 %v3866, 7
        %v3868 = vsub.s32 7, %v3867
        %v3869 = vrot.slane %v3836, %v3868
        %v3886 = vunpack.c.l.b16 %v2804
        %v3887 = vunpack.c.h.b16 %v2804
        %v3888 = vunpack.c.l.b16 %v2805
        %v3889 = vunpack.c.h.b16 %v2805
        %v3890 = vunpack.c.l.b16 %v2806
        %v3891 = vunpack.c.h.b16 %v2806
        %v3892 = vunpack.c.l.b16 %v2807
        %v3893 = vunpack.c.h.b16 %v2807
        %v3894 = vunpack.c.l.b16 %v2808
        %v3895 = vunpack.c.h.b16 %v2808
        %v3896 = vunpack.c.l.b16 %v2809
        %v3897 = vunpack.c.h.b16 %v2809
        %v3898 = vunpack.c.l.b16 %v2810
        %v3899 = vunpack.c.h.b16 %v2810
        %v3900 = vunpack.c.l.b16 %v2811
        %v3901 = vunpack.c.h.b16 %v2811
        %v3902 = vpack.c.b16 %v3886, %v3886
        %v3903 = vpack.c.b16 %v3887, %v3887
        %v3904 = vpack.c.b16 %v3888, %v3888
        %v3905 = vpack.c.b16 %v3889, %v3889
        %v3906 = vpack.c.b16 %v3890, %v3890
        %v3907 = vpack.c.b16 %v3891, %v3891
        %v3908 = vpack.c.b16 %v3892, %v3892
        %v3909 = vpack.c.b16 %v3893, %v3893
        %v3910 = vpack.c.b16 %v3894, %v3894
        %v3911 = vpack.c.b16 %v3895, %v3895
        %v3912 = vpack.c.b16 %v3896, %v3896
        %v3913 = vpack.c.b16 %v3897, %v3897
        %v3914 = vpack.c.b16 %v3898, %v3898
        %v3915 = vpack.c.b16 %v3899, %v3899
        %v3916 = vpack.c.b16 %v3900, %v3900
        %v3917 = vpack.c.b16 %v3901, %v3901
        %v4958 = vunpack.c.l.b16 %v2812
        %v4959 = vunpack.c.h.b16 %v2812
        %v4960 = vunpack.c.l.b16 %v2813
        %v4961 = vunpack.c.h.b16 %v2813
        %v4962 = vunpack.c.l.b16 %v2814
        %v4963 = vunpack.c.h.b16 %v2814
        %v4964 = vunpack.c.l.b16 %v2815
        %v4965 = vunpack.c.h.b16 %v2815
        %v4966 = vunpack.c.l.b16 %v2816
        %v4967 = vunpack.c.h.b16 %v2816
        %v4968 = vunpack.c.l.b16 %v2817
        %v4969 = vunpack.c.h.b16 %v2817
        %v4970 = vunpack.c.l.b16 %v2818
        %v4971 = vunpack.c.h.b16 %v2818
        %v4972 = vunpack.c.l.b16 %v2819
        %v4973 = vunpack.c.h.b16 %v2819
        %v4974 = vunpack.c.l.b16 %v2820
        %v4975 = vunpack.c.h.b16 %v2820
        %v4976 = vunpack.c.l.b16 %v2821
        %v4977 = vunpack.c.h.b16 %v2821
        %v4978 = vunpack.c.l.b16 %v2822
        %v4979 = vunpack.c.h.b16 %v2822
        %v4980 = vunpack.c.l.b16 %v2823
        %v4981 = vunpack.c.h.b16 %v2823
        %v4982 = vunpack.c.l.b16 %v2824
        %v4983 = vunpack.c.h.b16 %v2824
        %v4984 = vunpack.c.l.b16 %v2825
        %v4985 = vunpack.c.h.b16 %v2825
        %v4986 = vunpack.c.l.b16 %v2826
        %v4987 = vunpack.c.h.b16 %v2826
        %v4988 = vunpack.c.l.b16 %v2827
        %v4989 = vunpack.c.h.b16 %v2827
        %v4990 = vunpack.c.l.b16 %v2828
        %v4991 = vunpack.c.h.b16 %v2828
        %v4992 = vunpack.c.l.b16 %v2829
        %v4993 = vunpack.c.h.b16 %v2829
        %v4994 = vunpack.c.l.b16 %v2830
        %v4995 = vunpack.c.h.b16 %v2830
        %v4996 = vunpack.c.l.b16 %v2831
        %v4997 = vunpack.c.h.b16 %v2831
        %v4998 = vunpack.c.l.b16 %v2832
        %v4999 = vunpack.c.h.b16 %v2832
        %v5000 = vunpack.c.l.b16 %v2833
        %v5001 = vunpack.c.h.b16 %v2833
        %v5002 = vunpack.c.l.b16 %v2834
        %v5003 = vunpack.c.h.b16 %v2834
        %v5004 = vunpack.c.l.b16 %v2835
        %v5005 = vunpack.c.h.b16 %v2835
        %v5006 = vunpack.c.l.b16 %v2836
        %v5007 = vunpack.c.h.b16 %v2836
        %v5008 = vunpack.c.l.b16 %v2837
        %v5009 = vunpack.c.h.b16 %v2837
        %v5010 = vunpack.c.l.b16 %v2838
        %v5011 = vunpack.c.h.b16 %v2838
        %v5012 = vunpack.c.l.b16 %v2839
        %v5013 = vunpack.c.h.b16 %v2839
        %v5014 = vunpack.c.l.b16 %v2840
        %v5015 = vunpack.c.h.b16 %v2840
        %v5016 = vunpack.c.l.b16 %v2841
        %v5017 = vunpack.c.h.b16 %v2841
        %v5018 = vunpack.c.l.b16 %v2842
        %v5019 = vunpack.c.h.b16 %v2842
        %v5020 = vunpack.c.l.b16 %v2843
        %v5021 = vunpack.c.h.b16 %v2843
        %v5022 = vunpack.c.l.b16 %v2844
        %v5023 = vunpack.c.h.b16 %v2844
        %v5024 = vunpack.c.l.b16 %v2845
        %v5025 = vunpack.c.h.b16 %v2845
        %v5026 = vunpack.c.l.b16 %v2846
        %v5027 = vunpack.c.h.b16 %v2846
        %v5028 = vunpack.c.l.b16 %v2847
        %v5029 = vunpack.c.h.b16 %v2847
        %v5030 = vunpack.c.l.b16 %v2848
        %v5031 = vunpack.c.h.b16 %v2848
        %v5032 = vunpack.c.l.b16 %v2849
        %v5033 = vunpack.c.h.b16 %v2849
        %v5034 = vunpack.c.l.b16 %v2850
        %v5035 = vunpack.c.h.b16 %v2850
        %v5036 = vunpack.c.l.b16 %v2851
        %v5037 = vunpack.c.h.b16 %v2851
        %v5038 = vunpack.c.l.b16 %v2852
        %v5039 = vunpack.c.h.b16 %v2852
        %v5040 = vunpack.c.l.b16 %v2853
        %v5041 = vunpack.c.h.b16 %v2853
        %v5042 = vunpack.c.l.b16 %v2854
        %v5043 = vunpack.c.h.b16 %v2854
        %v5044 = vunpack.c.l.b16 %v2855
        %v5045 = vunpack.c.h.b16 %v2855
        %v5046 = vunpack.c.l.b16 %v2856
        %v5047 = vunpack.c.h.b16 %v2856
        %v5048 = vunpack.c.l.b16 %v2857
        %v5049 = vunpack.c.h.b16 %v2857
        %v5050 = vunpack.c.l.b16 %v2858
        %v5051 = vunpack.c.h.b16 %v2858
        %v5052 = vunpack.c.l.b16 %v2859
        %v5053 = vunpack.c.h.b16 %v2859
        %v5054 = vunpack.c.l.b16 %v2860
        %v5055 = vunpack.c.h.b16 %v2860
        %v5056 = vunpack.c.l.b16 %v2861
        %v5057 = vunpack.c.h.b16 %v2861
        %v5058 = vunpack.c.l.b16 %v2862
        %v5059 = vunpack.c.h.b16 %v2862
        %v5060 = vunpack.c.l.b16 %v2863
        %v5061 = vunpack.c.h.b16 %v2863
        %v5062 = vunpack.c.l.b16 %v2864
        %v5063 = vunpack.c.h.b16 %v2864
        %v5064 = vunpack.c.l.b16 %v2865
        %v5065 = vunpack.c.h.b16 %v2865
        %v5066 = vunpack.c.l.b16 %v2866
        %v5067 = vunpack.c.h.b16 %v2866
        %v5068 = vunpack.c.l.b16 %v2867
        %v5069 = vunpack.c.h.b16 %v2867
        %v5070 = vunpack.c.l.b16 %v2868
        %v5071 = vunpack.c.h.b16 %v2868
        %v5072 = vunpack.c.l.b16 %v2869
        %v5073 = vunpack.c.h.b16 %v2869
        %v5074 = vunpack.c.l.b16 %v2870
        %v5075 = vunpack.c.h.b16 %v2870
        %v5076 = vunpack.c.l.b16 %v2871
        %v5077 = vunpack.c.h.b16 %v2871
        %v5078 = vunpack.c.l.b16 %v2872
        %v5079 = vunpack.c.h.b16 %v2872
        %v5080 = vunpack.c.l.b16 %v2873
        %v5081 = vunpack.c.h.b16 %v2873
        %v5082 = vunpack.c.l.b16 %v2874
        %v5083 = vunpack.c.h.b16 %v2874
        %v5084 = vunpack.c.l.b16 %v2875
        %v5085 = vunpack.c.h.b16 %v2875
        %v5086 = vunpack.c.l.b16 %v2876
        %v5087 = vunpack.c.h.b16 %v2876
        %v5088 = vunpack.c.l.b16 %v2877
        %v5089 = vunpack.c.h.b16 %v2877
        %v5090 = vunpack.c.l.b16 %v2878
        %v5091 = vunpack.c.h.b16 %v2878
        %v5092 = vunpack.c.l.b16 %v2879
        %v5093 = vunpack.c.h.b16 %v2879
        %v5094 = vunpack.c.l.b16 %v2880
        %v5095 = vunpack.c.h.b16 %v2880
        %v5096 = vunpack.c.l.b16 %v2881
        %v5097 = vunpack.c.h.b16 %v2881
        %v5098 = vunpack.c.l.b16 %v2882
        %v5099 = vunpack.c.h.b16 %v2882
        %v5100 = vunpack.c.l.b16 %v2883
        %v5101 = vunpack.c.h.b16 %v2883
        %v5102 = vunpack.c.l.b16 %v2884
        %v5103 = vunpack.c.h.b16 %v2884
        %v5104 = vunpack.c.l.b16 %v2885
        %v5105 = vunpack.c.h.b16 %v2885
        %v5106 = vunpack.c.l.b16 %v2886
        %v5107 = vunpack.c.h.b16 %v2886
        %v5108 = vunpack.c.l.b16 %v2887
        %v5109 = vunpack.c.h.b16 %v2887
        %v5110 = vunpack.c.l.b16 %v2888
        %v5111 = vunpack.c.h.b16 %v2888
        %v5112 = vunpack.c.l.b16 %v2889
        %v5113 = vunpack.c.h.b16 %v2889
        %v5114 = vunpack.c.l.b16 %v2890
        %v5115 = vunpack.c.h.b16 %v2890
        %v5116 = vunpack.c.l.b16 %v2891
        %v5117 = vunpack.c.h.b16 %v2891
        %v5118 = vunpack.c.l.b16 %v2892
        %v5119 = vunpack.c.h.b16 %v2892
        %v5120 = vunpack.c.l.b16 %v2893
        %v5121 = vunpack.c.h.b16 %v2893
        %v5122 = vunpack.c.l.b16 %v2894
        %v5123 = vunpack.c.h.b16 %v2894
        %v5124 = vunpack.c.l.b16 %v2895
        %v5125 = vunpack.c.h.b16 %v2895
        %v5126 = vunpack.c.l.b16 %v2896
        %v5127 = vunpack.c.h.b16 %v2896
        %v5128 = vunpack.c.l.b16 %v2897
        %v5129 = vunpack.c.h.b16 %v2897
        %v5130 = vunpack.c.l.b16 %v2898
        %v5131 = vunpack.c.h.b16 %v2898
        %v5132 = vunpack.c.l.b16 %v2899
        %v5133 = vunpack.c.h.b16 %v2899
        %v5134 = vunpack.c.l.b16 %v2900
        %v5135 = vunpack.c.h.b16 %v2900
        %v5136 = vunpack.c.l.b16 %v2901
        %v5137 = vunpack.c.h.b16 %v2901
        %v5138 = vunpack.c.l.b16 %v2902
        %v5139 = vunpack.c.h.b16 %v2902
        %v5140 = vunpack.c.l.b16 %v2903
        %v5141 = vunpack.c.h.b16 %v2903
        %v5142 = vunpack.c.l.b16 %v2904
        %v5143 = vunpack.c.h.b16 %v2904
        %v5144 = vunpack.c.l.b16 %v2905
        %v5145 = vunpack.c.h.b16 %v2905
        %v5146 = vunpack.c.l.b16 %v2906
        %v5147 = vunpack.c.h.b16 %v2906
        %v5148 = vunpack.c.l.b16 %v2907
        %v5149 = vunpack.c.h.b16 %v2907
        %v5150 = vunpack.c.l.b16 %v2908
        %v5151 = vunpack.c.h.b16 %v2908
        %v5152 = vunpack.c.l.b16 %v2909
        %v5153 = vunpack.c.h.b16 %v2909
        %v5154 = vunpack.c.l.b16 %v2910
        %v5155 = vunpack.c.h.b16 %v2910
        %v5156 = vunpack.c.l.b16 %v2911
        %v5157 = vunpack.c.h.b16 %v2911
        %v5158 = vunpack.c.l.b16 %v2912
        %v5159 = vunpack.c.h.b16 %v2912
        %v5160 = vunpack.c.l.b16 %v2913
        %v5161 = vunpack.c.h.b16 %v2913
        %v5162 = vunpack.c.l.b16 %v2914
        %v5163 = vunpack.c.h.b16 %v2914
        %v5164 = vunpack.c.l.b16 %v2915
        %v5165 = vunpack.c.h.b16 %v2915
        %v5166 = vunpack.c.l.b16 %v2916
        %v5167 = vunpack.c.h.b16 %v2916
        %v5168 = vunpack.c.l.b16 %v2917
        %v5169 = vunpack.c.h.b16 %v2917
        %v5170 = vunpack.c.l.b16 %v2918
        %v5171 = vunpack.c.h.b16 %v2918
        %v5172 = vunpack.c.l.b16 %v2919
        %v5173 = vunpack.c.h.b16 %v2919
        %v5174 = vunpack.c.l.b16 %v2920
        %v5175 = vunpack.c.h.b16 %v2920
        %v5176 = vunpack.c.l.b16 %v2921
        %v5177 = vunpack.c.h.b16 %v2921
        %v5178 = vunpack.c.l.b16 %v2922
        %v5179 = vunpack.c.h.b16 %v2922
        %v5180 = vunpack.c.l.b16 %v2923
        %v5181 = vunpack.c.h.b16 %v2923
        %v5182 = vunpack.c.l.b16 %v2924
        %v5183 = vunpack.c.h.b16 %v2924
        %v5184 = vunpack.c.l.b16 %v2925
        %v5185 = vunpack.c.h.b16 %v2925
        %v5186 = vunpack.c.l.b16 %v2926
        %v5187 = vunpack.c.h.b16 %v2926
        %v5188 = vunpack.c.l.b16 %v2927
        %v5189 = vunpack.c.h.b16 %v2927
        %v5190 = vunpack.c.l.b16 %v2928
        %v5191 = vunpack.c.h.b16 %v2928
        %v5192 = vunpack.c.l.b16 %v2929
        %v5193 = vunpack.c.h.b16 %v2929
        %v5194 = vunpack.c.l.b16 %v2930
        %v5195 = vunpack.c.h.b16 %v2930
        %v5196 = vunpack.c.l.b16 %v2931
        %v5197 = vunpack.c.h.b16 %v2931
        %v5198 = vunpack.c.l.b16 %v2932
        %v5199 = vunpack.c.h.b16 %v2932
        %v5200 = vunpack.c.l.b16 %v2933
        %v5201 = vunpack.c.h.b16 %v2933
        %v5202 = vunpack.c.l.b16 %v2934
        %v5203 = vunpack.c.h.b16 %v2934
        %v5204 = vunpack.c.l.b16 %v2935
        %v5205 = vunpack.c.h.b16 %v2935
        %v5206 = vunpack.c.l.b16 %v2936
        %v5207 = vunpack.c.h.b16 %v2936
        %v5208 = vunpack.c.l.b16 %v2937
        %v5209 = vunpack.c.h.b16 %v2937
        %v5210 = vunpack.c.l.b16 %v2938
        %v5211 = vunpack.c.h.b16 %v2938
        %v5212 = vunpack.c.l.b16 %v2939
        %v5213 = vunpack.c.h.b16 %v2939
        %v5214 = vunpack.c.l.b16 %v2940
        %v5215 = vunpack.c.h.b16 %v2940
        %v5216 = vunpack.c.l.b16 %v2941
        %v5217 = vunpack.c.h.b16 %v2941
        %v5218 = vunpack.c.l.b16 %v2942
        %v5219 = vunpack.c.h.b16 %v2942
        %v5220 = vunpack.c.l.b16 %v2943
        %v5221 = vunpack.c.h.b16 %v2943
        %v5222 = vunpack.c.l.b16 %v2944
        %v5223 = vunpack.c.h.b16 %v2944
        %v5224 = vunpack.c.l.b16 %v2945
        %v5225 = vunpack.c.h.b16 %v2945
        %v5226 = vunpack.c.l.b16 %v2946
        %v5227 = vunpack.c.h.b16 %v2946
        %v5228 = vunpack.c.l.b16 %v2947
        %v5229 = vunpack.c.h.b16 %v2947
        %v5230 = vunpack.c.l.b16 %v2948
        %v5231 = vunpack.c.h.b16 %v2948
        %v5232 = vunpack.c.l.b16 %v2949
        %v5233 = vunpack.c.h.b16 %v2949
        %v5234 = vunpack.c.l.b16 %v2950
        %v5235 = vunpack.c.h.b16 %v2950
        %v5236 = vunpack.c.l.b16 %v2951
        %v5237 = vunpack.c.h.b16 %v2951
        %v5238 = vunpack.c.l.b16 %v2952
        %v5239 = vunpack.c.h.b16 %v2952
        %v5240 = vunpack.c.l.b16 %v2953
        %v5241 = vunpack.c.h.b16 %v2953
        %v5242 = vunpack.c.l.b16 %v2954
        %v5243 = vunpack.c.h.b16 %v2954
        %v5244 = vunpack.c.l.b16 %v2955
        %v5245 = vunpack.c.h.b16 %v2955
        %v5246 = vunpack.c.l.b16 %v2956
        %v5247 = vunpack.c.h.b16 %v2956
        %v5248 = vunpack.c.l.b16 %v2957
        %v5249 = vunpack.c.h.b16 %v2957
        %v5250 = vunpack.c.l.b16 %v2958
        %v5251 = vunpack.c.h.b16 %v2958
        %v5252 = vunpack.c.l.b16 %v2959
        %v5253 = vunpack.c.h.b16 %v2959
        %v5254 = vunpack.c.l.b16 %v2960
        %v5255 = vunpack.c.h.b16 %v2960
        %v5256 = vunpack.c.l.b16 %v2961
        %v5257 = vunpack.c.h.b16 %v2961
        %v5258 = vunpack.c.l.b16 %v2962
        %v5259 = vunpack.c.h.b16 %v2962
        %v5260 = vunpack.c.l.b16 %v2963
        %v5261 = vunpack.c.h.b16 %v2963
        %v5262 = vunpack.c.l.b16 %v2964
        %v5263 = vunpack.c.h.b16 %v2964
        %v5264 = vunpack.c.l.b16 %v2965
        %v5265 = vunpack.c.h.b16 %v2965
        %v5266 = vunpack.c.l.b16 %v2966
        %v5267 = vunpack.c.h.b16 %v2966
        %v5268 = vunpack.c.l.b16 %v2967
        %v5269 = vunpack.c.h.b16 %v2967
        %v5270 = vunpack.c.l.b16 %v2968
        %v5271 = vunpack.c.h.b16 %v2968
        %v5272 = vunpack.c.l.b16 %v2969
        %v5273 = vunpack.c.h.b16 %v2969
        %v5274 = vunpack.c.l.b16 %v2970
        %v5275 = vunpack.c.h.b16 %v2970
        %v5276 = vunpack.c.l.b16 %v2971
        %v5277 = vunpack.c.h.b16 %v2971
        %v5278 = vunpack.c.l.b16 %v2972
        %v5279 = vunpack.c.h.b16 %v2972
        %v5280 = vunpack.c.l.b16 %v2973
        %v5281 = vunpack.c.h.b16 %v2973
        %v5282 = vunpack.c.l.b16 %v2974
        %v5283 = vunpack.c.h.b16 %v2974
        %v5284 = vunpack.c.l.b16 %v2975
        %v5285 = vunpack.c.h.b16 %v2975
        %v5286 = vunpack.c.l.b16 %v2976
        %v5287 = vunpack.c.h.b16 %v2976
        %v5288 = vunpack.c.l.b16 %v2977
        %v5289 = vunpack.c.h.b16 %v2977
        %v5290 = vunpack.c.l.b16 %v2978
        %v5291 = vunpack.c.h.b16 %v2978
        %v5292 = vunpack.c.l.b16 %v2979
        %v5293 = vunpack.c.h.b16 %v2979
        %v5294 = vunpack.c.l.b16 %v2980
        %v5295 = vunpack.c.h.b16 %v2980
        %v5296 = vunpack.c.l.b16 %v2981
        %v5297 = vunpack.c.h.b16 %v2981
        %v5298 = vunpack.c.l.b16 %v2982
        %v5299 = vunpack.c.h.b16 %v2982
        %v5300 = vunpack.c.l.b16 %v2983
        %v5301 = vunpack.c.h.b16 %v2983
        %v5302 = vunpack.c.l.b16 %v2984
        %v5303 = vunpack.c.h.b16 %v2984
        %v5304 = vunpack.c.l.b16 %v2985
        %v5305 = vunpack.c.h.b16 %v2985
        %v5306 = vunpack.c.l.b16 %v2986
        %v5307 = vunpack.c.h.b16 %v2986
        %v5308 = vunpack.c.l.b16 %v2987
        %v5309 = vunpack.c.h.b16 %v2987
        %v5310 = vunpack.c.l.b16 %v2988
        %v5311 = vunpack.c.h.b16 %v2988
        %v5312 = vunpack.c.l.b16 %v2989
        %v5313 = vunpack.c.h.b16 %v2989
        %v5314 = vunpack.c.l.b16 %v2990
        %v5315 = vunpack.c.h.b16 %v2990
        %v5316 = vunpack.c.l.b16 %v2991
        %v5317 = vunpack.c.h.b16 %v2991
        %v5318 = vunpack.c.l.b16 %v2992
        %v5319 = vunpack.c.h.b16 %v2992
        %v5320 = vunpack.c.l.b16 %v2993
        %v5321 = vunpack.c.h.b16 %v2993
        %v5322 = vunpack.c.l.b16 %v2994
        %v5323 = vunpack.c.h.b16 %v2994
        %v5324 = vunpack.c.l.b16 %v2995
        %v5325 = vunpack.c.h.b16 %v2995
        %v5326 = vunpack.c.l.b16 %v2996
        %v5327 = vunpack.c.h.b16 %v2996
        %v5328 = vunpack.c.l.b16 %v2997
        %v5329 = vunpack.c.h.b16 %v2997
        %v5330 = vunpack.c.l.b16 %v2998
        %v5331 = vunpack.c.h.b16 %v2998
        %v5332 = vunpack.c.l.b16 %v2999
        %v5333 = vunpack.c.h.b16 %v2999
        %v5334 = vunpack.c.l.b16 %v3000
        %v5335 = vunpack.c.h.b16 %v3000
        %v5336 = vunpack.c.l.b16 %v3001
        %v5337 = vunpack.c.h.b16 %v3001
        %v5338 = vunpack.c.l.b16 %v3002
        %v5339 = vunpack.c.h.b16 %v3002
        %v5340 = vunpack.c.l.b16 %v3003
        %v5341 = vunpack.c.h.b16 %v3003
        %v5342 = vunpack.c.l.b16 %v3004
        %v5343 = vunpack.c.h.b16 %v3004
        %v5344 = vunpack.c.l.b16 %v3005
        %v5345 = vunpack.c.h.b16 %v3005
        %v5346 = vunpack.c.l.b16 %v3006
        %v5347 = vunpack.c.h.b16 %v3006
        %v5348 = vunpack.c.l.b16 %v3007
        %v5349 = vunpack.c.h.b16 %v3007
        %v5350 = vunpack.c.l.b16 %v3008
        %v5351 = vunpack.c.h.b16 %v3008
        %v5352 = vunpack.c.l.b16 %v3009
        %v5353 = vunpack.c.h.b16 %v3009
        %v5354 = vunpack.c.l.b16 %v3010
        %v5355 = vunpack.c.h.b16 %v3010
        %v5356 = vunpack.c.l.b16 %v3011
        %v5357 = vunpack.c.h.b16 %v3011
        %v5358 = vunpack.c.l.b16 %v3012
        %v5359 = vunpack.c.h.b16 %v3012
        %v5360 = vunpack.c.l.b16 %v3013
        %v5361 = vunpack.c.h.b16 %v3013
        %v5362 = vunpack.c.l.b16 %v3014
        %v5363 = vunpack.c.h.b16 %v3014
        %v5364 = vunpack.c.l.b16 %v3015
        %v5365 = vunpack.c.h.b16 %v3015
        %v5366 = vunpack.c.l.b16 %v3016
        %v5367 = vunpack.c.h.b16 %v3016
        %v5368 = vunpack.c.l.b16 %v3017
        %v5369 = vunpack.c.h.b16 %v3017
        %v5370 = vunpack.c.l.b16 %v3018
        %v5371 = vunpack.c.h.b16 %v3018
        %v5372 = vunpack.c.l.b16 %v3019
        %v5373 = vunpack.c.h.b16 %v3019
        %v5374 = vunpack.c.l.b16 %v3020
        %v5375 = vunpack.c.h.b16 %v3020
        %v5376 = vunpack.c.l.b16 %v3021
        %v5377 = vunpack.c.h.b16 %v3021
        %v5378 = vunpack.c.l.b16 %v3022
        %v5379 = vunpack.c.h.b16 %v3022
        %v5380 = vunpack.c.l.b16 %v3023
        %v5381 = vunpack.c.h.b16 %v3023
        %v5382 = vunpack.c.l.b16 %v3024
        %v5383 = vunpack.c.h.b16 %v3024
        %v5384 = vunpack.c.l.b16 %v3025
        %v5385 = vunpack.c.h.b16 %v3025
        %v5386 = vunpack.c.l.b16 %v3026
        %v5387 = vunpack.c.h.b16 %v3026
        %v5388 = vunpack.c.l.b16 %v3027
        %v5389 = vunpack.c.h.b16 %v3027
        %v5390 = vunpack.c.l.b16 %v3028
        %v5391 = vunpack.c.h.b16 %v3028
        %v5392 = vunpack.c.l.b16 %v3029
        %v5393 = vunpack.c.h.b16 %v3029
        %v5394 = vunpack.c.l.b16 %v3030
        %v5395 = vunpack.c.h.b16 %v3030
        %v5396 = vunpack.c.l.b16 %v3031
        %v5397 = vunpack.c.h.b16 %v3031
        %v5398 = vunpack.c.l.b16 %v3032
        %v5399 = vunpack.c.h.b16 %v3032
        %v5400 = vunpack.c.l.b16 %v3033
        %v5401 = vunpack.c.h.b16 %v3033
        %v5402 = vunpack.c.l.b16 %v3034
        %v5403 = vunpack.c.h.b16 %v3034
        %v5404 = vunpack.c.l.b16 %v3035
        %v5405 = vunpack.c.h.b16 %v3035
        %v5406 = vunpack.c.l.b16 %v3036
        %v5407 = vunpack.c.h.b16 %v3036
        %v5408 = vunpack.c.l.b16 %v3037
        %v5409 = vunpack.c.h.b16 %v3037
        %v5410 = vunpack.c.l.b16 %v3038
        %v5411 = vunpack.c.h.b16 %v3038
        %v5412 = vunpack.c.l.b16 %v3039
        %v5413 = vunpack.c.h.b16 %v3039
        %v5414 = vunpack.c.l.b16 %v3040
        %v5415 = vunpack.c.h.b16 %v3040
        %v5416 = vunpack.c.l.b16 %v3041
        %v5417 = vunpack.c.h.b16 %v3041
        %v5418 = vunpack.c.l.b16 %v3042
        %v5419 = vunpack.c.h.b16 %v3042
        %v5420 = vunpack.c.l.b16 %v3043
        %v5421 = vunpack.c.h.b16 %v3043
        %v5422 = vunpack.c.l.b16 %v3044
        %v5423 = vunpack.c.h.b16 %v3044
        %v5424 = vunpack.c.l.b16 %v3045
        %v5425 = vunpack.c.h.b16 %v3045
        %v5426 = vunpack.c.l.b16 %v3046
        %v5427 = vunpack.c.h.b16 %v3046
        %v5428 = vunpack.c.l.b16 %v3047
        %v5429 = vunpack.c.h.b16 %v3047
        %v5430 = vunpack.c.l.b16 %v3048
        %v5431 = vunpack.c.h.b16 %v3048
        %v5432 = vunpack.c.l.b16 %v3049
        %v5433 = vunpack.c.h.b16 %v3049
        %v5434 = vunpack.c.l.b16 %v3050
        %v5435 = vunpack.c.h.b16 %v3050
        %v5436 = vunpack.c.l.b16 %v3051
        %v5437 = vunpack.c.h.b16 %v3051
        %v5438 = vunpack.c.l.b16 %v3052
        %v5439 = vunpack.c.h.b16 %v3052
        %v5440 = vunpack.c.l.b16 %v3053
        %v5441 = vunpack.c.h.b16 %v3053
        %v5442 = vunpack.c.l.b16 %v3054
        %v5443 = vunpack.c.h.b16 %v3054
        %v5444 = vunpack.c.l.b16 %v3055
        %v5445 = vunpack.c.h.b16 %v3055
        %v5446 = vunpack.c.l.b16 %v3056
        %v5447 = vunpack.c.h.b16 %v3056
        %v5448 = vunpack.c.l.b16 %v3057
        %v5449 = vunpack.c.h.b16 %v3057
        %v5450 = vunpack.c.l.b16 %v3058
        %v5451 = vunpack.c.h.b16 %v3058
        %v5452 = vunpack.c.l.b16 %v3059
        %v5453 = vunpack.c.h.b16 %v3059
        %v5454 = vunpack.c.l.b16 %v3060
        %v5455 = vunpack.c.h.b16 %v3060
        %v5456 = vunpack.c.l.b16 %v3061
        %v5457 = vunpack.c.h.b16 %v3061
        %v5458 = vunpack.c.l.b16 %v3062
        %v5459 = vunpack.c.h.b16 %v3062
        %v5460 = vunpack.c.l.b16 %v3063
        %v5461 = vunpack.c.h.b16 %v3063
        %v5462 = vunpack.c.l.b16 %v3064
        %v5463 = vunpack.c.h.b16 %v3064
        %v5464 = vunpack.c.l.b16 %v3065
        %v5465 = vunpack.c.h.b16 %v3065
        %v5466 = vunpack.c.l.b16 %v3066
        %v5467 = vunpack.c.h.b16 %v3066
        %v5468 = vunpack.c.l.b16 %v3067
        %v5469 = vunpack.c.h.b16 %v3067
        %v5470 = vunpack.c.l.b16 %v3068
        %v5471 = vunpack.c.h.b16 %v3068
        %v5472 = vunpack.c.l.b16 %v3069
        %v5473 = vunpack.c.h.b16 %v3069
        %v5474 = vunpack.c.l.b16 %v3070
        %v5475 = vunpack.c.h.b16 %v3070
        %v5476 = vunpack.c.l.b16 %v3071
        %v5477 = vunpack.c.h.b16 %v3071
        %v5478 = vunpack.c.l.b16 %v3072
        %v5479 = vunpack.c.h.b16 %v3072
        %v5480 = vunpack.c.l.b16 %v3073
        %v5481 = vunpack.c.h.b16 %v3073
        %v5482 = vunpack.c.l.b16 %v3074
        %v5483 = vunpack.c.h.b16 %v3074
        %v5484 = vunpack.c.l.b16 %v3075
        %v5485 = vunpack.c.h.b16 %v3075
        %v5486 = vunpack.c.l.b16 %v3076
        %v5487 = vunpack.c.h.b16 %v3076
        %v5488 = vunpack.c.l.b16 %v3077
        %v5489 = vunpack.c.h.b16 %v3077
        %v5490 = vunpack.c.l.b16 %v3078
        %v5491 = vunpack.c.h.b16 %v3078
        %v5492 = vunpack.c.l.b16 %v3079
        %v5493 = vunpack.c.h.b16 %v3079
        %v5494 = vunpack.c.l.b16 %v3080
        %v5495 = vunpack.c.h.b16 %v3080
        %v5496 = vunpack.c.l.b16 %v3081
        %v5497 = vunpack.c.h.b16 %v3081
        %v5498 = vunpack.c.l.b16 %v3082
        %v5499 = vunpack.c.h.b16 %v3082
        %v5500 = vunpack.c.l.b16 %v3083
        %v5501 = vunpack.c.h.b16 %v3083
        %v5502 = vunpack.c.l.b16 %v3084
        %v5503 = vunpack.c.h.b16 %v3084
        %v5504 = vunpack.c.l.b16 %v3085
        %v5505 = vunpack.c.h.b16 %v3085
        %v5506 = vunpack.c.l.b16 %v3086
        %v5507 = vunpack.c.h.b16 %v3086
        %v5508 = vunpack.c.l.b16 %v3087
        %v5509 = vunpack.c.h.b16 %v3087
        %v5510 = vunpack.c.l.b16 %v3088
        %v5511 = vunpack.c.h.b16 %v3088
        %v5512 = vunpack.c.l.b16 %v3089
        %v5513 = vunpack.c.h.b16 %v3089
        %v5514 = vunpack.c.l.b16 %v3090
        %v5515 = vunpack.c.h.b16 %v3090
        %v5516 = vunpack.c.l.b16 %v3091
        %v5517 = vunpack.c.h.b16 %v3091
        %v5518 = vunpack.c.l.b16 %v3092
        %v5519 = vunpack.c.h.b16 %v3092
        %v5520 = vunpack.c.l.b16 %v3093
        %v5521 = vunpack.c.h.b16 %v3093
        %v5522 = vunpack.c.l.b16 %v3094
        %v5523 = vunpack.c.h.b16 %v3094
        %v5524 = vunpack.c.l.b16 %v3095
        %v5525 = vunpack.c.h.b16 %v3095
        %v5526 = vunpack.c.l.b16 %v3096
        %v5527 = vunpack.c.h.b16 %v3096
        %v5528 = vunpack.c.l.b16 %v3097
        %v5529 = vunpack.c.h.b16 %v3097
        %v5530 = vunpack.c.l.b16 %v3098
        %v5531 = vunpack.c.h.b16 %v3098
        %v5532 = vunpack.c.l.b16 %v3099
        %v5533 = vunpack.c.h.b16 %v3099
        %v5534 = vunpack.c.l.b16 %v3100
        %v5535 = vunpack.c.h.b16 %v3100
        %v5536 = vunpack.c.l.b16 %v3101
        %v5537 = vunpack.c.h.b16 %v3101
        %v5538 = vunpack.c.l.b16 %v3102
        %v5539 = vunpack.c.h.b16 %v3102
        %v5540 = vunpack.c.l.b16 %v3103
        %v5541 = vunpack.c.h.b16 %v3103
        %v5542 = vunpack.c.l.b16 %v3104
        %v5543 = vunpack.c.h.b16 %v3104
        %v5544 = vunpack.c.l.b16 %v3105
        %v5545 = vunpack.c.h.b16 %v3105
        %v5546 = vunpack.c.l.b16 %v3106
        %v5547 = vunpack.c.h.b16 %v3106
        %v5548 = vunpack.c.l.b16 %v3107
        %v5549 = vunpack.c.h.b16 %v3107
        %v5550 = vunpack.c.l.b16 %v3108
        %v5551 = vunpack.c.h.b16 %v3108
        %v5552 = vunpack.c.l.b16 %v3109
        %v5553 = vunpack.c.h.b16 %v3109
        %v5554 = vunpack.c.l.b16 %v3110
        %v5555 = vunpack.c.h.b16 %v3110
        %v5556 = vunpack.c.l.b16 %v3111
        %v5557 = vunpack.c.h.b16 %v3111
        %v5558 = vunpack.c.l.b16 %v3112
        %v5559 = vunpack.c.h.b16 %v3112
        %v5560 = vunpack.c.l.b16 %v3113
        %v5561 = vunpack.c.h.b16 %v3113
        %v5562 = vunpack.c.l.b16 %v3114
        %v5563 = vunpack.c.h.b16 %v3114
        %v5564 = vunpack.c.l.b16 %v3115
        %v5565 = vunpack.c.h.b16 %v3115
        %v5566 = vunpack.c.l.b16 %v3116
        %v5567 = vunpack.c.h.b16 %v3116
        %v5568 = vunpack.c.l.b16 %v3117
        %v5569 = vunpack.c.h.b16 %v3117
        %v5570 = vunpack.c.l.b16 %v3118
        %v5571 = vunpack.c.h.b16 %v3118
        %v5572 = vunpack.c.l.b16 %v3119
        %v5573 = vunpack.c.h.b16 %v3119
        %v5574 = vunpack.c.l.b16 %v3120
        %v5575 = vunpack.c.h.b16 %v3120
        %v5576 = vunpack.c.l.b16 %v3121
        %v5577 = vunpack.c.h.b16 %v3121
        %v5578 = vunpack.c.l.b16 %v3122
        %v5579 = vunpack.c.h.b16 %v3122
        %v5580 = vunpack.c.l.b16 %v3123
        %v5581 = vunpack.c.h.b16 %v3123
        %v5582 = vunpack.c.l.b16 %v3124
        %v5583 = vunpack.c.h.b16 %v3124
        %v5584 = vunpack.c.l.b16 %v3125
        %v5585 = vunpack.c.h.b16 %v3125
        %v5586 = vunpack.c.l.b16 %v3126
        %v5587 = vunpack.c.h.b16 %v3126
        %v5588 = vunpack.c.l.b16 %v3127
        %v5589 = vunpack.c.h.b16 %v3127
        %v5590 = vunpack.c.l.b16 %v3128
        %v5591 = vunpack.c.h.b16 %v3128
        %v5592 = vunpack.c.l.b16 %v3129
        %v5593 = vunpack.c.h.b16 %v3129
        %v5594 = vunpack.c.l.b16 %v3130
        %v5595 = vunpack.c.h.b16 %v3130
        %v5596 = vunpack.c.l.b16 %v3131
        %v5597 = vunpack.c.h.b16 %v3131
        %v5598 = vunpack.c.l.b16 %v3132
        %v5599 = vunpack.c.h.b16 %v3132
        %v5600 = vunpack.c.l.b16 %v3133
        %v5601 = vunpack.c.h.b16 %v3133
        %v5602 = vunpack.c.l.b16 %v3134
        %v5603 = vunpack.c.h.b16 %v3134
        %v5604 = vunpack.c.l.b16 %v3135
        %v5605 = vunpack.c.h.b16 %v3135
        %v5606 = vunpack.c.l.b16 %v3136
        %v5607 = vunpack.c.h.b16 %v3136
        %v5608 = vunpack.c.l.b16 %v3137
        %v5609 = vunpack.c.h.b16 %v3137
        %v5610 = vunpack.c.l.b16 %v3138
        %v5611 = vunpack.c.h.b16 %v3138
        %v5612 = vunpack.c.l.b16 %v3139
        %v5613 = vunpack.c.h.b16 %v3139
        %v5614 = vunpack.c.l.b16 %v3140
        %v5615 = vunpack.c.h.b16 %v3140
        %v5616 = vunpack.c.l.b16 %v3141
        %v5617 = vunpack.c.h.b16 %v3141
        %v5618 = vunpack.c.l.b16 %v3142
        %v5619 = vunpack.c.h.b16 %v3142
        %v5620 = vunpack.c.l.b16 %v3143
        %v5621 = vunpack.c.h.b16 %v3143
        %v5622 = vunpack.c.l.b16 %v3144
        %v5623 = vunpack.c.h.b16 %v3144
        %v5624 = vunpack.c.l.b16 %v3145
        %v5625 = vunpack.c.h.b16 %v3145
        %v5626 = vunpack.c.l.b16 %v3146
        %v5627 = vunpack.c.h.b16 %v3146
        %v5628 = vunpack.c.l.b16 %v3147
        %v5629 = vunpack.c.h.b16 %v3147
        %v5630 = vunpack.c.l.b16 %v3148
        %v5631 = vunpack.c.h.b16 %v3148
        %v5632 = vunpack.c.l.b16 %v3149
        %v5633 = vunpack.c.h.b16 %v3149
        %v5634 = vunpack.c.l.b16 %v3150
        %v5635 = vunpack.c.h.b16 %v3150
        %v5636 = vunpack.c.l.b16 %v3151
        %v5637 = vunpack.c.h.b16 %v3151
        %v5638 = vunpack.c.l.b16 %v3152
        %v5639 = vunpack.c.h.b16 %v3152
        %v5640 = vunpack.c.l.b16 %v3153
        %v5641 = vunpack.c.h.b16 %v3153
        %v5642 = vunpack.c.l.b16 %v3154
        %v5643 = vunpack.c.h.b16 %v3154
        %v5644 = vunpack.c.l.b16 %v3155
        %v5645 = vunpack.c.h.b16 %v3155
        %v5646 = vunpack.c.l.b16 %v3156
        %v5647 = vunpack.c.h.b16 %v3156
        %v5648 = vunpack.c.l.b16 %v3157
        %v5649 = vunpack.c.h.b16 %v3157
        %v5650 = vunpack.c.l.b16 %v3158
        %v5651 = vunpack.c.h.b16 %v3158
        %v5652 = vunpack.c.l.b16 %v3159
        %v5653 = vunpack.c.h.b16 %v3159
        %v5654 = vunpack.c.l.b16 %v3160
        %v5655 = vunpack.c.h.b16 %v3160
        %v5656 = vunpack.c.l.b16 %v3161
        %v5657 = vunpack.c.h.b16 %v3161
        %v5658 = vunpack.c.l.b16 %v3162
        %v5659 = vunpack.c.h.b16 %v3162
        %v5660 = vunpack.c.l.b16 %v3163
        %v5661 = vunpack.c.h.b16 %v3163
        %v5662 = vunpack.c.l.b16 %v3164
        %v5663 = vunpack.c.h.b16 %v3164
        %v5664 = vunpack.c.l.b16 %v3165
        %v5665 = vunpack.c.h.b16 %v3165
        %v5666 = vunpack.c.l.b16 %v3166
        %v5667 = vunpack.c.h.b16 %v3166
        %v5668 = vunpack.c.l.b16 %v3167
        %v5669 = vunpack.c.h.b16 %v3167
        %v5670 = vunpack.c.l.b16 %v3168
        %v5671 = vunpack.c.h.b16 %v3168
        %v5672 = vunpack.c.l.b16 %v3169
        %v5673 = vunpack.c.h.b16 %v3169
        %v5674 = vunpack.c.l.b16 %v3170
        %v5675 = vunpack.c.h.b16 %v3170
        %v5676 = vunpack.c.l.b16 %v3171
        %v5677 = vunpack.c.h.b16 %v3171
        %v5678 = vunpack.c.l.b16 %v3172
        %v5679 = vunpack.c.h.b16 %v3172
        %v5680 = vunpack.c.l.b16 %v3173
        %v5681 = vunpack.c.h.b16 %v3173
        %v5682 = vunpack.c.l.b16 %v3174
        %v5683 = vunpack.c.h.b16 %v3174
        %v5684 = vunpack.c.l.b16 %v3175
        %v5685 = vunpack.c.h.b16 %v3175
        %v5686 = vunpack.c.l.b16 %v3176
        %v5687 = vunpack.c.h.b16 %v3176
        %v5688 = vunpack.c.l.b16 %v3177
        %v5689 = vunpack.c.h.b16 %v3177
        %v5690 = vunpack.c.l.b16 %v3178
        %v5691 = vunpack.c.h.b16 %v3178
        %v5692 = vunpack.c.l.b16 %v3179
        %v5693 = vunpack.c.h.b16 %v3179
        %v5694 = vunpack.c.l.b16 %v3180
        %v5695 = vunpack.c.h.b16 %v3180
        %v5696 = vunpack.c.l.b16 %v3181
        %v5697 = vunpack.c.h.b16 %v3181
        %v5698 = vunpack.c.l.b16 %v3182
        %v5699 = vunpack.c.h.b16 %v3182
        %v5700 = vunpack.c.l.b16 %v3183
        %v5701 = vunpack.c.h.b16 %v3183
        %v5702 = vunpack.c.l.b16 %v3184
        %v5703 = vunpack.c.h.b16 %v3184
        %v5704 = vunpack.c.l.b16 %v3185
        %v5705 = vunpack.c.h.b16 %v3185
        %v5706 = vunpack.c.l.b16 %v3186
        %v5707 = vunpack.c.h.b16 %v3186
        %v5708 = vunpack.c.l.b16 %v3187
        %v5709 = vunpack.c.h.b16 %v3187
        %v5710 = vunpack.c.l.b16 %v3188
        %v5711 = vunpack.c.h.b16 %v3188
        %v5712 = vunpack.c.l.b16 %v3189
        %v5713 = vunpack.c.h.b16 %v3189
        %v5714 = vunpack.c.l.b16 %v3190
        %v5715 = vunpack.c.h.b16 %v3190
        %v5716 = vunpack.c.l.b16 %v3191
        %v5717 = vunpack.c.h.b16 %v3191
        %v5718 = vunpack.c.l.b16 %v3192
        %v5719 = vunpack.c.h.b16 %v3192
        %v5720 = vunpack.c.l.b16 %v3193
        %v5721 = vunpack.c.h.b16 %v3193
        %v5722 = vunpack.c.l.b16 %v3194
        %v5723 = vunpack.c.h.b16 %v3194
        %v5724 = vunpack.c.l.b16 %v3195
        %v5725 = vunpack.c.h.b16 %v3195
        %v5726 = vunpack.c.l.b16 %v3196
        %v5727 = vunpack.c.h.b16 %v3196
        %v5728 = vunpack.c.l.b16 %v3197
        %v5729 = vunpack.c.h.b16 %v3197
        %v5730 = vunpack.c.l.b16 %v3198
        %v5731 = vunpack.c.h.b16 %v3198
        %v5732 = vunpack.c.l.b16 %v3199
        %v5733 = vunpack.c.h.b16 %v3199
        %v5734 = vunpack.c.l.b16 %v3200
        %v5735 = vunpack.c.h.b16 %v3200
        %v5736 = vunpack.c.l.b16 %v3201
        %v5737 = vunpack.c.h.b16 %v3201
        %v5738 = vunpack.c.l.b16 %v3202
        %v5739 = vunpack.c.h.b16 %v3202
        %v5740 = vunpack.c.l.b16 %v3203
        %v5741 = vunpack.c.h.b16 %v3203
        %v5742 = vunpack.c.l.b16 %v3204
        %v5743 = vunpack.c.h.b16 %v3204
        %v5744 = vunpack.c.l.b16 %v3205
        %v5745 = vunpack.c.h.b16 %v3205
        %v5746 = vunpack.c.l.b16 %v3206
        %v5747 = vunpack.c.h.b16 %v3206
        %v5748 = vunpack.c.l.b16 %v3207
        %v5749 = vunpack.c.h.b16 %v3207
        %v5750 = vunpack.c.l.b16 %v3208
        %v5751 = vunpack.c.h.b16 %v3208
        %v5752 = vunpack.c.l.b16 %v3209
        %v5753 = vunpack.c.h.b16 %v3209
        %v5754 = vunpack.c.l.b16 %v3210
        %v5755 = vunpack.c.h.b16 %v3210
        %v5756 = vunpack.c.l.b16 %v3211
        %v5757 = vunpack.c.h.b16 %v3211
        %v5758 = vunpack.c.l.b16 %v3212
        %v5759 = vunpack.c.h.b16 %v3212
        %v5760 = vunpack.c.l.b16 %v3213
        %v5761 = vunpack.c.h.b16 %v3213
        %v5762 = vunpack.c.l.b16 %v3214
        %v5763 = vunpack.c.h.b16 %v3214
        %v5764 = vunpack.c.l.b16 %v3215
        %v5765 = vunpack.c.h.b16 %v3215
        %v5766 = vunpack.c.l.b16 %v3216
        %v5767 = vunpack.c.h.b16 %v3216
        %v5768 = vunpack.c.l.b16 %v3217
        %v5769 = vunpack.c.h.b16 %v3217
        %v5770 = vunpack.c.l.b16 %v3218
        %v5771 = vunpack.c.h.b16 %v3218
        %v5772 = vunpack.c.l.b16 %v3219
        %v5773 = vunpack.c.h.b16 %v3219
        %v5774 = vunpack.c.l.b16 %v3220
        %v5775 = vunpack.c.h.b16 %v3220
        %v5776 = vunpack.c.l.b16 %v3221
        %v5777 = vunpack.c.h.b16 %v3221
        %v5778 = vunpack.c.l.b16 %v3222
        %v5779 = vunpack.c.h.b16 %v3222
        %v5780 = vunpack.c.l.b16 %v3223
        %v5781 = vunpack.c.h.b16 %v3223
        %v5782 = vunpack.c.l.b16 %v3224
        %v5783 = vunpack.c.h.b16 %v3224
        %v5784 = vunpack.c.l.b16 %v3225
        %v5785 = vunpack.c.h.b16 %v3225
        %v5786 = vunpack.c.l.b16 %v3226
        %v5787 = vunpack.c.h.b16 %v3226
        %v5788 = vunpack.c.l.b16 %v3227
        %v5789 = vunpack.c.h.b16 %v3227
        %v5790 = vunpack.c.l.b16 %v3228
        %v5791 = vunpack.c.h.b16 %v3228
        %v5792 = vunpack.c.l.b16 %v3229
        %v5793 = vunpack.c.h.b16 %v3229
        %v5794 = vunpack.c.l.b16 %v3230
        %v5795 = vunpack.c.h.b16 %v3230
        %v5796 = vunpack.c.l.b16 %v3231
        %v5797 = vunpack.c.h.b16 %v3231
        %v5798 = vunpack.c.l.b16 %v3232
        %v5799 = vunpack.c.h.b16 %v3232
        %v5800 = vunpack.c.l.b16 %v3233
        %v5801 = vunpack.c.h.b16 %v3233
        %v5802 = vunpack.c.l.b16 %v3234
        %v5803 = vunpack.c.h.b16 %v3234
        %v5804 = vunpack.c.l.b16 %v3235
        %v5805 = vunpack.c.h.b16 %v3235
        %v5806 = vunpack.c.l.b16 %v3236
        %v5807 = vunpack.c.h.b16 %v3236
        %v5808 = vunpack.c.l.b16 %v3237
        %v5809 = vunpack.c.h.b16 %v3237
        %v5810 = vunpack.c.l.b16 %v3238
        %v5811 = vunpack.c.h.b16 %v3238
        %v5812 = vunpack.c.l.b16 %v3239
        %v5813 = vunpack.c.h.b16 %v3239
        %v5814 = vunpack.c.l.b16 %v3240
        %v5815 = vunpack.c.h.b16 %v3240
        %v5816 = vunpack.c.l.b16 %v3241
        %v5817 = vunpack.c.h.b16 %v3241
        %v5818 = vunpack.c.l.b16 %v3242
        %v5819 = vunpack.c.h.b16 %v3242
        %v5820 = vunpack.c.l.b16 %v3243
        %v5821 = vunpack.c.h.b16 %v3243
        %v5822 = vunpack.c.l.b16 %v3244
        %v5823 = vunpack.c.h.b16 %v3244
        %v5824 = vunpack.c.l.b16 %v3245
        %v5825 = vunpack.c.h.b16 %v3245
        %v5826 = vunpack.c.l.b16 %v3246
        %v5827 = vunpack.c.h.b16 %v3246
        %v5828 = vunpack.c.l.b16 %v3247
        %v5829 = vunpack.c.h.b16 %v3247
        %v5830 = vunpack.c.l.b16 %v3248
        %v5831 = vunpack.c.h.b16 %v3248
        %v5832 = vunpack.c.l.b16 %v3249
        %v5833 = vunpack.c.h.b16 %v3249
        %v5834 = vunpack.c.l.b16 %v3250
        %v5835 = vunpack.c.h.b16 %v3250
        %v5836 = vunpack.c.l.b16 %v3251
        %v5837 = vunpack.c.h.b16 %v3251
        %v5838 = vunpack.c.l.b16 %v3252
        %v5839 = vunpack.c.h.b16 %v3252
        %v5840 = vunpack.c.l.b16 %v3253
        %v5841 = vunpack.c.h.b16 %v3253
        %v5842 = vunpack.c.l.b16 %v3254
        %v5843 = vunpack.c.h.b16 %v3254
        %v5844 = vunpack.c.l.b16 %v3255
        %v5845 = vunpack.c.h.b16 %v3255
        %v5846 = vunpack.c.l.b16 %v3256
        %v5847 = vunpack.c.h.b16 %v3256
        %v5848 = vunpack.c.l.b16 %v3257
        %v5849 = vunpack.c.h.b16 %v3257
        %v5850 = vunpack.c.l.b16 %v3258
        %v5851 = vunpack.c.h.b16 %v3258
        %v5852 = vunpack.c.l.b16 %v3259
        %v5853 = vunpack.c.h.b16 %v3259
        %v5854 = vunpack.c.l.b16 %v3260
        %v5855 = vunpack.c.h.b16 %v3260
        %v5856 = vunpack.c.l.b16 %v3261
        %v5857 = vunpack.c.h.b16 %v3261
        %v5858 = vunpack.c.l.b16 %v3262
        %v5859 = vunpack.c.h.b16 %v3262
        %v5860 = vunpack.c.l.b16 %v3263
        %v5861 = vunpack.c.h.b16 %v3263
        %v5862 = vunpack.c.l.b16 %v3264
        %v5863 = vunpack.c.h.b16 %v3264
        %v5864 = vunpack.c.l.b16 %v3265
        %v5865 = vunpack.c.h.b16 %v3265
        %v5866 = vunpack.c.l.b16 %v3266
        %v5867 = vunpack.c.h.b16 %v3266
        %v5868 = vunpack.c.l.b16 %v3267
        %v5869 = vunpack.c.h.b16 %v3267
        %v5870 = vunpack.c.l.b16 %v3268
        %v5871 = vunpack.c.h.b16 %v3268
        %v5872 = vunpack.c.l.b16 %v3269
        %v5873 = vunpack.c.h.b16 %v3269
        %v5874 = vunpack.c.l.b16 %v3270
        %v5875 = vunpack.c.h.b16 %v3270
        %v5876 = vunpack.c.l.b16 %v3271
        %v5877 = vunpack.c.h.b16 %v3271
        %v5878 = vunpack.c.l.b16 %v3272
        %v5879 = vunpack.c.h.b16 %v3272
        %v5880 = vunpack.c.l.b16 %v3273
        %v5881 = vunpack.c.h.b16 %v3273
        %v5882 = vunpack.c.l.b16 %v3274
        %v5883 = vunpack.c.h.b16 %v3274
        %v5884 = vunpack.c.l.b16 %v3275
        %v5885 = vunpack.c.h.b16 %v3275
        %v5886 = vunpack.c.l.b16 %v3276
        %v5887 = vunpack.c.h.b16 %v3276
        %v5888 = vunpack.c.l.b16 %v3277
        %v5889 = vunpack.c.h.b16 %v3277
        %v5890 = vunpack.c.l.b16 %v3278
        %v5891 = vunpack.c.h.b16 %v3278
        %v5892 = vunpack.c.l.b16 %v3279
        %v5893 = vunpack.c.h.b16 %v3279
        %v5894 = vunpack.c.l.b16 %v3280
        %v5895 = vunpack.c.h.b16 %v3280
        %v5896 = vunpack.c.l.b16 %v3281
        %v5897 = vunpack.c.h.b16 %v3281
        %v5898 = vunpack.c.l.b16 %v3282
        %v5899 = vunpack.c.h.b16 %v3282
        %v5900 = vunpack.c.l.b16 %v3283
        %v5901 = vunpack.c.h.b16 %v3283
        %v5902 = vunpack.c.l.b16 %v3284
        %v5903 = vunpack.c.h.b16 %v3284
        %v5904 = vunpack.c.l.b16 %v3285
        %v5905 = vunpack.c.h.b16 %v3285
        %v5906 = vunpack.c.l.b16 %v3286
        %v5907 = vunpack.c.h.b16 %v3286
        %v5908 = vunpack.c.l.b16 %v3287
        %v5909 = vunpack.c.h.b16 %v3287
        %v5910 = vunpack.c.l.b16 %v3288
        %v5911 = vunpack.c.h.b16 %v3288
        %v5912 = vunpack.c.l.b16 %v3289
        %v5913 = vunpack.c.h.b16 %v3289
        %v5914 = vunpack.c.l.b16 %v3290
        %v5915 = vunpack.c.h.b16 %v3290
        %v5916 = vunpack.c.l.b16 %v3291
        %v5917 = vunpack.c.h.b16 %v3291
        %v5918 = vunpack.c.l.b16 %v3292
        %v5919 = vunpack.c.h.b16 %v3292
        %v5920 = vunpack.c.l.b16 %v3293
        %v5921 = vunpack.c.h.b16 %v3293
        %v5922 = vunpack.c.l.b16 %v3294
        %v5923 = vunpack.c.h.b16 %v3294
        %v5924 = vunpack.c.l.b16 %v3295
        %v5925 = vunpack.c.h.b16 %v3295
        %v5926 = vunpack.c.l.b16 %v3296
        %v5927 = vunpack.c.h.b16 %v3296
        %v5928 = vunpack.c.l.b16 %v3297
        %v5929 = vunpack.c.h.b16 %v3297
        %v5930 = vunpack.c.l.b16 %v3298
        %v5931 = vunpack.c.h.b16 %v3298
        %v5932 = vunpack.c.l.b16 %v3299
        %v5933 = vunpack.c.h.b16 %v3299
        %v5934 = vunpack.c.l.b16 %v3300
        %v5935 = vunpack.c.h.b16 %v3300
        %v5936 = vunpack.c.l.b16 %v3301
        %v5937 = vunpack.c.h.b16 %v3301
        %v5938 = vunpack.c.l.b16 %v3302
        %v5939 = vunpack.c.h.b16 %v3302
        %v5940 = vunpack.c.l.b16 %v3303
        %v5941 = vunpack.c.h.b16 %v3303
        %v5942 = vunpack.c.l.b16 %v3304
        %v5943 = vunpack.c.h.b16 %v3304
        %v5944 = vunpack.c.l.b16 %v3305
        %v5945 = vunpack.c.h.b16 %v3305
        %v5946 = vunpack.c.l.b16 %v3306
        %v5947 = vunpack.c.h.b16 %v3306
        %v5948 = vunpack.c.l.b16 %v3307
        %v5949 = vunpack.c.h.b16 %v3307
        %v5950 = vunpack.c.l.b16 %v3308
        %v5951 = vunpack.c.h.b16 %v3308
        %v5952 = vunpack.c.l.b16 %v3309
        %v5953 = vunpack.c.h.b16 %v3309
        %v5954 = vunpack.c.l.b16 %v3310
        %v5955 = vunpack.c.h.b16 %v3310
        %v5956 = vunpack.c.l.b16 %v3311
        %v5957 = vunpack.c.h.b16 %v3311
        %v5958 = vunpack.c.l.b16 %v3312
        %v5959 = vunpack.c.h.b16 %v3312
        %v5960 = vunpack.c.l.b16 %v3313
        %v5961 = vunpack.c.h.b16 %v3313
        %v5962 = vunpack.c.l.b16 %v3314
        %v5963 = vunpack.c.h.b16 %v3314
        %v5964 = vunpack.c.l.b16 %v3315
        %v5965 = vunpack.c.h.b16 %v3315
        %v5966 = vunpack.c.l.b16 %v3316
        %v5967 = vunpack.c.h.b16 %v3316
        %v5968 = vunpack.c.l.b16 %v3317
        %v5969 = vunpack.c.h.b16 %v3317
        %v5970 = vunpack.c.l.b16 %v3318
        %v5971 = vunpack.c.h.b16 %v3318
        %v5972 = vunpack.c.l.b16 %v3319
        %v5973 = vunpack.c.h.b16 %v3319
        %v5974 = vunpack.c.l.b16 %v3320
        %v5975 = vunpack.c.h.b16 %v3320
        %v5976 = vunpack.c.l.b16 %v3321
        %v5977 = vunpack.c.h.b16 %v3321
        %v5978 = vunpack.c.l.b16 %v3322
        %v5979 = vunpack.c.h.b16 %v3322
        %v5980 = vunpack.c.l.b16 %v3323
        %v5981 = vunpack.c.h.b16 %v3323
        %v5982 = vunpack.c.l.b16 %v3324
        %v5983 = vunpack.c.h.b16 %v3324
        %v5984 = vunpack.c.l.b16 %v3325
        %v5985 = vunpack.c.h.b16 %v3325
        %v5986 = vunpack.c.l.b16 %v3326
        %v5987 = vunpack.c.h.b16 %v3326
        %v5988 = vunpack.c.l.b16 %v3327
        %v5989 = vunpack.c.h.b16 %v3327
        %v5990 = vunpack.c.l.b16 %v3328
        %v5991 = vunpack.c.h.b16 %v3328
        %v5992 = vunpack.c.l.b16 %v3329
        %v5993 = vunpack.c.h.b16 %v3329
        %v5994 = vunpack.c.l.b16 %v3330
        %v5995 = vunpack.c.h.b16 %v3330
        %v5996 = vunpack.c.l.b16 %v3331
        %v5997 = vunpack.c.h.b16 %v3331
        %v5998 = vunpack.c.l.b16 %v3332
        %v5999 = vunpack.c.h.b16 %v3332
        %v6000 = vunpack.c.l.b16 %v3333
        %v6001 = vunpack.c.h.b16 %v3333
        %v6002 = vunpack.c.l.b16 %v3334
        %v6003 = vunpack.c.h.b16 %v3334
        %v6004 = vunpack.c.l.b16 %v3335
        %v6005 = vunpack.c.h.b16 %v3335
        %v6006 = vunpack.c.l.b16 %v3336
        %v6007 = vunpack.c.h.b16 %v3336
        %v6008 = vunpack.c.l.b16 %v3337
        %v6009 = vunpack.c.h.b16 %v3337
        %v6010 = vunpack.c.l.b16 %v3338
        %v6011 = vunpack.c.h.b16 %v3338
        %v6012 = vunpack.c.l.b16 %v3339
        %v6013 = vunpack.c.h.b16 %v3339
        %v6014 = vunpack.c.l.b16 %v3340
        %v6015 = vunpack.c.h.b16 %v3340
        %v6016 = vunpack.c.l.b16 %v3341
        %v6017 = vunpack.c.h.b16 %v3341
        %v6018 = vunpack.c.l.b16 %v3342
        %v6019 = vunpack.c.h.b16 %v3342
        %v6020 = vunpack.c.l.b16 %v3343
        %v6021 = vunpack.c.h.b16 %v3343
        %v6022 = vunpack.c.l.b16 %v3344
        %v6023 = vunpack.c.h.b16 %v3344
        %v6024 = vunpack.c.l.b16 %v3345
        %v6025 = vunpack.c.h.b16 %v3345
        %v6026 = vunpack.c.l.b16 %v3346
        %v6027 = vunpack.c.h.b16 %v3346
        %v6028 = vunpack.c.l.b16 %v3347
        %v6029 = vunpack.c.h.b16 %v3347
        %v6030 = vunpack.c.l.b16 %v3348
        %v6031 = vunpack.c.h.b16 %v3348
        %v6032 = vunpack.c.l.b16 %v3349
        %v6033 = vunpack.c.h.b16 %v3349
        %v6034 = vunpack.c.l.b16 %v3350
        %v6035 = vunpack.c.h.b16 %v3350
        %v6036 = vunpack.c.l.b16 %v3351
        %v6037 = vunpack.c.h.b16 %v3351
        %v6038 = vunpack.c.l.b16 %v3352
        %v6039 = vunpack.c.h.b16 %v3352
        %v6040 = vunpack.c.l.b16 %v3353
        %v6041 = vunpack.c.h.b16 %v3353
        %v6042 = vunpack.c.l.b16 %v3354
        %v6043 = vunpack.c.h.b16 %v3354
        %v6044 = vunpack.c.l.b16 %v3355
        %v6045 = vunpack.c.h.b16 %v3355
        %v6046 = vunpack.c.l.b16 %v3356
        %v6047 = vunpack.c.h.b16 %v3356
        %v6048 = vunpack.c.l.b16 %v3357
        %v6049 = vunpack.c.h.b16 %v3357
        %v6050 = vunpack.c.l.b16 %v3358
        %v6051 = vunpack.c.h.b16 %v3358
        %v6052 = vunpack.c.l.b16 %v3359
        %v6053 = vunpack.c.h.b16 %v3359
        %v6054 = vunpack.c.l.b16 %v3360
        %v6055 = vunpack.c.h.b16 %v3360
        %v6056 = vunpack.c.l.b16 %v3361
        %v6057 = vunpack.c.h.b16 %v3361
        %v6058 = vunpack.c.l.b16 %v3362
        %v6059 = vunpack.c.h.b16 %v3362
        %v6060 = vunpack.c.l.b16 %v3363
        %v6061 = vunpack.c.h.b16 %v3363
        %v6062 = vunpack.c.l.b16 %v3364
        %v6063 = vunpack.c.h.b16 %v3364
        %v6064 = vunpack.c.l.b16 %v3365
        %v6065 = vunpack.c.h.b16 %v3365
        %v6066 = vunpack.c.l.b16 %v3366
        %v6067 = vunpack.c.h.b16 %v3366
        %v6068 = vunpack.c.l.b16 %v3367
        %v6069 = vunpack.c.h.b16 %v3367
        %v6070 = vunpack.c.l.b16 %v3368
        %v6071 = vunpack.c.h.b16 %v3368
        %v6072 = vunpack.c.l.b16 %v3369
        %v6073 = vunpack.c.h.b16 %v3369
        %v6074 = vunpack.c.l.b16 %v3370
        %v6075 = vunpack.c.h.b16 %v3370
        %v6076 = vunpack.c.l.b16 %v3371
        %v6077 = vunpack.c.h.b16 %v3371
        %v6078 = vunpack.c.l.b16 %v3372
        %v6079 = vunpack.c.h.b16 %v3372
        %v6080 = vunpack.c.l.b16 %v3373
        %v6081 = vunpack.c.h.b16 %v3373
        %v6082 = vunpack.c.l.b16 %v3374
        %v6083 = vunpack.c.h.b16 %v3374
        %v6084 = vunpack.c.l.b16 %v3375
        %v6085 = vunpack.c.h.b16 %v3375
        %v6086 = vunpack.c.l.b16 %v3376
        %v6087 = vunpack.c.h.b16 %v3376
        %v6088 = vunpack.c.l.b16 %v3377
        %v6089 = vunpack.c.h.b16 %v3377
        %v6090 = vunpack.c.l.b16 %v3378
        %v6091 = vunpack.c.h.b16 %v3378
        %v6092 = vunpack.c.l.b16 %v3379
        %v6093 = vunpack.c.h.b16 %v3379
        %v6094 = vunpack.c.l.b16 %v3380
        %v6095 = vunpack.c.h.b16 %v3380
        %v6096 = vunpack.c.l.b16 %v3381
        %v6097 = vunpack.c.h.b16 %v3381
        %v6098 = vunpack.c.l.b16 %v3382
        %v6099 = vunpack.c.h.b16 %v3382
        %v6100 = vunpack.c.l.b16 %v3383
        %v6101 = vunpack.c.h.b16 %v3383
        %v6102 = vunpack.c.l.b16 %v3384
        %v6103 = vunpack.c.h.b16 %v3384
        %v6104 = vunpack.c.l.b16 %v3385
        %v6105 = vunpack.c.h.b16 %v3385
        %v6106 = vunpack.c.l.b16 %v3386
        %v6107 = vunpack.c.h.b16 %v3386
        %v6108 = vunpack.c.l.b16 %v3387
        %v6109 = vunpack.c.h.b16 %v3387
        %v6110 = vunpack.c.l.b16 %v3388
        %v6111 = vunpack.c.h.b16 %v3388
        %v6112 = vunpack.c.l.b16 %v3389
        %v6113 = vunpack.c.h.b16 %v3389
        %v6114 = vunpack.c.l.b16 %v3390
        %v6115 = vunpack.c.h.b16 %v3390
        %v6116 = vunpack.c.l.b16 %v3391
        %v6117 = vunpack.c.h.b16 %v3391
        %v6118 = vunpack.c.l.b16 %v3392
        %v6119 = vunpack.c.h.b16 %v3392
        %v6120 = vunpack.c.l.b16 %v3393
        %v6121 = vunpack.c.h.b16 %v3393
        %v6122 = vunpack.c.l.b16 %v3394
        %v6123 = vunpack.c.h.b16 %v3394
        %v6124 = vunpack.c.l.b16 %v3395
        %v6125 = vunpack.c.h.b16 %v3395
        %v6126 = vunpack.c.l.b16 %v3396
        %v6127 = vunpack.c.h.b16 %v3396
        %v6128 = vunpack.c.l.b16 %v3397
        %v6129 = vunpack.c.h.b16 %v3397
        %v6130 = vunpack.c.l.b16 %v3398
        %v6131 = vunpack.c.h.b16 %v3398
        %v6132 = vunpack.c.l.b16 %v3399
        %v6133 = vunpack.c.h.b16 %v3399
        %v6134 = vunpack.c.l.b16 %v3400
        %v6135 = vunpack.c.h.b16 %v3400
        %v6136 = vunpack.c.l.b16 %v3401
        %v6137 = vunpack.c.h.b16 %v3401
        %v6138 = vunpack.c.l.b16 %v3402
        %v6139 = vunpack.c.h.b16 %v3402
        %v6140 = vunpack.c.l.b16 %v3403
        %v6141 = vunpack.c.h.b16 %v3403
        %v6142 = vunpack.c.l.b16 %v3404
        %v6143 = vunpack.c.h.b16 %v3404
        %v6144 = vunpack.c.l.b16 %v3405
        %v6145 = vunpack.c.h.b16 %v3405
        %v6146 = vunpack.c.l.b16 %v3406
        %v6147 = vunpack.c.h.b16 %v3406
        %v6148 = vunpack.c.l.b16 %v3407
        %v6149 = vunpack.c.h.b16 %v3407
        %v6150 = vunpack.c.l.b16 %v3408
        %v6151 = vunpack.c.h.b16 %v3408
        %v6152 = vunpack.c.l.b16 %v3409
        %v6153 = vunpack.c.h.b16 %v3409
        %v6154 = vunpack.c.l.b16 %v3410
        %v6155 = vunpack.c.h.b16 %v3410
        %v6156 = vunpack.c.l.b16 %v3411
        %v6157 = vunpack.c.h.b16 %v3411
        %v6158 = vunpack.c.l.b16 %v3412
        %v6159 = vunpack.c.h.b16 %v3412
        %v6160 = vunpack.c.l.b16 %v3413
        %v6161 = vunpack.c.h.b16 %v3413
        %v6162 = vunpack.c.l.b16 %v3414
        %v6163 = vunpack.c.h.b16 %v3414
        %v6164 = vunpack.c.l.b16 %v3415
        %v6165 = vunpack.c.h.b16 %v3415
        %v6166 = vunpack.c.l.b16 %v3416
        %v6167 = vunpack.c.h.b16 %v3416
        %v6168 = vunpack.c.l.b16 %v3417
        %v6169 = vunpack.c.h.b16 %v3417
        %v6170 = vunpack.c.l.b16 %v3418
        %v6171 = vunpack.c.h.b16 %v3418
        %v6172 = vunpack.c.l.b16 %v3419
        %v6173 = vunpack.c.h.b16 %v3419
        %v6174 = vunpack.c.l.b16 %v3420
        %v6175 = vunpack.c.h.b16 %v3420
        %v6176 = vunpack.c.l.b16 %v3421
        %v6177 = vunpack.c.h.b16 %v3421
        %v6178 = vunpack.c.l.b16 %v3422
        %v6179 = vunpack.c.h.b16 %v3422
        %v6180 = vunpack.c.l.b16 %v3423
        %v6181 = vunpack.c.h.b16 %v3423
        %v6182 = vunpack.c.l.b16 %v3424
        %v6183 = vunpack.c.h.b16 %v3424
        %v6184 = vunpack.c.l.b16 %v3425
        %v6185 = vunpack.c.h.b16 %v3425
        %v6186 = vunpack.c.l.b16 %v3426
        %v6187 = vunpack.c.h.b16 %v3426
        %v6188 = vunpack.c.l.b16 %v3427
        %v6189 = vunpack.c.h.b16 %v3427
        %v6190 = vunpack.c.l.b16 %v3428
        %v6191 = vunpack.c.h.b16 %v3428
        %v6192 = vunpack.c.l.b16 %v3429
        %v6193 = vunpack.c.h.b16 %v3429
        %v6194 = vunpack.c.l.b16 %v3430
        %v6195 = vunpack.c.h.b16 %v3430
        %v6196 = vunpack.c.l.b16 %v3431
        %v6197 = vunpack.c.h.b16 %v3431
        %v6198 = vunpack.c.l.b16 %v3432
        %v6199 = vunpack.c.h.b16 %v3432
        %v6200 = vunpack.c.l.b16 %v3433
        %v6201 = vunpack.c.h.b16 %v3433
        %v6202 = vunpack.c.l.b16 %v3434
        %v6203 = vunpack.c.h.b16 %v3434
        %v6204 = vunpack.c.l.b16 %v3435
        %v6205 = vunpack.c.h.b16 %v3435
        %v6206 = vunpack.c.l.b16 %v3436
        %v6207 = vunpack.c.h.b16 %v3436
        %v6208 = vunpack.c.l.b16 %v3437
        %v6209 = vunpack.c.h.b16 %v3437
        %v6210 = vunpack.c.l.b16 %v3438
        %v6211 = vunpack.c.h.b16 %v3438
        %v6212 = vunpack.c.l.b16 %v3439
        %v6213 = vunpack.c.h.b16 %v3439
        %v6214 = vunpack.c.l.b16 %v3440
        %v6215 = vunpack.c.h.b16 %v3440
        %v6216 = vunpack.c.l.b16 %v3441
        %v6217 = vunpack.c.h.b16 %v3441
        %v6218 = vunpack.c.l.b16 %v3442
        %v6219 = vunpack.c.h.b16 %v3442
        %v6220 = vunpack.c.l.b16 %v3443
        %v6221 = vunpack.c.h.b16 %v3443
        %v6222 = vunpack.c.l.b16 %v3444
        %v6223 = vunpack.c.h.b16 %v3444
        %v6224 = vunpack.c.l.b16 %v3445
        %v6225 = vunpack.c.h.b16 %v3445
        %v6226 = vunpack.c.l.b16 %v3446
        %v6227 = vunpack.c.h.b16 %v3446
        %v6228 = vunpack.c.l.b16 %v3447
        %v6229 = vunpack.c.h.b16 %v3447
        %v6230 = vunpack.c.l.b16 %v3448
        %v6231 = vunpack.c.h.b16 %v3448
        %v6232 = vunpack.c.l.b16 %v3449
        %v6233 = vunpack.c.h.b16 %v3449
        %v6234 = vunpack.c.l.b16 %v3450
        %v6235 = vunpack.c.h.b16 %v3450
        %v6236 = vunpack.c.l.b16 %v3451
        %v6237 = vunpack.c.h.b16 %v3451
        %v6238 = vunpack.c.l.b16 %v3452
        %v6239 = vunpack.c.h.b16 %v3452
        %v6240 = vunpack.c.l.b16 %v3453
        %v6241 = vunpack.c.h.b16 %v3453
        %v6242 = vunpack.c.l.b16 %v3454
        %v6243 = vunpack.c.h.b16 %v3454
        %v6244 = vunpack.c.l.b16 %v3455
        %v6245 = vunpack.c.h.b16 %v3455
        %v6246 = vunpack.c.l.b16 %v3456
        %v6247 = vunpack.c.h.b16 %v3456
        %v6248 = vunpack.c.l.b16 %v3457
        %v6249 = vunpack.c.h.b16 %v3457
        %v6250 = vunpack.c.l.b16 %v3458
        %v6251 = vunpack.c.h.b16 %v3458
        %v6252 = vunpack.c.l.b16 %v3459
        %v6253 = vunpack.c.h.b16 %v3459
        %v6254 = vunpack.c.l.b16 %v3460
        %v6255 = vunpack.c.h.b16 %v3460
        %v6256 = vunpack.c.l.b16 %v3461
        %v6257 = vunpack.c.h.b16 %v3461
        %v6258 = vunpack.c.l.b16 %v3462
        %v6259 = vunpack.c.h.b16 %v3462
        %v6260 = vunpack.c.l.b16 %v3463
        %v6261 = vunpack.c.h.b16 %v3463
        %v6262 = vunpack.c.l.b16 %v3464
        %v6263 = vunpack.c.h.b16 %v3464
        %v6264 = vunpack.c.l.b16 %v3465
        %v6265 = vunpack.c.h.b16 %v3465
        %v6266 = vunpack.c.l.b16 %v3466
        %v6267 = vunpack.c.h.b16 %v3466
        %v6268 = vunpack.c.l.b16 %v3467
        %v6269 = vunpack.c.h.b16 %v3467
        %v6270 = vunpack.c.l.b16 %v3468
        %v6271 = vunpack.c.h.b16 %v3468
        %v6272 = vunpack.c.l.b16 %v3469
        %v6273 = vunpack.c.h.b16 %v3469
        %v6274 = vunpack.c.l.b16 %v3470
        %v6275 = vunpack.c.h.b16 %v3470
        %v6276 = vunpack.c.l.b16 %v3471
        %v6277 = vunpack.c.h.b16 %v3471
        %v6278 = vunpack.c.l.b16 %v3472
        %v6279 = vunpack.c.h.b16 %v3472
        %v6280 = vunpack.c.l.b16 %v3473
        %v6281 = vunpack.c.h.b16 %v3473
        %v6282 = vunpack.c.l.b16 %v3474
        %v6283 = vunpack.c.h.b16 %v3474
        %v6284 = vunpack.c.l.b16 %v3475
        %v6285 = vunpack.c.h.b16 %v3475
        %v6286 = vunpack.c.l.b16 %v3476
        %v6287 = vunpack.c.h.b16 %v3476
        %v6288 = vunpack.c.l.b16 %v3477
        %v6289 = vunpack.c.h.b16 %v3477
        %v6290 = vunpack.c.l.b16 %v3478
        %v6291 = vunpack.c.h.b16 %v3478
        %v6292 = vunpack.c.l.b16 %v3479
        %v6293 = vunpack.c.h.b16 %v3479
        %v6294 = vunpack.c.l.b16 %v3480
        %v6295 = vunpack.c.h.b16 %v3480
        %v6296 = vunpack.c.l.b16 %v3481
        %v6297 = vunpack.c.h.b16 %v3481
        %v6298 = vunpack.c.l.b16 %v3482
        %v6299 = vunpack.c.h.b16 %v3482
        %v6300 = vunpack.c.l.b16 %v3483
        %v6301 = vunpack.c.h.b16 %v3483
        %v6302 = vunpack.c.l.b16 %v3484
        %v6303 = vunpack.c.h.b16 %v3484
        %v6304 = vunpack.c.l.b16 %v3485
        %v6305 = vunpack.c.h.b16 %v3485
        %v6306 = vunpack.c.l.b16 %v3486
        %v6307 = vunpack.c.h.b16 %v3486
        %v6308 = vunpack.c.l.b16 %v3487
        %v6309 = vunpack.c.h.b16 %v3487
        %v6310 = vunpack.c.l.b16 %v3488
        %v6311 = vunpack.c.h.b16 %v3488
        %v6312 = vunpack.c.l.b16 %v3489
        %v6313 = vunpack.c.h.b16 %v3489
        %v6314 = vunpack.c.l.b16 %v3490
        %v6315 = vunpack.c.h.b16 %v3490
        %v6316 = vunpack.c.l.b16 %v3491
        %v6317 = vunpack.c.h.b16 %v3491
        %v6318 = vunpack.c.l.b16 %v3492
        %v6319 = vunpack.c.h.b16 %v3492
        %v6320 = vunpack.c.l.b16 %v3493
        %v6321 = vunpack.c.h.b16 %v3493
        %v6322 = vunpack.c.l.b16 %v3494
        %v6323 = vunpack.c.h.b16 %v3494
        %v6324 = vunpack.c.l.b16 %v3495
        %v6325 = vunpack.c.h.b16 %v3495
        %v6326 = vunpack.c.l.b16 %v3496
        %v6327 = vunpack.c.h.b16 %v3496
        %v6328 = vunpack.c.l.b16 %v3497
        %v6329 = vunpack.c.h.b16 %v3497
        %v6330 = vunpack.c.l.b16 %v3498
        %v6331 = vunpack.c.h.b16 %v3498
        %v6332 = vunpack.c.l.b16 %v3499
        %v6333 = vunpack.c.h.b16 %v3499
        %v6334 = vunpack.c.l.b16 %v3500
        %v6335 = vunpack.c.h.b16 %v3500
        %v6336 = vunpack.c.l.b16 %v3501
        %v6337 = vunpack.c.h.b16 %v3501
        %v6338 = vunpack.c.l.b16 %v3502
        %v6339 = vunpack.c.h.b16 %v3502
        %v6340 = vunpack.c.l.b16 %v3503
        %v6341 = vunpack.c.h.b16 %v3503
        %v6342 = vunpack.c.l.b16 %v3504
        %v6343 = vunpack.c.h.b16 %v3504
        %v6344 = vunpack.c.l.b16 %v3505
        %v6345 = vunpack.c.h.b16 %v3505
        %v6346 = vunpack.c.l.b16 %v3506
        %v6347 = vunpack.c.h.b16 %v3506
        %v6348 = vunpack.c.l.b16 %v3507
        %v6349 = vunpack.c.h.b16 %v3507
        %v6350 = vunpack.c.l.b16 %v3508
        %v6351 = vunpack.c.h.b16 %v3508
        %v6352 = vunpack.c.l.b16 %v3509
        %v6353 = vunpack.c.h.b16 %v3509
        %v6354 = vunpack.c.l.b16 %v3510
        %v6355 = vunpack.c.h.b16 %v3510
        %v6356 = vunpack.c.l.b16 %v3511
        %v6357 = vunpack.c.h.b16 %v3511
        %v6358 = vunpack.c.l.b16 %v3512
        %v6359 = vunpack.c.h.b16 %v3512
        %v6360 = vunpack.c.l.b16 %v3513
        %v6361 = vunpack.c.h.b16 %v3513
        %v6362 = vunpack.c.l.b16 %v3514
        %v6363 = vunpack.c.h.b16 %v3514
        %v6364 = vunpack.c.l.b16 %v3515
        %v6365 = vunpack.c.h.b16 %v3515
        %v6366 = vunpack.c.l.b16 %v3516
        %v6367 = vunpack.c.h.b16 %v3516
        %v6368 = vunpack.c.l.b16 %v3517
        %v6369 = vunpack.c.h.b16 %v3517
        %v6370 = vunpack.c.l.b16 %v3518
        %v6371 = vunpack.c.h.b16 %v3518
        %v6372 = vunpack.c.l.b16 %v3519
        %v6373 = vunpack.c.h.b16 %v3519
        %v6374 = vunpack.c.l.b16 %v3520
        %v6375 = vunpack.c.h.b16 %v3520
        %v6376 = vunpack.c.l.b16 %v3521
        %v6377 = vunpack.c.h.b16 %v3521
        %v6378 = vunpack.c.l.b16 %v3522
        %v6379 = vunpack.c.h.b16 %v3522
        %v6380 = vunpack.c.l.b16 %v3523
        %v6381 = vunpack.c.h.b16 %v3523
        %v6382 = vunpack.c.l.b16 %v3524
        %v6383 = vunpack.c.h.b16 %v3524
        %v6384 = vunpack.c.l.b16 %v3525
        %v6385 = vunpack.c.h.b16 %v3525
        %v6386 = vunpack.c.l.b16 %v3526
        %v6387 = vunpack.c.h.b16 %v3526
        %v6388 = vunpack.c.l.b16 %v3527
        %v6389 = vunpack.c.h.b16 %v3527
        %v6390 = vunpack.c.l.b16 %v3528
        %v6391 = vunpack.c.h.b16 %v3528
        %v6392 = vunpack.c.l.b16 %v3529
        %v6393 = vunpack.c.h.b16 %v3529
        %v6394 = vunpack.c.l.b16 %v3530
        %v6395 = vunpack.c.h.b16 %v3530
        %v6396 = vunpack.c.l.b16 %v3531
        %v6397 = vunpack.c.h.b16 %v3531
        %v6398 = vunpack.c.l.b16 %v3532
        %v6399 = vunpack.c.h.b16 %v3532
        %v6400 = vunpack.c.l.b16 %v3533
        %v6401 = vunpack.c.h.b16 %v3533
        %v6402 = vunpack.c.l.b16 %v3534
        %v6403 = vunpack.c.h.b16 %v3534
        %v6404 = vunpack.c.l.b16 %v3535
        %v6405 = vunpack.c.h.b16 %v3535
        %v6406 = vunpack.c.l.b16 %v3536
        %v6407 = vunpack.c.h.b16 %v3536
        %v6408 = vunpack.c.l.b16 %v3537
        %v6409 = vunpack.c.h.b16 %v3537
        %v6410 = vunpack.c.l.b16 %v3538
        %v6411 = vunpack.c.h.b16 %v3538
        %v6412 = vunpack.c.l.b16 %v3539
        %v6413 = vunpack.c.h.b16 %v3539
        %v6414 = vunpack.c.l.b16 %v3540
        %v6415 = vunpack.c.h.b16 %v3540
        %v6416 = vunpack.c.l.b16 %v3541
        %v6417 = vunpack.c.h.b16 %v3541
        %v6418 = vunpack.c.l.b16 %v3542
        %v6419 = vunpack.c.h.b16 %v3542
        %v6420 = vunpack.c.l.b16 %v3543
        %v6421 = vunpack.c.h.b16 %v3543
        %v6422 = vunpack.c.l.b16 %v3544
        %v6423 = vunpack.c.h.b16 %v3544
        %v6424 = vunpack.c.l.b16 %v3545
        %v6425 = vunpack.c.h.b16 %v3545
        %v6426 = vunpack.c.l.b16 %v3546
        %v6427 = vunpack.c.h.b16 %v3546
        %v6428 = vunpack.c.l.b16 %v3547
        %v6429 = vunpack.c.h.b16 %v3547
        %v6430 = vunpack.c.l.b16 %v3548
        %v6431 = vunpack.c.h.b16 %v3548
        %v6432 = vunpack.c.l.b16 %v3549
        %v6433 = vunpack.c.h.b16 %v3549
        %v6434 = vunpack.c.l.b16 %v3550
        %v6435 = vunpack.c.h.b16 %v3550
        %v6436 = vunpack.c.l.b16 %v3551
        %v6437 = vunpack.c.h.b16 %v3551
        %v6438 = vunpack.c.l.b16 %v3552
        %v6439 = vunpack.c.h.b16 %v3552
        %v6440 = vunpack.c.l.b16 %v3553
        %v6441 = vunpack.c.h.b16 %v3553
        %v6442 = vunpack.c.l.b16 %v3554
        %v6443 = vunpack.c.h.b16 %v3554
        %v6444 = vunpack.c.l.b16 %v3555
        %v6445 = vunpack.c.h.b16 %v3555
        %v6446 = vunpack.c.l.b16 %v3556
        %v6447 = vunpack.c.h.b16 %v3556
        %v6448 = vunpack.c.l.b16 %v3557
        %v6449 = vunpack.c.h.b16 %v3557
        %v6450 = vunpack.c.l.b16 %v3558
        %v6451 = vunpack.c.h.b16 %v3558
        %v6452 = vunpack.c.l.b16 %v3559
        %v6453 = vunpack.c.h.b16 %v3559
        %v6454 = vunpack.c.l.b16 %v3560
        %v6455 = vunpack.c.h.b16 %v3560
        %v6456 = vunpack.c.l.b16 %v3561
        %v6457 = vunpack.c.h.b16 %v3561
        %v6458 = vunpack.c.l.b16 %v3562
        %v6459 = vunpack.c.h.b16 %v3562
        %v6460 = vunpack.c.l.b16 %v3563
        %v6461 = vunpack.c.h.b16 %v3563
        %v6462 = vunpack.c.l.b16 %v3564
        %v6463 = vunpack.c.h.b16 %v3564
        %v6464 = vunpack.c.l.b16 %v3565
        %v6465 = vunpack.c.h.b16 %v3565
        %v6466 = vunpack.c.l.b16 %v3566
        %v6467 = vunpack.c.h.b16 %v3566
        %v6468 = vunpack.c.l.b16 %v3567
        %v6469 = vunpack.c.h.b16 %v3567
        %v6470 = vunpack.c.l.b16 %v3568
        %v6471 = vunpack.c.h.b16 %v3568
        %v6472 = vunpack.c.l.b16 %v3569
        %v6473 = vunpack.c.h.b16 %v3569
        %v6474 = vunpack.c.l.b16 %v3570
        %v6475 = vunpack.c.h.b16 %v3570
        %v6476 = vunpack.c.l.b16 %v3571
        %v6477 = vunpack.c.h.b16 %v3571
        %v6478 = vunpack.c.l.b16 %v3572
        %v6479 = vunpack.c.h.b16 %v3572
        %v6480 = vunpack.c.l.b16 %v3573
        %v6481 = vunpack.c.h.b16 %v3573
        %v6482 = vunpack.c.l.b16 %v3574
        %v6483 = vunpack.c.h.b16 %v3574
        %v6484 = vunpack.c.l.b16 %v3575
        %v6485 = vunpack.c.h.b16 %v3575
        %v6486 = vunpack.c.l.b16 %v3576
        %v6487 = vunpack.c.h.b16 %v3576
        %v6488 = vunpack.c.l.b16 %v3577
        %v6489 = vunpack.c.h.b16 %v3577
        %v6490 = vunpack.c.l.b16 %v3578
        %v6491 = vunpack.c.h.b16 %v3578
        %v6492 = vunpack.c.l.b16 %v3579
        %v6493 = vunpack.c.h.b16 %v3579
        %v6494 = vunpack.c.l.b16 %v3580
        %v6495 = vunpack.c.h.b16 %v3580
        %v6496 = vunpack.c.l.b16 %v3581
        %v6497 = vunpack.c.h.b16 %v3581
        %v6498 = vunpack.c.l.b16 %v3582
        %v6499 = vunpack.c.h.b16 %v3582
        %v6500 = vunpack.c.l.b16 %v3583
        %v6501 = vunpack.c.h.b16 %v3583
        %v6502 = vunpack.c.l.b16 %v3584
        %v6503 = vunpack.c.h.b16 %v3584
        %v6504 = vunpack.c.l.b16 %v3585
        %v6505 = vunpack.c.h.b16 %v3585
        %v6506 = vunpack.c.l.b16 %v3586
        %v6507 = vunpack.c.h.b16 %v3586
        %v6508 = vunpack.c.l.b16 %v3587
        %v6509 = vunpack.c.h.b16 %v3587
        %v6510 = vunpack.c.l.b16 %v3588
        %v6511 = vunpack.c.h.b16 %v3588
        %v6512 = vunpack.c.l.b16 %v3589
        %v6513 = vunpack.c.h.b16 %v3589
        %v6514 = vunpack.c.l.b16 %v3590
        %v6515 = vunpack.c.h.b16 %v3590
        %v6516 = vunpack.c.l.b16 %v3591
        %v6517 = vunpack.c.h.b16 %v3591
        %v6518 = vunpack.c.l.b16 %v3592
        %v6519 = vunpack.c.h.b16 %v3592
        %v6520 = vunpack.c.l.b16 %v3593
        %v6521 = vunpack.c.h.b16 %v3593
        %v6522 = vunpack.c.l.b16 %v3594
        %v6523 = vunpack.c.h.b16 %v3594
        %v6524 = vunpack.c.l.b16 %v3595
        %v6525 = vunpack.c.h.b16 %v3595
        %v6526 = vunpack.c.l.b16 %v3596
        %v6527 = vunpack.c.h.b16 %v3596
        %v6528 = vunpack.c.l.b16 %v3597
        %v6529 = vunpack.c.h.b16 %v3597
        %v6530 = vunpack.c.l.b16 %v3598
        %v6531 = vunpack.c.h.b16 %v3598
        %v6532 = vunpack.c.l.b16 %v3599
        %v6533 = vunpack.c.h.b16 %v3599
        %v6534 = vunpack.c.l.b16 %v3600
        %v6535 = vunpack.c.h.b16 %v3600
        %v6536 = vunpack.c.l.b16 %v3601
        %v6537 = vunpack.c.h.b16 %v3601
        %v6538 = vunpack.c.l.b16 %v3602
        %v6539 = vunpack.c.h.b16 %v3602
        %v6540 = vunpack.c.l.b16 %v3603
        %v6541 = vunpack.c.h.b16 %v3603
        %v6542 = vunpack.c.l.b16 %v3604
        %v6543 = vunpack.c.h.b16 %v3604
        %v6544 = vunpack.c.l.b16 %v3605
        %v6545 = vunpack.c.h.b16 %v3605
        %v6546 = vunpack.c.l.b16 %v3606
        %v6547 = vunpack.c.h.b16 %v3606
        %v6548 = vunpack.c.l.b16 %v3607
        %v6549 = vunpack.c.h.b16 %v3607
        %v6550 = vunpack.c.l.b16 %v3608
        %v6551 = vunpack.c.h.b16 %v3608
        %v6552 = vunpack.c.l.b16 %v3609
        %v6553 = vunpack.c.h.b16 %v3609
        %v6554 = vunpack.c.l.b16 %v3610
        %v6555 = vunpack.c.h.b16 %v3610
        %v6556 = vunpack.c.l.b16 %v3611
        %v6557 = vunpack.c.h.b16 %v3611
        %v6558 = vunpack.c.l.b16 %v3612
        %v6559 = vunpack.c.h.b16 %v3612
        %v6560 = vunpack.c.l.b16 %v3613
        %v6561 = vunpack.c.h.b16 %v3613
        %v6562 = vunpack.c.l.b16 %v3614
        %v6563 = vunpack.c.h.b16 %v3614
        %v6564 = vunpack.c.l.b16 %v3615
        %v6565 = vunpack.c.h.b16 %v3615
        %v6566 = vunpack.c.l.b16 %v3616
        %v6567 = vunpack.c.h.b16 %v3616
        %v6568 = vunpack.c.l.b16 %v3617
        %v6569 = vunpack.c.h.b16 %v3617
        %v6570 = vunpack.c.l.b16 %v3618
        %v6571 = vunpack.c.h.b16 %v3618
        %v6572 = vunpack.c.l.b16 %v3619
        %v6573 = vunpack.c.h.b16 %v3619
        %v6574 = vunpack.c.l.b16 %v3620
        %v6575 = vunpack.c.h.b16 %v3620
        %v6576 = vunpack.c.l.b16 %v3621
        %v6577 = vunpack.c.h.b16 %v3621
        %v6578 = vunpack.c.l.b16 %v3622
        %v6579 = vunpack.c.h.b16 %v3622
        %v6580 = vunpack.c.l.b16 %v3623
        %v6581 = vunpack.c.h.b16 %v3623
        %v6582 = vunpack.c.l.b16 %v3624
        %v6583 = vunpack.c.h.b16 %v3624
        %v6584 = vunpack.c.l.b16 %v3625
        %v6585 = vunpack.c.h.b16 %v3625
        %v6586 = vunpack.c.l.b16 %v3626
        %v6587 = vunpack.c.h.b16 %v3626
        %v6588 = vunpack.c.l.b16 %v3627
        %v6589 = vunpack.c.h.b16 %v3627
        %v6590 = vunpack.c.l.b16 %v3628
        %v6591 = vunpack.c.h.b16 %v3628
        %v6592 = vunpack.c.l.b16 %v3629
        %v6593 = vunpack.c.h.b16 %v3629
        %v6594 = vunpack.c.l.b16 %v3630
        %v6595 = vunpack.c.h.b16 %v3630
        %v6596 = vunpack.c.l.b16 %v3631
        %v6597 = vunpack.c.h.b16 %v3631
        %v6598 = vunpack.c.l.b16 %v3632
        %v6599 = vunpack.c.h.b16 %v3632
        %v6600 = vunpack.c.l.b16 %v3633
        %v6601 = vunpack.c.h.b16 %v3633
        %v6602 = vunpack.c.l.b16 %v3634
        %v6603 = vunpack.c.h.b16 %v3634
        %v6604 = vunpack.c.l.b16 %v3635
        %v6605 = vunpack.c.h.b16 %v3635
        %v6606 = vunpack.c.l.b16 %v3636
        %v6607 = vunpack.c.h.b16 %v3636
        %v6608 = vunpack.c.l.b16 %v3637
        %v6609 = vunpack.c.h.b16 %v3637
        %v6610 = vunpack.c.l.b16 %v3638
        %v6611 = vunpack.c.h.b16 %v3638
        %v6612 = vunpack.c.l.b16 %v3639
        %v6613 = vunpack.c.h.b16 %v3639
        %v6614 = vunpack.c.l.b16 %v3640
        %v6615 = vunpack.c.h.b16 %v3640
        %v6616 = vunpack.c.l.b16 %v3641
        %v6617 = vunpack.c.h.b16 %v3641
        %v6618 = vunpack.c.l.b16 %v3642
        %v6619 = vunpack.c.h.b16 %v3642
        %v6620 = vunpack.c.l.b16 %v3643
        %v6621 = vunpack.c.h.b16 %v3643
        %v6622 = vunpack.c.l.b16 %v3644
        %v6623 = vunpack.c.h.b16 %v3644
        %v6624 = vunpack.c.l.b16 %v3645
        %v6625 = vunpack.c.h.b16 %v3645
        %v6626 = vunpack.c.l.b16 %v3646
        %v6627 = vunpack.c.h.b16 %v3646
        %v6628 = vunpack.c.l.b16 %v3647
        %v6629 = vunpack.c.h.b16 %v3647
        %v6630 = vunpack.c.l.b16 %v3648
        %v6631 = vunpack.c.h.b16 %v3648
        %v6632 = vunpack.c.l.b16 %v3649
        %v6633 = vunpack.c.h.b16 %v3649
        %v6634 = vunpack.c.l.b16 %v3650
        %v6635 = vunpack.c.h.b16 %v3650
        %v6636 = vunpack.c.l.b16 %v3651
        %v6637 = vunpack.c.h.b16 %v3651
        %v6638 = vunpack.c.l.b16 %v3652
        %v6639 = vunpack.c.h.b16 %v3652
        %v6640 = vunpack.c.l.b16 %v3653
        %v6641 = vunpack.c.h.b16 %v3653
        %v6642 = vunpack.c.l.b16 %v3654
        %v6643 = vunpack.c.h.b16 %v3654
        %v6644 = vunpack.c.l.b16 %v3655
        %v6645 = vunpack.c.h.b16 %v3655
        %v6646 = vunpack.c.l.b16 %v3656
        %v6647 = vunpack.c.h.b16 %v3656
        %v6648 = vunpack.c.l.b16 %v3657
        %v6649 = vunpack.c.h.b16 %v3657
        %v6650 = vunpack.c.l.b16 %v3658
        %v6651 = vunpack.c.h.b16 %v3658
        %v6652 = vunpack.c.l.b16 %v3659
        %v6653 = vunpack.c.h.b16 %v3659
        %v6654 = vunpack.c.l.b16 %v3660
        %v6655 = vunpack.c.h.b16 %v3660
        %v6656 = vunpack.c.l.b16 %v3661
        %v6657 = vunpack.c.h.b16 %v3661
        %v6658 = vunpack.c.l.b16 %v3662
        %v6659 = vunpack.c.h.b16 %v3662
        %v6660 = vunpack.c.l.b16 %v3663
        %v6661 = vunpack.c.h.b16 %v3663
        %v6662 = vunpack.c.l.b16 %v3664
        %v6663 = vunpack.c.h.b16 %v3664
        %v6664 = vunpack.c.l.b16 %v3665
        %v6665 = vunpack.c.h.b16 %v3665
        %v6666 = vunpack.c.l.b16 %v3666
        %v6667 = vunpack.c.h.b16 %v3666
        %v6668 = vunpack.c.l.b16 %v3667
        %v6669 = vunpack.c.h.b16 %v3667
        %v6670 = vunpack.c.l.b16 %v3668
        %v6671 = vunpack.c.h.b16 %v3668
        %v6672 = vunpack.c.l.b16 %v3669
        %v6673 = vunpack.c.h.b16 %v3669
        %v6674 = vunpack.c.l.b16 %v3670
        %v6675 = vunpack.c.h.b16 %v3670
        %v6676 = vunpack.c.l.b16 %v3671
        %v6677 = vunpack.c.h.b16 %v3671
        %v6678 = vunpack.c.l.b16 %v3672
        %v6679 = vunpack.c.h.b16 %v3672
        %v6680 = vunpack.c.l.b16 %v3673
        %v6681 = vunpack.c.h.b16 %v3673
        %v6682 = vunpack.c.l.b16 %v3674
        %v6683 = vunpack.c.h.b16 %v3674
        %v6684 = vunpack.c.l.b16 %v3675
        %v6685 = vunpack.c.h.b16 %v3675
        %v6686 = vunpack.c.l.b16 %v3676
        %v6687 = vunpack.c.h.b16 %v3676
        %v6688 = vunpack.c.l.b16 %v3677
        %v6689 = vunpack.c.h.b16 %v3677
        %v6690 = vunpack.c.l.b16 %v3678
        %v6691 = vunpack.c.h.b16 %v3678
        %v6692 = vunpack.c.l.b16 %v3679
        %v6693 = vunpack.c.h.b16 %v3679
        %v6694 = vunpack.c.l.b16 %v3680
        %v6695 = vunpack.c.h.b16 %v3680
        %v6696 = vunpack.c.l.b16 %v3681
        %v6697 = vunpack.c.h.b16 %v3681
        %v6698 = vunpack.c.l.b16 %v3682
        %v6699 = vunpack.c.h.b16 %v3682
        %v6700 = vunpack.c.l.b16 %v3683
        %v6701 = vunpack.c.h.b16 %v3683
        %v6702 = vunpack.c.l.b16 %v3684
        %v6703 = vunpack.c.h.b16 %v3684
        %v6704 = vunpack.c.l.b16 %v3685
        %v6705 = vunpack.c.h.b16 %v3685
        %v6706 = vunpack.c.l.b16 %v3686
        %v6707 = vunpack.c.h.b16 %v3686
        %v6708 = vunpack.c.l.b16 %v3687
        %v6709 = vunpack.c.h.b16 %v3687
        %v6710 = vunpack.c.l.b16 %v3688
        %v6711 = vunpack.c.h.b16 %v3688
        %v6712 = vunpack.c.l.b16 %v3689
        %v6713 = vunpack.c.h.b16 %v3689
        %v6714 = vunpack.c.l.b16 %v3690
        %v6715 = vunpack.c.h.b16 %v3690
        %v6716 = vunpack.c.l.b16 %v3691
        %v6717 = vunpack.c.h.b16 %v3691
        %v6718 = vunpack.c.l.b16 %v3692
        %v6719 = vunpack.c.h.b16 %v3692
        %v6720 = vunpack.c.l.b16 %v3693
        %v6721 = vunpack.c.h.b16 %v3693
        %v6722 = vunpack.c.l.b16 %v3694
        %v6723 = vunpack.c.h.b16 %v3694
        %v6724 = vunpack.c.l.b16 %v3695
        %v6725 = vunpack.c.h.b16 %v3695
        %v6726 = vunpack.c.l.b16 %v3696
        %v6727 = vunpack.c.h.b16 %v3696
        %v6728 = vunpack.c.l.b16 %v3697
        %v6729 = vunpack.c.h.b16 %v3697
        %v6730 = vunpack.c.l.b16 %v3698
        %v6731 = vunpack.c.h.b16 %v3698
        %v6732 = vunpack.c.l.b16 %v3699
        %v6733 = vunpack.c.h.b16 %v3699
        %v6734 = vunpack.c.l.b16 %v3700
        %v6735 = vunpack.c.h.b16 %v3700
        %v6736 = vunpack.c.l.b16 %v3701
        %v6737 = vunpack.c.h.b16 %v3701
        %v6738 = vunpack.c.l.b16 %v3702
        %v6739 = vunpack.c.h.b16 %v3702
        %v6740 = vunpack.c.l.b16 %v3703
        %v6741 = vunpack.c.h.b16 %v3703
        %v6742 = vunpack.c.l.b16 %v3704
        %v6743 = vunpack.c.h.b16 %v3704
        %v6744 = vunpack.c.l.b16 %v3705
        %v6745 = vunpack.c.h.b16 %v3705
        %v6746 = vunpack.c.l.b16 %v3706
        %v6747 = vunpack.c.h.b16 %v3706
        %v6748 = vunpack.c.l.b16 %v3707
        %v6749 = vunpack.c.h.b16 %v3707
        %v6750 = vunpack.c.l.b16 %v3708
        %v6751 = vunpack.c.h.b16 %v3708
        %v6752 = vunpack.c.l.b16 %v3709
        %v6753 = vunpack.c.h.b16 %v3709
        %v6754 = vunpack.c.l.b16 %v3710
        %v6755 = vunpack.c.h.b16 %v3710
        %v6756 = vunpack.c.l.b16 %v3711
        %v6757 = vunpack.c.h.b16 %v3711
        %v6758 = vunpack.c.l.b16 %v3712
        %v6759 = vunpack.c.h.b16 %v3712
        %v6760 = vunpack.c.l.b16 %v3713
        %v6761 = vunpack.c.h.b16 %v3713
        %v6762 = vunpack.c.l.b16 %v3714
        %v6763 = vunpack.c.h.b16 %v3714
        %v6764 = vunpack.c.l.b16 %v3715
        %v6765 = vunpack.c.h.b16 %v3715
        %v6766 = vunpack.c.l.b16 %v3716
        %v6767 = vunpack.c.h.b16 %v3716
        %v6768 = vunpack.c.l.b16 %v3717
        %v6769 = vunpack.c.h.b16 %v3717
        %v6770 = vunpack.c.l.b16 %v3718
        %v6771 = vunpack.c.h.b16 %v3718
        %v6772 = vunpack.c.l.b16 %v3719
        %v6773 = vunpack.c.h.b16 %v3719
        %v6774 = vunpack.c.l.b16 %v3720
        %v6775 = vunpack.c.h.b16 %v3720
        %v6776 = vunpack.c.l.b16 %v3721
        %v6777 = vunpack.c.h.b16 %v3721
        %v6778 = vunpack.c.l.b16 %v3722
        %v6779 = vunpack.c.h.b16 %v3722
        %v6780 = vunpack.c.l.b16 %v3723
        %v6781 = vunpack.c.h.b16 %v3723
        %v6782 = vunpack.c.l.b16 %v3724
        %v6783 = vunpack.c.h.b16 %v3724
        %v6784 = vunpack.c.l.b16 %v3725
        %v6785 = vunpack.c.h.b16 %v3725
        %v6786 = vunpack.c.l.b16 %v3726
        %v6787 = vunpack.c.h.b16 %v3726
        %v6788 = vunpack.c.l.b16 %v3727
        %v6789 = vunpack.c.h.b16 %v3727
        %v6790 = vunpack.c.l.b16 %v3728
        %v6791 = vunpack.c.h.b16 %v3728
        %v6792 = vunpack.c.l.b16 %v3729
        %v6793 = vunpack.c.h.b16 %v3729
        %v6794 = vunpack.c.l.b16 %v3730
        %v6795 = vunpack.c.h.b16 %v3730
        %v6796 = vunpack.c.l.b16 %v3731
        %v6797 = vunpack.c.h.b16 %v3731
        %v6798 = vunpack.c.l.b16 %v3732
        %v6799 = vunpack.c.h.b16 %v3732
        %v6800 = vunpack.c.l.b16 %v3733
        %v6801 = vunpack.c.h.b16 %v3733
        %v6802 = vunpack.c.l.b16 %v3734
        %v6803 = vunpack.c.h.b16 %v3734
        %v6804 = vunpack.c.l.b16 %v3735
        %v6805 = vunpack.c.h.b16 %v3735
        %v6806 = vunpack.c.l.b16 %v3736
        %v6807 = vunpack.c.h.b16 %v3736
        %v6808 = vunpack.c.l.b16 %v3737
        %v6809 = vunpack.c.h.b16 %v3737
        %v6810 = vunpack.c.l.b16 %v3738
        %v6811 = vunpack.c.h.b16 %v3738
        %v6812 = vunpack.c.l.b16 %v3739
        %v6813 = vunpack.c.h.b16 %v3739
        %v6814 = vunpack.c.l.b16 %v3740
        %v6815 = vunpack.c.h.b16 %v3740
        %v6816 = vunpack.c.l.b16 %v3741
        %v6817 = vunpack.c.h.b16 %v3741
        %v6818 = vunpack.c.l.b16 %v3742
        %v6819 = vunpack.c.h.b16 %v3742
        %v6820 = vunpack.c.l.b16 %v3743
        %v6821 = vunpack.c.h.b16 %v3743
        %v6822 = vunpack.c.l.b16 %v3744
        %v6823 = vunpack.c.h.b16 %v3744
        %v6824 = vunpack.c.l.b16 %v3745
        %v6825 = vunpack.c.h.b16 %v3745
        %v6826 = vunpack.c.l.b16 %v3746
        %v6827 = vunpack.c.h.b16 %v3746
        %v6828 = vunpack.c.l.b16 %v3747
        %v6829 = vunpack.c.h.b16 %v3747
        %v6830 = vunpack.c.l.b16 %v3748
        %v6831 = vunpack.c.h.b16 %v3748
        %v6832 = vunpack.c.l.b16 %v3749
        %v6833 = vunpack.c.h.b16 %v3749
        %v6834 = vunpack.c.l.b16 %v3750
        %v6835 = vunpack.c.h.b16 %v3750
        %v6836 = vunpack.c.l.b16 %v3751
        %v6837 = vunpack.c.h.b16 %v3751
        %v6838 = vunpack.c.l.b16 %v3752
        %v6839 = vunpack.c.h.b16 %v3752
        %v6840 = vunpack.c.l.b16 %v3753
        %v6841 = vunpack.c.h.b16 %v3753
        %v6842 = vunpack.c.l.b16 %v3754
        %v6843 = vunpack.c.h.b16 %v3754
        %v6844 = vunpack.c.l.b16 %v3755
        %v6845 = vunpack.c.h.b16 %v3755
        %v6846 = vunpack.c.l.b16 %v3756
        %v6847 = vunpack.c.h.b16 %v3756
        %v6848 = vunpack.c.l.b16 %v3757
        %v6849 = vunpack.c.h.b16 %v3757
        %v6850 = vunpack.c.l.b16 %v3758
        %v6851 = vunpack.c.h.b16 %v3758
        %v6852 = vunpack.c.l.b16 %v3759
        %v6853 = vunpack.c.h.b16 %v3759
        %v6854 = vunpack.c.l.b16 %v3760
        %v6855 = vunpack.c.h.b16 %v3760
        %v6856 = vunpack.c.l.b16 %v3761
        %v6857 = vunpack.c.h.b16 %v3761
        %v6858 = vunpack.c.l.b16 %v3762
        %v6859 = vunpack.c.h.b16 %v3762
        %v6860 = vunpack.c.l.b16 %v3763
        %v6861 = vunpack.c.h.b16 %v3763
        %v6862 = vunpack.c.l.b16 %v3764
        %v6863 = vunpack.c.h.b16 %v3764
        %v6864 = vunpack.c.l.b16 %v3765
        %v6865 = vunpack.c.h.b16 %v3765
        %v6866 = vunpack.c.l.b16 %v3766
        %v6867 = vunpack.c.h.b16 %v3766
        %v6868 = vunpack.c.l.b16 %v3767
        %v6869 = vunpack.c.h.b16 %v3767
        %v6870 = vunpack.c.l.b16 %v3768
        %v6871 = vunpack.c.h.b16 %v3768
        %v6872 = vunpack.c.l.b16 %v3769
        %v6873 = vunpack.c.h.b16 %v3769
        %v6874 = vunpack.c.l.b16 %v3770
        %v6875 = vunpack.c.h.b16 %v3770
        %v6876 = vunpack.c.l.b16 %v3771
        %v6877 = vunpack.c.h.b16 %v3771
        %v6878 = vunpack.c.l.b16 %v3772
        %v6879 = vunpack.c.h.b16 %v3772
        %v6880 = vunpack.c.l.b16 %v3773
        %v6881 = vunpack.c.h.b16 %v3773
        %v6882 = vunpack.c.l.b16 %v3774
        %v6883 = vunpack.c.h.b16 %v3774
        %v6884 = vunpack.c.l.b16 %v3775
        %v6885 = vunpack.c.h.b16 %v3775
        %v6886 = vunpack.c.l.b16 %v3776
        %v6887 = vunpack.c.h.b16 %v3776
        %v6888 = vunpack.c.l.b16 %v3777
        %v6889 = vunpack.c.h.b16 %v3777
        %v6890 = vunpack.c.l.b16 %v3778
        %v6891 = vunpack.c.h.b16 %v3778
        %v6892 = vunpack.c.l.b16 %v3779
        %v6893 = vunpack.c.h.b16 %v3779
        %v6894 = vunpack.c.l.b16 %v3780
        %v6895 = vunpack.c.h.b16 %v3780
        %v6896 = vunpack.c.l.b16 %v3781
        %v6897 = vunpack.c.h.b16 %v3781
        %v6898 = vunpack.c.l.b16 %v3782
        %v6899 = vunpack.c.h.b16 %v3782
        %v6900 = vunpack.c.l.b16 %v3783
        %v6901 = vunpack.c.h.b16 %v3783
        %v6902 = vunpack.c.l.b16 %v3784
        %v6903 = vunpack.c.h.b16 %v3784
        %v6904 = vunpack.c.l.b16 %v3785
        %v6905 = vunpack.c.h.b16 %v3785
        %v6906 = vunpack.c.l.b16 %v3786
        %v6907 = vunpack.c.h.b16 %v3786
        %v6908 = vunpack.c.l.b16 %v3787
        %v6909 = vunpack.c.h.b16 %v3787
        %v6910 = vunpack.c.l.b16 %v3788
        %v6911 = vunpack.c.h.b16 %v3788
        %v6912 = vunpack.c.l.b16 %v3789
        %v6913 = vunpack.c.h.b16 %v3789
        %v6914 = vunpack.c.l.b16 %v3790
        %v6915 = vunpack.c.h.b16 %v3790
        %v6916 = vunpack.c.l.b16 %v3791
        %v6917 = vunpack.c.h.b16 %v3791
        %v6918 = vunpack.c.l.b16 %v3792
        %v6919 = vunpack.c.h.b16 %v3792
        %v6920 = vunpack.c.l.b16 %v3793
        %v6921 = vunpack.c.h.b16 %v3793
        %v6922 = vunpack.c.l.b16 %v3794
        %v6923 = vunpack.c.h.b16 %v3794
        %v6924 = vunpack.c.l.b16 %v3795
        %v6925 = vunpack.c.h.b16 %v3795
        %v6926 = vunpack.c.l.b16 %v3796
        %v6927 = vunpack.c.h.b16 %v3796
        %v6928 = vunpack.c.l.b16 %v3797
        %v6929 = vunpack.c.h.b16 %v3797
        %v6930 = vunpack.c.l.b16 %v3798
        %v6931 = vunpack.c.h.b16 %v3798
        %v6932 = vunpack.c.l.b16 %v3799
        %v6933 = vunpack.c.h.b16 %v3799
        %v6934 = vunpack.c.l.b16 %v3800
        %v6935 = vunpack.c.h.b16 %v3800
        %v6936 = vunpack.c.l.b16 %v3801
        %v6937 = vunpack.c.h.b16 %v3801
        %v6938 = vunpack.c.l.b16 %v3802
        %v6939 = vunpack.c.h.b16 %v3802
        %v6940 = vunpack.c.l.b16 %v3803
        %v6941 = vunpack.c.h.b16 %v3803
        %v6942 = vunpack.c.l.b16 %v3804
        %v6943 = vunpack.c.h.b16 %v3804
        %v6944 = vunpack.c.l.b16 %v3805
        %v6945 = vunpack.c.h.b16 %v3805
        %v6946 = vunpack.c.l.b16 %v3806
        %v6947 = vunpack.c.h.b16 %v3806
        %v6948 = vunpack.c.l.b16 %v3807
        %v6949 = vunpack.c.h.b16 %v3807
        %v6950 = vunpack.c.l.b16 %v3808
        %v6951 = vunpack.c.h.b16 %v3808
        %v6952 = vunpack.c.l.b16 %v3809
        %v6953 = vunpack.c.h.b16 %v3809
        %v6954 = vunpack.c.l.b16 %v3810
        %v6955 = vunpack.c.h.b16 %v3810
        %v6956 = vunpack.c.l.b16 %v3811
        %v6957 = vunpack.c.h.b16 %v3811
        %v6958 = vunpack.c.l.b16 %v3812
        %v6959 = vunpack.c.h.b16 %v3812
        %v6960 = vunpack.c.l.b16 %v3813
        %v6961 = vunpack.c.h.b16 %v3813
        %v6962 = vunpack.c.l.b16 %v3814
        %v6963 = vunpack.c.h.b16 %v3814
        %v6964 = vunpack.c.l.b16 %v3815
        %v6965 = vunpack.c.h.b16 %v3815
        %v6966 = vunpack.c.l.b16 %v3816
        %v6967 = vunpack.c.h.b16 %v3816
        %v6968 = vunpack.c.l.b16 %v3817
        %v6969 = vunpack.c.h.b16 %v3817
        %v6970 = vunpack.c.l.b16 %v3818
        %v6971 = vunpack.c.h.b16 %v3818
        %v6972 = vunpack.c.l.b16 %v3819
        %v6973 = vunpack.c.h.b16 %v3819
        %v6974 = vunpack.c.l.b16 %v3820
        %v6975 = vunpack.c.h.b16 %v3820
        %v6976 = vunpack.c.l.b16 %v3821
        %v6977 = vunpack.c.h.b16 %v3821
        %v6978 = vunpack.c.l.b16 %v3822
        %v6979 = vunpack.c.h.b16 %v3822
        %v6980 = vunpack.c.l.b16 %v3823
        %v6981 = vunpack.c.h.b16 %v3823
        %v6982 = vunpack.c.l.b16 %v3824
        %v6983 = vunpack.c.h.b16 %v3824
        %v6984 = vunpack.c.l.b16 %v3825
        %v6985 = vunpack.c.h.b16 %v3825
        %v6986 = vunpack.c.l.b16 %v3826
        %v6987 = vunpack.c.h.b16 %v3826
        %v6988 = vunpack.c.l.b16 %v3827
        %v6989 = vunpack.c.h.b16 %v3827
        %v6990 = vunpack.c.l.b16 %v3828
        %v6991 = vunpack.c.h.b16 %v3828
        %v6992 = vunpack.c.l.b16 %v3829
        %v6993 = vunpack.c.h.b16 %v3829
        %v6994 = vunpack.c.l.b16 %v3830
        %v6995 = vunpack.c.h.b16 %v3830
        %v6996 = vunpack.c.l.b16 %v3831
        %v6997 = vunpack.c.h.b16 %v3831
        %v6998 = vunpack.c.l.b16 %v3832
        %v6999 = vunpack.c.h.b16 %v3832
        %v7000 = vunpack.c.l.b16 %v3833
        %v7001 = vunpack.c.h.b16 %v3833
        %v7002 = vunpack.c.l.b16 %v3834
        %v7003 = vunpack.c.h.b16 %v3834
        %v7004 = vunpack.c.l.b16 %v3835
        %v7005 = vunpack.c.h.b16 %v3835
        %v7006 = vpack.c.b16 %v4966, %v4958
        %v7007 = vpack.c.b16 %v4967, %v4959
        %v7008 = vpack.c.b16 %v4968, %v4960
        %v7009 = vpack.c.b16 %v4969, %v4961
        %v7010 = vpack.c.b16 %v4970, %v4962
        %v7011 = vpack.c.b16 %v4971, %v4963
        %v7012 = vpack.c.b16 %v4972, %v4964
        %v7013 = vpack.c.b16 %v4973, %v4965
        %v7014 = vpack.c.b16 %v4982, %v4974
        %v7015 = vpack.c.b16 %v4983, %v4975
        %v7016 = vpack.c.b16 %v4984, %v4976
        %v7017 = vpack.c.b16 %v4985, %v4977
        %v7018 = vpack.c.b16 %v4986, %v4978
        %v7019 = vpack.c.b16 %v4987, %v4979
        %v7020 = vpack.c.b16 %v4988, %v4980
        %v7021 = vpack.c.b16 %v4989, %v4981
        %v7022 = vpack.c.b16 %v4998, %v4990
        %v7023 = vpack.c.b16 %v4999, %v4991
        %v7024 = vpack.c.b16 %v5000, %v4992
        %v7025 = vpack.c.b16 %v5001, %v4993
        %v7026 = vpack.c.b16 %v5002, %v4994
        %v7027 = vpack.c.b16 %v5003, %v4995
        %v7028 = vpack.c.b16 %v5004, %v4996
        %v7029 = vpack.c.b16 %v5005, %v4997
        %v7030 = vpack.c.b16 %v5014, %v5006
        %v7031 = vpack.c.b16 %v5015, %v5007
        %v7032 = vpack.c.b16 %v5016, %v5008
        %v7033 = vpack.c.b16 %v5017, %v5009
        %v7034 = vpack.c.b16 %v5018, %v5010
        %v7035 = vpack.c.b16 %v5019, %v5011
        %v7036 = vpack.c.b16 %v5020, %v5012
        %v7037 = vpack.c.b16 %v5021, %v5013
        %v7038 = vpack.c.b16 %v5030, %v5022
        %v7039 = vpack.c.b16 %v5031, %v5023
        %v7040 = vpack.c.b16 %v5032, %v5024
        %v7041 = vpack.c.b16 %v5033, %v5025
        %v7042 = vpack.c.b16 %v5034, %v5026
        %v7043 = vpack.c.b16 %v5035, %v5027
        %v7044 = vpack.c.b16 %v5036, %v5028
        %v7045 = vpack.c.b16 %v5037, %v5029
        %v7046 = vpack.c.b16 %v5046, %v5038
        %v7047 = vpack.c.b16 %v5047, %v5039
        %v7048 = vpack.c.b16 %v5048, %v5040
        %v7049 = vpack.c.b16 %v5049, %v5041
        %v7050 = vpack.c.b16 %v5050, %v5042
        %v7051 = vpack.c.b16 %v5051, %v5043
        %v7052 = vpack.c.b16 %v5052, %v5044
        %v7053 = vpack.c.b16 %v5053, %v5045
        %v7054 = vpack.c.b16 %v5062, %v5054
        %v7055 = vpack.c.b16 %v5063, %v5055
        %v7056 = vpack.c.b16 %v5064, %v5056
        %v7057 = vpack.c.b16 %v5065, %v5057
        %v7058 = vpack.c.b16 %v5066, %v5058
        %v7059 = vpack.c.b16 %v5067, %v5059
        %v7060 = vpack.c.b16 %v5068, %v5060
        %v7061 = vpack.c.b16 %v5069, %v5061
        %v7062 = vpack.c.b16 %v5078, %v5070
        %v7063 = vpack.c.b16 %v5079, %v5071
        %v7064 = vpack.c.b16 %v5080, %v5072
        %v7065 = vpack.c.b16 %v5081, %v5073
        %v7066 = vpack.c.b16 %v5082, %v5074
        %v7067 = vpack.c.b16 %v5083, %v5075
        %v7068 = vpack.c.b16 %v5084, %v5076
        %v7069 = vpack.c.b16 %v5085, %v5077
        %v7070 = vpack.c.b16 %v5094, %v5086
        %v7071 = vpack.c.b16 %v5095, %v5087
        %v7072 = vpack.c.b16 %v5096, %v5088
        %v7073 = vpack.c.b16 %v5097, %v5089
        %v7074 = vpack.c.b16 %v5098, %v5090
        %v7075 = vpack.c.b16 %v5099, %v5091
        %v7076 = vpack.c.b16 %v5100, %v5092
        %v7077 = vpack.c.b16 %v5101, %v5093
        %v7078 = vpack.c.b16 %v5110, %v5102
        %v7079 = vpack.c.b16 %v5111, %v5103
        %v7080 = vpack.c.b16 %v5112, %v5104
        %v7081 = vpack.c.b16 %v5113, %v5105
        %v7082 = vpack.c.b16 %v5114, %v5106
        %v7083 = vpack.c.b16 %v5115, %v5107
        %v7084 = vpack.c.b16 %v5116, %v5108
        %v7085 = vpack.c.b16 %v5117, %v5109
        %v7086 = vpack.c.b16 %v5126, %v5118
        %v7087 = vpack.c.b16 %v5127, %v5119
        %v7088 = vpack.c.b16 %v5128, %v5120
        %v7089 = vpack.c.b16 %v5129, %v5121
        %v7090 = vpack.c.b16 %v5130, %v5122
        %v7091 = vpack.c.b16 %v5131, %v5123
        %v7092 = vpack.c.b16 %v5132, %v5124
        %v7093 = vpack.c.b16 %v5133, %v5125
        %v7094 = vpack.c.b16 %v5142, %v5134
        %v7095 = vpack.c.b16 %v5143, %v5135
        %v7096 = vpack.c.b16 %v5144, %v5136
        %v7097 = vpack.c.b16 %v5145, %v5137
        %v7098 = vpack.c.b16 %v5146, %v5138
        %v7099 = vpack.c.b16 %v5147, %v5139
        %v7100 = vpack.c.b16 %v5148, %v5140
        %v7101 = vpack.c.b16 %v5149, %v5141
        %v7102 = vpack.c.b16 %v5158, %v5150
        %v7103 = vpack.c.b16 %v5159, %v5151
        %v7104 = vpack.c.b16 %v5160, %v5152
        %v7105 = vpack.c.b16 %v5161, %v5153
        %v7106 = vpack.c.b16 %v5162, %v5154
        %v7107 = vpack.c.b16 %v5163, %v5155
        %v7108 = vpack.c.b16 %v5164, %v5156
        %v7109 = vpack.c.b16 %v5165, %v5157
        %v7110 = vpack.c.b16 %v5174, %v5166
        %v7111 = vpack.c.b16 %v5175, %v5167
        %v7112 = vpack.c.b16 %v5176, %v5168
        %v7113 = vpack.c.b16 %v5177, %v5169
        %v7114 = vpack.c.b16 %v5178, %v5170
        %v7115 = vpack.c.b16 %v5179, %v5171
        %v7116 = vpack.c.b16 %v5180, %v5172
        %v7117 = vpack.c.b16 %v5181, %v5173
        %v7118 = vpack.c.b16 %v5190, %v5182
        %v7119 = vpack.c.b16 %v5191, %v5183
        %v7120 = vpack.c.b16 %v5192, %v5184
        %v7121 = vpack.c.b16 %v5193, %v5185
        %v7122 = vpack.c.b16 %v5194, %v5186
        %v7123 = vpack.c.b16 %v5195, %v5187
        %v7124 = vpack.c.b16 %v5196, %v5188
        %v7125 = vpack.c.b16 %v5197, %v5189
        %v7126 = vpack.c.b16 %v5206, %v5198
        %v7127 = vpack.c.b16 %v5207, %v5199
        %v7128 = vpack.c.b16 %v5208, %v5200
        %v7129 = vpack.c.b16 %v5209, %v5201
        %v7130 = vpack.c.b16 %v5210, %v5202
        %v7131 = vpack.c.b16 %v5211, %v5203
        %v7132 = vpack.c.b16 %v5212, %v5204
        %v7133 = vpack.c.b16 %v5213, %v5205
        %v7134 = vpack.c.b16 %v5222, %v5214
        %v7135 = vpack.c.b16 %v5223, %v5215
        %v7136 = vpack.c.b16 %v5224, %v5216
        %v7137 = vpack.c.b16 %v5225, %v5217
        %v7138 = vpack.c.b16 %v5226, %v5218
        %v7139 = vpack.c.b16 %v5227, %v5219
        %v7140 = vpack.c.b16 %v5228, %v5220
        %v7141 = vpack.c.b16 %v5229, %v5221
        %v7142 = vpack.c.b16 %v5238, %v5230
        %v7143 = vpack.c.b16 %v5239, %v5231
        %v7144 = vpack.c.b16 %v5240, %v5232
        %v7145 = vpack.c.b16 %v5241, %v5233
        %v7146 = vpack.c.b16 %v5242, %v5234
        %v7147 = vpack.c.b16 %v5243, %v5235
        %v7148 = vpack.c.b16 %v5244, %v5236
        %v7149 = vpack.c.b16 %v5245, %v5237
        %v7150 = vpack.c.b16 %v5254, %v5246
        %v7151 = vpack.c.b16 %v5255, %v5247
        %v7152 = vpack.c.b16 %v5256, %v5248
        %v7153 = vpack.c.b16 %v5257, %v5249
        %v7154 = vpack.c.b16 %v5258, %v5250
        %v7155 = vpack.c.b16 %v5259, %v5251
        %v7156 = vpack.c.b16 %v5260, %v5252
        %v7157 = vpack.c.b16 %v5261, %v5253
        %v7158 = vpack.c.b16 %v5270, %v5262
        %v7159 = vpack.c.b16 %v5271, %v5263
        %v7160 = vpack.c.b16 %v5272, %v5264
        %v7161 = vpack.c.b16 %v5273, %v5265
        %v7162 = vpack.c.b16 %v5274, %v5266
        %v7163 = vpack.c.b16 %v5275, %v5267
        %v7164 = vpack.c.b16 %v5276, %v5268
        %v7165 = vpack.c.b16 %v5277, %v5269
        %v7166 = vpack.c.b16 %v5286, %v5278
        %v7167 = vpack.c.b16 %v5287, %v5279
        %v7168 = vpack.c.b16 %v5288, %v5280
        %v7169 = vpack.c.b16 %v5289, %v5281
        %v7170 = vpack.c.b16 %v5290, %v5282
        %v7171 = vpack.c.b16 %v5291, %v5283
        %v7172 = vpack.c.b16 %v5292, %v5284
        %v7173 = vpack.c.b16 %v5293, %v5285
        %v7174 = vpack.c.b16 %v5302, %v5294
        %v7175 = vpack.c.b16 %v5303, %v5295
        %v7176 = vpack.c.b16 %v5304, %v5296
        %v7177 = vpack.c.b16 %v5305, %v5297
        %v7178 = vpack.c.b16 %v5306, %v5298
        %v7179 = vpack.c.b16 %v5307, %v5299
        %v7180 = vpack.c.b16 %v5308, %v5300
        %v7181 = vpack.c.b16 %v5309, %v5301
        %v7182 = vpack.c.b16 %v5318, %v5310
        %v7183 = vpack.c.b16 %v5319, %v5311
        %v7184 = vpack.c.b16 %v5320, %v5312
        %v7185 = vpack.c.b16 %v5321, %v5313
        %v7186 = vpack.c.b16 %v5322, %v5314
        %v7187 = vpack.c.b16 %v5323, %v5315
        %v7188 = vpack.c.b16 %v5324, %v5316
        %v7189 = vpack.c.b16 %v5325, %v5317
        %v7190 = vpack.c.b16 %v5334, %v5326
        %v7191 = vpack.c.b16 %v5335, %v5327
        %v7192 = vpack.c.b16 %v5336, %v5328
        %v7193 = vpack.c.b16 %v5337, %v5329
        %v7194 = vpack.c.b16 %v5338, %v5330
        %v7195 = vpack.c.b16 %v5339, %v5331
        %v7196 = vpack.c.b16 %v5340, %v5332
        %v7197 = vpack.c.b16 %v5341, %v5333
        %v7198 = vpack.c.b16 %v5350, %v5342
        %v7199 = vpack.c.b16 %v5351, %v5343
        %v7200 = vpack.c.b16 %v5352, %v5344
        %v7201 = vpack.c.b16 %v5353, %v5345
        %v7202 = vpack.c.b16 %v5354, %v5346
        %v7203 = vpack.c.b16 %v5355, %v5347
        %v7204 = vpack.c.b16 %v5356, %v5348
        %v7205 = vpack.c.b16 %v5357, %v5349
        %v7206 = vpack.c.b16 %v5366, %v5358
        %v7207 = vpack.c.b16 %v5367, %v5359
        %v7208 = vpack.c.b16 %v5368, %v5360
        %v7209 = vpack.c.b16 %v5369, %v5361
        %v7210 = vpack.c.b16 %v5370, %v5362
        %v7211 = vpack.c.b16 %v5371, %v5363
        %v7212 = vpack.c.b16 %v5372, %v5364
        %v7213 = vpack.c.b16 %v5373, %v5365
        %v7214 = vpack.c.b16 %v5382, %v5374
        %v7215 = vpack.c.b16 %v5383, %v5375
        %v7216 = vpack.c.b16 %v5384, %v5376
        %v7217 = vpack.c.b16 %v5385, %v5377
        %v7218 = vpack.c.b16 %v5386, %v5378
        %v7219 = vpack.c.b16 %v5387, %v5379
        %v7220 = vpack.c.b16 %v5388, %v5380
        %v7221 = vpack.c.b16 %v5389, %v5381
        %v7222 = vpack.c.b16 %v5398, %v5390
        %v7223 = vpack.c.b16 %v5399, %v5391
        %v7224 = vpack.c.b16 %v5400, %v5392
        %v7225 = vpack.c.b16 %v5401, %v5393
        %v7226 = vpack.c.b16 %v5402, %v5394
        %v7227 = vpack.c.b16 %v5403, %v5395
        %v7228 = vpack.c.b16 %v5404, %v5396
        %v7229 = vpack.c.b16 %v5405, %v5397
        %v7230 = vpack.c.b16 %v5414, %v5406
        %v7231 = vpack.c.b16 %v5415, %v5407
        %v7232 = vpack.c.b16 %v5416, %v5408
        %v7233 = vpack.c.b16 %v5417, %v5409
        %v7234 = vpack.c.b16 %v5418, %v5410
        %v7235 = vpack.c.b16 %v5419, %v5411
        %v7236 = vpack.c.b16 %v5420, %v5412
        %v7237 = vpack.c.b16 %v5421, %v5413
        %v7238 = vpack.c.b16 %v5430, %v5422
        %v7239 = vpack.c.b16 %v5431, %v5423
        %v7240 = vpack.c.b16 %v5432, %v5424
        %v7241 = vpack.c.b16 %v5433, %v5425
        %v7242 = vpack.c.b16 %v5434, %v5426
        %v7243 = vpack.c.b16 %v5435, %v5427
        %v7244 = vpack.c.b16 %v5436, %v5428
        %v7245 = vpack.c.b16 %v5437, %v5429
        %v7246 = vpack.c.b16 %v5446, %v5438
        %v7247 = vpack.c.b16 %v5447, %v5439
        %v7248 = vpack.c.b16 %v5448, %v5440
        %v7249 = vpack.c.b16 %v5449, %v5441
        %v7250 = vpack.c.b16 %v5450, %v5442
        %v7251 = vpack.c.b16 %v5451, %v5443
        %v7252 = vpack.c.b16 %v5452, %v5444
        %v7253 = vpack.c.b16 %v5453, %v5445
        %v7254 = vpack.c.b16 %v5462, %v5454
        %v7255 = vpack.c.b16 %v5463, %v5455
        %v7256 = vpack.c.b16 %v5464, %v5456
        %v7257 = vpack.c.b16 %v5465, %v5457
        %v7258 = vpack.c.b16 %v5466, %v5458
        %v7259 = vpack.c.b16 %v5467, %v5459
        %v7260 = vpack.c.b16 %v5468, %v5460
        %v7261 = vpack.c.b16 %v5469, %v5461
        %v7262 = vpack.c.b16 %v5478, %v5470
        %v7263 = vpack.c.b16 %v5479, %v5471
        %v7264 = vpack.c.b16 %v5480, %v5472
        %v7265 = vpack.c.b16 %v5481, %v5473
        %v7266 = vpack.c.b16 %v5482, %v5474
        %v7267 = vpack.c.b16 %v5483, %v5475
        %v7268 = vpack.c.b16 %v5484, %v5476
        %v7269 = vpack.c.b16 %v5485, %v5477
        %v7270 = vpack.c.b16 %v5494, %v5486
        %v7271 = vpack.c.b16 %v5495, %v5487
        %v7272 = vpack.c.b16 %v5496, %v5488
        %v7273 = vpack.c.b16 %v5497, %v5489
        %v7274 = vpack.c.b16 %v5498, %v5490
        %v7275 = vpack.c.b16 %v5499, %v5491
        %v7276 = vpack.c.b16 %v5500, %v5492
        %v7277 = vpack.c.b16 %v5501, %v5493
        %v7278 = vpack.c.b16 %v5510, %v5502
        %v7279 = vpack.c.b16 %v5511, %v5503
        %v7280 = vpack.c.b16 %v5512, %v5504
        %v7281 = vpack.c.b16 %v5513, %v5505
        %v7282 = vpack.c.b16 %v5514, %v5506
        %v7283 = vpack.c.b16 %v5515, %v5507
        %v7284 = vpack.c.b16 %v5516, %v5508
        %v7285 = vpack.c.b16 %v5517, %v5509
        %v7286 = vpack.c.b16 %v5526, %v5518
        %v7287 = vpack.c.b16 %v5527, %v5519
        %v7288 = vpack.c.b16 %v5528, %v5520
        %v7289 = vpack.c.b16 %v5529, %v5521
        %v7290 = vpack.c.b16 %v5530, %v5522
        %v7291 = vpack.c.b16 %v5531, %v5523
        %v7292 = vpack.c.b16 %v5532, %v5524
        %v7293 = vpack.c.b16 %v5533, %v5525
        %v7294 = vpack.c.b16 %v5542, %v5534
        %v7295 = vpack.c.b16 %v5543, %v5535
        %v7296 = vpack.c.b16 %v5544, %v5536
        %v7297 = vpack.c.b16 %v5545, %v5537
        %v7298 = vpack.c.b16 %v5546, %v5538
        %v7299 = vpack.c.b16 %v5547, %v5539
        %v7300 = vpack.c.b16 %v5548, %v5540
        %v7301 = vpack.c.b16 %v5549, %v5541
        %v7302 = vpack.c.b16 %v5558, %v5550
        %v7303 = vpack.c.b16 %v5559, %v5551
        %v7304 = vpack.c.b16 %v5560, %v5552
        %v7305 = vpack.c.b16 %v5561, %v5553
        %v7306 = vpack.c.b16 %v5562, %v5554
        %v7307 = vpack.c.b16 %v5563, %v5555
        %v7308 = vpack.c.b16 %v5564, %v5556
        %v7309 = vpack.c.b16 %v5565, %v5557
        %v7310 = vpack.c.b16 %v5574, %v5566
        %v7311 = vpack.c.b16 %v5575, %v5567
        %v7312 = vpack.c.b16 %v5576, %v5568
        %v7313 = vpack.c.b16 %v5577, %v5569
        %v7314 = vpack.c.b16 %v5578, %v5570
        %v7315 = vpack.c.b16 %v5579, %v5571
        %v7316 = vpack.c.b16 %v5580, %v5572
        %v7317 = vpack.c.b16 %v5581, %v5573
        %v7318 = vpack.c.b16 %v5590, %v5582
        %v7319 = vpack.c.b16 %v5591, %v5583
        %v7320 = vpack.c.b16 %v5592, %v5584
        %v7321 = vpack.c.b16 %v5593, %v5585
        %v7322 = vpack.c.b16 %v5594, %v5586
        %v7323 = vpack.c.b16 %v5595, %v5587
        %v7324 = vpack.c.b16 %v5596, %v5588
        %v7325 = vpack.c.b16 %v5597, %v5589
        %v7326 = vpack.c.b16 %v5606, %v5598
        %v7327 = vpack.c.b16 %v5607, %v5599
        %v7328 = vpack.c.b16 %v5608, %v5600
        %v7329 = vpack.c.b16 %v5609, %v5601
        %v7330 = vpack.c.b16 %v5610, %v5602
        %v7331 = vpack.c.b16 %v5611, %v5603
        %v7332 = vpack.c.b16 %v5612, %v5604
        %v7333 = vpack.c.b16 %v5613, %v5605
        %v7334 = vpack.c.b16 %v5622, %v5614
        %v7335 = vpack.c.b16 %v5623, %v5615
        %v7336 = vpack.c.b16 %v5624, %v5616
        %v7337 = vpack.c.b16 %v5625, %v5617
        %v7338 = vpack.c.b16 %v5626, %v5618
        %v7339 = vpack.c.b16 %v5627, %v5619
        %v7340 = vpack.c.b16 %v5628, %v5620
        %v7341 = vpack.c.b16 %v5629, %v5621
        %v7342 = vpack.c.b16 %v5638, %v5630
        %v7343 = vpack.c.b16 %v5639, %v5631
        %v7344 = vpack.c.b16 %v5640, %v5632
        %v7345 = vpack.c.b16 %v5641, %v5633
        %v7346 = vpack.c.b16 %v5642, %v5634
        %v7347 = vpack.c.b16 %v5643, %v5635
        %v7348 = vpack.c.b16 %v5644, %v5636
        %v7349 = vpack.c.b16 %v5645, %v5637
        %v7350 = vpack.c.b16 %v5654, %v5646
        %v7351 = vpack.c.b16 %v5655, %v5647
        %v7352 = vpack.c.b16 %v5656, %v5648
        %v7353 = vpack.c.b16 %v5657, %v5649
        %v7354 = vpack.c.b16 %v5658, %v5650
        %v7355 = vpack.c.b16 %v5659, %v5651
        %v7356 = vpack.c.b16 %v5660, %v5652
        %v7357 = vpack.c.b16 %v5661, %v5653
        %v7358 = vpack.c.b16 %v5670, %v5662
        %v7359 = vpack.c.b16 %v5671, %v5663
        %v7360 = vpack.c.b16 %v5672, %v5664
        %v7361 = vpack.c.b16 %v5673, %v5665
        %v7362 = vpack.c.b16 %v5674, %v5666
        %v7363 = vpack.c.b16 %v5675, %v5667
        %v7364 = vpack.c.b16 %v5676, %v5668
        %v7365 = vpack.c.b16 %v5677, %v5669
        %v7366 = vpack.c.b16 %v5686, %v5678
        %v7367 = vpack.c.b16 %v5687, %v5679
        %v7368 = vpack.c.b16 %v5688, %v5680
        %v7369 = vpack.c.b16 %v5689, %v5681
        %v7370 = vpack.c.b16 %v5690, %v5682
        %v7371 = vpack.c.b16 %v5691, %v5683
        %v7372 = vpack.c.b16 %v5692, %v5684
        %v7373 = vpack.c.b16 %v5693, %v5685
        %v7374 = vpack.c.b16 %v5702, %v5694
        %v7375 = vpack.c.b16 %v5703, %v5695
        %v7376 = vpack.c.b16 %v5704, %v5696
        %v7377 = vpack.c.b16 %v5705, %v5697
        %v7378 = vpack.c.b16 %v5706, %v5698
        %v7379 = vpack.c.b16 %v5707, %v5699
        %v7380 = vpack.c.b16 %v5708, %v5700
        %v7381 = vpack.c.b16 %v5709, %v5701
        %v7382 = vpack.c.b16 %v5718, %v5710
        %v7383 = vpack.c.b16 %v5719, %v5711
        %v7384 = vpack.c.b16 %v5720, %v5712
        %v7385 = vpack.c.b16 %v5721, %v5713
        %v7386 = vpack.c.b16 %v5722, %v5714
        %v7387 = vpack.c.b16 %v5723, %v5715
        %v7388 = vpack.c.b16 %v5724, %v5716
        %v7389 = vpack.c.b16 %v5725, %v5717
        %v7390 = vpack.c.b16 %v5734, %v5726
        %v7391 = vpack.c.b16 %v5735, %v5727
        %v7392 = vpack.c.b16 %v5736, %v5728
        %v7393 = vpack.c.b16 %v5737, %v5729
        %v7394 = vpack.c.b16 %v5738, %v5730
        %v7395 = vpack.c.b16 %v5739, %v5731
        %v7396 = vpack.c.b16 %v5740, %v5732
        %v7397 = vpack.c.b16 %v5741, %v5733
        %v7398 = vpack.c.b16 %v5750, %v5742
        %v7399 = vpack.c.b16 %v5751, %v5743
        %v7400 = vpack.c.b16 %v5752, %v5744
        %v7401 = vpack.c.b16 %v5753, %v5745
        %v7402 = vpack.c.b16 %v5754, %v5746
        %v7403 = vpack.c.b16 %v5755, %v5747
        %v7404 = vpack.c.b16 %v5756, %v5748
        %v7405 = vpack.c.b16 %v5757, %v5749
        %v7406 = vpack.c.b16 %v5766, %v5758
        %v7407 = vpack.c.b16 %v5767, %v5759
        %v7408 = vpack.c.b16 %v5768, %v5760
        %v7409 = vpack.c.b16 %v5769, %v5761
        %v7410 = vpack.c.b16 %v5770, %v5762
        %v7411 = vpack.c.b16 %v5771, %v5763
        %v7412 = vpack.c.b16 %v5772, %v5764
        %v7413 = vpack.c.b16 %v5773, %v5765
        %v7414 = vpack.c.b16 %v5782, %v5774
        %v7415 = vpack.c.b16 %v5783, %v5775
        %v7416 = vpack.c.b16 %v5784, %v5776
        %v7417 = vpack.c.b16 %v5785, %v5777
        %v7418 = vpack.c.b16 %v5786, %v5778
        %v7419 = vpack.c.b16 %v5787, %v5779
        %v7420 = vpack.c.b16 %v5788, %v5780
        %v7421 = vpack.c.b16 %v5789, %v5781
        %v7422 = vpack.c.b16 %v5798, %v5790
        %v7423 = vpack.c.b16 %v5799, %v5791
        %v7424 = vpack.c.b16 %v5800, %v5792
        %v7425 = vpack.c.b16 %v5801, %v5793
        %v7426 = vpack.c.b16 %v5802, %v5794
        %v7427 = vpack.c.b16 %v5803, %v5795
        %v7428 = vpack.c.b16 %v5804, %v5796
        %v7429 = vpack.c.b16 %v5805, %v5797
        %v7430 = vpack.c.b16 %v5814, %v5806
        %v7431 = vpack.c.b16 %v5815, %v5807
        %v7432 = vpack.c.b16 %v5816, %v5808
        %v7433 = vpack.c.b16 %v5817, %v5809
        %v7434 = vpack.c.b16 %v5818, %v5810
        %v7435 = vpack.c.b16 %v5819, %v5811
        %v7436 = vpack.c.b16 %v5820, %v5812
        %v7437 = vpack.c.b16 %v5821, %v5813
        %v7438 = vpack.c.b16 %v5830, %v5822
        %v7439 = vpack.c.b16 %v5831, %v5823
        %v7440 = vpack.c.b16 %v5832, %v5824
        %v7441 = vpack.c.b16 %v5833, %v5825
        %v7442 = vpack.c.b16 %v5834, %v5826
        %v7443 = vpack.c.b16 %v5835, %v5827
        %v7444 = vpack.c.b16 %v5836, %v5828
        %v7445 = vpack.c.b16 %v5837, %v5829
        %v7446 = vpack.c.b16 %v5846, %v5838
        %v7447 = vpack.c.b16 %v5847, %v5839
        %v7448 = vpack.c.b16 %v5848, %v5840
        %v7449 = vpack.c.b16 %v5849, %v5841
        %v7450 = vpack.c.b16 %v5850, %v5842
        %v7451 = vpack.c.b16 %v5851, %v5843
        %v7452 = vpack.c.b16 %v5852, %v5844
        %v7453 = vpack.c.b16 %v5853, %v5845
        %v7454 = vpack.c.b16 %v5862, %v5854
        %v7455 = vpack.c.b16 %v5863, %v5855
        %v7456 = vpack.c.b16 %v5864, %v5856
        %v7457 = vpack.c.b16 %v5865, %v5857
        %v7458 = vpack.c.b16 %v5866, %v5858
        %v7459 = vpack.c.b16 %v5867, %v5859
        %v7460 = vpack.c.b16 %v5868, %v5860
        %v7461 = vpack.c.b16 %v5869, %v5861
        %v7462 = vpack.c.b16 %v5878, %v5870
        %v7463 = vpack.c.b16 %v5879, %v5871
        %v7464 = vpack.c.b16 %v5880, %v5872
        %v7465 = vpack.c.b16 %v5881, %v5873
        %v7466 = vpack.c.b16 %v5882, %v5874
        %v7467 = vpack.c.b16 %v5883, %v5875
        %v7468 = vpack.c.b16 %v5884, %v5876
        %v7469 = vpack.c.b16 %v5885, %v5877
        %v7470 = vpack.c.b16 %v5894, %v5886
        %v7471 = vpack.c.b16 %v5895, %v5887
        %v7472 = vpack.c.b16 %v5896, %v5888
        %v7473 = vpack.c.b16 %v5897, %v5889
        %v7474 = vpack.c.b16 %v5898, %v5890
        %v7475 = vpack.c.b16 %v5899, %v5891
        %v7476 = vpack.c.b16 %v5900, %v5892
        %v7477 = vpack.c.b16 %v5901, %v5893
        %v7478 = vpack.c.b16 %v5910, %v5902
        %v7479 = vpack.c.b16 %v5911, %v5903
        %v7480 = vpack.c.b16 %v5912, %v5904
        %v7481 = vpack.c.b16 %v5913, %v5905
        %v7482 = vpack.c.b16 %v5914, %v5906
        %v7483 = vpack.c.b16 %v5915, %v5907
        %v7484 = vpack.c.b16 %v5916, %v5908
        %v7485 = vpack.c.b16 %v5917, %v5909
        %v7486 = vpack.c.b16 %v5926, %v5918
        %v7487 = vpack.c.b16 %v5927, %v5919
        %v7488 = vpack.c.b16 %v5928, %v5920
        %v7489 = vpack.c.b16 %v5929, %v5921
        %v7490 = vpack.c.b16 %v5930, %v5922
        %v7491 = vpack.c.b16 %v5931, %v5923
        %v7492 = vpack.c.b16 %v5932, %v5924
        %v7493 = vpack.c.b16 %v5933, %v5925
        %v7494 = vpack.c.b16 %v5942, %v5934
        %v7495 = vpack.c.b16 %v5943, %v5935
        %v7496 = vpack.c.b16 %v5944, %v5936
        %v7497 = vpack.c.b16 %v5945, %v5937
        %v7498 = vpack.c.b16 %v5946, %v5938
        %v7499 = vpack.c.b16 %v5947, %v5939
        %v7500 = vpack.c.b16 %v5948, %v5940
        %v7501 = vpack.c.b16 %v5949, %v5941
        %v7502 = vpack.c.b16 %v5958, %v5950
        %v7503 = vpack.c.b16 %v5959, %v5951
        %v7504 = vpack.c.b16 %v5960, %v5952
        %v7505 = vpack.c.b16 %v5961, %v5953
        %v7506 = vpack.c.b16 %v5962, %v5954
        %v7507 = vpack.c.b16 %v5963, %v5955
        %v7508 = vpack.c.b16 %v5964, %v5956
        %v7509 = vpack.c.b16 %v5965, %v5957
        %v7510 = vpack.c.b16 %v5974, %v5966
        %v7511 = vpack.c.b16 %v5975, %v5967
        %v7512 = vpack.c.b16 %v5976, %v5968
        %v7513 = vpack.c.b16 %v5977, %v5969
        %v7514 = vpack.c.b16 %v5978, %v5970
        %v7515 = vpack.c.b16 %v5979, %v5971
        %v7516 = vpack.c.b16 %v5980, %v5972
        %v7517 = vpack.c.b16 %v5981, %v5973
        %v7518 = vpack.c.b16 %v5990, %v5982
        %v7519 = vpack.c.b16 %v5991, %v5983
        %v7520 = vpack.c.b16 %v5992, %v5984
        %v7521 = vpack.c.b16 %v5993, %v5985
        %v7522 = vpack.c.b16 %v5994, %v5986
        %v7523 = vpack.c.b16 %v5995, %v5987
        %v7524 = vpack.c.b16 %v5996, %v5988
        %v7525 = vpack.c.b16 %v5997, %v5989
        %v7526 = vpack.c.b16 %v6006, %v5998
        %v7527 = vpack.c.b16 %v6007, %v5999
        %v7528 = vpack.c.b16 %v6008, %v6000
        %v7529 = vpack.c.b16 %v6009, %v6001
        %v7530 = vpack.c.b16 %v6010, %v6002
        %v7531 = vpack.c.b16 %v6011, %v6003
        %v7532 = vpack.c.b16 %v6012, %v6004
        %v7533 = vpack.c.b16 %v6013, %v6005
        %v7534 = vpack.c.b16 %v6022, %v6014
        %v7535 = vpack.c.b16 %v6023, %v6015
        %v7536 = vpack.c.b16 %v6024, %v6016
        %v7537 = vpack.c.b16 %v6025, %v6017
        %v7538 = vpack.c.b16 %v6026, %v6018
        %v7539 = vpack.c.b16 %v6027, %v6019
        %v7540 = vpack.c.b16 %v6028, %v6020
        %v7541 = vpack.c.b16 %v6029, %v6021
        %v7542 = vpack.c.b16 %v6038, %v6030
        %v7543 = vpack.c.b16 %v6039, %v6031
        %v7544 = vpack.c.b16 %v6040, %v6032
        %v7545 = vpack.c.b16 %v6041, %v6033
        %v7546 = vpack.c.b16 %v6042, %v6034
        %v7547 = vpack.c.b16 %v6043, %v6035
        %v7548 = vpack.c.b16 %v6044, %v6036
        %v7549 = vpack.c.b16 %v6045, %v6037
        %v7550 = vpack.c.b16 %v6054, %v6046
        %v7551 = vpack.c.b16 %v6055, %v6047
        %v7552 = vpack.c.b16 %v6056, %v6048
        %v7553 = vpack.c.b16 %v6057, %v6049
        %v7554 = vpack.c.b16 %v6058, %v6050
        %v7555 = vpack.c.b16 %v6059, %v6051
        %v7556 = vpack.c.b16 %v6060, %v6052
        %v7557 = vpack.c.b16 %v6061, %v6053
        %v7558 = vpack.c.b16 %v6070, %v6062
        %v7559 = vpack.c.b16 %v6071, %v6063
        %v7560 = vpack.c.b16 %v6072, %v6064
        %v7561 = vpack.c.b16 %v6073, %v6065
        %v7562 = vpack.c.b16 %v6074, %v6066
        %v7563 = vpack.c.b16 %v6075, %v6067
        %v7564 = vpack.c.b16 %v6076, %v6068
        %v7565 = vpack.c.b16 %v6077, %v6069
        %v7566 = vpack.c.b16 %v6086, %v6078
        %v7567 = vpack.c.b16 %v6087, %v6079
        %v7568 = vpack.c.b16 %v6088, %v6080
        %v7569 = vpack.c.b16 %v6089, %v6081
        %v7570 = vpack.c.b16 %v6090, %v6082
        %v7571 = vpack.c.b16 %v6091, %v6083
        %v7572 = vpack.c.b16 %v6092, %v6084
        %v7573 = vpack.c.b16 %v6093, %v6085
        %v7574 = vpack.c.b16 %v6102, %v6094
        %v7575 = vpack.c.b16 %v6103, %v6095
        %v7576 = vpack.c.b16 %v6104, %v6096
        %v7577 = vpack.c.b16 %v6105, %v6097
        %v7578 = vpack.c.b16 %v6106, %v6098
        %v7579 = vpack.c.b16 %v6107, %v6099
        %v7580 = vpack.c.b16 %v6108, %v6100
        %v7581 = vpack.c.b16 %v6109, %v6101
        %v7582 = vpack.c.b16 %v6118, %v6110
        %v7583 = vpack.c.b16 %v6119, %v6111
        %v7584 = vpack.c.b16 %v6120, %v6112
        %v7585 = vpack.c.b16 %v6121, %v6113
        %v7586 = vpack.c.b16 %v6122, %v6114
        %v7587 = vpack.c.b16 %v6123, %v6115
        %v7588 = vpack.c.b16 %v6124, %v6116
        %v7589 = vpack.c.b16 %v6125, %v6117
        %v7590 = vpack.c.b16 %v6134, %v6126
        %v7591 = vpack.c.b16 %v6135, %v6127
        %v7592 = vpack.c.b16 %v6136, %v6128
        %v7593 = vpack.c.b16 %v6137, %v6129
        %v7594 = vpack.c.b16 %v6138, %v6130
        %v7595 = vpack.c.b16 %v6139, %v6131
        %v7596 = vpack.c.b16 %v6140, %v6132
        %v7597 = vpack.c.b16 %v6141, %v6133
        %v7598 = vpack.c.b16 %v6150, %v6142
        %v7599 = vpack.c.b16 %v6151, %v6143
        %v7600 = vpack.c.b16 %v6152, %v6144
        %v7601 = vpack.c.b16 %v6153, %v6145
        %v7602 = vpack.c.b16 %v6154, %v6146
        %v7603 = vpack.c.b16 %v6155, %v6147
        %v7604 = vpack.c.b16 %v6156, %v6148
        %v7605 = vpack.c.b16 %v6157, %v6149
        %v7606 = vpack.c.b16 %v6166, %v6158
        %v7607 = vpack.c.b16 %v6167, %v6159
        %v7608 = vpack.c.b16 %v6168, %v6160
        %v7609 = vpack.c.b16 %v6169, %v6161
        %v7610 = vpack.c.b16 %v6170, %v6162
        %v7611 = vpack.c.b16 %v6171, %v6163
        %v7612 = vpack.c.b16 %v6172, %v6164
        %v7613 = vpack.c.b16 %v6173, %v6165
        %v7614 = vpack.c.b16 %v6182, %v6174
        %v7615 = vpack.c.b16 %v6183, %v6175
        %v7616 = vpack.c.b16 %v6184, %v6176
        %v7617 = vpack.c.b16 %v6185, %v6177
        %v7618 = vpack.c.b16 %v6186, %v6178
        %v7619 = vpack.c.b16 %v6187, %v6179
        %v7620 = vpack.c.b16 %v6188, %v6180
        %v7621 = vpack.c.b16 %v6189, %v6181
        %v7622 = vpack.c.b16 %v6198, %v6190
        %v7623 = vpack.c.b16 %v6199, %v6191
        %v7624 = vpack.c.b16 %v6200, %v6192
        %v7625 = vpack.c.b16 %v6201, %v6193
        %v7626 = vpack.c.b16 %v6202, %v6194
        %v7627 = vpack.c.b16 %v6203, %v6195
        %v7628 = vpack.c.b16 %v6204, %v6196
        %v7629 = vpack.c.b16 %v6205, %v6197
        %v7630 = vpack.c.b16 %v6214, %v6206
        %v7631 = vpack.c.b16 %v6215, %v6207
        %v7632 = vpack.c.b16 %v6216, %v6208
        %v7633 = vpack.c.b16 %v6217, %v6209
        %v7634 = vpack.c.b16 %v6218, %v6210
        %v7635 = vpack.c.b16 %v6219, %v6211
        %v7636 = vpack.c.b16 %v6220, %v6212
        %v7637 = vpack.c.b16 %v6221, %v6213
        %v7638 = vpack.c.b16 %v6230, %v6222
        %v7639 = vpack.c.b16 %v6231, %v6223
        %v7640 = vpack.c.b16 %v6232, %v6224
        %v7641 = vpack.c.b16 %v6233, %v6225
        %v7642 = vpack.c.b16 %v6234, %v6226
        %v7643 = vpack.c.b16 %v6235, %v6227
        %v7644 = vpack.c.b16 %v6236, %v6228
        %v7645 = vpack.c.b16 %v6237, %v6229
        %v7646 = vpack.c.b16 %v6246, %v6238
        %v7647 = vpack.c.b16 %v6247, %v6239
        %v7648 = vpack.c.b16 %v6248, %v6240
        %v7649 = vpack.c.b16 %v6249, %v6241
        %v7650 = vpack.c.b16 %v6250, %v6242
        %v7651 = vpack.c.b16 %v6251, %v6243
        %v7652 = vpack.c.b16 %v6252, %v6244
        %v7653 = vpack.c.b16 %v6253, %v6245
        %v7654 = vpack.c.b16 %v6262, %v6254
        %v7655 = vpack.c.b16 %v6263, %v6255
        %v7656 = vpack.c.b16 %v6264, %v6256
        %v7657 = vpack.c.b16 %v6265, %v6257
        %v7658 = vpack.c.b16 %v6266, %v6258
        %v7659 = vpack.c.b16 %v6267, %v6259
        %v7660 = vpack.c.b16 %v6268, %v6260
        %v7661 = vpack.c.b16 %v6269, %v6261
        %v7662 = vpack.c.b16 %v6278, %v6270
        %v7663 = vpack.c.b16 %v6279, %v6271
        %v7664 = vpack.c.b16 %v6280, %v6272
        %v7665 = vpack.c.b16 %v6281, %v6273
        %v7666 = vpack.c.b16 %v6282, %v6274
        %v7667 = vpack.c.b16 %v6283, %v6275
        %v7668 = vpack.c.b16 %v6284, %v6276
        %v7669 = vpack.c.b16 %v6285, %v6277
        %v7670 = vpack.c.b16 %v6294, %v6286
        %v7671 = vpack.c.b16 %v6295, %v6287
        %v7672 = vpack.c.b16 %v6296, %v6288
        %v7673 = vpack.c.b16 %v6297, %v6289
        %v7674 = vpack.c.b16 %v6298, %v6290
        %v7675 = vpack.c.b16 %v6299, %v6291
        %v7676 = vpack.c.b16 %v6300, %v6292
        %v7677 = vpack.c.b16 %v6301, %v6293
        %v7678 = vpack.c.b16 %v6310, %v6302
        %v7679 = vpack.c.b16 %v6311, %v6303
        %v7680 = vpack.c.b16 %v6312, %v6304
        %v7681 = vpack.c.b16 %v6313, %v6305
        %v7682 = vpack.c.b16 %v6314, %v6306
        %v7683 = vpack.c.b16 %v6315, %v6307
        %v7684 = vpack.c.b16 %v6316, %v6308
        %v7685 = vpack.c.b16 %v6317, %v6309
        %v7686 = vpack.c.b16 %v6326, %v6318
        %v7687 = vpack.c.b16 %v6327, %v6319
        %v7688 = vpack.c.b16 %v6328, %v6320
        %v7689 = vpack.c.b16 %v6329, %v6321
        %v7690 = vpack.c.b16 %v6330, %v6322
        %v7691 = vpack.c.b16 %v6331, %v6323
        %v7692 = vpack.c.b16 %v6332, %v6324
        %v7693 = vpack.c.b16 %v6333, %v6325
        %v7694 = vpack.c.b16 %v6342, %v6334
        %v7695 = vpack.c.b16 %v6343, %v6335
        %v7696 = vpack.c.b16 %v6344, %v6336
        %v7697 = vpack.c.b16 %v6345, %v6337
        %v7698 = vpack.c.b16 %v6346, %v6338
        %v7699 = vpack.c.b16 %v6347, %v6339
        %v7700 = vpack.c.b16 %v6348, %v6340
        %v7701 = vpack.c.b16 %v6349, %v6341
        %v7702 = vpack.c.b16 %v6358, %v6350
        %v7703 = vpack.c.b16 %v6359, %v6351
        %v7704 = vpack.c.b16 %v6360, %v6352
        %v7705 = vpack.c.b16 %v6361, %v6353
        %v7706 = vpack.c.b16 %v6362, %v6354
        %v7707 = vpack.c.b16 %v6363, %v6355
        %v7708 = vpack.c.b16 %v6364, %v6356
        %v7709 = vpack.c.b16 %v6365, %v6357
        %v7710 = vpack.c.b16 %v6374, %v6366
        %v7711 = vpack.c.b16 %v6375, %v6367
        %v7712 = vpack.c.b16 %v6376, %v6368
        %v7713 = vpack.c.b16 %v6377, %v6369
        %v7714 = vpack.c.b16 %v6378, %v6370
        %v7715 = vpack.c.b16 %v6379, %v6371
        %v7716 = vpack.c.b16 %v6380, %v6372
        %v7717 = vpack.c.b16 %v6381, %v6373
        %v7718 = vpack.c.b16 %v6390, %v6382
        %v7719 = vpack.c.b16 %v6391, %v6383
        %v7720 = vpack.c.b16 %v6392, %v6384
        %v7721 = vpack.c.b16 %v6393, %v6385
        %v7722 = vpack.c.b16 %v6394, %v6386
        %v7723 = vpack.c.b16 %v6395, %v6387
        %v7724 = vpack.c.b16 %v6396, %v6388
        %v7725 = vpack.c.b16 %v6397, %v6389
        %v7726 = vpack.c.b16 %v6406, %v6398
        %v7727 = vpack.c.b16 %v6407, %v6399
        %v7728 = vpack.c.b16 %v6408, %v6400
        %v7729 = vpack.c.b16 %v6409, %v6401
        %v7730 = vpack.c.b16 %v6410, %v6402
        %v7731 = vpack.c.b16 %v6411, %v6403
        %v7732 = vpack.c.b16 %v6412, %v6404
        %v7733 = vpack.c.b16 %v6413, %v6405
        %v7734 = vpack.c.b16 %v6422, %v6414
        %v7735 = vpack.c.b16 %v6423, %v6415
        %v7736 = vpack.c.b16 %v6424, %v6416
        %v7737 = vpack.c.b16 %v6425, %v6417
        %v7738 = vpack.c.b16 %v6426, %v6418
        %v7739 = vpack.c.b16 %v6427, %v6419
        %v7740 = vpack.c.b16 %v6428, %v6420
        %v7741 = vpack.c.b16 %v6429, %v6421
        %v7742 = vpack.c.b16 %v6438, %v6430
        %v7743 = vpack.c.b16 %v6439, %v6431
        %v7744 = vpack.c.b16 %v6440, %v6432
        %v7745 = vpack.c.b16 %v6441, %v6433
        %v7746 = vpack.c.b16 %v6442, %v6434
        %v7747 = vpack.c.b16 %v6443, %v6435
        %v7748 = vpack.c.b16 %v6444, %v6436
        %v7749 = vpack.c.b16 %v6445, %v6437
        %v7750 = vpack.c.b16 %v6454, %v6446
        %v7751 = vpack.c.b16 %v6455, %v6447
        %v7752 = vpack.c.b16 %v6456, %v6448
        %v7753 = vpack.c.b16 %v6457, %v6449
        %v7754 = vpack.c.b16 %v6458, %v6450
        %v7755 = vpack.c.b16 %v6459, %v6451
        %v7756 = vpack.c.b16 %v6460, %v6452
        %v7757 = vpack.c.b16 %v6461, %v6453
        %v7758 = vpack.c.b16 %v6470, %v6462
        %v7759 = vpack.c.b16 %v6471, %v6463
        %v7760 = vpack.c.b16 %v6472, %v6464
        %v7761 = vpack.c.b16 %v6473, %v6465
        %v7762 = vpack.c.b16 %v6474, %v6466
        %v7763 = vpack.c.b16 %v6475, %v6467
        %v7764 = vpack.c.b16 %v6476, %v6468
        %v7765 = vpack.c.b16 %v6477, %v6469
        %v7766 = vpack.c.b16 %v6486, %v6478
        %v7767 = vpack.c.b16 %v6487, %v6479
        %v7768 = vpack.c.b16 %v6488, %v6480
        %v7769 = vpack.c.b16 %v6489, %v6481
        %v7770 = vpack.c.b16 %v6490, %v6482
        %v7771 = vpack.c.b16 %v6491, %v6483
        %v7772 = vpack.c.b16 %v6492, %v6484
        %v7773 = vpack.c.b16 %v6493, %v6485
        %v7774 = vpack.c.b16 %v6502, %v6494
        %v7775 = vpack.c.b16 %v6503, %v6495
        %v7776 = vpack.c.b16 %v6504, %v6496
        %v7777 = vpack.c.b16 %v6505, %v6497
        %v7778 = vpack.c.b16 %v6506, %v6498
        %v7779 = vpack.c.b16 %v6507, %v6499
        %v7780 = vpack.c.b16 %v6508, %v6500
        %v7781 = vpack.c.b16 %v6509, %v6501
        %v7782 = vpack.c.b16 %v6518, %v6510
        %v7783 = vpack.c.b16 %v6519, %v6511
        %v7784 = vpack.c.b16 %v6520, %v6512
        %v7785 = vpack.c.b16 %v6521, %v6513
        %v7786 = vpack.c.b16 %v6522, %v6514
        %v7787 = vpack.c.b16 %v6523, %v6515
        %v7788 = vpack.c.b16 %v6524, %v6516
        %v7789 = vpack.c.b16 %v6525, %v6517
        %v7790 = vpack.c.b16 %v6534, %v6526
        %v7791 = vpack.c.b16 %v6535, %v6527
        %v7792 = vpack.c.b16 %v6536, %v6528
        %v7793 = vpack.c.b16 %v6537, %v6529
        %v7794 = vpack.c.b16 %v6538, %v6530
        %v7795 = vpack.c.b16 %v6539, %v6531
        %v7796 = vpack.c.b16 %v6540, %v6532
        %v7797 = vpack.c.b16 %v6541, %v6533
        %v7798 = vpack.c.b16 %v6550, %v6542
        %v7799 = vpack.c.b16 %v6551, %v6543
        %v7800 = vpack.c.b16 %v6552, %v6544
        %v7801 = vpack.c.b16 %v6553, %v6545
        %v7802 = vpack.c.b16 %v6554, %v6546
        %v7803 = vpack.c.b16 %v6555, %v6547
        %v7804 = vpack.c.b16 %v6556, %v6548
        %v7805 = vpack.c.b16 %v6557, %v6549
        %v7806 = vpack.c.b16 %v6566, %v6558
        %v7807 = vpack.c.b16 %v6567, %v6559
        %v7808 = vpack.c.b16 %v6568, %v6560
        %v7809 = vpack.c.b16 %v6569, %v6561
        %v7810 = vpack.c.b16 %v6570, %v6562
        %v7811 = vpack.c.b16 %v6571, %v6563
        %v7812 = vpack.c.b16 %v6572, %v6564
        %v7813 = vpack.c.b16 %v6573, %v6565
        %v7814 = vpack.c.b16 %v6582, %v6574
        %v7815 = vpack.c.b16 %v6583, %v6575
        %v7816 = vpack.c.b16 %v6584, %v6576
        %v7817 = vpack.c.b16 %v6585, %v6577
        %v7818 = vpack.c.b16 %v6586, %v6578
        %v7819 = vpack.c.b16 %v6587, %v6579
        %v7820 = vpack.c.b16 %v6588, %v6580
        %v7821 = vpack.c.b16 %v6589, %v6581
        %v7822 = vpack.c.b16 %v6598, %v6590
        %v7823 = vpack.c.b16 %v6599, %v6591
        %v7824 = vpack.c.b16 %v6600, %v6592
        %v7825 = vpack.c.b16 %v6601, %v6593
        %v7826 = vpack.c.b16 %v6602, %v6594
        %v7827 = vpack.c.b16 %v6603, %v6595
        %v7828 = vpack.c.b16 %v6604, %v6596
        %v7829 = vpack.c.b16 %v6605, %v6597
        %v7830 = vpack.c.b16 %v6614, %v6606
        %v7831 = vpack.c.b16 %v6615, %v6607
        %v7832 = vpack.c.b16 %v6616, %v6608
        %v7833 = vpack.c.b16 %v6617, %v6609
        %v7834 = vpack.c.b16 %v6618, %v6610
        %v7835 = vpack.c.b16 %v6619, %v6611
        %v7836 = vpack.c.b16 %v6620, %v6612
        %v7837 = vpack.c.b16 %v6621, %v6613
        %v7838 = vpack.c.b16 %v6630, %v6622
        %v7839 = vpack.c.b16 %v6631, %v6623
        %v7840 = vpack.c.b16 %v6632, %v6624
        %v7841 = vpack.c.b16 %v6633, %v6625
        %v7842 = vpack.c.b16 %v6634, %v6626
        %v7843 = vpack.c.b16 %v6635, %v6627
        %v7844 = vpack.c.b16 %v6636, %v6628
        %v7845 = vpack.c.b16 %v6637, %v6629
        %v7846 = vpack.c.b16 %v6646, %v6638
        %v7847 = vpack.c.b16 %v6647, %v6639
        %v7848 = vpack.c.b16 %v6648, %v6640
        %v7849 = vpack.c.b16 %v6649, %v6641
        %v7850 = vpack.c.b16 %v6650, %v6642
        %v7851 = vpack.c.b16 %v6651, %v6643
        %v7852 = vpack.c.b16 %v6652, %v6644
        %v7853 = vpack.c.b16 %v6653, %v6645
        %v7854 = vpack.c.b16 %v6662, %v6654
        %v7855 = vpack.c.b16 %v6663, %v6655
        %v7856 = vpack.c.b16 %v6664, %v6656
        %v7857 = vpack.c.b16 %v6665, %v6657
        %v7858 = vpack.c.b16 %v6666, %v6658
        %v7859 = vpack.c.b16 %v6667, %v6659
        %v7860 = vpack.c.b16 %v6668, %v6660
        %v7861 = vpack.c.b16 %v6669, %v6661
        %v7862 = vpack.c.b16 %v6678, %v6670
        %v7863 = vpack.c.b16 %v6679, %v6671
        %v7864 = vpack.c.b16 %v6680, %v6672
        %v7865 = vpack.c.b16 %v6681, %v6673
        %v7866 = vpack.c.b16 %v6682, %v6674
        %v7867 = vpack.c.b16 %v6683, %v6675
        %v7868 = vpack.c.b16 %v6684, %v6676
        %v7869 = vpack.c.b16 %v6685, %v6677
        %v7870 = vpack.c.b16 %v6694, %v6686
        %v7871 = vpack.c.b16 %v6695, %v6687
        %v7872 = vpack.c.b16 %v6696, %v6688
        %v7873 = vpack.c.b16 %v6697, %v6689
        %v7874 = vpack.c.b16 %v6698, %v6690
        %v7875 = vpack.c.b16 %v6699, %v6691
        %v7876 = vpack.c.b16 %v6700, %v6692
        %v7877 = vpack.c.b16 %v6701, %v6693
        %v7878 = vpack.c.b16 %v6710, %v6702
        %v7879 = vpack.c.b16 %v6711, %v6703
        %v7880 = vpack.c.b16 %v6712, %v6704
        %v7881 = vpack.c.b16 %v6713, %v6705
        %v7882 = vpack.c.b16 %v6714, %v6706
        %v7883 = vpack.c.b16 %v6715, %v6707
        %v7884 = vpack.c.b16 %v6716, %v6708
        %v7885 = vpack.c.b16 %v6717, %v6709
        %v7886 = vpack.c.b16 %v6726, %v6718
        %v7887 = vpack.c.b16 %v6727, %v6719
        %v7888 = vpack.c.b16 %v6728, %v6720
        %v7889 = vpack.c.b16 %v6729, %v6721
        %v7890 = vpack.c.b16 %v6730, %v6722
        %v7891 = vpack.c.b16 %v6731, %v6723
        %v7892 = vpack.c.b16 %v6732, %v6724
        %v7893 = vpack.c.b16 %v6733, %v6725
        %v7894 = vpack.c.b16 %v6742, %v6734
        %v7895 = vpack.c.b16 %v6743, %v6735
        %v7896 = vpack.c.b16 %v6744, %v6736
        %v7897 = vpack.c.b16 %v6745, %v6737
        %v7898 = vpack.c.b16 %v6746, %v6738
        %v7899 = vpack.c.b16 %v6747, %v6739
        %v7900 = vpack.c.b16 %v6748, %v6740
        %v7901 = vpack.c.b16 %v6749, %v6741
        %v7902 = vpack.c.b16 %v6758, %v6750
        %v7903 = vpack.c.b16 %v6759, %v6751
        %v7904 = vpack.c.b16 %v6760, %v6752
        %v7905 = vpack.c.b16 %v6761, %v6753
        %v7906 = vpack.c.b16 %v6762, %v6754
        %v7907 = vpack.c.b16 %v6763, %v6755
        %v7908 = vpack.c.b16 %v6764, %v6756
        %v7909 = vpack.c.b16 %v6765, %v6757
        %v7910 = vpack.c.b16 %v6774, %v6766
        %v7911 = vpack.c.b16 %v6775, %v6767
        %v7912 = vpack.c.b16 %v6776, %v6768
        %v7913 = vpack.c.b16 %v6777, %v6769
        %v7914 = vpack.c.b16 %v6778, %v6770
        %v7915 = vpack.c.b16 %v6779, %v6771
        %v7916 = vpack.c.b16 %v6780, %v6772
        %v7917 = vpack.c.b16 %v6781, %v6773
        %v7918 = vpack.c.b16 %v6790, %v6782
        %v7919 = vpack.c.b16 %v6791, %v6783
        %v7920 = vpack.c.b16 %v6792, %v6784
        %v7921 = vpack.c.b16 %v6793, %v6785
        %v7922 = vpack.c.b16 %v6794, %v6786
        %v7923 = vpack.c.b16 %v6795, %v6787
        %v7924 = vpack.c.b16 %v6796, %v6788
        %v7925 = vpack.c.b16 %v6797, %v6789
        %v7926 = vpack.c.b16 %v6806, %v6798
        %v7927 = vpack.c.b16 %v6807, %v6799
        %v7928 = vpack.c.b16 %v6808, %v6800
        %v7929 = vpack.c.b16 %v6809, %v6801
        %v7930 = vpack.c.b16 %v6810, %v6802
        %v7931 = vpack.c.b16 %v6811, %v6803
        %v7932 = vpack.c.b16 %v6812, %v6804
        %v7933 = vpack.c.b16 %v6813, %v6805
        %v7934 = vpack.c.b16 %v6822, %v6814
        %v7935 = vpack.c.b16 %v6823, %v6815
        %v7936 = vpack.c.b16 %v6824, %v6816
        %v7937 = vpack.c.b16 %v6825, %v6817
        %v7938 = vpack.c.b16 %v6826, %v6818
        %v7939 = vpack.c.b16 %v6827, %v6819
        %v7940 = vpack.c.b16 %v6828, %v6820
        %v7941 = vpack.c.b16 %v6829, %v6821
        %v7942 = vpack.c.b16 %v6838, %v6830
        %v7943 = vpack.c.b16 %v6839, %v6831
        %v7944 = vpack.c.b16 %v6840, %v6832
        %v7945 = vpack.c.b16 %v6841, %v6833
        %v7946 = vpack.c.b16 %v6842, %v6834
        %v7947 = vpack.c.b16 %v6843, %v6835
        %v7948 = vpack.c.b16 %v6844, %v6836
        %v7949 = vpack.c.b16 %v6845, %v6837
        %v7950 = vpack.c.b16 %v6854, %v6846
        %v7951 = vpack.c.b16 %v6855, %v6847
        %v7952 = vpack.c.b16 %v6856, %v6848
        %v7953 = vpack.c.b16 %v6857, %v6849
        %v7954 = vpack.c.b16 %v6858, %v6850
        %v7955 = vpack.c.b16 %v6859, %v6851
        %v7956 = vpack.c.b16 %v6860, %v6852
        %v7957 = vpack.c.b16 %v6861, %v6853
        %v7958 = vpack.c.b16 %v6870, %v6862
        %v7959 = vpack.c.b16 %v6871, %v6863
        %v7960 = vpack.c.b16 %v6872, %v6864
        %v7961 = vpack.c.b16 %v6873, %v6865
        %v7962 = vpack.c.b16 %v6874, %v6866
        %v7963 = vpack.c.b16 %v6875, %v6867
        %v7964 = vpack.c.b16 %v6876, %v6868
        %v7965 = vpack.c.b16 %v6877, %v6869
        %v7966 = vpack.c.b16 %v6886, %v6878
        %v7967 = vpack.c.b16 %v6887, %v6879
        %v7968 = vpack.c.b16 %v6888, %v6880
        %v7969 = vpack.c.b16 %v6889, %v6881
        %v7970 = vpack.c.b16 %v6890, %v6882
        %v7971 = vpack.c.b16 %v6891, %v6883
        %v7972 = vpack.c.b16 %v6892, %v6884
        %v7973 = vpack.c.b16 %v6893, %v6885
        %v7974 = vpack.c.b16 %v6902, %v6894
        %v7975 = vpack.c.b16 %v6903, %v6895
        %v7976 = vpack.c.b16 %v6904, %v6896
        %v7977 = vpack.c.b16 %v6905, %v6897
        %v7978 = vpack.c.b16 %v6906, %v6898
        %v7979 = vpack.c.b16 %v6907, %v6899
        %v7980 = vpack.c.b16 %v6908, %v6900
        %v7981 = vpack.c.b16 %v6909, %v6901
        %v7982 = vpack.c.b16 %v6918, %v6910
        %v7983 = vpack.c.b16 %v6919, %v6911
        %v7984 = vpack.c.b16 %v6920, %v6912
        %v7985 = vpack.c.b16 %v6921, %v6913
        %v7986 = vpack.c.b16 %v6922, %v6914
        %v7987 = vpack.c.b16 %v6923, %v6915
        %v7988 = vpack.c.b16 %v6924, %v6916
        %v7989 = vpack.c.b16 %v6925, %v6917
        %v7990 = vpack.c.b16 %v6934, %v6926
        %v7991 = vpack.c.b16 %v6935, %v6927
        %v7992 = vpack.c.b16 %v6936, %v6928
        %v7993 = vpack.c.b16 %v6937, %v6929
        %v7994 = vpack.c.b16 %v6938, %v6930
        %v7995 = vpack.c.b16 %v6939, %v6931
        %v7996 = vpack.c.b16 %v6940, %v6932
        %v7997 = vpack.c.b16 %v6941, %v6933
        %v7998 = vpack.c.b16 %v6950, %v6942
        %v7999 = vpack.c.b16 %v6951, %v6943
        %v8000 = vpack.c.b16 %v6952, %v6944
        %v8001 = vpack.c.b16 %v6953, %v6945
        %v8002 = vpack.c.b16 %v6954, %v6946
        %v8003 = vpack.c.b16 %v6955, %v6947
        %v8004 = vpack.c.b16 %v6956, %v6948
        %v8005 = vpack.c.b16 %v6957, %v6949
        %v8006 = vpack.c.b16 %v6966, %v6958
        %v8007 = vpack.c.b16 %v6967, %v6959
        %v8008 = vpack.c.b16 %v6968, %v6960
        %v8009 = vpack.c.b16 %v6969, %v6961
        %v8010 = vpack.c.b16 %v6970, %v6962
        %v8011 = vpack.c.b16 %v6971, %v6963
        %v8012 = vpack.c.b16 %v6972, %v6964
        %v8013 = vpack.c.b16 %v6973, %v6965
        %v8014 = vpack.c.b16 %v6982, %v6974
        %v8015 = vpack.c.b16 %v6983, %v6975
        %v8016 = vpack.c.b16 %v6984, %v6976
        %v8017 = vpack.c.b16 %v6985, %v6977
        %v8018 = vpack.c.b16 %v6986, %v6978
        %v8019 = vpack.c.b16 %v6987, %v6979
        %v8020 = vpack.c.b16 %v6988, %v6980
        %v8021 = vpack.c.b16 %v6989, %v6981
        %v8022 = vpack.c.b16 %v6998, %v6990
        %v8023 = vpack.c.b16 %v6999, %v6991
        %v8024 = vpack.c.b16 %v7000, %v6992
        %v8025 = vpack.c.b16 %v7001, %v6993
        %v8026 = vpack.c.b16 %v7002, %v6994
        %v8027 = vpack.c.b16 %v7003, %v6995
        %v8028 = vpack.c.b16 %v7004, %v6996
        %v8029 = vpack.c.b16 %v7005, %v6997
        %9054 = vmatprep.subr.bf16.mxu0 %v7063
        %9055 = vmatpush1.bf16.msra.mxu0 %v7062
        %9056 = vmatprep.subr.bf16.mxu0 %v7055
        %9057 = vmatpush1.bf16.msra.mxu0 %v7054
        %9058 = vmatprep.subr.bf16.mxu0 %v7047
        %9059 = vmatpush1.bf16.msra.mxu0 %v7046
        %9060 = vmatprep.subr.bf16.mxu0 %v7039
        %9061 = vmatpush1.bf16.msra.mxu0 %v7038
        %9062 = vmatprep.subr.bf16.mxu0 %v7031
        %9063 = vmatpush1.bf16.msra.mxu0 %v7030
        %9064 = vmatprep.subr.bf16.mxu0 %v7023
        %9065 = vmatpush1.bf16.msra.mxu0 %v7022
        %9066 = vmatprep.subr.bf16.mxu0 %v7015
        %9067 = vmatpush1.bf16.msra.mxu0 %v7014
        %9068 = vmatprep.subr.bf16.mxu0 %v7007
        %9069 = vmatpush1.bf16.msra.mxu0 %v7006
        %9070 = vmatprep.subr.bf16.mxu0 %v7127
        %9071 = vmatpush2.bf16.msra.mxu0 %v7126
        %9072 = vmatprep.subr.bf16.mxu0 %v7119
        %9073 = vmatpush2.bf16.msra.mxu0 %v7118
        %9074 = vmatprep.subr.bf16.mxu0 %v7111
        %9075 = vmatpush2.bf16.msra.mxu0 %v7110
        %9076 = vmatprep.subr.bf16.mxu0 %v7103
        %9077 = vmatpush2.bf16.msra.mxu0 %v7102
        %9078 = vmatprep.subr.bf16.mxu0 %v7095
        %9079 = vmatpush2.bf16.msra.mxu0 %v7094
        %9080 = vmatprep.subr.bf16.mxu0 %v7087
        %9081 = vmatpush2.bf16.msra.mxu0 %v7086
        %9082 = vmatprep.subr.bf16.mxu0 %v7079
        %9083 = vmatpush2.bf16.msra.mxu0 %v7078
        %9084 = vmatprep.subr.bf16.mxu0 %v7071
        %9085 = vmatpush2.bf16.msra.mxu0 %v7070
        %9086 = vmatprep.mubr.bf16.mxu0 %v3903
        %9087 = vmatmul.mubr.bf16.gmra.mxu0 %v3902
        %v9088 = vpop.f32.mrf.mxu0
        %v9089 = vadd.f32 %v3841, %v9088
        %v9090 = vpop.f32.mrf.mxu0
        %v9091 = vadd.f32 %v3845, %v9090
        %v9092 = vpop.f32.mrf.mxu0
        %v9093 = vpop.f32.mrf.mxu0
        %9094 = vdwg.mxu0
        %9095 = vmatprep.subr.bf16.mxu0 %v7191
        %9096 = vmatpush1.bf16.msra.mxu0 %v7190
        %9097 = vmatprep.subr.bf16.mxu0 %v7183
        %9098 = vmatpush1.bf16.msra.mxu0 %v7182
        %9099 = vmatprep.subr.bf16.mxu0 %v7175
        %9100 = vmatpush1.bf16.msra.mxu0 %v7174
        %9101 = vmatprep.subr.bf16.mxu0 %v7167
        %9102 = vmatpush1.bf16.msra.mxu0 %v7166
        %9103 = vmatprep.subr.bf16.mxu0 %v7159
        %9104 = vmatpush1.bf16.msra.mxu0 %v7158
        %9105 = vmatprep.subr.bf16.mxu0 %v7151
        %9106 = vmatpush1.bf16.msra.mxu0 %v7150
        %9107 = vmatprep.subr.bf16.mxu0 %v7143
        %9108 = vmatpush1.bf16.msra.mxu0 %v7142
        %9109 = vmatprep.subr.bf16.mxu0 %v7135
        %9110 = vmatpush1.bf16.msra.mxu0 %v7134
        %9111 = vmatprep.subr.bf16.mxu0 %v7255
        %9112 = vmatpush2.bf16.msra.mxu0 %v7254
        %9113 = vmatprep.subr.bf16.mxu0 %v7247
        %9114 = vmatpush2.bf16.msra.mxu0 %v7246
        %9115 = vmatprep.subr.bf16.mxu0 %v7239
        %9116 = vmatpush2.bf16.msra.mxu0 %v7238
        %9117 = vmatprep.subr.bf16.mxu0 %v7231
        %9118 = vmatpush2.bf16.msra.mxu0 %v7230
        %9119 = vmatprep.subr.bf16.mxu0 %v7223
        %9120 = vmatpush2.bf16.msra.mxu0 %v7222
        %9121 = vmatprep.subr.bf16.mxu0 %v7215
        %9122 = vmatpush2.bf16.msra.mxu0 %v7214
        %9123 = vmatprep.subr.bf16.mxu0 %v7207
        %9124 = vmatpush2.bf16.msra.mxu0 %v7206
        %9125 = vmatprep.subr.bf16.mxu0 %v7199
        %9126 = vmatpush2.bf16.msra.mxu0 %v7198
        %9127 = vmatprep.mubr.bf16.mxu0 %v3905
        %9128 = vmatmul.mubr.bf16.gmra.mxu0 %v3904
        %v9129 = vpop.f32.mrf.mxu0
        %v9130 = vadd.f32 %v9089, %v9129
        %v9131 = vpop.f32.mrf.mxu0
        %v9132 = vadd.f32 %v9091, %v9131
        %v9133 = vpop.f32.mrf.mxu0
        %v9134 = vpop.f32.mrf.mxu0
        %9135 = vdwg.mxu0
        %9136 = vmatprep.subr.bf16.mxu0 %v7319
        %9137 = vmatpush1.bf16.msra.mxu0 %v7318
        %9138 = vmatprep.subr.bf16.mxu0 %v7311
        %9139 = vmatpush1.bf16.msra.mxu0 %v7310
        %9140 = vmatprep.subr.bf16.mxu0 %v7303
        %9141 = vmatpush1.bf16.msra.mxu0 %v7302
        %9142 = vmatprep.subr.bf16.mxu0 %v7295
        %9143 = vmatpush1.bf16.msra.mxu0 %v7294
        %9144 = vmatprep.subr.bf16.mxu0 %v7287
        %9145 = vmatpush1.bf16.msra.mxu0 %v7286
        %9146 = vmatprep.subr.bf16.mxu0 %v7279
        %9147 = vmatpush1.bf16.msra.mxu0 %v7278
        %9148 = vmatprep.subr.bf16.mxu0 %v7271
        %9149 = vmatpush1.bf16.msra.mxu0 %v7270
        %9150 = vmatprep.subr.bf16.mxu0 %v7263
        %9151 = vmatpush1.bf16.msra.mxu0 %v7262
        %9152 = vmatprep.subr.bf16.mxu0 %v7383
        %9153 = vmatpush2.bf16.msra.mxu0 %v7382
        %9154 = vmatprep.subr.bf16.mxu0 %v7375
        %9155 = vmatpush2.bf16.msra.mxu0 %v7374
        %9156 = vmatprep.subr.bf16.mxu0 %v7367
        %9157 = vmatpush2.bf16.msra.mxu0 %v7366
        %9158 = vmatprep.subr.bf16.mxu0 %v7359
        %9159 = vmatpush2.bf16.msra.mxu0 %v7358
        %9160 = vmatprep.subr.bf16.mxu0 %v7351
        %9161 = vmatpush2.bf16.msra.mxu0 %v7350
        %9162 = vmatprep.subr.bf16.mxu0 %v7343
        %9163 = vmatpush2.bf16.msra.mxu0 %v7342
        %9164 = vmatprep.subr.bf16.mxu0 %v7335
        %9165 = vmatpush2.bf16.msra.mxu0 %v7334
        %9166 = vmatprep.subr.bf16.mxu0 %v7327
        %9167 = vmatpush2.bf16.msra.mxu0 %v7326
        %9168 = vmatprep.mubr.bf16.mxu0 %v3907
        %9169 = vmatmul.mubr.bf16.gmra.mxu0 %v3906
        %v9170 = vpop.f32.mrf.mxu0
        %v9171 = vadd.f32 %v9130, %v9170
        %v9172 = vpop.f32.mrf.mxu0
        %v9173 = vadd.f32 %v9132, %v9172
        %v9174 = vpop.f32.mrf.mxu0
        %v9175 = vpop.f32.mrf.mxu0
        %9176 = vdwg.mxu0
        %9177 = vmatprep.subr.bf16.mxu0 %v7447
        %9178 = vmatpush1.bf16.msra.mxu0 %v7446
        %9179 = vmatprep.subr.bf16.mxu0 %v7439
        %9180 = vmatpush1.bf16.msra.mxu0 %v7438
        %9181 = vmatprep.subr.bf16.mxu0 %v7431
        %9182 = vmatpush1.bf16.msra.mxu0 %v7430
        %9183 = vmatprep.subr.bf16.mxu0 %v7423
        %9184 = vmatpush1.bf16.msra.mxu0 %v7422
        %9185 = vmatprep.subr.bf16.mxu0 %v7415
        %9186 = vmatpush1.bf16.msra.mxu0 %v7414
        %9187 = vmatprep.subr.bf16.mxu0 %v7407
        %9188 = vmatpush1.bf16.msra.mxu0 %v7406
        %9189 = vmatprep.subr.bf16.mxu0 %v7399
        %9190 = vmatpush1.bf16.msra.mxu0 %v7398
        %9191 = vmatprep.subr.bf16.mxu0 %v7391
        %9192 = vmatpush1.bf16.msra.mxu0 %v7390
        %9193 = vmatprep.subr.bf16.mxu0 %v7511
        %9194 = vmatpush2.bf16.msra.mxu0 %v7510
        %9195 = vmatprep.subr.bf16.mxu0 %v7503
        %9196 = vmatpush2.bf16.msra.mxu0 %v7502
        %9197 = vmatprep.subr.bf16.mxu0 %v7495
        %9198 = vmatpush2.bf16.msra.mxu0 %v7494
        %9199 = vmatprep.subr.bf16.mxu0 %v7487
        %9200 = vmatpush2.bf16.msra.mxu0 %v7486
        %9201 = vmatprep.subr.bf16.mxu0 %v7479
        %9202 = vmatpush2.bf16.msra.mxu0 %v7478
        %9203 = vmatprep.subr.bf16.mxu0 %v7471
        %9204 = vmatpush2.bf16.msra.mxu0 %v7470
        %9205 = vmatprep.subr.bf16.mxu0 %v7463
        %9206 = vmatpush2.bf16.msra.mxu0 %v7462
        %9207 = vmatprep.subr.bf16.mxu0 %v7455
        %9208 = vmatpush2.bf16.msra.mxu0 %v7454
        %9209 = vmatprep.mubr.bf16.mxu0 %v3909
        %9210 = vmatmul.mubr.bf16.gmra.mxu0 %v3908
        %v9211 = vpop.f32.mrf.mxu0
        %v9212 = vadd.f32 %v9171, %v9211
        %v9213 = vpop.f32.mrf.mxu0
        %v9214 = vadd.f32 %v9173, %v9213
        %v9215 = vpop.f32.mrf.mxu0
        %v9216 = vpop.f32.mrf.mxu0
        %9217 = vdwg.mxu0
        %9218 = vmatprep.subr.bf16.mxu0 %v7575
        %9219 = vmatpush1.bf16.msra.mxu0 %v7574
        %9220 = vmatprep.subr.bf16.mxu0 %v7567
        %9221 = vmatpush1.bf16.msra.mxu0 %v7566
        %9222 = vmatprep.subr.bf16.mxu0 %v7559
        %9223 = vmatpush1.bf16.msra.mxu0 %v7558
        %9224 = vmatprep.subr.bf16.mxu0 %v7551
        %9225 = vmatpush1.bf16.msra.mxu0 %v7550
        %9226 = vmatprep.subr.bf16.mxu0 %v7543
        %9227 = vmatpush1.bf16.msra.mxu0 %v7542
        %9228 = vmatprep.subr.bf16.mxu0 %v7535
        %9229 = vmatpush1.bf16.msra.mxu0 %v7534
        %9230 = vmatprep.subr.bf16.mxu0 %v7527
        %9231 = vmatpush1.bf16.msra.mxu0 %v7526
        %9232 = vmatprep.subr.bf16.mxu0 %v7519
        %9233 = vmatpush1.bf16.msra.mxu0 %v7518
        %9234 = vmatprep.subr.bf16.mxu0 %v7639
        %9235 = vmatpush2.bf16.msra.mxu0 %v7638
        %9236 = vmatprep.subr.bf16.mxu0 %v7631
        %9237 = vmatpush2.bf16.msra.mxu0 %v7630
        %9238 = vmatprep.subr.bf16.mxu0 %v7623
        %9239 = vmatpush2.bf16.msra.mxu0 %v7622
        %9240 = vmatprep.subr.bf16.mxu0 %v7615
        %9241 = vmatpush2.bf16.msra.mxu0 %v7614
        %9242 = vmatprep.subr.bf16.mxu0 %v7607
        %9243 = vmatpush2.bf16.msra.mxu0 %v7606
        %9244 = vmatprep.subr.bf16.mxu0 %v7599
        %9245 = vmatpush2.bf16.msra.mxu0 %v7598
        %9246 = vmatprep.subr.bf16.mxu0 %v7591
        %9247 = vmatpush2.bf16.msra.mxu0 %v7590
        %9248 = vmatprep.subr.bf16.mxu0 %v7583
        %9249 = vmatpush2.bf16.msra.mxu0 %v7582
        %9250 = vmatprep.mubr.bf16.mxu0 %v3911
        %9251 = vmatmul.mubr.bf16.gmra.mxu0 %v3910
        %v9252 = vpop.f32.mrf.mxu0
        %v9253 = vadd.f32 %v9212, %v9252
        %v9254 = vpop.f32.mrf.mxu0
        %v9255 = vadd.f32 %v9214, %v9254
        %v9256 = vpop.f32.mrf.mxu0
        %v9257 = vpop.f32.mrf.mxu0
        %9258 = vdwg.mxu0
        %9259 = vmatprep.subr.bf16.mxu0 %v7703
        %9260 = vmatpush1.bf16.msra.mxu0 %v7702
        %9261 = vmatprep.subr.bf16.mxu0 %v7695
        %9262 = vmatpush1.bf16.msra.mxu0 %v7694
        %9263 = vmatprep.subr.bf16.mxu0 %v7687
        %9264 = vmatpush1.bf16.msra.mxu0 %v7686
        %9265 = vmatprep.subr.bf16.mxu0 %v7679
        %9266 = vmatpush1.bf16.msra.mxu0 %v7678
        %9267 = vmatprep.subr.bf16.mxu0 %v7671
        %9268 = vmatpush1.bf16.msra.mxu0 %v7670
        %9269 = vmatprep.subr.bf16.mxu0 %v7663
        %9270 = vmatpush1.bf16.msra.mxu0 %v7662
        %9271 = vmatprep.subr.bf16.mxu0 %v7655
        %9272 = vmatpush1.bf16.msra.mxu0 %v7654
        %9273 = vmatprep.subr.bf16.mxu0 %v7647
        %9274 = vmatpush1.bf16.msra.mxu0 %v7646
        %9275 = vmatprep.subr.bf16.mxu0 %v7767
        %9276 = vmatpush2.bf16.msra.mxu0 %v7766
        %9277 = vmatprep.subr.bf16.mxu0 %v7759
        %9278 = vmatpush2.bf16.msra.mxu0 %v7758
        %9279 = vmatprep.subr.bf16.mxu0 %v7751
        %9280 = vmatpush2.bf16.msra.mxu0 %v7750
        %9281 = vmatprep.subr.bf16.mxu0 %v7743
        %9282 = vmatpush2.bf16.msra.mxu0 %v7742
        %9283 = vmatprep.subr.bf16.mxu0 %v7735
        %9284 = vmatpush2.bf16.msra.mxu0 %v7734
        %9285 = vmatprep.subr.bf16.mxu0 %v7727
        %9286 = vmatpush2.bf16.msra.mxu0 %v7726
        %9287 = vmatprep.subr.bf16.mxu0 %v7719
        %9288 = vmatpush2.bf16.msra.mxu0 %v7718
        %9289 = vmatprep.subr.bf16.mxu0 %v7711
        %9290 = vmatpush2.bf16.msra.mxu0 %v7710
        %9291 = vmatprep.mubr.bf16.mxu0 %v3913
        %9292 = vmatmul.mubr.bf16.gmra.mxu0 %v3912
        %v9293 = vpop.f32.mrf.mxu0
        %v9294 = vadd.f32 %v9253, %v9293
        %v9295 = vpop.f32.mrf.mxu0
        %v9296 = vadd.f32 %v9255, %v9295
        %v9297 = vpop.f32.mrf.mxu0
        %v9298 = vpop.f32.mrf.mxu0
        %9299 = vdwg.mxu0
        %9300 = vmatprep.subr.bf16.mxu0 %v7831
        %9301 = vmatpush1.bf16.msra.mxu0 %v7830
        %9302 = vmatprep.subr.bf16.mxu0 %v7823
        %9303 = vmatpush1.bf16.msra.mxu0 %v7822
        %9304 = vmatprep.subr.bf16.mxu0 %v7815
        %9305 = vmatpush1.bf16.msra.mxu0 %v7814
        %9306 = vmatprep.subr.bf16.mxu0 %v7807
        %9307 = vmatpush1.bf16.msra.mxu0 %v7806
        %9308 = vmatprep.subr.bf16.mxu0 %v7799
        %9309 = vmatpush1.bf16.msra.mxu0 %v7798
        %9310 = vmatprep.subr.bf16.mxu0 %v7791
        %9311 = vmatpush1.bf16.msra.mxu0 %v7790
        %9312 = vmatprep.subr.bf16.mxu0 %v7783
        %9313 = vmatpush1.bf16.msra.mxu0 %v7782
        %9314 = vmatprep.subr.bf16.mxu0 %v7775
        %9315 = vmatpush1.bf16.msra.mxu0 %v7774
        %9316 = vmatprep.subr.bf16.mxu0 %v7895
        %9317 = vmatpush2.bf16.msra.mxu0 %v7894
        %9318 = vmatprep.subr.bf16.mxu0 %v7887
        %9319 = vmatpush2.bf16.msra.mxu0 %v7886
        %9320 = vmatprep.subr.bf16.mxu0 %v7879
        %9321 = vmatpush2.bf16.msra.mxu0 %v7878
        %9322 = vmatprep.subr.bf16.mxu0 %v7871
        %9323 = vmatpush2.bf16.msra.mxu0 %v7870
        %9324 = vmatprep.subr.bf16.mxu0 %v7863
        %9325 = vmatpush2.bf16.msra.mxu0 %v7862
        %9326 = vmatprep.subr.bf16.mxu0 %v7855
        %9327 = vmatpush2.bf16.msra.mxu0 %v7854
        %9328 = vmatprep.subr.bf16.mxu0 %v7847
        %9329 = vmatpush2.bf16.msra.mxu0 %v7846
        %9330 = vmatprep.subr.bf16.mxu0 %v7839
        %9331 = vmatpush2.bf16.msra.mxu0 %v7838
        %9332 = vmatprep.mubr.bf16.mxu0 %v3915
        %9333 = vmatmul.mubr.bf16.gmra.mxu0 %v3914
        %v9334 = vpop.f32.mrf.mxu0
        %v9335 = vadd.f32 %v9294, %v9334
        %v9336 = vpop.f32.mrf.mxu0
        %v9337 = vadd.f32 %v9296, %v9336
        %v9338 = vpop.f32.mrf.mxu0
        %v9339 = vpop.f32.mrf.mxu0
        %9340 = vdwg.mxu0
        %9341 = vmatprep.subr.bf16.mxu0 %v7959
        %9342 = vmatpush1.bf16.msra.mxu0 %v7958
        %9343 = vmatprep.subr.bf16.mxu0 %v7951
        %9344 = vmatpush1.bf16.msra.mxu0 %v7950
        %9345 = vmatprep.subr.bf16.mxu0 %v7943
        %9346 = vmatpush1.bf16.msra.mxu0 %v7942
        %9347 = vmatprep.subr.bf16.mxu0 %v7935
        %9348 = vmatpush1.bf16.msra.mxu0 %v7934
        %9349 = vmatprep.subr.bf16.mxu0 %v7927
        %9350 = vmatpush1.bf16.msra.mxu0 %v7926
        %9351 = vmatprep.subr.bf16.mxu0 %v7919
        %9352 = vmatpush1.bf16.msra.mxu0 %v7918
        %9353 = vmatprep.subr.bf16.mxu0 %v7911
        %9354 = vmatpush1.bf16.msra.mxu0 %v7910
        %9355 = vmatprep.subr.bf16.mxu0 %v7903
        %9356 = vmatpush1.bf16.msra.mxu0 %v7902
        %9357 = vmatprep.subr.bf16.mxu0 %v8023
        %9358 = vmatpush2.bf16.msra.mxu0 %v8022
        %9359 = vmatprep.subr.bf16.mxu0 %v8015
        %9360 = vmatpush2.bf16.msra.mxu0 %v8014
        %9361 = vmatprep.subr.bf16.mxu0 %v8007
        %9362 = vmatpush2.bf16.msra.mxu0 %v8006
        %9363 = vmatprep.subr.bf16.mxu0 %v7999
        %9364 = vmatpush2.bf16.msra.mxu0 %v7998
        %9365 = vmatprep.subr.bf16.mxu0 %v7991
        %9366 = vmatpush2.bf16.msra.mxu0 %v7990
        %9367 = vmatprep.subr.bf16.mxu0 %v7983
        %9368 = vmatpush2.bf16.msra.mxu0 %v7982
        %9369 = vmatprep.subr.bf16.mxu0 %v7975
        %9370 = vmatpush2.bf16.msra.mxu0 %v7974
        %9371 = vmatprep.subr.bf16.mxu0 %v7967
        %9372 = vmatpush2.bf16.msra.mxu0 %v7966
        %9373 = vmatprep.mubr.bf16.mxu0 %v3917
        %9374 = vmatmul.mubr.bf16.gmra.mxu0 %v3916
        %v9375 = vpop.f32.mrf.mxu0
        %v9376 = vadd.f32 %v9335, %v9375
        %v9377 = vpop.f32.mrf.mxu0
        %v9378 = vadd.f32 %v9337, %v9377
        %v9379 = vpop.f32.mrf.mxu0
        %v9380 = vpop.f32.mrf.mxu0
        %9381 = vdwg.mxu0
        %9382 = vmatprep.subr.bf16.mxu0 %v7065
        %9383 = vmatpush1.bf16.msra.mxu0 %v7064
        %9384 = vmatprep.subr.bf16.mxu0 %v7057
        %9385 = vmatpush1.bf16.msra.mxu0 %v7056
        %9386 = vmatprep.subr.bf16.mxu0 %v7049
        %9387 = vmatpush1.bf16.msra.mxu0 %v7048
        %9388 = vmatprep.subr.bf16.mxu0 %v7041
        %9389 = vmatpush1.bf16.msra.mxu0 %v7040
        %9390 = vmatprep.subr.bf16.mxu0 %v7033
        %9391 = vmatpush1.bf16.msra.mxu0 %v7032
        %9392 = vmatprep.subr.bf16.mxu0 %v7025
        %9393 = vmatpush1.bf16.msra.mxu0 %v7024
        %9394 = vmatprep.subr.bf16.mxu0 %v7017
        %9395 = vmatpush1.bf16.msra.mxu0 %v7016
        %9396 = vmatprep.subr.bf16.mxu0 %v7009
        %9397 = vmatpush1.bf16.msra.mxu0 %v7008
        %9398 = vmatprep.subr.bf16.mxu0 %v7129
        %9399 = vmatpush2.bf16.msra.mxu0 %v7128
        %9400 = vmatprep.subr.bf16.mxu0 %v7121
        %9401 = vmatpush2.bf16.msra.mxu0 %v7120
        %9402 = vmatprep.subr.bf16.mxu0 %v7113
        %9403 = vmatpush2.bf16.msra.mxu0 %v7112
        %9404 = vmatprep.subr.bf16.mxu0 %v7105
        %9405 = vmatpush2.bf16.msra.mxu0 %v7104
        %9406 = vmatprep.subr.bf16.mxu0 %v7097
        %9407 = vmatpush2.bf16.msra.mxu0 %v7096
        %9408 = vmatprep.subr.bf16.mxu0 %v7089
        %9409 = vmatpush2.bf16.msra.mxu0 %v7088
        %9410 = vmatprep.subr.bf16.mxu0 %v7081
        %9411 = vmatpush2.bf16.msra.mxu0 %v7080
        %9412 = vmatprep.subr.bf16.mxu0 %v7073
        %9413 = vmatpush2.bf16.msra.mxu0 %v7072
        %9414 = vmatprep.mubr.bf16.mxu0 %v3903
        %9415 = vmatmul.mubr.bf16.gmra.mxu0 %v3902
        %v9416 = vpop.f32.mrf.mxu0
        %v9417 = vadd.f32 %v3849, %v9416
        %v9418 = vpop.f32.mrf.mxu0
        %v9419 = vadd.f32 %v3853, %v9418
        %v9420 = vpop.f32.mrf.mxu0
        %v9421 = vpop.f32.mrf.mxu0
        %9422 = vdwg.mxu0
        %9423 = vmatprep.subr.bf16.mxu0 %v7193
        %9424 = vmatpush1.bf16.msra.mxu0 %v7192
        %9425 = vmatprep.subr.bf16.mxu0 %v7185
        %9426 = vmatpush1.bf16.msra.mxu0 %v7184
        %9427 = vmatprep.subr.bf16.mxu0 %v7177
        %9428 = vmatpush1.bf16.msra.mxu0 %v7176
        %9429 = vmatprep.subr.bf16.mxu0 %v7169
        %9430 = vmatpush1.bf16.msra.mxu0 %v7168
        %9431 = vmatprep.subr.bf16.mxu0 %v7161
        %9432 = vmatpush1.bf16.msra.mxu0 %v7160
        %9433 = vmatprep.subr.bf16.mxu0 %v7153
        %9434 = vmatpush1.bf16.msra.mxu0 %v7152
        %9435 = vmatprep.subr.bf16.mxu0 %v7145
        %9436 = vmatpush1.bf16.msra.mxu0 %v7144
        %9437 = vmatprep.subr.bf16.mxu0 %v7137
        %9438 = vmatpush1.bf16.msra.mxu0 %v7136
        %9439 = vmatprep.subr.bf16.mxu0 %v7257
        %9440 = vmatpush2.bf16.msra.mxu0 %v7256
        %9441 = vmatprep.subr.bf16.mxu0 %v7249
        %9442 = vmatpush2.bf16.msra.mxu0 %v7248
        %9443 = vmatprep.subr.bf16.mxu0 %v7241
        %9444 = vmatpush2.bf16.msra.mxu0 %v7240
        %9445 = vmatprep.subr.bf16.mxu0 %v7233
        %9446 = vmatpush2.bf16.msra.mxu0 %v7232
        %9447 = vmatprep.subr.bf16.mxu0 %v7225
        %9448 = vmatpush2.bf16.msra.mxu0 %v7224
        %9449 = vmatprep.subr.bf16.mxu0 %v7217
        %9450 = vmatpush2.bf16.msra.mxu0 %v7216
        %9451 = vmatprep.subr.bf16.mxu0 %v7209
        %9452 = vmatpush2.bf16.msra.mxu0 %v7208
        %9453 = vmatprep.subr.bf16.mxu0 %v7201
        %9454 = vmatpush2.bf16.msra.mxu0 %v7200
        %9455 = vmatprep.mubr.bf16.mxu0 %v3905
        %9456 = vmatmul.mubr.bf16.gmra.mxu0 %v3904
        %v9457 = vpop.f32.mrf.mxu0
        %v9458 = vadd.f32 %v9417, %v9457
        %v9459 = vpop.f32.mrf.mxu0
        %v9460 = vadd.f32 %v9419, %v9459
        %v9461 = vpop.f32.mrf.mxu0
        %v9462 = vpop.f32.mrf.mxu0
        %9463 = vdwg.mxu0
        %9464 = vmatprep.subr.bf16.mxu0 %v7321
        %9465 = vmatpush1.bf16.msra.mxu0 %v7320
        %9466 = vmatprep.subr.bf16.mxu0 %v7313
        %9467 = vmatpush1.bf16.msra.mxu0 %v7312
        %9468 = vmatprep.subr.bf16.mxu0 %v7305
        %9469 = vmatpush1.bf16.msra.mxu0 %v7304
        %9470 = vmatprep.subr.bf16.mxu0 %v7297
        %9471 = vmatpush1.bf16.msra.mxu0 %v7296
        %9472 = vmatprep.subr.bf16.mxu0 %v7289
        %9473 = vmatpush1.bf16.msra.mxu0 %v7288
        %9474 = vmatprep.subr.bf16.mxu0 %v7281
        %9475 = vmatpush1.bf16.msra.mxu0 %v7280
        %9476 = vmatprep.subr.bf16.mxu0 %v7273
        %9477 = vmatpush1.bf16.msra.mxu0 %v7272
        %9478 = vmatprep.subr.bf16.mxu0 %v7265
        %9479 = vmatpush1.bf16.msra.mxu0 %v7264
        %9480 = vmatprep.subr.bf16.mxu0 %v7385
        %9481 = vmatpush2.bf16.msra.mxu0 %v7384
        %9482 = vmatprep.subr.bf16.mxu0 %v7377
        %9483 = vmatpush2.bf16.msra.mxu0 %v7376
        %9484 = vmatprep.subr.bf16.mxu0 %v7369
        %9485 = vmatpush2.bf16.msra.mxu0 %v7368
        %9486 = vmatprep.subr.bf16.mxu0 %v7361
        %9487 = vmatpush2.bf16.msra.mxu0 %v7360
        %9488 = vmatprep.subr.bf16.mxu0 %v7353
        %9489 = vmatpush2.bf16.msra.mxu0 %v7352
        %9490 = vmatprep.subr.bf16.mxu0 %v7345
        %9491 = vmatpush2.bf16.msra.mxu0 %v7344
        %9492 = vmatprep.subr.bf16.mxu0 %v7337
        %9493 = vmatpush2.bf16.msra.mxu0 %v7336
        %9494 = vmatprep.subr.bf16.mxu0 %v7329
        %9495 = vmatpush2.bf16.msra.mxu0 %v7328
        %9496 = vmatprep.mubr.bf16.mxu0 %v3907
        %9497 = vmatmul.mubr.bf16.gmra.mxu0 %v3906
        %v9498 = vpop.f32.mrf.mxu0
        %v9499 = vadd.f32 %v9458, %v9498
        %v9500 = vpop.f32.mrf.mxu0
        %v9501 = vadd.f32 %v9460, %v9500
        %v9502 = vpop.f32.mrf.mxu0
        %v9503 = vpop.f32.mrf.mxu0
        %9504 = vdwg.mxu0
        %9505 = vmatprep.subr.bf16.mxu0 %v7449
        %9506 = vmatpush1.bf16.msra.mxu0 %v7448
        %9507 = vmatprep.subr.bf16.mxu0 %v7441
        %9508 = vmatpush1.bf16.msra.mxu0 %v7440
        %9509 = vmatprep.subr.bf16.mxu0 %v7433
        %9510 = vmatpush1.bf16.msra.mxu0 %v7432
        %9511 = vmatprep.subr.bf16.mxu0 %v7425
        %9512 = vmatpush1.bf16.msra.mxu0 %v7424
        %9513 = vmatprep.subr.bf16.mxu0 %v7417
        %9514 = vmatpush1.bf16.msra.mxu0 %v7416
        %9515 = vmatprep.subr.bf16.mxu0 %v7409
        %9516 = vmatpush1.bf16.msra.mxu0 %v7408
        %9517 = vmatprep.subr.bf16.mxu0 %v7401
        %9518 = vmatpush1.bf16.msra.mxu0 %v7400
        %9519 = vmatprep.subr.bf16.mxu0 %v7393
        %9520 = vmatpush1.bf16.msra.mxu0 %v7392
        %9521 = vmatprep.subr.bf16.mxu0 %v7513
        %9522 = vmatpush2.bf16.msra.mxu0 %v7512
        %9523 = vmatprep.subr.bf16.mxu0 %v7505
        %9524 = vmatpush2.bf16.msra.mxu0 %v7504
        %9525 = vmatprep.subr.bf16.mxu0 %v7497
        %9526 = vmatpush2.bf16.msra.mxu0 %v7496
        %9527 = vmatprep.subr.bf16.mxu0 %v7489
        %9528 = vmatpush2.bf16.msra.mxu0 %v7488
        %9529 = vmatprep.subr.bf16.mxu0 %v7481
        %9530 = vmatpush2.bf16.msra.mxu0 %v7480
        %9531 = vmatprep.subr.bf16.mxu0 %v7473
        %9532 = vmatpush2.bf16.msra.mxu0 %v7472
        %9533 = vmatprep.subr.bf16.mxu0 %v7465
        %9534 = vmatpush2.bf16.msra.mxu0 %v7464
        %9535 = vmatprep.subr.bf16.mxu0 %v7457
        %9536 = vmatpush2.bf16.msra.mxu0 %v7456
        %9537 = vmatprep.mubr.bf16.mxu0 %v3909
        %9538 = vmatmul.mubr.bf16.gmra.mxu0 %v3908
        %v9539 = vpop.f32.mrf.mxu0
        %v9540 = vadd.f32 %v9499, %v9539
        %v9541 = vpop.f32.mrf.mxu0
        %v9542 = vadd.f32 %v9501, %v9541
        %v9543 = vpop.f32.mrf.mxu0
        %v9544 = vpop.f32.mrf.mxu0
        %9545 = vdwg.mxu0
        %9546 = vmatprep.subr.bf16.mxu0 %v7577
        %9547 = vmatpush1.bf16.msra.mxu0 %v7576
        %9548 = vmatprep.subr.bf16.mxu0 %v7569
        %9549 = vmatpush1.bf16.msra.mxu0 %v7568
        %9550 = vmatprep.subr.bf16.mxu0 %v7561
        %9551 = vmatpush1.bf16.msra.mxu0 %v7560
        %9552 = vmatprep.subr.bf16.mxu0 %v7553
        %9553 = vmatpush1.bf16.msra.mxu0 %v7552
        %9554 = vmatprep.subr.bf16.mxu0 %v7545
        %9555 = vmatpush1.bf16.msra.mxu0 %v7544
        %9556 = vmatprep.subr.bf16.mxu0 %v7537
        %9557 = vmatpush1.bf16.msra.mxu0 %v7536
        %9558 = vmatprep.subr.bf16.mxu0 %v7529
        %9559 = vmatpush1.bf16.msra.mxu0 %v7528
        %9560 = vmatprep.subr.bf16.mxu0 %v7521
        %9561 = vmatpush1.bf16.msra.mxu0 %v7520
        %9562 = vmatprep.subr.bf16.mxu0 %v7641
        %9563 = vmatpush2.bf16.msra.mxu0 %v7640
        %9564 = vmatprep.subr.bf16.mxu0 %v7633
        %9565 = vmatpush2.bf16.msra.mxu0 %v7632
        %9566 = vmatprep.subr.bf16.mxu0 %v7625
        %9567 = vmatpush2.bf16.msra.mxu0 %v7624
        %9568 = vmatprep.subr.bf16.mxu0 %v7617
        %9569 = vmatpush2.bf16.msra.mxu0 %v7616
        %9570 = vmatprep.subr.bf16.mxu0 %v7609
        %9571 = vmatpush2.bf16.msra.mxu0 %v7608
        %9572 = vmatprep.subr.bf16.mxu0 %v7601
        %9573 = vmatpush2.bf16.msra.mxu0 %v7600
        %9574 = vmatprep.subr.bf16.mxu0 %v7593
        %9575 = vmatpush2.bf16.msra.mxu0 %v7592
        %9576 = vmatprep.subr.bf16.mxu0 %v7585
        %9577 = vmatpush2.bf16.msra.mxu0 %v7584
        %9578 = vmatprep.mubr.bf16.mxu0 %v3911
        %9579 = vmatmul.mubr.bf16.gmra.mxu0 %v3910
        %v9580 = vpop.f32.mrf.mxu0
        %v9581 = vadd.f32 %v9540, %v9580
        %v9582 = vpop.f32.mrf.mxu0
        %v9583 = vadd.f32 %v9542, %v9582
        %v9584 = vpop.f32.mrf.mxu0
        %v9585 = vpop.f32.mrf.mxu0
        %9586 = vdwg.mxu0
        %9587 = vmatprep.subr.bf16.mxu0 %v7705
        %9588 = vmatpush1.bf16.msra.mxu0 %v7704
        %9589 = vmatprep.subr.bf16.mxu0 %v7697
        %9590 = vmatpush1.bf16.msra.mxu0 %v7696
        %9591 = vmatprep.subr.bf16.mxu0 %v7689
        %9592 = vmatpush1.bf16.msra.mxu0 %v7688
        %9593 = vmatprep.subr.bf16.mxu0 %v7681
        %9594 = vmatpush1.bf16.msra.mxu0 %v7680
        %9595 = vmatprep.subr.bf16.mxu0 %v7673
        %9596 = vmatpush1.bf16.msra.mxu0 %v7672
        %9597 = vmatprep.subr.bf16.mxu0 %v7665
        %9598 = vmatpush1.bf16.msra.mxu0 %v7664
        %9599 = vmatprep.subr.bf16.mxu0 %v7657
        %9600 = vmatpush1.bf16.msra.mxu0 %v7656
        %9601 = vmatprep.subr.bf16.mxu0 %v7649
        %9602 = vmatpush1.bf16.msra.mxu0 %v7648
        %9603 = vmatprep.subr.bf16.mxu0 %v7769
        %9604 = vmatpush2.bf16.msra.mxu0 %v7768
        %9605 = vmatprep.subr.bf16.mxu0 %v7761
        %9606 = vmatpush2.bf16.msra.mxu0 %v7760
        %9607 = vmatprep.subr.bf16.mxu0 %v7753
        %9608 = vmatpush2.bf16.msra.mxu0 %v7752
        %9609 = vmatprep.subr.bf16.mxu0 %v7745
        %9610 = vmatpush2.bf16.msra.mxu0 %v7744
        %9611 = vmatprep.subr.bf16.mxu0 %v7737
        %9612 = vmatpush2.bf16.msra.mxu0 %v7736
        %9613 = vmatprep.subr.bf16.mxu0 %v7729
        %9614 = vmatpush2.bf16.msra.mxu0 %v7728
        %9615 = vmatprep.subr.bf16.mxu0 %v7721
        %9616 = vmatpush2.bf16.msra.mxu0 %v7720
        %9617 = vmatprep.subr.bf16.mxu0 %v7713
        %9618 = vmatpush2.bf16.msra.mxu0 %v7712
        %9619 = vmatprep.mubr.bf16.mxu0 %v3913
        %9620 = vmatmul.mubr.bf16.gmra.mxu0 %v3912
        %v9621 = vpop.f32.mrf.mxu0
        %v9622 = vadd.f32 %v9581, %v9621
        %v9623 = vpop.f32.mrf.mxu0
        %v9624 = vadd.f32 %v9583, %v9623
        %v9625 = vpop.f32.mrf.mxu0
        %v9626 = vpop.f32.mrf.mxu0
        %9627 = vdwg.mxu0
        %9628 = vmatprep.subr.bf16.mxu0 %v7833
        %9629 = vmatpush1.bf16.msra.mxu0 %v7832
        %9630 = vmatprep.subr.bf16.mxu0 %v7825
        %9631 = vmatpush1.bf16.msra.mxu0 %v7824
        %9632 = vmatprep.subr.bf16.mxu0 %v7817
        %9633 = vmatpush1.bf16.msra.mxu0 %v7816
        %9634 = vmatprep.subr.bf16.mxu0 %v7809
        %9635 = vmatpush1.bf16.msra.mxu0 %v7808
        %9636 = vmatprep.subr.bf16.mxu0 %v7801
        %9637 = vmatpush1.bf16.msra.mxu0 %v7800
        %9638 = vmatprep.subr.bf16.mxu0 %v7793
        %9639 = vmatpush1.bf16.msra.mxu0 %v7792
        %9640 = vmatprep.subr.bf16.mxu0 %v7785
        %9641 = vmatpush1.bf16.msra.mxu0 %v7784
        %9642 = vmatprep.subr.bf16.mxu0 %v7777
        %9643 = vmatpush1.bf16.msra.mxu0 %v7776
        %9644 = vmatprep.subr.bf16.mxu0 %v7897
        %9645 = vmatpush2.bf16.msra.mxu0 %v7896
        %9646 = vmatprep.subr.bf16.mxu0 %v7889
        %9647 = vmatpush2.bf16.msra.mxu0 %v7888
        %9648 = vmatprep.subr.bf16.mxu0 %v7881
        %9649 = vmatpush2.bf16.msra.mxu0 %v7880
        %9650 = vmatprep.subr.bf16.mxu0 %v7873
        %9651 = vmatpush2.bf16.msra.mxu0 %v7872
        %9652 = vmatprep.subr.bf16.mxu0 %v7865
        %9653 = vmatpush2.bf16.msra.mxu0 %v7864
        %9654 = vmatprep.subr.bf16.mxu0 %v7857
        %9655 = vmatpush2.bf16.msra.mxu0 %v7856
        %9656 = vmatprep.subr.bf16.mxu0 %v7849
        %9657 = vmatpush2.bf16.msra.mxu0 %v7848
        %9658 = vmatprep.subr.bf16.mxu0 %v7841
        %9659 = vmatpush2.bf16.msra.mxu0 %v7840
        %9660 = vmatprep.mubr.bf16.mxu0 %v3915
        %9661 = vmatmul.mubr.bf16.gmra.mxu0 %v3914
        %v9662 = vpop.f32.mrf.mxu0
        %v9663 = vadd.f32 %v9622, %v9662
        %v9664 = vpop.f32.mrf.mxu0
        %v9665 = vadd.f32 %v9624, %v9664
        %v9666 = vpop.f32.mrf.mxu0
        %v9667 = vpop.f32.mrf.mxu0
        %9668 = vdwg.mxu0
        %9669 = vmatprep.subr.bf16.mxu0 %v7961
        %9670 = vmatpush1.bf16.msra.mxu0 %v7960
        %9671 = vmatprep.subr.bf16.mxu0 %v7953
        %9672 = vmatpush1.bf16.msra.mxu0 %v7952
        %9673 = vmatprep.subr.bf16.mxu0 %v7945
        %9674 = vmatpush1.bf16.msra.mxu0 %v7944
        %9675 = vmatprep.subr.bf16.mxu0 %v7937
        %9676 = vmatpush1.bf16.msra.mxu0 %v7936
        %9677 = vmatprep.subr.bf16.mxu0 %v7929
        %9678 = vmatpush1.bf16.msra.mxu0 %v7928
        %9679 = vmatprep.subr.bf16.mxu0 %v7921
        %9680 = vmatpush1.bf16.msra.mxu0 %v7920
        %9681 = vmatprep.subr.bf16.mxu0 %v7913
        %9682 = vmatpush1.bf16.msra.mxu0 %v7912
        %9683 = vmatprep.subr.bf16.mxu0 %v7905
        %9684 = vmatpush1.bf16.msra.mxu0 %v7904
        %9685 = vmatprep.subr.bf16.mxu0 %v8025
        %9686 = vmatpush2.bf16.msra.mxu0 %v8024
        %9687 = vmatprep.subr.bf16.mxu0 %v8017
        %9688 = vmatpush2.bf16.msra.mxu0 %v8016
        %9689 = vmatprep.subr.bf16.mxu0 %v8009
        %9690 = vmatpush2.bf16.msra.mxu0 %v8008
        %9691 = vmatprep.subr.bf16.mxu0 %v8001
        %9692 = vmatpush2.bf16.msra.mxu0 %v8000
        %9693 = vmatprep.subr.bf16.mxu0 %v7993
        %9694 = vmatpush2.bf16.msra.mxu0 %v7992
        %9695 = vmatprep.subr.bf16.mxu0 %v7985
        %9696 = vmatpush2.bf16.msra.mxu0 %v7984
        %9697 = vmatprep.subr.bf16.mxu0 %v7977
        %9698 = vmatpush2.bf16.msra.mxu0 %v7976
        %9699 = vmatprep.subr.bf16.mxu0 %v7969
        %9700 = vmatpush2.bf16.msra.mxu0 %v7968
        %9701 = vmatprep.mubr.bf16.mxu0 %v3917
        %9702 = vmatmul.mubr.bf16.gmra.mxu0 %v3916
        %v9703 = vpop.f32.mrf.mxu0
        %v9704 = vadd.f32 %v9663, %v9703
        %v9705 = vpop.f32.mrf.mxu0
        %v9706 = vadd.f32 %v9665, %v9705
        %v9707 = vpop.f32.mrf.mxu0
        %v9708 = vpop.f32.mrf.mxu0
        %9709 = vdwg.mxu0
        %9710 = vmatprep.subr.bf16.mxu0 %v7067
        %9711 = vmatpush1.bf16.msra.mxu0 %v7066
        %9712 = vmatprep.subr.bf16.mxu0 %v7059
        %9713 = vmatpush1.bf16.msra.mxu0 %v7058
        %9714 = vmatprep.subr.bf16.mxu0 %v7051
        %9715 = vmatpush1.bf16.msra.mxu0 %v7050
        %9716 = vmatprep.subr.bf16.mxu0 %v7043
        %9717 = vmatpush1.bf16.msra.mxu0 %v7042
        %9718 = vmatprep.subr.bf16.mxu0 %v7035
        %9719 = vmatpush1.bf16.msra.mxu0 %v7034
        %9720 = vmatprep.subr.bf16.mxu0 %v7027
        %9721 = vmatpush1.bf16.msra.mxu0 %v7026
        %9722 = vmatprep.subr.bf16.mxu0 %v7019
        %9723 = vmatpush1.bf16.msra.mxu0 %v7018
        %9724 = vmatprep.subr.bf16.mxu0 %v7011
        %9725 = vmatpush1.bf16.msra.mxu0 %v7010
        %9726 = vmatprep.subr.bf16.mxu0 %v7131
        %9727 = vmatpush2.bf16.msra.mxu0 %v7130
        %9728 = vmatprep.subr.bf16.mxu0 %v7123
        %9729 = vmatpush2.bf16.msra.mxu0 %v7122
        %9730 = vmatprep.subr.bf16.mxu0 %v7115
        %9731 = vmatpush2.bf16.msra.mxu0 %v7114
        %9732 = vmatprep.subr.bf16.mxu0 %v7107
        %9733 = vmatpush2.bf16.msra.mxu0 %v7106
        %9734 = vmatprep.subr.bf16.mxu0 %v7099
        %9735 = vmatpush2.bf16.msra.mxu0 %v7098
        %9736 = vmatprep.subr.bf16.mxu0 %v7091
        %9737 = vmatpush2.bf16.msra.mxu0 %v7090
        %9738 = vmatprep.subr.bf16.mxu0 %v7083
        %9739 = vmatpush2.bf16.msra.mxu0 %v7082
        %9740 = vmatprep.subr.bf16.mxu0 %v7075
        %9741 = vmatpush2.bf16.msra.mxu0 %v7074
        %9742 = vmatprep.mubr.bf16.mxu0 %v3903
        %9743 = vmatmul.mubr.bf16.gmra.mxu0 %v3902
        %v9744 = vpop.f32.mrf.mxu0
        %v9745 = vadd.f32 %v3857, %v9744
        %v9746 = vpop.f32.mrf.mxu0
        %v9747 = vadd.f32 %v3861, %v9746
        %v9748 = vpop.f32.mrf.mxu0
        %v9749 = vpop.f32.mrf.mxu0
        %9750 = vdwg.mxu0
        %9751 = vmatprep.subr.bf16.mxu0 %v7195
        %9752 = vmatpush1.bf16.msra.mxu0 %v7194
        %9753 = vmatprep.subr.bf16.mxu0 %v7187
        %9754 = vmatpush1.bf16.msra.mxu0 %v7186
        %9755 = vmatprep.subr.bf16.mxu0 %v7179
        %9756 = vmatpush1.bf16.msra.mxu0 %v7178
        %9757 = vmatprep.subr.bf16.mxu0 %v7171
        %9758 = vmatpush1.bf16.msra.mxu0 %v7170
        %9759 = vmatprep.subr.bf16.mxu0 %v7163
        %9760 = vmatpush1.bf16.msra.mxu0 %v7162
        %9761 = vmatprep.subr.bf16.mxu0 %v7155
        %9762 = vmatpush1.bf16.msra.mxu0 %v7154
        %9763 = vmatprep.subr.bf16.mxu0 %v7147
        %9764 = vmatpush1.bf16.msra.mxu0 %v7146
        %9765 = vmatprep.subr.bf16.mxu0 %v7139
        %9766 = vmatpush1.bf16.msra.mxu0 %v7138
        %9767 = vmatprep.subr.bf16.mxu0 %v7259
        %9768 = vmatpush2.bf16.msra.mxu0 %v7258
        %9769 = vmatprep.subr.bf16.mxu0 %v7251
        %9770 = vmatpush2.bf16.msra.mxu0 %v7250
        %9771 = vmatprep.subr.bf16.mxu0 %v7243
        %9772 = vmatpush2.bf16.msra.mxu0 %v7242
        %9773 = vmatprep.subr.bf16.mxu0 %v7235
        %9774 = vmatpush2.bf16.msra.mxu0 %v7234
        %9775 = vmatprep.subr.bf16.mxu0 %v7227
        %9776 = vmatpush2.bf16.msra.mxu0 %v7226
        %9777 = vmatprep.subr.bf16.mxu0 %v7219
        %9778 = vmatpush2.bf16.msra.mxu0 %v7218
        %9779 = vmatprep.subr.bf16.mxu0 %v7211
        %9780 = vmatpush2.bf16.msra.mxu0 %v7210
        %9781 = vmatprep.subr.bf16.mxu0 %v7203
        %9782 = vmatpush2.bf16.msra.mxu0 %v7202
        %9783 = vmatprep.mubr.bf16.mxu0 %v3905
        %9784 = vmatmul.mubr.bf16.gmra.mxu0 %v3904
        %v9785 = vpop.f32.mrf.mxu0
        %v9786 = vadd.f32 %v9745, %v9785
        %v9787 = vpop.f32.mrf.mxu0
        %v9788 = vadd.f32 %v9747, %v9787
        %v9789 = vpop.f32.mrf.mxu0
        %v9790 = vpop.f32.mrf.mxu0
        %9791 = vdwg.mxu0
        %9792 = vmatprep.subr.bf16.mxu0 %v7323
        %9793 = vmatpush1.bf16.msra.mxu0 %v7322
        %9794 = vmatprep.subr.bf16.mxu0 %v7315
        %9795 = vmatpush1.bf16.msra.mxu0 %v7314
        %9796 = vmatprep.subr.bf16.mxu0 %v7307
        %9797 = vmatpush1.bf16.msra.mxu0 %v7306
        %9798 = vmatprep.subr.bf16.mxu0 %v7299
        %9799 = vmatpush1.bf16.msra.mxu0 %v7298
        %9800 = vmatprep.subr.bf16.mxu0 %v7291
        %9801 = vmatpush1.bf16.msra.mxu0 %v7290
        %9802 = vmatprep.subr.bf16.mxu0 %v7283
        %9803 = vmatpush1.bf16.msra.mxu0 %v7282
        %9804 = vmatprep.subr.bf16.mxu0 %v7275
        %9805 = vmatpush1.bf16.msra.mxu0 %v7274
        %9806 = vmatprep.subr.bf16.mxu0 %v7267
        %9807 = vmatpush1.bf16.msra.mxu0 %v7266
        %9808 = vmatprep.subr.bf16.mxu0 %v7387
        %9809 = vmatpush2.bf16.msra.mxu0 %v7386
        %9810 = vmatprep.subr.bf16.mxu0 %v7379
        %9811 = vmatpush2.bf16.msra.mxu0 %v7378
        %9812 = vmatprep.subr.bf16.mxu0 %v7371
        %9813 = vmatpush2.bf16.msra.mxu0 %v7370
        %9814 = vmatprep.subr.bf16.mxu0 %v7363
        %9815 = vmatpush2.bf16.msra.mxu0 %v7362
        %9816 = vmatprep.subr.bf16.mxu0 %v7355
        %9817 = vmatpush2.bf16.msra.mxu0 %v7354
        %9818 = vmatprep.subr.bf16.mxu0 %v7347
        %9819 = vmatpush2.bf16.msra.mxu0 %v7346
        %9820 = vmatprep.subr.bf16.mxu0 %v7339
        %9821 = vmatpush2.bf16.msra.mxu0 %v7338
        %9822 = vmatprep.subr.bf16.mxu0 %v7331
        %9823 = vmatpush2.bf16.msra.mxu0 %v7330
        %9824 = vmatprep.mubr.bf16.mxu0 %v3907
        %9825 = vmatmul.mubr.bf16.gmra.mxu0 %v3906
        %v9826 = vpop.f32.mrf.mxu0
        %v9827 = vadd.f32 %v9786, %v9826
        %v9828 = vpop.f32.mrf.mxu0
        %v9829 = vadd.f32 %v9788, %v9828
        %v9830 = vpop.f32.mrf.mxu0
        %v9831 = vpop.f32.mrf.mxu0
        %9832 = vdwg.mxu0
        %9833 = vmatprep.subr.bf16.mxu0 %v7451
        %9834 = vmatpush1.bf16.msra.mxu0 %v7450
        %9835 = vmatprep.subr.bf16.mxu0 %v7443
        %9836 = vmatpush1.bf16.msra.mxu0 %v7442
        %9837 = vmatprep.subr.bf16.mxu0 %v7435
        %9838 = vmatpush1.bf16.msra.mxu0 %v7434
        %9839 = vmatprep.subr.bf16.mxu0 %v7427
        %9840 = vmatpush1.bf16.msra.mxu0 %v7426
        %9841 = vmatprep.subr.bf16.mxu0 %v7419
        %9842 = vmatpush1.bf16.msra.mxu0 %v7418
        %9843 = vmatprep.subr.bf16.mxu0 %v7411
        %9844 = vmatpush1.bf16.msra.mxu0 %v7410
        %9845 = vmatprep.subr.bf16.mxu0 %v7403
        %9846 = vmatpush1.bf16.msra.mxu0 %v7402
        %9847 = vmatprep.subr.bf16.mxu0 %v7395
        %9848 = vmatpush1.bf16.msra.mxu0 %v7394
        %9849 = vmatprep.subr.bf16.mxu0 %v7515
        %9850 = vmatpush2.bf16.msra.mxu0 %v7514
        %9851 = vmatprep.subr.bf16.mxu0 %v7507
        %9852 = vmatpush2.bf16.msra.mxu0 %v7506
        %9853 = vmatprep.subr.bf16.mxu0 %v7499
        %9854 = vmatpush2.bf16.msra.mxu0 %v7498
        %9855 = vmatprep.subr.bf16.mxu0 %v7491
        %9856 = vmatpush2.bf16.msra.mxu0 %v7490
        %9857 = vmatprep.subr.bf16.mxu0 %v7483
        %9858 = vmatpush2.bf16.msra.mxu0 %v7482
        %9859 = vmatprep.subr.bf16.mxu0 %v7475
        %9860 = vmatpush2.bf16.msra.mxu0 %v7474
        %9861 = vmatprep.subr.bf16.mxu0 %v7467
        %9862 = vmatpush2.bf16.msra.mxu0 %v7466
        %9863 = vmatprep.subr.bf16.mxu0 %v7459
        %9864 = vmatpush2.bf16.msra.mxu0 %v7458
        %9865 = vmatprep.mubr.bf16.mxu0 %v3909
        %9866 = vmatmul.mubr.bf16.gmra.mxu0 %v3908
        %v9867 = vpop.f32.mrf.mxu0
        %v9868 = vadd.f32 %v9827, %v9867
        %v9869 = vpop.f32.mrf.mxu0
        %v9870 = vadd.f32 %v9829, %v9869
        %v9871 = vpop.f32.mrf.mxu0
        %v9872 = vpop.f32.mrf.mxu0
        %9873 = vdwg.mxu0
        %9874 = vmatprep.subr.bf16.mxu0 %v7579
        %9875 = vmatpush1.bf16.msra.mxu0 %v7578
        %9876 = vmatprep.subr.bf16.mxu0 %v7571
        %9877 = vmatpush1.bf16.msra.mxu0 %v7570
        %9878 = vmatprep.subr.bf16.mxu0 %v7563
        %9879 = vmatpush1.bf16.msra.mxu0 %v7562
        %9880 = vmatprep.subr.bf16.mxu0 %v7555
        %9881 = vmatpush1.bf16.msra.mxu0 %v7554
        %9882 = vmatprep.subr.bf16.mxu0 %v7547
        %9883 = vmatpush1.bf16.msra.mxu0 %v7546
        %9884 = vmatprep.subr.bf16.mxu0 %v7539
        %9885 = vmatpush1.bf16.msra.mxu0 %v7538
        %9886 = vmatprep.subr.bf16.mxu0 %v7531
        %9887 = vmatpush1.bf16.msra.mxu0 %v7530
        %9888 = vmatprep.subr.bf16.mxu0 %v7523
        %9889 = vmatpush1.bf16.msra.mxu0 %v7522
        %9890 = vmatprep.subr.bf16.mxu0 %v7643
        %9891 = vmatpush2.bf16.msra.mxu0 %v7642
        %9892 = vmatprep.subr.bf16.mxu0 %v7635
        %9893 = vmatpush2.bf16.msra.mxu0 %v7634
        %9894 = vmatprep.subr.bf16.mxu0 %v7627
        %9895 = vmatpush2.bf16.msra.mxu0 %v7626
        %9896 = vmatprep.subr.bf16.mxu0 %v7619
        %9897 = vmatpush2.bf16.msra.mxu0 %v7618
        %9898 = vmatprep.subr.bf16.mxu0 %v7611
        %9899 = vmatpush2.bf16.msra.mxu0 %v7610
        %9900 = vmatprep.subr.bf16.mxu0 %v7603
        %9901 = vmatpush2.bf16.msra.mxu0 %v7602
        %9902 = vmatprep.subr.bf16.mxu0 %v7595
        %9903 = vmatpush2.bf16.msra.mxu0 %v7594
        %9904 = vmatprep.subr.bf16.mxu0 %v7587
        %9905 = vmatpush2.bf16.msra.mxu0 %v7586
        %9906 = vmatprep.mubr.bf16.mxu0 %v3911
        %9907 = vmatmul.mubr.bf16.gmra.mxu0 %v3910
        %v9908 = vpop.f32.mrf.mxu0
        %v9909 = vadd.f32 %v9868, %v9908
        %v9910 = vpop.f32.mrf.mxu0
        %v9911 = vadd.f32 %v9870, %v9910
        %v9912 = vpop.f32.mrf.mxu0
        %v9913 = vpop.f32.mrf.mxu0
        %9914 = vdwg.mxu0
        %9915 = vmatprep.subr.bf16.mxu0 %v7707
        %9916 = vmatpush1.bf16.msra.mxu0 %v7706
        %9917 = vmatprep.subr.bf16.mxu0 %v7699
        %9918 = vmatpush1.bf16.msra.mxu0 %v7698
        %9919 = vmatprep.subr.bf16.mxu0 %v7691
        %9920 = vmatpush1.bf16.msra.mxu0 %v7690
        %9921 = vmatprep.subr.bf16.mxu0 %v7683
        %9922 = vmatpush1.bf16.msra.mxu0 %v7682
        %9923 = vmatprep.subr.bf16.mxu0 %v7675
        %9924 = vmatpush1.bf16.msra.mxu0 %v7674
        %9925 = vmatprep.subr.bf16.mxu0 %v7667
        %9926 = vmatpush1.bf16.msra.mxu0 %v7666
        %9927 = vmatprep.subr.bf16.mxu0 %v7659
        %9928 = vmatpush1.bf16.msra.mxu0 %v7658
        %9929 = vmatprep.subr.bf16.mxu0 %v7651
        %9930 = vmatpush1.bf16.msra.mxu0 %v7650
        %9931 = vmatprep.subr.bf16.mxu0 %v7771
        %9932 = vmatpush2.bf16.msra.mxu0 %v7770
        %9933 = vmatprep.subr.bf16.mxu0 %v7763
        %9934 = vmatpush2.bf16.msra.mxu0 %v7762
        %9935 = vmatprep.subr.bf16.mxu0 %v7755
        %9936 = vmatpush2.bf16.msra.mxu0 %v7754
        %9937 = vmatprep.subr.bf16.mxu0 %v7747
        %9938 = vmatpush2.bf16.msra.mxu0 %v7746
        %9939 = vmatprep.subr.bf16.mxu0 %v7739
        %9940 = vmatpush2.bf16.msra.mxu0 %v7738
        %9941 = vmatprep.subr.bf16.mxu0 %v7731
        %9942 = vmatpush2.bf16.msra.mxu0 %v7730
        %9943 = vmatprep.subr.bf16.mxu0 %v7723
        %9944 = vmatpush2.bf16.msra.mxu0 %v7722
        %9945 = vmatprep.subr.bf16.mxu0 %v7715
        %9946 = vmatpush2.bf16.msra.mxu0 %v7714
        %9947 = vmatprep.mubr.bf16.mxu0 %v3913
        %9948 = vmatmul.mubr.bf16.gmra.mxu0 %v3912
        %v9949 = vpop.f32.mrf.mxu0
        %v9950 = vadd.f32 %v9909, %v9949
        %v9951 = vpop.f32.mrf.mxu0
        %v9952 = vadd.f32 %v9911, %v9951
        %v9953 = vpop.f32.mrf.mxu0
        %v9954 = vpop.f32.mrf.mxu0
        %9955 = vdwg.mxu0
        %9956 = vmatprep.subr.bf16.mxu0 %v7835
        %9957 = vmatpush1.bf16.msra.mxu0 %v7834
        %9958 = vmatprep.subr.bf16.mxu0 %v7827
        %9959 = vmatpush1.bf16.msra.mxu0 %v7826
        %9960 = vmatprep.subr.bf16.mxu0 %v7819
        %9961 = vmatpush1.bf16.msra.mxu0 %v7818
        %9962 = vmatprep.subr.bf16.mxu0 %v7811
        %9963 = vmatpush1.bf16.msra.mxu0 %v7810
        %9964 = vmatprep.subr.bf16.mxu0 %v7803
        %9965 = vmatpush1.bf16.msra.mxu0 %v7802
        %9966 = vmatprep.subr.bf16.mxu0 %v7795
        %9967 = vmatpush1.bf16.msra.mxu0 %v7794
        %9968 = vmatprep.subr.bf16.mxu0 %v7787
        %9969 = vmatpush1.bf16.msra.mxu0 %v7786
        %9970 = vmatprep.subr.bf16.mxu0 %v7779
        %9971 = vmatpush1.bf16.msra.mxu0 %v7778
        %9972 = vmatprep.subr.bf16.mxu0 %v7899
        %9973 = vmatpush2.bf16.msra.mxu0 %v7898
        %9974 = vmatprep.subr.bf16.mxu0 %v7891
        %9975 = vmatpush2.bf16.msra.mxu0 %v7890
        %9976 = vmatprep.subr.bf16.mxu0 %v7883
        %9977 = vmatpush2.bf16.msra.mxu0 %v7882
        %9978 = vmatprep.subr.bf16.mxu0 %v7875
        %9979 = vmatpush2.bf16.msra.mxu0 %v7874
        %9980 = vmatprep.subr.bf16.mxu0 %v7867
        %9981 = vmatpush2.bf16.msra.mxu0 %v7866
        %9982 = vmatprep.subr.bf16.mxu0 %v7859
        %9983 = vmatpush2.bf16.msra.mxu0 %v7858
        %9984 = vmatprep.subr.bf16.mxu0 %v7851
        %9985 = vmatpush2.bf16.msra.mxu0 %v7850
        %9986 = vmatprep.subr.bf16.mxu0 %v7843
        %9987 = vmatpush2.bf16.msra.mxu0 %v7842
        %9988 = vmatprep.mubr.bf16.mxu0 %v3915
        %9989 = vmatmul.mubr.bf16.gmra.mxu0 %v3914
        %v9990 = vpop.f32.mrf.mxu0
        %v9991 = vadd.f32 %v9950, %v9990
        %v9992 = vpop.f32.mrf.mxu0
        %v9993 = vadd.f32 %v9952, %v9992
        %v9994 = vpop.f32.mrf.mxu0
        %v9995 = vpop.f32.mrf.mxu0
        %9996 = vdwg.mxu0
        %9997 = vmatprep.subr.bf16.mxu0 %v7963
        %9998 = vmatpush1.bf16.msra.mxu0 %v7962
        %9999 = vmatprep.subr.bf16.mxu0 %v7955
        %10000 = vmatpush1.bf16.msra.mxu0 %v7954
        %10001 = vmatprep.subr.bf16.mxu0 %v7947
        %10002 = vmatpush1.bf16.msra.mxu0 %v7946
        %10003 = vmatprep.subr.bf16.mxu0 %v7939
        %10004 = vmatpush1.bf16.msra.mxu0 %v7938
        %10005 = vmatprep.subr.bf16.mxu0 %v7931
        %10006 = vmatpush1.bf16.msra.mxu0 %v7930
        %10007 = vmatprep.subr.bf16.mxu0 %v7923
        %10008 = vmatpush1.bf16.msra.mxu0 %v7922
        %10009 = vmatprep.subr.bf16.mxu0 %v7915
        %10010 = vmatpush1.bf16.msra.mxu0 %v7914
        %10011 = vmatprep.subr.bf16.mxu0 %v7907
        %10012 = vmatpush1.bf16.msra.mxu0 %v7906
        %10013 = vmatprep.subr.bf16.mxu0 %v8027
        %10014 = vmatpush2.bf16.msra.mxu0 %v8026
        %10015 = vmatprep.subr.bf16.mxu0 %v8019
        %10016 = vmatpush2.bf16.msra.mxu0 %v8018
        %10017 = vmatprep.subr.bf16.mxu0 %v8011
        %10018 = vmatpush2.bf16.msra.mxu0 %v8010
        %10019 = vmatprep.subr.bf16.mxu0 %v8003
        %10020 = vmatpush2.bf16.msra.mxu0 %v8002
        %10021 = vmatprep.subr.bf16.mxu0 %v7995
        %10022 = vmatpush2.bf16.msra.mxu0 %v7994
        %10023 = vmatprep.subr.bf16.mxu0 %v7987
        %10024 = vmatpush2.bf16.msra.mxu0 %v7986
        %10025 = vmatprep.subr.bf16.mxu0 %v7979
        %10026 = vmatpush2.bf16.msra.mxu0 %v7978
        %10027 = vmatprep.subr.bf16.mxu0 %v7971
        %10028 = vmatpush2.bf16.msra.mxu0 %v7970
        %10029 = vmatprep.mubr.bf16.mxu0 %v3917
        %10030 = vmatmul.mubr.bf16.gmra.mxu0 %v3916
        %v10031 = vpop.f32.mrf.mxu0
        %v10032 = vadd.f32 %v9991, %v10031
        %v10033 = vpop.f32.mrf.mxu0
        %v10034 = vadd.f32 %v9993, %v10033
        %v10035 = vpop.f32.mrf.mxu0
        %v10036 = vpop.f32.mrf.mxu0
        %10037 = vdwg.mxu0
        %10038 = vmatprep.subr.bf16.mxu0 %v7069
        %10039 = vmatpush1.bf16.msra.mxu0 %v7068
        %10040 = vmatprep.subr.bf16.mxu0 %v7061
        %10041 = vmatpush1.bf16.msra.mxu0 %v7060
        %10042 = vmatprep.subr.bf16.mxu0 %v7053
        %10043 = vmatpush1.bf16.msra.mxu0 %v7052
        %10044 = vmatprep.subr.bf16.mxu0 %v7045
        %10045 = vmatpush1.bf16.msra.mxu0 %v7044
        %10046 = vmatprep.subr.bf16.mxu0 %v7037
        %10047 = vmatpush1.bf16.msra.mxu0 %v7036
        %10048 = vmatprep.subr.bf16.mxu0 %v7029
        %10049 = vmatpush1.bf16.msra.mxu0 %v7028
        %10050 = vmatprep.subr.bf16.mxu0 %v7021
        %10051 = vmatpush1.bf16.msra.mxu0 %v7020
        %10052 = vmatprep.subr.bf16.mxu0 %v7013
        %10053 = vmatpush1.bf16.msra.mxu0 %v7012
        %10054 = vmatprep.subr.bf16.mxu0 %v7133
        %10055 = vmatpush2.bf16.msra.mxu0 %v7132
        %10056 = vmatprep.subr.bf16.mxu0 %v7125
        %10057 = vmatpush2.bf16.msra.mxu0 %v7124
        %10058 = vmatprep.subr.bf16.mxu0 %v7117
        %10059 = vmatpush2.bf16.msra.mxu0 %v7116
        %10060 = vmatprep.subr.bf16.mxu0 %v7109
        %10061 = vmatpush2.bf16.msra.mxu0 %v7108
        %10062 = vmatprep.subr.bf16.mxu0 %v7101
        %10063 = vmatpush2.bf16.msra.mxu0 %v7100
        %10064 = vmatprep.subr.bf16.mxu0 %v7093
        %10065 = vmatpush2.bf16.msra.mxu0 %v7092
        %10066 = vmatprep.subr.bf16.mxu0 %v7085
        %10067 = vmatpush2.bf16.msra.mxu0 %v7084
        %10068 = vmatprep.subr.bf16.mxu0 %v7077
        %10069 = vmatpush2.bf16.msra.mxu0 %v7076
        %10070 = vmatprep.mubr.bf16.mxu0 %v3903
        %10071 = vmatmul.mubr.bf16.gmra.mxu0 %v3902
        %v10072 = vpop.f32.mrf.mxu0
        %v10073 = vadd.f32 %v3865, %v10072
        %v10074 = vpop.f32.mrf.mxu0
        %v10075 = vadd.f32 %v3869, %v10074
        %v10076 = vpop.f32.mrf.mxu0
        %v10077 = vpop.f32.mrf.mxu0
        %10078 = vdwg.mxu0
        %10079 = vmatprep.subr.bf16.mxu0 %v7197
        %10080 = vmatpush1.bf16.msra.mxu0 %v7196
        %10081 = vmatprep.subr.bf16.mxu0 %v7189
        %10082 = vmatpush1.bf16.msra.mxu0 %v7188
        %10083 = vmatprep.subr.bf16.mxu0 %v7181
        %10084 = vmatpush1.bf16.msra.mxu0 %v7180
        %10085 = vmatprep.subr.bf16.mxu0 %v7173
        %10086 = vmatpush1.bf16.msra.mxu0 %v7172
        %10087 = vmatprep.subr.bf16.mxu0 %v7165
        %10088 = vmatpush1.bf16.msra.mxu0 %v7164
        %10089 = vmatprep.subr.bf16.mxu0 %v7157
        %10090 = vmatpush1.bf16.msra.mxu0 %v7156
        %10091 = vmatprep.subr.bf16.mxu0 %v7149
        %10092 = vmatpush1.bf16.msra.mxu0 %v7148
        %10093 = vmatprep.subr.bf16.mxu0 %v7141
        %10094 = vmatpush1.bf16.msra.mxu0 %v7140
        %10095 = vmatprep.subr.bf16.mxu0 %v7261
        %10096 = vmatpush2.bf16.msra.mxu0 %v7260
        %10097 = vmatprep.subr.bf16.mxu0 %v7253
        %10098 = vmatpush2.bf16.msra.mxu0 %v7252
        %10099 = vmatprep.subr.bf16.mxu0 %v7245
        %10100 = vmatpush2.bf16.msra.mxu0 %v7244
        %10101 = vmatprep.subr.bf16.mxu0 %v7237
        %10102 = vmatpush2.bf16.msra.mxu0 %v7236
        %10103 = vmatprep.subr.bf16.mxu0 %v7229
        %10104 = vmatpush2.bf16.msra.mxu0 %v7228
        %10105 = vmatprep.subr.bf16.mxu0 %v7221
        %10106 = vmatpush2.bf16.msra.mxu0 %v7220
        %10107 = vmatprep.subr.bf16.mxu0 %v7213
        %10108 = vmatpush2.bf16.msra.mxu0 %v7212
        %10109 = vmatprep.subr.bf16.mxu0 %v7205
        %10110 = vmatpush2.bf16.msra.mxu0 %v7204
        %10111 = vmatprep.mubr.bf16.mxu0 %v3905
        %10112 = vmatmul.mubr.bf16.gmra.mxu0 %v3904
        %v10113 = vpop.f32.mrf.mxu0
        %v10114 = vadd.f32 %v10073, %v10113
        %v10115 = vpop.f32.mrf.mxu0
        %v10116 = vadd.f32 %v10075, %v10115
        %v10117 = vpop.f32.mrf.mxu0
        %v10118 = vpop.f32.mrf.mxu0
        %10119 = vdwg.mxu0
        %10120 = vmatprep.subr.bf16.mxu0 %v7325
        %10121 = vmatpush1.bf16.msra.mxu0 %v7324
        %10122 = vmatprep.subr.bf16.mxu0 %v7317
        %10123 = vmatpush1.bf16.msra.mxu0 %v7316
        %10124 = vmatprep.subr.bf16.mxu0 %v7309
        %10125 = vmatpush1.bf16.msra.mxu0 %v7308
        %10126 = vmatprep.subr.bf16.mxu0 %v7301
        %10127 = vmatpush1.bf16.msra.mxu0 %v7300
        %10128 = vmatprep.subr.bf16.mxu0 %v7293
        %10129 = vmatpush1.bf16.msra.mxu0 %v7292
        %10130 = vmatprep.subr.bf16.mxu0 %v7285
        %10131 = vmatpush1.bf16.msra.mxu0 %v7284
        %10132 = vmatprep.subr.bf16.mxu0 %v7277
        %10133 = vmatpush1.bf16.msra.mxu0 %v7276
        %10134 = vmatprep.subr.bf16.mxu0 %v7269
        %10135 = vmatpush1.bf16.msra.mxu0 %v7268
        %10136 = vmatprep.subr.bf16.mxu0 %v7389
        %10137 = vmatpush2.bf16.msra.mxu0 %v7388
        %10138 = vmatprep.subr.bf16.mxu0 %v7381
        %10139 = vmatpush2.bf16.msra.mxu0 %v7380
        %10140 = vmatprep.subr.bf16.mxu0 %v7373
        %10141 = vmatpush2.bf16.msra.mxu0 %v7372
        %10142 = vmatprep.subr.bf16.mxu0 %v7365
        %10143 = vmatpush2.bf16.msra.mxu0 %v7364
        %10144 = vmatprep.subr.bf16.mxu0 %v7357
        %10145 = vmatpush2.bf16.msra.mxu0 %v7356
        %10146 = vmatprep.subr.bf16.mxu0 %v7349
        %10147 = vmatpush2.bf16.msra.mxu0 %v7348
        %10148 = vmatprep.subr.bf16.mxu0 %v7341
        %10149 = vmatpush2.bf16.msra.mxu0 %v7340
        %10150 = vmatprep.subr.bf16.mxu0 %v7333
        %10151 = vmatpush2.bf16.msra.mxu0 %v7332
        %10152 = vmatprep.mubr.bf16.mxu0 %v3907
        %10153 = vmatmul.mubr.bf16.gmra.mxu0 %v3906
        %v10154 = vpop.f32.mrf.mxu0
        %v10155 = vadd.f32 %v10114, %v10154
        %v10156 = vpop.f32.mrf.mxu0
        %v10157 = vadd.f32 %v10116, %v10156
        %v10158 = vpop.f32.mrf.mxu0
        %v10159 = vpop.f32.mrf.mxu0
        %10160 = vdwg.mxu0
        %10161 = vmatprep.subr.bf16.mxu0 %v7453
        %10162 = vmatpush1.bf16.msra.mxu0 %v7452
        %10163 = vmatprep.subr.bf16.mxu0 %v7445
        %10164 = vmatpush1.bf16.msra.mxu0 %v7444
        %10165 = vmatprep.subr.bf16.mxu0 %v7437
        %10166 = vmatpush1.bf16.msra.mxu0 %v7436
        %10167 = vmatprep.subr.bf16.mxu0 %v7429
        %10168 = vmatpush1.bf16.msra.mxu0 %v7428
        %10169 = vmatprep.subr.bf16.mxu0 %v7421
        %10170 = vmatpush1.bf16.msra.mxu0 %v7420
        %10171 = vmatprep.subr.bf16.mxu0 %v7413
        %10172 = vmatpush1.bf16.msra.mxu0 %v7412
        %10173 = vmatprep.subr.bf16.mxu0 %v7405
        %10174 = vmatpush1.bf16.msra.mxu0 %v7404
        %10175 = vmatprep.subr.bf16.mxu0 %v7397
        %10176 = vmatpush1.bf16.msra.mxu0 %v7396
        %10177 = vmatprep.subr.bf16.mxu0 %v7517
        %10178 = vmatpush2.bf16.msra.mxu0 %v7516
        %10179 = vmatprep.subr.bf16.mxu0 %v7509
        %10180 = vmatpush2.bf16.msra.mxu0 %v7508
        %10181 = vmatprep.subr.bf16.mxu0 %v7501
        %10182 = vmatpush2.bf16.msra.mxu0 %v7500
        %10183 = vmatprep.subr.bf16.mxu0 %v7493
        %10184 = vmatpush2.bf16.msra.mxu0 %v7492
        %10185 = vmatprep.subr.bf16.mxu0 %v7485
        %10186 = vmatpush2.bf16.msra.mxu0 %v7484
        %10187 = vmatprep.subr.bf16.mxu0 %v7477
        %10188 = vmatpush2.bf16.msra.mxu0 %v7476
        %10189 = vmatprep.subr.bf16.mxu0 %v7469
        %10190 = vmatpush2.bf16.msra.mxu0 %v7468
        %10191 = vmatprep.subr.bf16.mxu0 %v7461
        %10192 = vmatpush2.bf16.msra.mxu0 %v7460
        %10193 = vmatprep.mubr.bf16.mxu0 %v3909
        %10194 = vmatmul.mubr.bf16.gmra.mxu0 %v3908
        %v10195 = vpop.f32.mrf.mxu0
        %v10196 = vadd.f32 %v10155, %v10195
        %v10197 = vpop.f32.mrf.mxu0
        %v10198 = vadd.f32 %v10157, %v10197
        %v10199 = vpop.f32.mrf.mxu0
        %v10200 = vpop.f32.mrf.mxu0
        %10201 = vdwg.mxu0
        %10202 = vmatprep.subr.bf16.mxu0 %v7581
        %10203 = vmatpush1.bf16.msra.mxu0 %v7580
        %10204 = vmatprep.subr.bf16.mxu0 %v7573
        %10205 = vmatpush1.bf16.msra.mxu0 %v7572
        %10206 = vmatprep.subr.bf16.mxu0 %v7565
        %10207 = vmatpush1.bf16.msra.mxu0 %v7564
        %10208 = vmatprep.subr.bf16.mxu0 %v7557
        %10209 = vmatpush1.bf16.msra.mxu0 %v7556
        %10210 = vmatprep.subr.bf16.mxu0 %v7549
        %10211 = vmatpush1.bf16.msra.mxu0 %v7548
        %10212 = vmatprep.subr.bf16.mxu0 %v7541
        %10213 = vmatpush1.bf16.msra.mxu0 %v7540
        %10214 = vmatprep.subr.bf16.mxu0 %v7533
        %10215 = vmatpush1.bf16.msra.mxu0 %v7532
        %10216 = vmatprep.subr.bf16.mxu0 %v7525
        %10217 = vmatpush1.bf16.msra.mxu0 %v7524
        %10218 = vmatprep.subr.bf16.mxu0 %v7645
        %10219 = vmatpush2.bf16.msra.mxu0 %v7644
        %10220 = vmatprep.subr.bf16.mxu0 %v7637
        %10221 = vmatpush2.bf16.msra.mxu0 %v7636
        %10222 = vmatprep.subr.bf16.mxu0 %v7629
        %10223 = vmatpush2.bf16.msra.mxu0 %v7628
        %10224 = vmatprep.subr.bf16.mxu0 %v7621
        %10225 = vmatpush2.bf16.msra.mxu0 %v7620
        %10226 = vmatprep.subr.bf16.mxu0 %v7613
        %10227 = vmatpush2.bf16.msra.mxu0 %v7612
        %10228 = vmatprep.subr.bf16.mxu0 %v7605
        %10229 = vmatpush2.bf16.msra.mxu0 %v7604
        %10230 = vmatprep.subr.bf16.mxu0 %v7597
        %10231 = vmatpush2.bf16.msra.mxu0 %v7596
        %10232 = vmatprep.subr.bf16.mxu0 %v7589
        %10233 = vmatpush2.bf16.msra.mxu0 %v7588
        %10234 = vmatprep.mubr.bf16.mxu0 %v3911
        %10235 = vmatmul.mubr.bf16.gmra.mxu0 %v3910
        %v10236 = vpop.f32.mrf.mxu0
        %v10237 = vadd.f32 %v10196, %v10236
        %v10238 = vpop.f32.mrf.mxu0
        %v10239 = vadd.f32 %v10198, %v10238
        %v10240 = vpop.f32.mrf.mxu0
        %v10241 = vpop.f32.mrf.mxu0
        %10242 = vdwg.mxu0
        %10243 = vmatprep.subr.bf16.mxu0 %v7709
        %10244 = vmatpush1.bf16.msra.mxu0 %v7708
        %10245 = vmatprep.subr.bf16.mxu0 %v7701
        %10246 = vmatpush1.bf16.msra.mxu0 %v7700
        %10247 = vmatprep.subr.bf16.mxu0 %v7693
        %10248 = vmatpush1.bf16.msra.mxu0 %v7692
        %10249 = vmatprep.subr.bf16.mxu0 %v7685
        %10250 = vmatpush1.bf16.msra.mxu0 %v7684
        %10251 = vmatprep.subr.bf16.mxu0 %v7677
        %10252 = vmatpush1.bf16.msra.mxu0 %v7676
        %10253 = vmatprep.subr.bf16.mxu0 %v7669
        %10254 = vmatpush1.bf16.msra.mxu0 %v7668
        %10255 = vmatprep.subr.bf16.mxu0 %v7661
        %10256 = vmatpush1.bf16.msra.mxu0 %v7660
        %10257 = vmatprep.subr.bf16.mxu0 %v7653
        %10258 = vmatpush1.bf16.msra.mxu0 %v7652
        %10259 = vmatprep.subr.bf16.mxu0 %v7773
        %10260 = vmatpush2.bf16.msra.mxu0 %v7772
        %10261 = vmatprep.subr.bf16.mxu0 %v7765
        %10262 = vmatpush2.bf16.msra.mxu0 %v7764
        %10263 = vmatprep.subr.bf16.mxu0 %v7757
        %10264 = vmatpush2.bf16.msra.mxu0 %v7756
        %10265 = vmatprep.subr.bf16.mxu0 %v7749
        %10266 = vmatpush2.bf16.msra.mxu0 %v7748
        %10267 = vmatprep.subr.bf16.mxu0 %v7741
        %10268 = vmatpush2.bf16.msra.mxu0 %v7740
        %10269 = vmatprep.subr.bf16.mxu0 %v7733
        %10270 = vmatpush2.bf16.msra.mxu0 %v7732
        %10271 = vmatprep.subr.bf16.mxu0 %v7725
        %10272 = vmatpush2.bf16.msra.mxu0 %v7724
        %10273 = vmatprep.subr.bf16.mxu0 %v7717
        %10274 = vmatpush2.bf16.msra.mxu0 %v7716
        %10275 = vmatprep.mubr.bf16.mxu0 %v3913
        %10276 = vmatmul.mubr.bf16.gmra.mxu0 %v3912
        %v10277 = vpop.f32.mrf.mxu0
        %v10278 = vadd.f32 %v10237, %v10277
        %v10279 = vpop.f32.mrf.mxu0
        %v10280 = vadd.f32 %v10239, %v10279
        %v10281 = vpop.f32.mrf.mxu0
        %v10282 = vpop.f32.mrf.mxu0
        %10283 = vdwg.mxu0
        %10284 = vmatprep.subr.bf16.mxu0 %v7837
        %10285 = vmatpush1.bf16.msra.mxu0 %v7836
        %10286 = vmatprep.subr.bf16.mxu0 %v7829
        %10287 = vmatpush1.bf16.msra.mxu0 %v7828
        %10288 = vmatprep.subr.bf16.mxu0 %v7821
        %10289 = vmatpush1.bf16.msra.mxu0 %v7820
        %10290 = vmatprep.subr.bf16.mxu0 %v7813
        %10291 = vmatpush1.bf16.msra.mxu0 %v7812
        %10292 = vmatprep.subr.bf16.mxu0 %v7805
        %10293 = vmatpush1.bf16.msra.mxu0 %v7804
        %10294 = vmatprep.subr.bf16.mxu0 %v7797
        %10295 = vmatpush1.bf16.msra.mxu0 %v7796
        %10296 = vmatprep.subr.bf16.mxu0 %v7789
        %10297 = vmatpush1.bf16.msra.mxu0 %v7788
        %10298 = vmatprep.subr.bf16.mxu0 %v7781
        %10299 = vmatpush1.bf16.msra.mxu0 %v7780
        %10300 = vmatprep.subr.bf16.mxu0 %v7901
        %10301 = vmatpush2.bf16.msra.mxu0 %v7900
        %10302 = vmatprep.subr.bf16.mxu0 %v7893
        %10303 = vmatpush2.bf16.msra.mxu0 %v7892
        %10304 = vmatprep.subr.bf16.mxu0 %v7885
        %10305 = vmatpush2.bf16.msra.mxu0 %v7884
        %10306 = vmatprep.subr.bf16.mxu0 %v7877
        %10307 = vmatpush2.bf16.msra.mxu0 %v7876
        %10308 = vmatprep.subr.bf16.mxu0 %v7869
        %10309 = vmatpush2.bf16.msra.mxu0 %v7868
        %10310 = vmatprep.subr.bf16.mxu0 %v7861
        %10311 = vmatpush2.bf16.msra.mxu0 %v7860
        %10312 = vmatprep.subr.bf16.mxu0 %v7853
        %10313 = vmatpush2.bf16.msra.mxu0 %v7852
        %10314 = vmatprep.subr.bf16.mxu0 %v7845
        %10315 = vmatpush2.bf16.msra.mxu0 %v7844
        %10316 = vmatprep.mubr.bf16.mxu0 %v3915
        %10317 = vmatmul.mubr.bf16.gmra.mxu0 %v3914
        %v10318 = vpop.f32.mrf.mxu0
        %v10319 = vadd.f32 %v10278, %v10318
        %v10320 = vpop.f32.mrf.mxu0
        %v10321 = vadd.f32 %v10280, %v10320
        %v10322 = vpop.f32.mrf.mxu0
        %v10323 = vpop.f32.mrf.mxu0
        %10324 = vdwg.mxu0
        %10325 = vmatprep.subr.bf16.mxu0 %v7965
        %10326 = vmatpush1.bf16.msra.mxu0 %v7964
        %10327 = vmatprep.subr.bf16.mxu0 %v7957
        %10328 = vmatpush1.bf16.msra.mxu0 %v7956
        %10329 = vmatprep.subr.bf16.mxu0 %v7949
        %10330 = vmatpush1.bf16.msra.mxu0 %v7948
        %10331 = vmatprep.subr.bf16.mxu0 %v7941
        %10332 = vmatpush1.bf16.msra.mxu0 %v7940
        %10333 = vmatprep.subr.bf16.mxu0 %v7933
        %10334 = vmatpush1.bf16.msra.mxu0 %v7932
        %10335 = vmatprep.subr.bf16.mxu0 %v7925
        %10336 = vmatpush1.bf16.msra.mxu0 %v7924
        %10337 = vmatprep.subr.bf16.mxu0 %v7917
        %10338 = vmatpush1.bf16.msra.mxu0 %v7916
        %10339 = vmatprep.subr.bf16.mxu0 %v7909
        %10340 = vmatpush1.bf16.msra.mxu0 %v7908
        %10341 = vmatprep.subr.bf16.mxu0 %v8029
        %10342 = vmatpush2.bf16.msra.mxu0 %v8028
        %10343 = vmatprep.subr.bf16.mxu0 %v8021
        %10344 = vmatpush2.bf16.msra.mxu0 %v8020
        %10345 = vmatprep.subr.bf16.mxu0 %v8013
        %10346 = vmatpush2.bf16.msra.mxu0 %v8012
        %10347 = vmatprep.subr.bf16.mxu0 %v8005
        %10348 = vmatpush2.bf16.msra.mxu0 %v8004
        %10349 = vmatprep.subr.bf16.mxu0 %v7997
        %10350 = vmatpush2.bf16.msra.mxu0 %v7996
        %10351 = vmatprep.subr.bf16.mxu0 %v7989
        %10352 = vmatpush2.bf16.msra.mxu0 %v7988
        %10353 = vmatprep.subr.bf16.mxu0 %v7981
        %10354 = vmatpush2.bf16.msra.mxu0 %v7980
        %10355 = vmatprep.subr.bf16.mxu0 %v7973
        %10356 = vmatpush2.bf16.msra.mxu0 %v7972
        %10357 = vmatprep.mubr.bf16.mxu0 %v3917
        %10358 = vmatmul.mubr.bf16.gmra.mxu0 %v3916
        %v10359 = vpop.f32.mrf.mxu0
        %v10360 = vadd.f32 %v10319, %v10359
        %v10361 = vpop.f32.mrf.mxu0
        %v10362 = vadd.f32 %v10321, %v10361
        %v10363 = vpop.f32.mrf.mxu0
        %v10364 = vpop.f32.mrf.mxu0
        %10365 = vdwg.mxu0
        %v10366 = vrot.slane %v9376, 4
        %v10367 = vadd.f32 %v9376, %v10366
        %v10368 = vrot.slane %v10367, 2
        %v10369 = vadd.f32 %v10367, %v10368
        %v10370 = vrot.slane %v10369, 1
        %v10371 = vadd.f32 %v10369, %v10370
        %v10372 = vrot.slane %v9378, 4
        %v10373 = vadd.f32 %v9378, %v10372
        %v10374 = vrot.slane %v10373, 2
        %v10375 = vadd.f32 %v10373, %v10374
        %v10376 = vrot.slane %v10375, 1
        %v10377 = vadd.f32 %v10375, %v10376
        %v10378 = vrot.slane %v9704, 4
        %v10379 = vadd.f32 %v9704, %v10378
        %v10380 = vrot.slane %v10379, 2
        %v10381 = vadd.f32 %v10379, %v10380
        %v10382 = vrot.slane %v10381, 1
        %v10383 = vadd.f32 %v10381, %v10382
        %v10384 = vrot.slane %v9706, 4
        %v10385 = vadd.f32 %v9706, %v10384
        %v10386 = vrot.slane %v10385, 2
        %v10387 = vadd.f32 %v10385, %v10386
        %v10388 = vrot.slane %v10387, 1
        %v10389 = vadd.f32 %v10387, %v10388
        %v10390 = vrot.slane %v10032, 4
        %v10391 = vadd.f32 %v10032, %v10390
        %v10392 = vrot.slane %v10391, 2
        %v10393 = vadd.f32 %v10391, %v10392
        %v10394 = vrot.slane %v10393, 1
        %v10395 = vadd.f32 %v10393, %v10394
        %v10396 = vrot.slane %v10034, 4
        %v10397 = vadd.f32 %v10034, %v10396
        %v10398 = vrot.slane %v10397, 2
        %v10399 = vadd.f32 %v10397, %v10398
        %v10400 = vrot.slane %v10399, 1
        %v10401 = vadd.f32 %v10399, %v10400
        %v10402 = vrot.slane %v10360, 4
        %v10403 = vadd.f32 %v10360, %v10402
        %v10404 = vrot.slane %v10403, 2
        %v10405 = vadd.f32 %v10403, %v10404
        %v10406 = vrot.slane %v10405, 1
        %v10407 = vadd.f32 %v10405, %v10406
        %v10408 = vrot.slane %v10362, 4
        %v10409 = vadd.f32 %v10362, %v10408
        %v10410 = vrot.slane %v10409, 2
        %v10411 = vadd.f32 %v10409, %v10410
        %v10412 = vrot.slane %v10411, 1
        %v10413 = vadd.f32 %v10411, %v10412
        %v10414 = vrcp.pop 8.0
        %v10415 = vmul.f32 %v10371, %v10414
        %v10416 = vmul.f32 %v10377, %v10414
        %v10417 = vmul.f32 %v10383, %v10414
        %v10418 = vmul.f32 %v10389, %v10414
        %v10419 = vmul.f32 %v10395, %v10414
        %v10420 = vmul.f32 %v10401, %v10414
        %v10421 = vmul.f32 %v10407, %v10414
        %v10422 = vmul.f32 %v10413, %v10414
        %v10423 = vsub.f32 %v9376, %v10415
        %v10424 = vsub.f32 %v9378, %v10416
        %v10425 = vsub.f32 %v9704, %v10417
        %v10426 = vsub.f32 %v9706, %v10418
        %v10427 = vsub.f32 %v10032, %v10419
        %v10428 = vsub.f32 %v10034, %v10420
        %v10429 = vsub.f32 %v10360, %v10421
        %v10430 = vsub.f32 %v10362, %v10422
        %v10431 = vmul.f32 %v10423, %v10423
        %v10432 = vmul.f32 %v10424, %v10424
        %v10433 = vmul.f32 %v10425, %v10425
        %v10434 = vmul.f32 %v10426, %v10426
        %v10435 = vmul.f32 %v10427, %v10427
        %v10436 = vmul.f32 %v10428, %v10428
        %v10437 = vmul.f32 %v10429, %v10429
        %v10438 = vmul.f32 %v10430, %v10430
        %v10439 = vrot.slane %v10431, 4
        %v10440 = vadd.f32 %v10431, %v10439
        %v10441 = vrot.slane %v10440, 2
        %v10442 = vadd.f32 %v10440, %v10441
        %v10443 = vrot.slane %v10442, 1
        %v10444 = vadd.f32 %v10442, %v10443
        %v10445 = vrot.slane %v10432, 4
        %v10446 = vadd.f32 %v10432, %v10445
        %v10447 = vrot.slane %v10446, 2
        %v10448 = vadd.f32 %v10446, %v10447
        %v10449 = vrot.slane %v10448, 1
        %v10450 = vadd.f32 %v10448, %v10449
        %v10451 = vrot.slane %v10433, 4
        %v10452 = vadd.f32 %v10433, %v10451
        %v10453 = vrot.slane %v10452, 2
        %v10454 = vadd.f32 %v10452, %v10453
        %v10455 = vrot.slane %v10454, 1
        %v10456 = vadd.f32 %v10454, %v10455
        %v10457 = vrot.slane %v10434, 4
        %v10458 = vadd.f32 %v10434, %v10457
        %v10459 = vrot.slane %v10458, 2
        %v10460 = vadd.f32 %v10458, %v10459
        %v10461 = vrot.slane %v10460, 1
        %v10462 = vadd.f32 %v10460, %v10461
        %v10463 = vrot.slane %v10435, 4
        %v10464 = vadd.f32 %v10435, %v10463
        %v10465 = vrot.slane %v10464, 2
        %v10466 = vadd.f32 %v10464, %v10465
        %v10467 = vrot.slane %v10466, 1
        %v10468 = vadd.f32 %v10466, %v10467
        %v10469 = vrot.slane %v10436, 4
        %v10470 = vadd.f32 %v10436, %v10469
        %v10471 = vrot.slane %v10470, 2
        %v10472 = vadd.f32 %v10470, %v10471
        %v10473 = vrot.slane %v10472, 1
        %v10474 = vadd.f32 %v10472, %v10473
        %v10475 = vrot.slane %v10437, 4
        %v10476 = vadd.f32 %v10437, %v10475
        %v10477 = vrot.slane %v10476, 2
        %v10478 = vadd.f32 %v10476, %v10477
        %v10479 = vrot.slane %v10478, 1
        %v10480 = vadd.f32 %v10478, %v10479
        %v10481 = vrot.slane %v10438, 4
        %v10482 = vadd.f32 %v10438, %v10481
        %v10483 = vrot.slane %v10482, 2
        %v10484 = vadd.f32 %v10482, %v10483
        %v10485 = vrot.slane %v10484, 1
        %v10486 = vadd.f32 %v10484, %v10485
        %v10487 = vmul.f32 %v10444, %v10414
        %v10488 = vmul.f32 %v10450, %v10414
        %v10489 = vmul.f32 %v10456, %v10414
        %v10490 = vmul.f32 %v10462, %v10414
        %v10491 = vmul.f32 %v10468, %v10414
        %v10492 = vmul.f32 %v10474, %v10414
        %v10493 = vmul.f32 %v10480, %v10414
        %v10494 = vmul.f32 %v10486, %v10414
        %v10495 = vld [vmem:[%s619] sm:$0xff]
        %v10497 = vlaneseq
        %v10498 = vshrl.u32 %v10497, 7
        %v10499 = vsub.s32 0, %v10498
        %v10500 = vrot.slane %v10495, %v10499
        %v10501 = vlaneseq
        %v10502 = vshrl.u32 %v10501, 7
        %v10503 = vsub.s32 1, %v10502
        %v10504 = vrot.slane %v10495, %v10503
        %v10505 = vlaneseq
        %v10506 = vshrl.u32 %v10505, 7
        %v10507 = vsub.s32 2, %v10506
        %v10508 = vrot.slane %v10495, %v10507
        %v10509 = vlaneseq
        %v10510 = vshrl.u32 %v10509, 7
        %v10511 = vsub.s32 3, %v10510
        %v10512 = vrot.slane %v10495, %v10511
        %v10513 = vlaneseq
        %v10514 = vshrl.u32 %v10513, 7
        %v10515 = vsub.s32 4, %v10514
        %v10516 = vrot.slane %v10495, %v10515
        %v10517 = vlaneseq
        %v10518 = vshrl.u32 %v10517, 7
        %v10519 = vsub.s32 5, %v10518
        %v10520 = vrot.slane %v10495, %v10519
        %v10521 = vlaneseq
        %v10522 = vshrl.u32 %v10521, 7
        %v10523 = vsub.s32 6, %v10522
        %v10524 = vrot.slane %v10495, %v10523
        %v10525 = vlaneseq
        %v10526 = vshrl.u32 %v10525, 7
        %v10527 = vsub.s32 7, %v10526
        %v10528 = vrot.slane %v10495, %v10527
        %v10537 = vmul.f32 %v10500, %v10423
        %v10538 = vmul.f32 %v10504, %v10424
        %v10539 = vmul.f32 %v10508, %v10425
        %v10540 = vmul.f32 %v10512, %v10426
        %v10541 = vmul.f32 %v10516, %v10427
        %v10542 = vmul.f32 %v10520, %v10428
        %v10543 = vmul.f32 %v10524, %v10429
        %v10544 = vmul.f32 %v10528, %v10430
        %v10545 = vadd.f32 %v10487, 1e-05
        %v10546 = vadd.f32 %v10488, 1e-05
        %v10547 = vadd.f32 %v10489, 1e-05
        %v10548 = vadd.f32 %v10490, 1e-05
        %v10549 = vadd.f32 %v10491, 1e-05
        %v10550 = vadd.f32 %v10492, 1e-05
        %v10551 = vadd.f32 %v10493, 1e-05
        %v10552 = vadd.f32 %v10494, 1e-05
        %v10553 = vrsqrt.pop %v10545
        %v10554 = vrsqrt.pop %v10546
        %v10555 = vrsqrt.pop %v10547
        %v10556 = vrsqrt.pop %v10548
        %v10557 = vrsqrt.pop %v10549
        %v10558 = vrsqrt.pop %v10550
        %v10559 = vrsqrt.pop %v10551
        %v10560 = vrsqrt.pop %v10552
        %v10561 = vmul.f32 %v10537, %v10553
        %v10562 = vmul.f32 %v10538, %v10554
        %v10563 = vmul.f32 %v10539, %v10555
        %v10564 = vmul.f32 %v10540, %v10556
        %v10565 = vmul.f32 %v10541, %v10557
        %v10566 = vmul.f32 %v10542, %v10558
        %v10567 = vmul.f32 %v10543, %v10559
        %v10568 = vmul.f32 %v10544, %v10560
        %v10569 = vld [vmem:[%s628] sm:$0xff]
        %v10571 = vlaneseq
        %v10572 = vshrl.u32 %v10571, 7
        %v10573 = vsub.s32 0, %v10572
        %v10574 = vrot.slane %v10569, %v10573
        %v10575 = vlaneseq
        %v10576 = vshrl.u32 %v10575, 7
        %v10577 = vsub.s32 1, %v10576
        %v10578 = vrot.slane %v10569, %v10577
        %v10579 = vlaneseq
        %v10580 = vshrl.u32 %v10579, 7
        %v10581 = vsub.s32 2, %v10580
        %v10582 = vrot.slane %v10569, %v10581
        %v10583 = vlaneseq
        %v10584 = vshrl.u32 %v10583, 7
        %v10585 = vsub.s32 3, %v10584
        %v10586 = vrot.slane %v10569, %v10585
        %v10587 = vlaneseq
        %v10588 = vshrl.u32 %v10587, 7
        %v10589 = vsub.s32 4, %v10588
        %v10590 = vrot.slane %v10569, %v10589
        %v10591 = vlaneseq
        %v10592 = vshrl.u32 %v10591, 7
        %v10593 = vsub.s32 5, %v10592
        %v10594 = vrot.slane %v10569, %v10593
        %v10595 = vlaneseq
        %v10596 = vshrl.u32 %v10595, 7
        %v10597 = vsub.s32 6, %v10596
        %v10598 = vrot.slane %v10569, %v10597
        %v10599 = vlaneseq
        %v10600 = vshrl.u32 %v10599, 7
        %v10601 = vsub.s32 7, %v10600
        %v10602 = vrot.slane %v10569, %v10601
        %v10611 = vadd.f32 %v10561, %v10574
        %v10612 = vadd.f32 %v10562, %v10578
        %v10613 = vadd.f32 %v10563, %v10582
        %v10614 = vadd.f32 %v10564, %v10586
        %v10615 = vadd.f32 %v10565, %v10590
        %v10616 = vadd.f32 %v10566, %v10594
        %v10617 = vadd.f32 %v10567, %v10598
        %v10618 = vadd.f32 %v10568, %v10602
        %v10619 = vmax.f32 %v10611, 0.0
        %v10620 = vmax.f32 %v10612, 0.0
        %v10621 = vmax.f32 %v10613, 0.0
        %v10622 = vmax.f32 %v10614, 0.0
        %v10623 = vmax.f32 %v10615, 0.0
        %v10624 = vmax.f32 %v10616, 0.0
        %v10625 = vmax.f32 %v10617, 0.0
        %v10626 = vmax.f32 %v10618, 0.0
        %v10627 = vld [vmem:[#allocation4] sm:$0xff]
        %v10628 = vpack.c.bf16 %v10619, %v10619
        %v10629 = vpack.c.bf16 %v10620, %v10620
        %v10630 = vpack.c.bf16 %v10621, %v10621
        %v10631 = vpack.c.bf16 %v10622, %v10622
        %v10632 = vpack.c.bf16 %v10623, %v10623
        %v10633 = vpack.c.bf16 %v10624, %v10624
        %v10634 = vpack.c.bf16 %v10625, %v10625
        %v10635 = vpack.c.bf16 %v10626, %v10626
        %v10636 = vld [vmem:[%s637] sm:$0xf]
        %v10637 = vld [vmem:[%s637 + $0x4] sm:$0xf]
        %v10638 = vld [vmem:[%s637 + $0x8] sm:$0xf]
        %v10639 = vld [vmem:[%s637 + $0xc] sm:$0xf]
        %v10640 = vld [vmem:[%s637 + $0x10] sm:$0xf]
        %v10641 = vld [vmem:[%s637 + $0x14] sm:$0xf]
        %v10642 = vld [vmem:[%s637 + $0x18] sm:$0xf]
        %v10643 = vld [vmem:[%s637 + $0x1c] sm:$0xf]
        %v10644 = vld [vmem:[%s637 + $0x20] sm:$0xf]
        %v10645 = vld [vmem:[%s637 + $0x24] sm:$0xf]
        %v10646 = vld [vmem:[%s637 + $0x28] sm:$0xf]
        %v10647 = vld [vmem:[%s637 + $0x2c] sm:$0xf]
        %v10648 = vld [vmem:[%s637 + $0x30] sm:$0xf]
        %v10649 = vld [vmem:[%s637 + $0x34] sm:$0xf]
        %v10650 = vld [vmem:[%s637 + $0x38] sm:$0xf]
        %v10651 = vld [vmem:[%s637 + $0x3c] sm:$0xf]
        %v10652 = vld [vmem:[%s637 + $0x40] sm:$0xf]
        %v10653 = vld [vmem:[%s637 + $0x44] sm:$0xf]
        %v10654 = vld [vmem:[%s637 + $0x48] sm:$0xf]
        %v10655 = vld [vmem:[%s637 + $0x4c] sm:$0xf]
        %v10656 = vld [vmem:[%s637 + $0x50] sm:$0xf]
        %v10657 = vld [vmem:[%s637 + $0x54] sm:$0xf]
        %v10658 = vld [vmem:[%s637 + $0x58] sm:$0xf]
        %v10659 = vld [vmem:[%s637 + $0x5c] sm:$0xf]
        %v10660 = vld [vmem:[%s637 + $0x60] sm:$0xf]
        %v10661 = vld [vmem:[%s637 + $0x64] sm:$0xf]
        %v10662 = vld [vmem:[%s637 + $0x68] sm:$0xf]
        %v10663 = vld [vmem:[%s637 + $0x6c] sm:$0xf]
        %v10664 = vld [vmem:[%s637 + $0x70] sm:$0xf]
        %v10665 = vld [vmem:[%s637 + $0x74] sm:$0xf]
        %v10666 = vld [vmem:[%s637 + $0x78] sm:$0xf]
        %v10667 = vld [vmem:[%s637 + $0x7c] sm:$0xf]
        %v10668 = vld [vmem:[%s637 + $0x80] sm:$0xf]
        %v10669 = vld [vmem:[%s637 + $0x84] sm:$0xf]
        %v10670 = vld [vmem:[%s637 + $0x88] sm:$0xf]
        %v10671 = vld [vmem:[%s637 + $0x8c] sm:$0xf]
        %v10672 = vld [vmem:[%s637 + $0x90] sm:$0xf]
        %v10673 = vld [vmem:[%s637 + $0x94] sm:$0xf]
        %v10674 = vld [vmem:[%s637 + $0x98] sm:$0xf]
        %v10675 = vld [vmem:[%s637 + $0x9c] sm:$0xf]
        %v10676 = vld [vmem:[%s637 + $0xa0] sm:$0xf]
        %v10677 = vld [vmem:[%s637 + $0xa4] sm:$0xf]
        %v10678 = vld [vmem:[%s637 + $0xa8] sm:$0xf]
        %v10679 = vld [vmem:[%s637 + $0xac] sm:$0xf]
        %v10680 = vld [vmem:[%s637 + $0xb0] sm:$0xf]
        %v10681 = vld [vmem:[%s637 + $0xb4] sm:$0xf]
        %v10682 = vld [vmem:[%s637 + $0xb8] sm:$0xf]
        %v10683 = vld [vmem:[%s637 + $0xbc] sm:$0xf]
        %v10684 = vld [vmem:[%s637 + $0xc0] sm:$0xf]
        %v10685 = vld [vmem:[%s637 + $0xc4] sm:$0xf]
        %v10686 = vld [vmem:[%s637 + $0xc8] sm:$0xf]
        %v10687 = vld [vmem:[%s637 + $0xcc] sm:$0xf]
        %v10688 = vld [vmem:[%s637 + $0xd0] sm:$0xf]
        %v10689 = vld [vmem:[%s637 + $0xd4] sm:$0xf]
        %v10690 = vld [vmem:[%s637 + $0xd8] sm:$0xf]
        %v10691 = vld [vmem:[%s637 + $0xdc] sm:$0xf]
        %v10692 = vld [vmem:[%s637 + $0xe0] sm:$0xf]
        %v10693 = vld [vmem:[%s637 + $0xe4] sm:$0xf]
        %v10694 = vld [vmem:[%s637 + $0xe8] sm:$0xf]
        %v10695 = vld [vmem:[%s637 + $0xec] sm:$0xf]
        %v10696 = vld [vmem:[%s637 + $0xf0] sm:$0xf]
        %v10697 = vld [vmem:[%s637 + $0xf4] sm:$0xf]
        %v10698 = vld [vmem:[%s637 + $0xf8] sm:$0xf]
        %v10699 = vld [vmem:[%s637 + $0xfc] sm:$0xf]
        %v10700 = vld [vmem:[%s637 + $0x100] sm:$0xf]
        %v10701 = vld [vmem:[%s637 + $0x104] sm:$0xf]
        %v10702 = vld [vmem:[%s637 + $0x108] sm:$0xf]
        %v10703 = vld [vmem:[%s637 + $0x10c] sm:$0xf]
        %v10704 = vld [vmem:[%s637 + $0x110] sm:$0xf]
        %v10705 = vld [vmem:[%s637 + $0x114] sm:$0xf]
        %v10706 = vld [vmem:[%s637 + $0x118] sm:$0xf]
        %v10707 = vld [vmem:[%s637 + $0x11c] sm:$0xf]
        %v10708 = vld [vmem:[%s637 + $0x120] sm:$0xf]
        %v10709 = vld [vmem:[%s637 + $0x124] sm:$0xf]
        %v10710 = vld [vmem:[%s637 + $0x128] sm:$0xf]
        %v10711 = vld [vmem:[%s637 + $0x12c] sm:$0xf]
        %v10712 = vld [vmem:[%s637 + $0x130] sm:$0xf]
        %v10713 = vld [vmem:[%s637 + $0x134] sm:$0xf]
        %v10714 = vld [vmem:[%s637 + $0x138] sm:$0xf]
        %v10715 = vld [vmem:[%s637 + $0x13c] sm:$0xf]
        %v10716 = vld [vmem:[%s637 + $0x140] sm:$0xf]
        %v10717 = vld [vmem:[%s637 + $0x144] sm:$0xf]
        %v10718 = vld [vmem:[%s637 + $0x148] sm:$0xf]
        %v10719 = vld [vmem:[%s637 + $0x14c] sm:$0xf]
        %v10720 = vld [vmem:[%s637 + $0x150] sm:$0xf]
        %v10721 = vld [vmem:[%s637 + $0x154] sm:$0xf]
        %v10722 = vld [vmem:[%s637 + $0x158] sm:$0xf]
        %v10723 = vld [vmem:[%s637 + $0x15c] sm:$0xf]
        %v10724 = vld [vmem:[%s637 + $0x160] sm:$0xf]
        %v10725 = vld [vmem:[%s637 + $0x164] sm:$0xf]
        %v10726 = vld [vmem:[%s637 + $0x168] sm:$0xf]
        %v10727 = vld [vmem:[%s637 + $0x16c] sm:$0xf]
        %v10728 = vld [vmem:[%s637 + $0x170] sm:$0xf]
        %v10729 = vld [vmem:[%s637 + $0x174] sm:$0xf]
        %v10730 = vld [vmem:[%s637 + $0x178] sm:$0xf]
        %v10731 = vld [vmem:[%s637 + $0x17c] sm:$0xf]
        %v10732 = vld [vmem:[%s637 + $0x180] sm:$0xf]
        %v10733 = vld [vmem:[%s637 + $0x184] sm:$0xf]
        %v10734 = vld [vmem:[%s637 + $0x188] sm:$0xf]
        %v10735 = vld [vmem:[%s637 + $0x18c] sm:$0xf]
        %v10736 = vld [vmem:[%s637 + $0x190] sm:$0xf]
        %v10737 = vld [vmem:[%s637 + $0x194] sm:$0xf]
        %v10738 = vld [vmem:[%s637 + $0x198] sm:$0xf]
        %v10739 = vld [vmem:[%s637 + $0x19c] sm:$0xf]
        %v10740 = vld [vmem:[%s637 + $0x1a0] sm:$0xf]
        %v10741 = vld [vmem:[%s637 + $0x1a4] sm:$0xf]
        %v10742 = vld [vmem:[%s637 + $0x1a8] sm:$0xf]
        %v10743 = vld [vmem:[%s637 + $0x1ac] sm:$0xf]
        %v10744 = vld [vmem:[%s637 + $0x1b0] sm:$0xf]
        %v10745 = vld [vmem:[%s637 + $0x1b4] sm:$0xf]
        %v10746 = vld [vmem:[%s637 + $0x1b8] sm:$0xf]
        %v10747 = vld [vmem:[%s637 + $0x1bc] sm:$0xf]
        %v10748 = vld [vmem:[%s637 + $0x1c0] sm:$0xf]
        %v10749 = vld [vmem:[%s637 + $0x1c4] sm:$0xf]
        %v10750 = vld [vmem:[%s637 + $0x1c8] sm:$0xf]
        %v10751 = vld [vmem:[%s637 + $0x1cc] sm:$0xf]
        %v10752 = vld [vmem:[%s637 + $0x1d0] sm:$0xf]
        %v10753 = vld [vmem:[%s637 + $0x1d4] sm:$0xf]
        %v10754 = vld [vmem:[%s637 + $0x1d8] sm:$0xf]
        %v10755 = vld [vmem:[%s637 + $0x1dc] sm:$0xf]
        %v10756 = vld [vmem:[%s637 + $0x1e0] sm:$0xf]
        %v10757 = vld [vmem:[%s637 + $0x1e4] sm:$0xf]
        %v10758 = vld [vmem:[%s637 + $0x1e8] sm:$0xf]
        %v10759 = vld [vmem:[%s637 + $0x1ec] sm:$0xf]
        %v10760 = vld [vmem:[%s637 + $0x1f0] sm:$0xf]
        %v10761 = vld [vmem:[%s637 + $0x1f4] sm:$0xf]
        %v10762 = vld [vmem:[%s637 + $0x1f8] sm:$0xf]
        %v10763 = vld [vmem:[%s637 + $0x1fc] sm:$0xf]
        %v10892 = vunpack.c.l.b16 %v10636
        %v10893 = vunpack.c.l.b16 %v10637
        %v10894 = vunpack.c.l.b16 %v10638
        %v10895 = vunpack.c.l.b16 %v10639
        %v10896 = vunpack.c.l.b16 %v10640
        %v10897 = vunpack.c.l.b16 %v10641
        %v10898 = vunpack.c.l.b16 %v10642
        %v10899 = vunpack.c.l.b16 %v10643
        %v10900 = vunpack.c.l.b16 %v10644
        %v10901 = vunpack.c.l.b16 %v10645
        %v10902 = vunpack.c.l.b16 %v10646
        %v10903 = vunpack.c.l.b16 %v10647
        %v10904 = vunpack.c.l.b16 %v10648
        %v10905 = vunpack.c.l.b16 %v10649
        %v10906 = vunpack.c.l.b16 %v10650
        %v10907 = vunpack.c.l.b16 %v10651
        %v10908 = vunpack.c.l.b16 %v10652
        %v10909 = vunpack.c.l.b16 %v10653
        %v10910 = vunpack.c.l.b16 %v10654
        %v10911 = vunpack.c.l.b16 %v10655
        %v10912 = vunpack.c.l.b16 %v10656
        %v10913 = vunpack.c.l.b16 %v10657
        %v10914 = vunpack.c.l.b16 %v10658
        %v10915 = vunpack.c.l.b16 %v10659
        %v10916 = vunpack.c.l.b16 %v10660
        %v10917 = vunpack.c.l.b16 %v10661
        %v10918 = vunpack.c.l.b16 %v10662
        %v10919 = vunpack.c.l.b16 %v10663
        %v10920 = vunpack.c.l.b16 %v10664
        %v10921 = vunpack.c.l.b16 %v10665
        %v10922 = vunpack.c.l.b16 %v10666
        %v10923 = vunpack.c.l.b16 %v10667
        %v10924 = vunpack.c.l.b16 %v10668
        %v10925 = vunpack.c.l.b16 %v10669
        %v10926 = vunpack.c.l.b16 %v10670
        %v10927 = vunpack.c.l.b16 %v10671
        %v10928 = vunpack.c.l.b16 %v10672
        %v10929 = vunpack.c.l.b16 %v10673
        %v10930 = vunpack.c.l.b16 %v10674
        %v10931 = vunpack.c.l.b16 %v10675
        %v10932 = vunpack.c.l.b16 %v10676
        %v10933 = vunpack.c.l.b16 %v10677
        %v10934 = vunpack.c.l.b16 %v10678
        %v10935 = vunpack.c.l.b16 %v10679
        %v10936 = vunpack.c.l.b16 %v10680
        %v10937 = vunpack.c.l.b16 %v10681
        %v10938 = vunpack.c.l.b16 %v10682
        %v10939 = vunpack.c.l.b16 %v10683
        %v10940 = vunpack.c.l.b16 %v10684
        %v10941 = vunpack.c.l.b16 %v10685
        %v10942 = vunpack.c.l.b16 %v10686
        %v10943 = vunpack.c.l.b16 %v10687
        %v10944 = vunpack.c.l.b16 %v10688
        %v10945 = vunpack.c.l.b16 %v10689
        %v10946 = vunpack.c.l.b16 %v10690
        %v10947 = vunpack.c.l.b16 %v10691
        %v10948 = vunpack.c.l.b16 %v10692
        %v10949 = vunpack.c.l.b16 %v10693
        %v10950 = vunpack.c.l.b16 %v10694
        %v10951 = vunpack.c.l.b16 %v10695
        %v10952 = vunpack.c.l.b16 %v10696
        %v10953 = vunpack.c.l.b16 %v10697
        %v10954 = vunpack.c.l.b16 %v10698
        %v10955 = vunpack.c.l.b16 %v10699
        %v10956 = vunpack.c.l.b16 %v10700
        %v10957 = vunpack.c.l.b16 %v10701
        %v10958 = vunpack.c.l.b16 %v10702
        %v10959 = vunpack.c.l.b16 %v10703
        %v10960 = vunpack.c.l.b16 %v10704
        %v10961 = vunpack.c.l.b16 %v10705
        %v10962 = vunpack.c.l.b16 %v10706
        %v10963 = vunpack.c.l.b16 %v10707
        %v10964 = vunpack.c.l.b16 %v10708
        %v10965 = vunpack.c.l.b16 %v10709
        %v10966 = vunpack.c.l.b16 %v10710
        %v10967 = vunpack.c.l.b16 %v10711
        %v10968 = vunpack.c.l.b16 %v10712
        %v10969 = vunpack.c.l.b16 %v10713
        %v10970 = vunpack.c.l.b16 %v10714
        %v10971 = vunpack.c.l.b16 %v10715
        %v10972 = vunpack.c.l.b16 %v10716
        %v10973 = vunpack.c.l.b16 %v10717
        %v10974 = vunpack.c.l.b16 %v10718
        %v10975 = vunpack.c.l.b16 %v10719
        %v10976 = vunpack.c.l.b16 %v10720
        %v10977 = vunpack.c.l.b16 %v10721
        %v10978 = vunpack.c.l.b16 %v10722
        %v10979 = vunpack.c.l.b16 %v10723
        %v10980 = vunpack.c.l.b16 %v10724
        %v10981 = vunpack.c.l.b16 %v10725
        %v10982 = vunpack.c.l.b16 %v10726
        %v10983 = vunpack.c.l.b16 %v10727
        %v10984 = vunpack.c.l.b16 %v10728
        %v10985 = vunpack.c.l.b16 %v10729
        %v10986 = vunpack.c.l.b16 %v10730
        %v10987 = vunpack.c.l.b16 %v10731
        %v10988 = vunpack.c.l.b16 %v10732
        %v10989 = vunpack.c.l.b16 %v10733
        %v10990 = vunpack.c.l.b16 %v10734
        %v10991 = vunpack.c.l.b16 %v10735
        %v10992 = vunpack.c.l.b16 %v10736
        %v10993 = vunpack.c.l.b16 %v10737
        %v10994 = vunpack.c.l.b16 %v10738
        %v10995 = vunpack.c.l.b16 %v10739
        %v10996 = vunpack.c.l.b16 %v10740
        %v10997 = vunpack.c.l.b16 %v10741
        %v10998 = vunpack.c.l.b16 %v10742
        %v10999 = vunpack.c.l.b16 %v10743
        %v11000 = vunpack.c.l.b16 %v10744
        %v11001 = vunpack.c.l.b16 %v10745
        %v11002 = vunpack.c.l.b16 %v10746
        %v11003 = vunpack.c.l.b16 %v10747
        %v11004 = vunpack.c.l.b16 %v10748
        %v11005 = vunpack.c.l.b16 %v10749
        %v11006 = vunpack.c.l.b16 %v10750
        %v11007 = vunpack.c.l.b16 %v10751
        %v11008 = vunpack.c.l.b16 %v10752
        %v11009 = vunpack.c.l.b16 %v10753
        %v11010 = vunpack.c.l.b16 %v10754
        %v11011 = vunpack.c.l.b16 %v10755
        %v11012 = vunpack.c.l.b16 %v10756
        %v11013 = vunpack.c.l.b16 %v10757
        %v11014 = vunpack.c.l.b16 %v10758
        %v11015 = vunpack.c.l.b16 %v10759
        %v11016 = vunpack.c.l.b16 %v10760
        %v11017 = vunpack.c.l.b16 %v10761
        %v11018 = vunpack.c.l.b16 %v10762
        %v11019 = vunpack.c.l.b16 %v10763
        %v11020 = vpack.c.b16 %v10893, %v10892
        %v11021 = vpack.c.b16 %v10895, %v10894
        %v11022 = vpack.c.b16 %v10897, %v10896
        %v11023 = vpack.c.b16 %v10899, %v10898
        %v11024 = vpack.c.b16 %v10901, %v10900
        %v11025 = vpack.c.b16 %v10903, %v10902
        %v11026 = vpack.c.b16 %v10905, %v10904
        %v11027 = vpack.c.b16 %v10907, %v10906
        %v11028 = vpack.c.b16 %v10909, %v10908
        %v11029 = vpack.c.b16 %v10911, %v10910
        %v11030 = vpack.c.b16 %v10913, %v10912
        %v11031 = vpack.c.b16 %v10915, %v10914
        %v11032 = vpack.c.b16 %v10917, %v10916
        %v11033 = vpack.c.b16 %v10919, %v10918
        %v11034 = vpack.c.b16 %v10921, %v10920
        %v11035 = vpack.c.b16 %v10923, %v10922
        %v11036 = vpack.c.b16 %v10925, %v10924
        %v11037 = vpack.c.b16 %v10927, %v10926
        %v11038 = vpack.c.b16 %v10929, %v10928
        %v11039 = vpack.c.b16 %v10931, %v10930
        %v11040 = vpack.c.b16 %v10933, %v10932
        %v11041 = vpack.c.b16 %v10935, %v10934
        %v11042 = vpack.c.b16 %v10937, %v10936
        %v11043 = vpack.c.b16 %v10939, %v10938
        %v11044 = vpack.c.b16 %v10941, %v10940
        %v11045 = vpack.c.b16 %v10943, %v10942
        %v11046 = vpack.c.b16 %v10945, %v10944
        %v11047 = vpack.c.b16 %v10947, %v10946
        %v11048 = vpack.c.b16 %v10949, %v10948
        %v11049 = vpack.c.b16 %v10951, %v10950
        %v11050 = vpack.c.b16 %v10953, %v10952
        %v11051 = vpack.c.b16 %v10955, %v10954
        %v11052 = vpack.c.b16 %v10957, %v10956
        %v11053 = vpack.c.b16 %v10959, %v10958
        %v11054 = vpack.c.b16 %v10961, %v10960
        %v11055 = vpack.c.b16 %v10963, %v10962
        %v11056 = vpack.c.b16 %v10965, %v10964
        %v11057 = vpack.c.b16 %v10967, %v10966
        %v11058 = vpack.c.b16 %v10969, %v10968
        %v11059 = vpack.c.b16 %v10971, %v10970
        %v11060 = vpack.c.b16 %v10973, %v10972
        %v11061 = vpack.c.b16 %v10975, %v10974
        %v11062 = vpack.c.b16 %v10977, %v10976
        %v11063 = vpack.c.b16 %v10979, %v10978
        %v11064 = vpack.c.b16 %v10981, %v10980
        %v11065 = vpack.c.b16 %v10983, %v10982
        %v11066 = vpack.c.b16 %v10985, %v10984
        %v11067 = vpack.c.b16 %v10987, %v10986
        %v11068 = vpack.c.b16 %v10989, %v10988
        %v11069 = vpack.c.b16 %v10991, %v10990
        %v11070 = vpack.c.b16 %v10993, %v10992
        %v11071 = vpack.c.b16 %v10995, %v10994
        %v11072 = vpack.c.b16 %v10997, %v10996
        %v11073 = vpack.c.b16 %v10999, %v10998
        %v11074 = vpack.c.b16 %v11001, %v11000
        %v11075 = vpack.c.b16 %v11003, %v11002
        %v11076 = vpack.c.b16 %v11005, %v11004
        %v11077 = vpack.c.b16 %v11007, %v11006
        %v11078 = vpack.c.b16 %v11009, %v11008
        %v11079 = vpack.c.b16 %v11011, %v11010
        %v11080 = vpack.c.b16 %v11013, %v11012
        %v11081 = vpack.c.b16 %v11015, %v11014
        %v11082 = vpack.c.b16 %v11017, %v11016
        %v11083 = vpack.c.b16 %v11019, %v11018
        %11148 = vmatprep.subr.bf16.mxu0 0
        %11149 = vmatpush1.bf16.msra.mxu0 %v11027
        %11150 = vmatprep.subr.bf16.mxu0 0
        %11151 = vmatpush1.bf16.msra.mxu0 %v11026
        %11152 = vmatprep.subr.bf16.mxu0 0
        %11153 = vmatpush1.bf16.msra.mxu0 %v11025
        %11154 = vmatprep.subr.bf16.mxu0 0
        %11155 = vmatpush1.bf16.msra.mxu0 %v11024
        %11156 = vmatprep.subr.bf16.mxu0 0
        %11157 = vmatpush1.bf16.msra.mxu0 %v11023
        %11158 = vmatprep.subr.bf16.mxu0 0
        %11159 = vmatpush1.bf16.msra.mxu0 %v11022
        %11160 = vmatprep.subr.bf16.mxu0 0
        %11161 = vmatpush1.bf16.msra.mxu0 %v11021
        %11162 = vmatprep.subr.bf16.mxu0 0
        %11163 = vmatpush1.bf16.msra.mxu0 %v11020
        %11164 = vmatprep.subr.bf16.mxu0 0
        %11165 = vmatpush2.bf16.msra.mxu0 %v11035
        %11166 = vmatprep.subr.bf16.mxu0 0
        %11167 = vmatpush2.bf16.msra.mxu0 %v11034
        %11168 = vmatprep.subr.bf16.mxu0 0
        %11169 = vmatpush2.bf16.msra.mxu0 %v11033
        %11170 = vmatprep.subr.bf16.mxu0 0
        %11171 = vmatpush2.bf16.msra.mxu0 %v11032
        %11172 = vmatprep.subr.bf16.mxu0 0
        %11173 = vmatpush2.bf16.msra.mxu0 %v11031
        %11174 = vmatprep.subr.bf16.mxu0 0
        %11175 = vmatpush2.bf16.msra.mxu0 %v11030
        %11176 = vmatprep.subr.bf16.mxu0 0
        %11177 = vmatpush2.bf16.msra.mxu0 %v11029
        %11178 = vmatprep.subr.bf16.mxu0 0
        %11179 = vmatpush2.bf16.msra.mxu0 %v11028
        %11180 = vmatprep.mubr.bf16.mxu0 %v10629
        %11181 = vmatmul.mubr.bf16.gmra.mxu0 %v10628
        %v11182 = vpop.f32.mrf.mxu0
        %v11183 = vadd.f32 0.0, %v11182
        %v11184 = vpop.f32.mrf.mxu0
        %v11185 = vpop.f32.mrf.mxu0
        %v11186 = vpop.f32.mrf.mxu0
        %11187 = vdwg.mxu0
        %11188 = vmatprep.subr.bf16.mxu0 0
        %11189 = vmatpush1.bf16.msra.mxu0 %v11043
        %11190 = vmatprep.subr.bf16.mxu0 0
        %11191 = vmatpush1.bf16.msra.mxu0 %v11042
        %11192 = vmatprep.subr.bf16.mxu0 0
        %11193 = vmatpush1.bf16.msra.mxu0 %v11041
        %11194 = vmatprep.subr.bf16.mxu0 0
        %11195 = vmatpush1.bf16.msra.mxu0 %v11040
        %11196 = vmatprep.subr.bf16.mxu0 0
        %11197 = vmatpush1.bf16.msra.mxu0 %v11039
        %11198 = vmatprep.subr.bf16.mxu0 0
        %11199 = vmatpush1.bf16.msra.mxu0 %v11038
        %11200 = vmatprep.subr.bf16.mxu0 0
        %11201 = vmatpush1.bf16.msra.mxu0 %v11037
        %11202 = vmatprep.subr.bf16.mxu0 0
        %11203 = vmatpush1.bf16.msra.mxu0 %v11036
        %11204 = vmatprep.subr.bf16.mxu0 0
        %11205 = vmatpush2.bf16.msra.mxu0 %v11051
        %11206 = vmatprep.subr.bf16.mxu0 0
        %11207 = vmatpush2.bf16.msra.mxu0 %v11050
        %11208 = vmatprep.subr.bf16.mxu0 0
        %11209 = vmatpush2.bf16.msra.mxu0 %v11049
        %11210 = vmatprep.subr.bf16.mxu0 0
        %11211 = vmatpush2.bf16.msra.mxu0 %v11048
        %11212 = vmatprep.subr.bf16.mxu0 0
        %11213 = vmatpush2.bf16.msra.mxu0 %v11047
        %11214 = vmatprep.subr.bf16.mxu0 0
        %11215 = vmatpush2.bf16.msra.mxu0 %v11046
        %11216 = vmatprep.subr.bf16.mxu0 0
        %11217 = vmatpush2.bf16.msra.mxu0 %v11045
        %11218 = vmatprep.subr.bf16.mxu0 0
        %11219 = vmatpush2.bf16.msra.mxu0 %v11044
        %11220 = vmatprep.mubr.bf16.mxu0 %v10631
        %11221 = vmatmul.mubr.bf16.gmra.mxu0 %v10630
        %v11222 = vpop.f32.mrf.mxu0
        %v11223 = vadd.f32 %v11183, %v11222
        %v11224 = vpop.f32.mrf.mxu0
        %v11225 = vpop.f32.mrf.mxu0
        %v11226 = vpop.f32.mrf.mxu0
        %11227 = vdwg.mxu0
        %11228 = vmatprep.subr.bf16.mxu0 0
        %11229 = vmatpush1.bf16.msra.mxu0 %v11059
        %11230 = vmatprep.subr.bf16.mxu0 0
        %11231 = vmatpush1.bf16.msra.mxu0 %v11058
        %11232 = vmatprep.subr.bf16.mxu0 0
        %11233 = vmatpush1.bf16.msra.mxu0 %v11057
        %11234 = vmatprep.subr.bf16.mxu0 0
        %11235 = vmatpush1.bf16.msra.mxu0 %v11056
        %11236 = vmatprep.subr.bf16.mxu0 0
        %11237 = vmatpush1.bf16.msra.mxu0 %v11055
        %11238 = vmatprep.subr.bf16.mxu0 0
        %11239 = vmatpush1.bf16.msra.mxu0 %v11054
        %11240 = vmatprep.subr.bf16.mxu0 0
        %11241 = vmatpush1.bf16.msra.mxu0 %v11053
        %11242 = vmatprep.subr.bf16.mxu0 0
        %11243 = vmatpush1.bf16.msra.mxu0 %v11052
        %11244 = vmatprep.subr.bf16.mxu0 0
        %11245 = vmatpush2.bf16.msra.mxu0 %v11067
        %11246 = vmatprep.subr.bf16.mxu0 0
        %11247 = vmatpush2.bf16.msra.mxu0 %v11066
        %11248 = vmatprep.subr.bf16.mxu0 0
        %11249 = vmatpush2.bf16.msra.mxu0 %v11065
        %11250 = vmatprep.subr.bf16.mxu0 0
        %11251 = vmatpush2.bf16.msra.mxu0 %v11064
        %11252 = vmatprep.subr.bf16.mxu0 0
        %11253 = vmatpush2.bf16.msra.mxu0 %v11063
        %11254 = vmatprep.subr.bf16.mxu0 0
        %11255 = vmatpush2.bf16.msra.mxu0 %v11062
        %11256 = vmatprep.subr.bf16.mxu0 0
        %11257 = vmatpush2.bf16.msra.mxu0 %v11061
        %11258 = vmatprep.subr.bf16.mxu0 0
        %11259 = vmatpush2.bf16.msra.mxu0 %v11060
        %11260 = vmatprep.mubr.bf16.mxu0 %v10633
        %11261 = vmatmul.mubr.bf16.gmra.mxu0 %v10632
        %v11262 = vpop.f32.mrf.mxu0
        %v11263 = vadd.f32 %v11223, %v11262
        %v11264 = vpop.f32.mrf.mxu0
        %v11265 = vpop.f32.mrf.mxu0
        %v11266 = vpop.f32.mrf.mxu0
        %11267 = vdwg.mxu0
        %11268 = vmatprep.subr.bf16.mxu0 0
        %11269 = vmatpush1.bf16.msra.mxu0 %v11075
        %11270 = vmatprep.subr.bf16.mxu0 0
        %11271 = vmatpush1.bf16.msra.mxu0 %v11074
        %11272 = vmatprep.subr.bf16.mxu0 0
        %11273 = vmatpush1.bf16.msra.mxu0 %v11073
        %11274 = vmatprep.subr.bf16.mxu0 0
        %11275 = vmatpush1.bf16.msra.mxu0 %v11072
        %11276 = vmatprep.subr.bf16.mxu0 0
        %11277 = vmatpush1.bf16.msra.mxu0 %v11071
        %11278 = vmatprep.subr.bf16.mxu0 0
        %11279 = vmatpush1.bf16.msra.mxu0 %v11070
        %11280 = vmatprep.subr.bf16.mxu0 0
        %11281 = vmatpush1.bf16.msra.mxu0 %v11069
        %11282 = vmatprep.subr.bf16.mxu0 0
        %11283 = vmatpush1.bf16.msra.mxu0 %v11068
        %11284 = vmatprep.subr.bf16.mxu0 0
        %11285 = vmatpush2.bf16.msra.mxu0 %v11083
        %11286 = vmatprep.subr.bf16.mxu0 0
        %11287 = vmatpush2.bf16.msra.mxu0 %v11082
        %11288 = vmatprep.subr.bf16.mxu0 0
        %11289 = vmatpush2.bf16.msra.mxu0 %v11081
        %11290 = vmatprep.subr.bf16.mxu0 0
        %11291 = vmatpush2.bf16.msra.mxu0 %v11080
        %11292 = vmatprep.subr.bf16.mxu0 0
        %11293 = vmatpush2.bf16.msra.mxu0 %v11079
        %11294 = vmatprep.subr.bf16.mxu0 0
        %11295 = vmatpush2.bf16.msra.mxu0 %v11078
        %11296 = vmatprep.subr.bf16.mxu0 0
        %11297 = vmatpush2.bf16.msra.mxu0 %v11077
        %11298 = vmatprep.subr.bf16.mxu0 0
        %11299 = vmatpush2.bf16.msra.mxu0 %v11076
        %11300 = vmatprep.mubr.bf16.mxu0 %v10635
        %11301 = vmatmul.mubr.bf16.gmra.mxu0 %v10634
        %v11302 = vpop.f32.mrf.mxu0
        %v11303 = vadd.f32 %v11263, %v11302
        %v11304 = vpop.f32.mrf.mxu0
        %v11305 = vpop.f32.mrf.mxu0
        %v11306 = vpop.f32.mrf.mxu0
        %11307 = vdwg.mxu0
        %v11308 = vadd.f32 %v10627, %v11303
        %11309 = vst [vmem:[#allocation4] sm:$0xff] %v11308
        %p11310 = scmp.eq.s32.totalorder %s38, 1
        // Predicated region
        $region129: #{tpu_custom_call.1} parent=71 // pred_check
          %p11311 = pneg %p11310
        $region130: #{tpu_custom_call.1} parent=71 // pred_check_branch
          %11313 = sbr.rel (%p11311) target = $region132
        $region131: #{tpu_custom_call.1} parent=71 // pred_region
          %v11314 = vld [vmem:[#allocation4] sm:$0xff]
          %v11315 = vld [vmem:[#allocation25] sm:$0x1]
          %v11317 = vlaneseq
          %v11318 = vshrl.u32 %v11317, 7
          %v11319 = vsub.s32 0, %v11318
          %v11320 = vrot.slane %v11315, %v11319
          %v11322 = vadd.f32 %v11314, %v11320
          %v11323 = vld [vmem:[#allocation2] sm:$0xff]
          %v11324 = vmul.f32 %v11322, %v11322
          %11325 = vadd.xlane.f32.xlu0 %v11324
          %v11326 = vpop.xlane.xlu0 %11325
          %v11327 = vmax.f32 %v11326, 1e-24
          %v11328 = vmul.f32 %v11323, %v11323
          %11329 = vadd.xlane.f32.xlu0 %v11328
          %v11330 = vpop.xlane.xlu0 %11329
          %v11331 = vmax.f32 %v11330, 1e-24
          %v11332 = vmul.f32 %v11322, %v11323
          %11333 = vadd.xlane.f32.xlu0 %v11332
          %v11334 = vpop.xlane.xlu0 %11333
          %v11335 = vrsqrt.pop %v11327
          %v11336 = vmul.f32 %v11334, %v11335
          %v11337 = vrsqrt.pop %v11331
          %v11338 = vmul.f32 %v11336, %v11337
          %v11339 = vmul.f32 %v11338, 2.0
          %v11340 = vsub.f32 2.0, %v11339
          %vm11341 = vcmask 7168
          %v11342 = vsel %vm11341, %v11340, 0.0
          %11343 = vadd.xlane.f32.xlu0 %v11342
          %v11344 = vpop.xlane.xlu0 %11343
          %v11345 = vrot.slane %v11344, 4
          %v11346 = vadd.f32 %v11344, %v11345
          %v11347 = vrot.slane %v11346, 2
          %v11348 = vadd.f32 %v11346, %v11347
          %v11349 = vrot.slane %v11348, 1
          %v11350 = vadd.f32 %v11348, %v11349
          %s11351 = vtos %v11350
          %v11352 = vrcp.pop 8.0
          %s11353 = vtos %v11352
          %s11354 = smul.f32 %s11351, %s11353
          %s11355 = scalar_lea.smem [#allocation26], 0
          %11356 = sst [smem:[%s11355]] %s11354
        $region132: #{tpu_custom_call.1} parent=71 // pred_fallthru
          _
        // Predicated region
        $region133: #{tpu_custom_call.1} parent=71 // pred_check
          %p11357 = pneg %p349
        $region134: #{tpu_custom_call.1} parent=71 // pred_check_branch
          %11359 = sbr.rel (%p11357) target = $region136
        $region135: #{tpu_custom_call.1} parent=71 // pred_region
          %s11361 = ssub.s32 16, 16
          %11362 = vsyncadd [#allocation7], %s11361
          %11365 = dma.smem_to_hbm [#allocation26], 16, %s13, [#allocation7]
        $region136: #{tpu_custom_call.1} parent=71 // pred_fallthru
          _
        // Predicated region
        $region137: #{tpu_custom_call.1} parent=71 // pred_check
          %p11366 = pneg %p349
        $region138: #{tpu_custom_call.1} parent=71 // pred_check_branch
          %11368 = sbr.rel (%p11366) target = $region140
        $region139: #{tpu_custom_call.1} parent=71 // pred_region
          %11369 = dma.done [#allocation7], 16
        $region140: #{tpu_custom_call.1} parent=71 // pred_fallthru
          _
        %11370 = sfence
      $region72: #{tpu_custom_call.1} parent=5 // pred_fallthru
        _
      %p11371 = scmp.le.s32.totalorder 2, %s33
      // Predicated region
      $region141: #{tpu_custom_call.1} parent=5 // pred_check
        %p11372 = pneg %p11371
      $region142: #{tpu_custom_call.1} parent=5 // pred_check_branch
        %11374 = sbr.rel (%p11372) target = $region144
      $region143: #{tpu_custom_call.1} parent=5 // pred_region
        %s11375 = ssub.s32 %s33, 2
      $region144: #{tpu_custom_call.1} parent=5 // pred_fallthru
        _
    $region6: #{tpu_custom_call.1} parent=1 // loop_footer
      %s37 = sadd.s32 1, %s33
    $region7: #{tpu_custom_call.1} parent=1 // loop_footer_branch
      %32 = sbr.rel target = $region3
    $region8: #{tpu_custom_call.1} parent=1 // loop_exit
      _
    %11376 = vsyncpa [#allocation6], 1
    %s11377 = scalar_lea.sflag [#allocation6], 1
    %11378 = vsyncpa %s11377, 1
    %11379 = vsyncpa [#allocation9], 1
    %11380 = vsyncpa [#allocation12], 1
    %11381 = vsyncpa [#allocation15], 1
    %11382 = vsyncpa [#allocation18], 1
    %s11383 = scalar_lea.sflag [#allocation18], 1
    %11384 = vsyncpa %s11383, 1
    %11385 = vsyncpa [#allocation21], 1
    %s11386 = scalar_lea.sflag [#allocation21], 1
    %11387 = vsyncpa %s11386, 1
    %11388 = vsyncpa [#allocation24], 1
    %s11389 = scalar_lea.sflag [#allocation24], 1
    %11390 = vsyncpa %s11389, 1
    %11391 = vsyncpa [#allocation7], 1
    %s11392 = scalar_lea.sflag [#allocation7], 1
    %11393 = vsyncpa %s11392, 1

</llo_original>
